<compile_context>
chip_gen: v7x
topology: tpu7x:2x2x1
jax: 0.10.0
libtpu: 0.0.40
codegen_flags: <defaults>
</compile_context>

<pallas_src>
import math
import numpy as np
import jax
import jax.numpy as jnp
from jax import lax
from jax.experimental import pallas as pl
from jax.experimental.pallas import tpu as pltpu

# ----------------------------- config (small, consistent with the module) ---
N_USERS  = 8            # len(usr_used)
HIDDEN   = 64           # args.hidden_dim
N_HIDDEN = 3            # args.n_hidden -> (N_HIDDEN - 1) extra [LeakyReLU, Linear] blocks
N_EXTRA  = N_HIDDEN - 1
N_CLASS  = 8
IMG_FEAT = 576          # mobilenet_v3_small: flatten(avgpool(features(img))) -> 576
L1_OUT   = 1024
BATCH    = 2
TILE     = 16384        # lane-dense output-column tile for the head GEMV

# (name, flat_size, .view(...) shape) in concatenation order, as in the PyTorch forward
SEGMENTS = [
    ("l1_weight", L1_OUT * IMG_FEAT, (L1_OUT, IMG_FEAT)),
    ("l1_bias",   L1_OUT,            (L1_OUT,)),
    ("l2_weight", N_CLASS * L1_OUT,  (N_CLASS, L1_OUT)),
    ("l2_bias",   N_CLASS,           (N_CLASS,)),
]
TOTAL_OUT = sum(s for _, s, _ in SEGMENTS)           # 599048
N_TILES   = (TOTAL_OUT + TILE - 1) // TILE           # 37
OUT_PAD   = N_TILES * TILE


# ----------------------------- Pallas kernels -------------------------------

def hyper_heads_kernel(ray_ref, w0_ref, b0_ref, wh_ref, bh_ref,
                       wcat_ref, bcat_ref, out_ref):
    """Fused self.mlp + one lane-dense tile of the concatenated hypernet heads."""
    # self.mlp (tiny; recomputed per tile, fully hidden under the 2 MiB weight DMA)
    h = jnp.dot(ray_ref[...], w0_ref[...],
                preferred_element_type=jnp.float32) + b0_ref[...]
    for i in range(N_EXTRA):                       # static unroll
        h = jnp.where(h > 0.0, h, 0.2 * h)         # LeakyReLU(0.2)
        h = jnp.dot(h, wh_ref[i],
                    preferred_element_type=jnp.float32) + bh_ref[i]
    # bandwidth-bound GEMV tile: bf16-stored weights, f32 math/accumulation
    w = wcat_ref[...].astype(jnp.float32)
    out_ref[...] = jnp.dot(h, w, preferred_element_type=jnp.float32) + bcat_ref[...]


def classifier_kernel(x_ref, w1_ref, b1_ref, w2_ref, b2_ref, out_ref):
    """x = F.linear(x, l1_w, l1_b); x = F.linear(x, l2_w, l2_b)  (PyTorch (out,in) layout)."""
    h = lax.dot_general(x_ref[...], w1_ref[...], (((1,), (1,)), ((), ())),
                        preferred_element_type=jnp.float32) + b1_ref[...]
    out_ref[...] = lax.dot_general(h, w2_ref[...], (((1,), (1,)), ((), ())),
                                   preferred_element_type=jnp.float32) + b2_ref[...]


def run_heads(params):
    w_bytes = HIDDEN * OUT_PAD * 2                 # bf16 weight stream (dominant)
    cost = pl.CostEstimate(flops=2 * HIDDEN * OUT_PAD,
                           transcendentals=0,
                           bytes_accessed=w_bytes + 2 * OUT_PAD * 4)
    return pl.pallas_call(
        hyper_heads_kernel,
        out_shape=jax.ShapeDtypeStruct((1, OUT_PAD), jnp.float32),
        grid=(N_TILES,),
        in_specs=[
            pl.BlockSpec((1, N_USERS), lambda j: (0, 0)),
            pl.BlockSpec((N_USERS, HIDDEN), lambda j: (0, 0)),
            pl.BlockSpec((1, HIDDEN), lambda j: (0, 0)),
            pl.BlockSpec((N_EXTRA, HIDDEN, HIDDEN), lambda j: (0, 0, 0)),
            pl.BlockSpec((N_EXTRA, 1, HIDDEN), lambda j: (0, 0, 0)),
            pl.BlockSpec((HIDDEN, TILE), lambda j: (0, j)),
            pl.BlockSpec((1, TILE), lambda j: (0, j)),
        ],
        out_specs=pl.BlockSpec((1, TILE), lambda j: (0, j)),
        compiler_params=pltpu.CompilerParams(dimension_semantics=("parallel",)),
        cost_estimate=cost,
    )(params["input_ray"], params["w0_t"], params["b0"],
      params["wh_t"], params["bh"], params["w_cat"], params["b_cat"])


def run_classifier(x_img, l1_w, l1_b, l2_w, l2_b):
    return pl.pallas_call(
        classifier_kernel,
        out_shape=jax.ShapeDtypeStruct((BATCH, N_CLASS), jnp.float32),
    )(x_img, l1_w, l1_b[None, :], l2_w, l2_b[None, :])


# ----------------------------- parameter setup ------------------------------

def init_params(seed=0):
    key = jax.random.PRNGKey(seed)
    ks = iter(jax.random.split(key, 32))

    def nrm(k, shape, scale):
        return scale * jax.random.normal(k, shape, dtype=jnp.float32)

    p = {}
    # self.input_ray default: 1/len(usr_used) everywhere
    p["input_ray"] = jnp.full((1, N_USERS), 1.0 / N_USERS, dtype=jnp.float32)
    # self.mlp — stored pre-transposed (in, out) once, so forward does x @ W directly.
    # (args.spec_norm=False here: spectral_norm at forward time is just a normalized Linear.)
    p["w0_t"] = nrm(next(ks), (N_USERS, HIDDEN), 1.0 / math.sqrt(N_USERS))
    p["b0"]   = nrm(next(ks), (1, HIDDEN), 0.01)
    p["wh_t"] = jnp.stack([nrm(next(ks), (HIDDEN, HIDDEN), 1.0 / math.sqrt(HIDDEN))
                           for _ in range(N_EXTRA)])
    p["bh"]   = jnp.stack([nrm(next(ks), (1, HIDDEN), 0.01) for _ in range(N_EXTRA)])
    # l1_weights / l1_bias / l2_weights / l2_bias concatenated column-wise into
    # one (HIDDEN, TOTAL_OUT) matrix; stored bf16 (memory-bound stream), bias f32.
    w_cols, b_cols = [], []
    for _, flat, _ in SEGMENTS:
        w_cols.append(nrm(next(ks), (HIDDEN, flat), 1.0 / math.sqrt(HIDDEN)))
        b_cols.append(nrm(next(ks), (flat,), 0.01))
    w_cat = jnp.concatenate(w_cols, axis=1)
    b_cat = jnp.concatenate(b_cols, axis=0)[None, :]
    pad = OUT_PAD - TOTAL_OUT
    p["w_cat"] = jnp.pad(w_cat, ((0, 0), (0, pad))).astype(jnp.bfloat16)
    p["b_cat"] = jnp.pad(b_cat, ((0, 0), (0, pad)))
    return p


# ------------------------------- forward ------------------------------------

def skin_model_forward(x_img, params):
    # TODO(synk): pretrained mobilenet_v3_small backbone (encoder.features + avgpool +
    # flatten) has no self-contained Pallas equivalent; x_img is the flattened
    # (BATCH, 576) pooled feature it would produce.
    flat = run_heads(params)[0]                      # (OUT_PAD,) f32
    gen, off = {}, 0
    for name, size, shape in SEGMENTS:               # same .view() calls as PyTorch
        gen[name] = flat[off:off + size].reshape(shape)
        off += size
    logits = run_classifier(x_img, gen["l1_weight"], gen["l1_bias"],
                            gen["l2_weight"], gen["l2_bias"])
    return logits, gen


def reference(x_img, params):
    h = params["input_ray"] @ params["w0_t"] + params["b0"]
    for i in range(N_EXTRA):
        h = jnp.where(h > 0.0, h, 0.2 * h)
        h = h @ params["wh_t"][i] + params["bh"][i]
    flat = (h @ params["w_cat"].astype(jnp.float32) + params["b_cat"])[0]
    gen, off = {}, 0
    for name, size, shape in SEGMENTS:
        gen[name] = flat[off:off + size].reshape(shape)
        off += size
    y = x_img @ gen["l1_weight"].T + gen["l1_bias"]
    y = y @ gen["l2_weight"].T + gen["l2_bias"]
    return y, gen


# --------------------------------- main --------------------------------------

if __name__ == "__main__":
    params = init_params(seed=0)
    # stand-in for flatten(avgpool(mobilenet.features(img))) — see TODO above
    x_img = jax.random.normal(jax.random.PRNGKey(0), (BATCH, IMG_FEAT),
                              dtype=jnp.float32)

    logits, gen = skin_model_forward(x_img, params)
    jax.block_until_ready(logits)

    logits_ref, gen_ref = reference(x_img, params)

    # generated hypernetwork weights: check shape (matches the .view calls) and values
    for name, _, shape in SEGMENTS:
        assert tuple(gen[name].shape) == tuple(shape), (name, gen[name].shape)
        np.testing.assert_allclose(np.asarray(gen[name]), np.asarray(gen_ref[name]),
                                   rtol=2e-2, atol=5e-3)
    # final classifier output (tolerance covers MXU default-precision differences)
    np.testing.assert_allclose(np.asarray(logits), np.asarray(logits_ref),
                               rtol=2e-2, atol=1.0)

    print("KERNEL_OK")
</pallas_src>

<mosaic_0001>
module attributes {stable_mosaic.version = 11 : i64} {
  func.func @hyper_heads_kernel(%arg0: i32, %arg1: memref<1x8xf32, #tpu.memory_space<vmem>>, %arg2: memref<8x64xf32, #tpu.memory_space<vmem>>, %arg3: memref<1x64xf32, #tpu.memory_space<vmem>>, %arg4: memref<2x64x64xf32, #tpu.memory_space<vmem>>, %arg5: memref<2x1x64xf32, #tpu.memory_space<vmem>>, %arg6: memref<64x16384xbf16, #tpu.memory_space<vmem>>, %arg7: memref<1x16384xf32, #tpu.memory_space<vmem>>, %arg8: memref<1x16384xf32, #tpu.memory_space<vmem>>) attributes {dimension_semantics = [#tpu.dimension_semantics<parallel>], iteration_bounds = array<i64: 37>, scalar_prefetch = 0 : i64, scratch_operands = 0 : i64, tpu.core_type = #tpu.core_type<tc>, window_params = [{pipeline_mode = #tpu.pipeline_mode<synchronous>, transform_indices = @transform_0, window_bounds = array<i64: 1, 8>}, {pipeline_mode = #tpu.pipeline_mode<synchronous>, transform_indices = @transform_1, window_bounds = array<i64: 8, 64>}, {pipeline_mode = #tpu.pipeline_mode<synchronous>, transform_indices = @transform_2, window_bounds = array<i64: 1, 64>}, {pipeline_mode = #tpu.pipeline_mode<synchronous>, transform_indices = @transform_3, window_bounds = array<i64: 2, 64, 64>}, {pipeline_mode = #tpu.pipeline_mode<synchronous>, transform_indices = @transform_4, window_bounds = array<i64: 2, 1, 64>}, {transform_indices = @transform_5, window_bounds = array<i64: 64, 16384>}, {transform_indices = @transform_6, window_bounds = array<i64: 1, 16384>}, {transform_indices = @transform_7, window_bounds = array<i64: 1, 16384>}]} {
    %c0 = arith.constant 0 : index
    %c0_0 = arith.constant 0 : index
    %0 = vector.load %arg1[%c0, %c0_0] : memref<1x8xf32, #tpu.memory_space<vmem>>, vector<1x8xf32>
    %c0_1 = arith.constant 0 : index
    %c0_2 = arith.constant 0 : index
    %1 = vector.load %arg2[%c0_1, %c0_2] : memref<8x64xf32, #tpu.memory_space<vmem>>, vector<8x64xf32>
    %cst = arith.constant dense<0.000000e+00> : vector<1x64xf32>
    %2 = tpu.matmul %0, %1, %cst {dimension_numbers = #tpu.dot_dimension_numbers<[1], [0], [0], [1], [0, 0, 1, 1], [], []>} : vector<1x8xf32>, vector<8x64xf32>, vector<1x64xf32> -> vector<1x64xf32>
    %c0_3 = arith.constant 0 : index
    %c0_4 = arith.constant 0 : index
    %3 = vector.load %arg3[%c0_3, %c0_4] : memref<1x64xf32, #tpu.memory_space<vmem>>, vector<1x64xf32>
    %4 = arith.addf %2, %3 : vector<1x64xf32>
    %cst_5 = arith.constant 0.000000e+00 : f32
    %5 = vector.broadcast %cst_5 : f32 to vector<1x64xf32>
    %6 = arith.cmpf ogt, %4, %5 : vector<1x64xf32>
    %cst_6 = arith.constant 2.000000e-01 : f32
    %7 = vector.broadcast %cst_6 : f32 to vector<1x64xf32>
    %8 = arith.mulf %7, %4 : vector<1x64xf32>
    %9 = arith.select %6, %4, %8 : vector<1x64xi1>, vector<1x64xf32>
    %c0_7 = arith.constant 0 : index
    %c0_8 = arith.constant 0 : index
    %c0_9 = arith.constant 0 : index
    %10 = vector.load %arg4[%c0_7, %c0_8, %c0_9] : memref<2x64x64xf32, #tpu.memory_space<vmem>>, vector<1x64x64xf32>
    %11 = vector.shape_cast %10 : vector<1x64x64xf32> to vector<64x64xf32>
    %cst_10 = arith.constant dense<0.000000e+00> : vector<1x64xf32>
    %12 = tpu.matmul %9, %11, %cst_10 {dimension_numbers = #tpu.dot_dimension_numbers<[1], [0], [0], [1], [0, 0, 1, 1], [], []>} : vector<1x64xf32>, vector<64x64xf32>, vector<1x64xf32> -> vector<1x64xf32>
    %c0_11 = arith.constant 0 : index
    %c0_12 = arith.constant 0 : index
    %c0_13 = arith.constant 0 : index
    %13 = vector.load %arg5[%c0_11, %c0_12, %c0_13] : memref<2x1x64xf32, #tpu.memory_space<vmem>>, vector<1x1x64xf32>
    %14 = vector.shape_cast %13 : vector<1x1x64xf32> to vector<1x64xf32>
    %15 = arith.addf %12, %14 : vector<1x64xf32>
    %cst_14 = arith.constant 0.000000e+00 : f32
    %16 = vector.broadcast %cst_14 : f32 to vector<1x64xf32>
    %17 = arith.cmpf ogt, %15, %16 : vector<1x64xf32>
    %cst_15 = arith.constant 2.000000e-01 : f32
    %18 = vector.broadcast %cst_15 : f32 to vector<1x64xf32>
    %19 = arith.mulf %18, %15 : vector<1x64xf32>
    %20 = arith.select %17, %15, %19 : vector<1x64xi1>, vector<1x64xf32>
    %c1 = arith.constant 1 : index
    %c0_16 = arith.constant 0 : index
    %c0_17 = arith.constant 0 : index
    %21 = vector.load %arg4[%c1, %c0_16, %c0_17] : memref<2x64x64xf32, #tpu.memory_space<vmem>>, vector<1x64x64xf32>
    %22 = vector.shape_cast %21 : vector<1x64x64xf32> to vector<64x64xf32>
    %cst_18 = arith.constant dense<0.000000e+00> : vector<1x64xf32>
    %23 = tpu.matmul %20, %22, %cst_18 {dimension_numbers = #tpu.dot_dimension_numbers<[1], [0], [0], [1], [0, 0, 1, 1], [], []>} : vector<1x64xf32>, vector<64x64xf32>, vector<1x64xf32> -> vector<1x64xf32>
    %c1_19 = arith.constant 1 : index
    %c0_20 = arith.constant 0 : index
    %c0_21 = arith.constant 0 : index
    %24 = vector.load %arg5[%c1_19, %c0_20, %c0_21] : memref<2x1x64xf32, #tpu.memory_space<vmem>>, vector<1x1x64xf32>
    %25 = vector.shape_cast %24 : vector<1x1x64xf32> to vector<1x64xf32>
    %26 = arith.addf %23, %25 : vector<1x64xf32>
    %c0_22 = arith.constant 0 : index
    %c0_23 = arith.constant 0 : index
    %27 = vector.load %arg6[%c0_22, %c0_23] : memref<64x16384xbf16, #tpu.memory_space<vmem>>, vector<64x16384xbf16>
    %28 = arith.extf %27 : vector<64x16384xbf16> to vector<64x16384xf32>
    %cst_24 = arith.constant dense<0.000000e+00> : vector<1x16384xf32>
    %29 = tpu.matmul %26, %28, %cst_24 {dimension_numbers = #tpu.dot_dimension_numbers<[1], [0], [0], [1], [0, 0, 1, 1], [], []>} : vector<1x64xf32>, vector<64x16384xf32>, vector<1x16384xf32> -> vector<1x16384xf32>
    %c0_25 = arith.constant 0 : index
    %c0_26 = arith.constant 0 : index
    %30 = vector.load %arg7[%c0_25, %c0_26] : memref<1x16384xf32, #tpu.memory_space<vmem>>, vector<1x16384xf32>
    %31 = arith.addf %29, %30 : vector<1x16384xf32>
    %c0_27 = arith.constant 0 : index
    %c0_28 = arith.constant 0 : index
    %32 = vector.load %arg8[%c0_27, %c0_28] : memref<1x16384xf32, #tpu.memory_space<vmem>>, vector<1x16384xf32>
    tpu.vector_store %arg8[%c0_27, %c0_28], %31 {strides = array<i32>} : memref<1x16384xf32, #tpu.memory_space<vmem>>, vector<1x16384xf32>,
    return
  }
  func.func @transform_0(%arg0: i32) -> (i32, i32) {
    %c0_i32 = arith.constant 0 : i32
    %c0_i32_0 = arith.constant 0 : i32
    %c0_i32_1 = arith.constant 0 : i32
    return %c0_i32, %c0_i32_0 : i32, i32
  }
  func.func @transform_1(%arg0: i32) -> (i32, i32) {
    %c0_i32 = arith.constant 0 : i32
    %c0_i32_0 = arith.constant 0 : i32
    %c0_i32_1 = arith.constant 0 : i32
    return %c0_i32, %c0_i32_0 : i32, i32
  }
  func.func @transform_2(%arg0: i32) -> (i32, i32) {
    %c0_i32 = arith.constant 0 : i32
    %c0_i32_0 = arith.constant 0 : i32
    %c0_i32_1 = arith.constant 0 : i32
    return %c0_i32, %c0_i32_0 : i32, i32
  }
  func.func @transform_3(%arg0: i32) -> (i32, i32, i32) {
    %c0_i32 = arith.constant 0 : i32
    %c0_i32_0 = arith.constant 0 : i32
    %c0_i32_1 = arith.constant 0 : i32
    %c0_i32_2 = arith.constant 0 : i32
    return %c0_i32, %c0_i32_0, %c0_i32_1 : i32, i32, i32
  }
  func.func @transform_4(%arg0: i32) -> (i32, i32, i32) {
    %c0_i32 = arith.constant 0 : i32
    %c0_i32_0 = arith.constant 0 : i32
    %c0_i32_1 = arith.constant 0 : i32
    %c0_i32_2 = arith.constant 0 : i32
    return %c0_i32, %c0_i32_0, %c0_i32_1 : i32, i32, i32
  }
  func.func @transform_5(%arg0: i32) -> (i32, i32) {
    %c0_i32 = arith.constant 0 : i32
    %c0_i32_0 = arith.constant 0 : i32
    return %c0_i32, %arg0 : i32, i32
  }
  func.func @transform_6(%arg0: i32) -> (i32, i32) {
    %c0_i32 = arith.constant 0 : i32
    %c0_i32_0 = arith.constant 0 : i32
    return %c0_i32, %arg0 : i32, i32
  }
  func.func @transform_7(%arg0: i32) -> (i32, i32) {
    %c0_i32 = arith.constant 0 : i32
    %c0_i32_0 = arith.constant 0 : i32
    return %c0_i32, %arg0 : i32, i32
  }
}

</mosaic_0001>

<llo_original>
// kernel: tpu_custom_call.1
$region0: #{tpu_custom_call.1}
  #allocation0 [shape = 'u32[]', space=smem, size = 0x4, offset = 0x4, fixed_abs, tag = 'smem constant byte address 0x4 - core index']
  #allocation1 [shape = 'u32[144,128]{1,0:T(1,128)}', space=vmem, size = 0x12000, scoped, tag = 'internal scratch']
  %s0 = inlined_call_operand.hbm [shape: f32[1,8], index: 0, kind: input, shape index: {}]
  %s1 = inlined_call_operand.hbm [shape: f32[8,64], index: 1, kind: input, shape index: {}]
  %s2 = inlined_call_operand.hbm [shape: f32[1,64], index: 2, kind: input, shape index: {}]
  %s3 = inlined_call_operand.hbm [shape: f32[2,64,64], index: 3, kind: input, shape index: {}]
  %s4 = inlined_call_operand.hbm [shape: f32[2,1,64], index: 4, kind: input, shape index: {}]
  %s5 = inlined_call_operand.hbm [shape: bf16[64,606208], index: 5, kind: input, shape index: {}]
  %s6 = inlined_call_operand.hbm [shape: f32[1,606208], index: 6, kind: input, shape index: {}]
  %s7 = inlined_call_operand.hbm [shape: f32[1,606208], index: 7, kind: output, shape index: {}]
  %s8 = sld [smem:[#allocation0]]
  $region89: #{tpu_custom_call.1} parent=0
    _
  %s10 = ssub.s32 1, %s8
  %s11 = scalar_select 0, %s10, %s8
  $region1: #{tpu_custom_call.1} parent=0
    #allocation2 [shape = 'u8[512]{0}', space=vmem, size = 0x400, scoped, tag = 'input window, operand 0, single buffered']
    #allocation3 [shape = 's32[2]{0}', space=sflag, size = 0x8, scoped, tag = 'scoped memory for tpu_custom_call.1']
    #allocation4 [shape = 's32[2]{0}', space=sflag, size = 0x8, scoped, tag = 'scoped memory for tpu_custom_call.1']
    #allocation5 [shape = 'u8[4096]{0}', space=vmem, size = 0x1000, scoped, tag = 'input window, operand 1, single buffered']
    #allocation6 [shape = 's32[1]{0}', space=sflag, size = 0x4, scoped, tag = 'scoped memory for tpu_custom_call.1']
    #allocation7 [shape = 'u8[512]{0}', space=vmem, size = 0x400, scoped, tag = 'input window, operand 2, single buffered']
    #allocation8 [shape = 'u8[65536]{0}', space=vmem, size = 0x10000, scoped, tag = 'input window, operand 3, single buffered']
    #allocation9 [shape = 's32[1]{0}', space=sflag, size = 0x4, scoped, tag = 'scoped memory for tpu_custom_call.1']
    #allocation10 [shape = 'u8[1024]{0}', space=vmem, size = 0x400, scoped, tag = 'input window, operand 4, single buffered']
    #allocation11 [shape = 'u8[4194304]{0}', space=vmem, size = 0x400000, scoped, tag = 'input window, operand 5']
    #allocation12 [shape = 's32[2]{0}', space=sflag, size = 0x8, scoped, tag = 'scoped memory for tpu_custom_call.1']
    #allocation13 [shape = 'u8[131072]{0}', space=vmem, size = 0x20000, scoped, tag = 'input window, operand 6']
    #allocation14 [shape = 'u8[131072]{0}', space=vmem, size = 0x20000, scoped, tag = 'output window, operand 0']
    %12 = vsyncpa [#allocation3], 0
    %13 = vsyncpa [#allocation6], 0
    %14 = vsyncpa [#allocation9], 0
    %15 = vsyncpa [#allocation12], 0
    %s16 = scalar_lea.sflag [#allocation12], 1
    %17 = vsyncpa %s16, 0
    %18 = vsyncpa [#allocation4], 0
    %s19 = scalar_lea.sflag [#allocation4], 1
    %20 = vsyncpa %s19, 0
    loop: start=0, step=1, limit=39
    $region2: #{tpu_custom_call.1} parent=1 // loop_pre_header
      _
    $region3: #{tpu_custom_call.1} parent=1 // loop_header
      %s22 = sphi 0, %s26
      %p23 = scmp.ge.s32.totalorder %s22, 39
      %s30 = sphi 0, %s30
      %s32 = sphi 0, %s30
      %s33 = sphi 0, %s32
      %s47 = sphi 0, %s33
      %s51 = sphi 0, %s51
      %s53 = sphi 0, %s51
      %s54 = sphi 0, %s53
      %s68 = sphi 0, %s54
      %s72 = sphi 0, %s72
      %s74 = sphi 0, %s72
      %s75 = sphi 0, %s74
      %s89 = sphi 0, %s75
      %s93 = sphi 0, %s93
      %s95 = sphi 0, %s93
      %s96 = sphi 0, %s95
      %s110 = sphi 0, %s96
      %s114 = sphi 0, %s114
      %s116 = sphi 0, %s114
      %s117 = sphi 0, %s116
      %s131 = sphi 0, %s117
      %s137 = sphi 0, %s139
      %s140 = sphi 0, %s137
      %s141 = sphi 0, %s140
      %s157 = sphi 0, %s141
      %s163 = sphi 0, %s165
      %s166 = sphi 0, %s163
      %s167 = sphi 0, %s166
      %s183 = sphi 0, %s167
      %s189 = sphi 0, %s191
      %s192 = sphi 0, %s189
      %s193 = sphi 0, %s192
      %s209 = sphi 0, %s193
    $region4: #{tpu_custom_call.1} parent=1 // loop_header_branch
      %25 = sbr.rel (%p23) target = $region8
    $region5: #{tpu_custom_call.1} parent=1 // loop_body
      %s27 = ssub.s32 %s22, 1
      %s28 = ssub.s32 %s22, 2
      %s29 = sadd.s32 %s22, 1
      %s31 = sadd.s32 %s30, 1
      %p34 = scmp.eq.s32.totalorder %s22, 36
      %p35 = scmp.ne.s32.totalorder %s30, %s32
      %p36 = scmp.eq.s32.totalorder %s22, 0
      %p37 = por %p35, %p36
      %p38 = scmp.ne.s32.totalorder %s30, %s32
      %p39 = scmp.eq.s32.totalorder %s27, 36
      %p40 = por %p38, %p39
      %p41 = scmp.ne.s32.totalorder %s32, %s33
      %p42 = scmp.eq.s32.totalorder %s27, 0
      %p43 = por %p41, %p42
      %p44 = scmp.ne.s32.totalorder %s32, %s33
      %p45 = scmp.eq.s32.totalorder %s28, 36
      %p46 = por %p44, %p45
      %p48 = scmp.ne.s32.totalorder %s33, %s47
      %p49 = scmp.eq.s32.totalorder %s28, 0
      %p50 = por %p48, %p49
      %s52 = sadd.s32 %s51, 1
      %p55 = scmp.eq.s32.totalorder %s22, 36
      %p56 = scmp.ne.s32.totalorder %s51, %s53
      %p57 = scmp.eq.s32.totalorder %s22, 0
      %p58 = por %p56, %p57
      %p59 = scmp.ne.s32.totalorder %s51, %s53
      %p60 = scmp.eq.s32.totalorder %s27, 36
      %p61 = por %p59, %p60
      %p62 = scmp.ne.s32.totalorder %s53, %s54
      %p63 = scmp.eq.s32.totalorder %s27, 0
      %p64 = por %p62, %p63
      %p65 = scmp.ne.s32.totalorder %s53, %s54
      %p66 = scmp.eq.s32.totalorder %s28, 36
      %p67 = por %p65, %p66
      %p69 = scmp.ne.s32.totalorder %s54, %s68
      %p70 = scmp.eq.s32.totalorder %s28, 0
      %p71 = por %p69, %p70
      %s73 = sadd.s32 %s72, 1
      %p76 = scmp.eq.s32.totalorder %s22, 36
      %p77 = scmp.ne.s32.totalorder %s72, %s74
      %p78 = scmp.eq.s32.totalorder %s22, 0
      %p79 = por %p77, %p78
      %p80 = scmp.ne.s32.totalorder %s72, %s74
      %p81 = scmp.eq.s32.totalorder %s27, 36
      %p82 = por %p80, %p81
      %p83 = scmp.ne.s32.totalorder %s74, %s75
      %p84 = scmp.eq.s32.totalorder %s27, 0
      %p85 = por %p83, %p84
      %p86 = scmp.ne.s32.totalorder %s74, %s75
      %p87 = scmp.eq.s32.totalorder %s28, 36
      %p88 = por %p86, %p87
      %p90 = scmp.ne.s32.totalorder %s75, %s89
      %p91 = scmp.eq.s32.totalorder %s28, 0
      %p92 = por %p90, %p91
      %s94 = sadd.s32 %s93, 1
      %p97 = scmp.eq.s32.totalorder %s22, 36
      %p98 = scmp.ne.s32.totalorder %s93, %s95
      %p99 = scmp.eq.s32.totalorder %s22, 0
      %p100 = por %p98, %p99
      %p101 = scmp.ne.s32.totalorder %s93, %s95
      %p102 = scmp.eq.s32.totalorder %s27, 36
      %p103 = por %p101, %p102
      %p104 = scmp.ne.s32.totalorder %s95, %s96
      %p105 = scmp.eq.s32.totalorder %s27, 0
      %p106 = por %p104, %p105
      %p107 = scmp.ne.s32.totalorder %s95, %s96
      %p108 = scmp.eq.s32.totalorder %s28, 36
      %p109 = por %p107, %p108
      %p111 = scmp.ne.s32.totalorder %s96, %s110
      %p112 = scmp.eq.s32.totalorder %s28, 0
      %p113 = por %p111, %p112
      %s115 = sadd.s32 %s114, 1
      %p118 = scmp.eq.s32.totalorder %s22, 36
      %p119 = scmp.ne.s32.totalorder %s114, %s116
      %p120 = scmp.eq.s32.totalorder %s22, 0
      %p121 = por %p119, %p120
      %p122 = scmp.ne.s32.totalorder %s114, %s116
      %p123 = scmp.eq.s32.totalorder %s27, 36
      %p124 = por %p122, %p123
      %p125 = scmp.ne.s32.totalorder %s116, %s117
      %p126 = scmp.eq.s32.totalorder %s27, 0
      %p127 = por %p125, %p126
      %p128 = scmp.ne.s32.totalorder %s116, %s117
      %p129 = scmp.eq.s32.totalorder %s28, 36
      %p130 = por %p128, %p129
      %p132 = scmp.ne.s32.totalorder %s117, %s131
      %p133 = scmp.eq.s32.totalorder %s28, 0
      %p134 = por %p132, %p133
      %s135 = ssub.s32 %s22, %s29
      %p136 = scmp.eq.s32.totalorder %s135, 0
      %s138 = sadd.s32 %s137, 1
      %s139 = scalar_select %p136, %s137, %s138
      %p142 = pneg %p136
      %p143 = scmp.eq.s32.totalorder %s22, 36
      %p144 = por %p142, %p143
      %p145 = scmp.ne.s32.totalorder %s137, %s140
      %p146 = scmp.eq.s32.totalorder %s22, 0
      %p147 = por %p145, %p146
      %p148 = scmp.ne.s32.totalorder %s137, %s140
      %p149 = scmp.eq.s32.totalorder %s27, 36
      %p150 = por %p148, %p149
      %p151 = scmp.ne.s32.totalorder %s140, %s141
      %p152 = scmp.eq.s32.totalorder %s27, 0
      %p153 = por %p151, %p152
      %p154 = scmp.ne.s32.totalorder %s140, %s141
      %p155 = scmp.eq.s32.totalorder %s28, 36
      %p156 = por %p154, %p155
      %p158 = scmp.ne.s32.totalorder %s141, %s157
      %p159 = scmp.eq.s32.totalorder %s28, 0
      %p160 = por %p158, %p159
      %s161 = ssub.s32 %s22, %s29
      %p162 = scmp.eq.s32.totalorder %s161, 0
      %s164 = sadd.s32 %s163, 1
      %s165 = scalar_select %p162, %s163, %s164
      %p168 = pneg %p162
      %p169 = scmp.eq.s32.totalorder %s22, 36
      %p170 = por %p168, %p169
      %p171 = scmp.ne.s32.totalorder %s163, %s166
      %p172 = scmp.eq.s32.totalorder %s22, 0
      %p173 = por %p171, %p172
      %p174 = scmp.ne.s32.totalorder %s163, %s166
      %p175 = scmp.eq.s32.totalorder %s27, 36
      %p176 = por %p174, %p175
      %p177 = scmp.ne.s32.totalorder %s166, %s167
      %p178 = scmp.eq.s32.totalorder %s27, 0
      %p179 = por %p177, %p178
      %p180 = scmp.ne.s32.totalorder %s166, %s167
      %p181 = scmp.eq.s32.totalorder %s28, 36
      %p182 = por %p180, %p181
      %p184 = scmp.ne.s32.totalorder %s167, %s183
      %p185 = scmp.eq.s32.totalorder %s28, 0
      %p186 = por %p184, %p185
      %s187 = ssub.s32 %s22, %s29
      %p188 = scmp.eq.s32.totalorder %s187, 0
      %s190 = sadd.s32 %s189, 1
      %s191 = scalar_select %p188, %s189, %s190
      %p194 = pneg %p188
      %p195 = scmp.eq.s32.totalorder %s22, 36
      %p196 = por %p194, %p195
      %p197 = scmp.ne.s32.totalorder %s189, %s192
      %p198 = scmp.eq.s32.totalorder %s22, 0
      %p199 = por %p197, %p198
      %p200 = scmp.ne.s32.totalorder %s189, %s192
      %p201 = scmp.eq.s32.totalorder %s27, 36
      %p202 = por %p200, %p201
      %p203 = scmp.ne.s32.totalorder %s192, %s193
      %p204 = scmp.eq.s32.totalorder %s27, 0
      %p205 = por %p203, %p204
      %p206 = scmp.ne.s32.totalorder %s192, %s193
      %p207 = scmp.eq.s32.totalorder %s28, 36
      %p208 = por %p206, %p207
      %p210 = scmp.ne.s32.totalorder %s193, %s209
      %p211 = scmp.eq.s32.totalorder %s28, 0
      %p212 = por %p210, %p211
      %p213 = scmp.le.s32.totalorder 1, %s22
      %p214 = scmp.lt.s32.totalorder %s22, 38
      %p215 = pnand %p213, %p214
      %p216 = pneg %p215
      // Predicated region
      $region9: #{tpu_custom_call.1} parent=5 // pred_check
        _
      $region10: #{tpu_custom_call.1} parent=5 // pred_check_branch
        %218 = sbr.rel (%p215) target = $region12
      $region11: #{tpu_custom_call.1} parent=5 // pred_region
        %s219 = ssub.s32 %s22, 1
        // Predicated region
        $region13: #{tpu_custom_call.1} parent=11 // pred_check
          %p220 = pneg %p43
        $region14: #{tpu_custom_call.1} parent=11 // pred_check_branch
          %222 = sbr.rel (%p220) target = $region16
        $region15: #{tpu_custom_call.1} parent=11 // pred_region
          %s224 = ssub.s32 16, 16
          %225 = vsyncadd [#allocation3], %s224
          %s227 = sshll.u32 [#allocation2], 4
          %s228 = int_to_ptr.vmem [resolvable:$true] %s227
          %230 = dma.hbm_to_vmem [thread:$0]  %s0, 16, %s228, [#allocation3]
        $region16: #{tpu_custom_call.1} parent=11 // pred_fallthru
          _
        // Predicated region
        $region17: #{tpu_custom_call.1} parent=11 // pred_check
          %p231 = pneg %p64
        $region18: #{tpu_custom_call.1} parent=11 // pred_check_branch
          %233 = sbr.rel (%p231) target = $region20
        $region19: #{tpu_custom_call.1} parent=11 // pred_region
          %s235 = ssub.s32 128, 128
          %236 = vsyncadd [#allocation6], %s235
          %s238 = sshll.u32 [#allocation5], 4
          %s239 = int_to_ptr.vmem [resolvable:$true] %s238
          %241 = dma.hbm_to_vmem [thread:$0]  %s1, 128, %s239, [#allocation6]
        $region20: #{tpu_custom_call.1} parent=11 // pred_fallthru
          _
        // Predicated region
        $region21: #{tpu_custom_call.1} parent=11 // pred_check
          %p242 = pneg %p85
        $region22: #{tpu_custom_call.1} parent=11 // pred_check_branch
          %244 = sbr.rel (%p242) target = $region24
        $region23: #{tpu_custom_call.1} parent=11 // pred_region
          %s246 = ssub.s32 16, 16
          %247 = vsyncadd [#allocation6], %s246
          %s249 = sshll.u32 [#allocation7], 4
          %s250 = int_to_ptr.vmem [resolvable:$true] %s249
          %252 = dma.hbm_to_vmem [thread:$0]  %s2, 16, %s250, [#allocation6]
        $region24: #{tpu_custom_call.1} parent=11 // pred_fallthru
          _
        // Predicated region
        $region25: #{tpu_custom_call.1} parent=11 // pred_check
          %p253 = pneg %p106
        $region26: #{tpu_custom_call.1} parent=11 // pred_check_branch
          %255 = sbr.rel (%p253) target = $region28
        $region27: #{tpu_custom_call.1} parent=11 // pred_region
          %s257 = ssub.s32 2048, 2048
          %258 = vsyncadd [#allocation9], %s257
          %s259 = sshll.u32 [#allocation8], 4
          %s260 = int_to_ptr.vmem [resolvable:$true] %s259
          %265 = dma.hbm_to_vmem [thread:$0]  %s3, 2048, %s260, [#allocation9], 128, 128, 8
        $region28: #{tpu_custom_call.1} parent=11 // pred_fallthru
          _
        // Predicated region
        $region29: #{tpu_custom_call.1} parent=11 // pred_check
          %p266 = pneg %p127
        $region30: #{tpu_custom_call.1} parent=11 // pred_check_branch
          %268 = sbr.rel (%p266) target = $region32
        $region31: #{tpu_custom_call.1} parent=11 // pred_region
          %s270 = ssub.s32 32, 32
          %271 = vsyncadd [#allocation9], %s270
          %s272 = sshll.u32 [#allocation10], 4
          %s273 = int_to_ptr.vmem [resolvable:$true] %s272
          %278 = dma.hbm_to_vmem [thread:$0]  %s4, 32, %s273, [#allocation9], 16, 16, 1
        $region32: #{tpu_custom_call.1} parent=11 // pred_fallthru
          _
      $region12: #{tpu_custom_call.1} parent=5 // pred_fallthru
        _
      %p279 = scmp.lt.s32.totalorder %s22, 37
      // Predicated region
      $region33: #{tpu_custom_call.1} parent=5 // pred_check
        %p280 = pneg %p279
      $region34: #{tpu_custom_call.1} parent=5 // pred_check_branch
        %282 = sbr.rel (%p280) target = $region36
      $region35: #{tpu_custom_call.1} parent=5 // pred_region
        // Predicated region
        $region37: #{tpu_custom_call.1} parent=35 // pred_check
          %p283 = pneg %p147
        $region38: #{tpu_custom_call.1} parent=35 // pred_check_branch
          %285 = sbr.rel (%p283) target = $region40
        $region39: #{tpu_custom_call.1} parent=35 // pred_region
          %s286 = sand.u32 %s22, 1
          %s287 = scalar_lea.sflag [#allocation12], %s286
          %s288 = sand.u32 %s137, 1
          %s289 = smul.addr %s288, 4096
          %s290 = scalar_lea.vmem [#allocation11], %s289
          %s291 = smul.u32 128, %s22
          %s293 = ssub.s32 65536, 65536
          %294 = vsyncadd %s287, %s293
          %s295 = smul.addr %s291, 64
          %s296 = scalar_lea.hbm %s5, %s295
          %s297 = sshll.u32 %s290, 4
          %s298 = int_to_ptr.vmem [resolvable:$true] %s297
          %303 = dma.hbm_to_vmem [thread:$0]  %s296, 65536, %s298, %s287, 303104, 8192, 512
        $region40: #{tpu_custom_call.1} parent=35 // pred_fallthru
          _
        // Predicated region
        $region41: #{tpu_custom_call.1} parent=35 // pred_check
          %p304 = pneg %p173
        $region42: #{tpu_custom_call.1} parent=35 // pred_check_branch
          %306 = sbr.rel (%p304) target = $region44
        $region43: #{tpu_custom_call.1} parent=35 // pred_region
          %s307 = sand.u32 %s22, 1
          %s308 = scalar_lea.sflag [#allocation12], %s307
          %s309 = sand.u32 %s163, 1
          %s310 = smul.addr %s309, 128
          %s311 = scalar_lea.vmem [#allocation13], %s310
          %s312 = smul.u32 128, %s22
          %s314 = ssub.s32 2048, 2048
          %315 = vsyncadd %s308, %s314
          %s316 = smul.addr %s312, 16
          %s317 = scalar_lea.hbm %s6, %s316
          %s319 = sshll.u32 %s311, 4
          %s320 = int_to_ptr.vmem [resolvable:$true] %s319
          %322 = dma.hbm_to_vmem [thread:$0]  %s317, 2048, %s320, %s308
        $region44: #{tpu_custom_call.1} parent=35 // pred_fallthru
          _
      $region36: #{tpu_custom_call.1} parent=5 // pred_fallthru
        _
      %p323 = scmp.le.s32.totalorder 1, %s22
      %p324 = scmp.lt.s32.totalorder %s22, 38
      %p325 = pnand %p323, %p324
      %p326 = pneg %p325
      // Predicated region
      $region45: #{tpu_custom_call.1} parent=5 // pred_check
        _
      $region46: #{tpu_custom_call.1} parent=5 // pred_check_branch
        %328 = sbr.rel (%p325) target = $region48
      $region47: #{tpu_custom_call.1} parent=5 // pred_region
        %s329 = ssub.s32 %s22, 1
        // Predicated region
        $region49: #{tpu_custom_call.1} parent=47 // pred_check
          %p330 = pneg %p43
        $region50: #{tpu_custom_call.1} parent=47 // pred_check_branch
          %332 = sbr.rel (%p330) target = $region52
        $region51: #{tpu_custom_call.1} parent=47 // pred_region
          %333 = dma.done [#allocation3], 16
        $region52: #{tpu_custom_call.1} parent=47 // pred_fallthru
          _
        // Predicated region
        $region53: #{tpu_custom_call.1} parent=47 // pred_check
          %p334 = pneg %p64
        $region54: #{tpu_custom_call.1} parent=47 // pred_check_branch
          %336 = sbr.rel (%p334) target = $region56
        $region55: #{tpu_custom_call.1} parent=47 // pred_region
          %337 = dma.done [#allocation6], 128
        $region56: #{tpu_custom_call.1} parent=47 // pred_fallthru
          _
        // Predicated region
        $region57: #{tpu_custom_call.1} parent=47 // pred_check
          %p338 = pneg %p85
        $region58: #{tpu_custom_call.1} parent=47 // pred_check_branch
          %340 = sbr.rel (%p338) target = $region60
        $region59: #{tpu_custom_call.1} parent=47 // pred_region
          %341 = dma.done [#allocation6], 16
        $region60: #{tpu_custom_call.1} parent=47 // pred_fallthru
          _
        // Predicated region
        $region61: #{tpu_custom_call.1} parent=47 // pred_check
          %p342 = pneg %p106
        $region62: #{tpu_custom_call.1} parent=47 // pred_check_branch
          %344 = sbr.rel (%p342) target = $region64
        $region63: #{tpu_custom_call.1} parent=47 // pred_region
          %345 = dma.done [#allocation9], 2048
        $region64: #{tpu_custom_call.1} parent=47 // pred_fallthru
          _
        // Predicated region
        $region65: #{tpu_custom_call.1} parent=47 // pred_check
          %p346 = pneg %p127
        $region66: #{tpu_custom_call.1} parent=47 // pred_check_branch
          %348 = sbr.rel (%p346) target = $region68
        $region67: #{tpu_custom_call.1} parent=47 // pred_region
          %349 = dma.done [#allocation9], 32
        $region68: #{tpu_custom_call.1} parent=47 // pred_fallthru
          _
        %s350 = sand.u32 %s27, 1
        %s351 = scalar_lea.sflag [#allocation12], %s350
        %s352 = sand.u32 %s140, 1
        %s353 = smul.addr %s352, 4096
        %s354 = scalar_lea.vmem [#allocation11], %s353
        // Predicated region
        $region69: #{tpu_custom_call.1} parent=47 // pred_check
          %p355 = pneg %p153
        $region70: #{tpu_custom_call.1} parent=47 // pred_check_branch
          %357 = sbr.rel (%p355) target = $region72
        $region71: #{tpu_custom_call.1} parent=47 // pred_region
          %358 = dma.done %s351, 65536
        $region72: #{tpu_custom_call.1} parent=47 // pred_fallthru
          _
        %s359 = sand.u32 %s27, 1
        %s360 = scalar_lea.sflag [#allocation12], %s359
        %s361 = sand.u32 %s166, 1
        %s362 = smul.addr %s361, 128
        %s363 = scalar_lea.vmem [#allocation13], %s362
        // Predicated region
        $region73: #{tpu_custom_call.1} parent=47 // pred_check
          %p364 = pneg %p179
        $region74: #{tpu_custom_call.1} parent=47 // pred_check_branch
          %366 = sbr.rel (%p364) target = $region76
        $region75: #{tpu_custom_call.1} parent=47 // pred_region
          %367 = dma.done %s360, 2048
        $region76: #{tpu_custom_call.1} parent=47 // pred_fallthru
          _
        %p368 = pneg %p43
        %p369 = pneg %p40
        %p370 = pneg %p64
        %p371 = pneg %p61
        %p372 = pneg %p85
        %p373 = pneg %p82
        %p374 = pneg %p106
        %p375 = pneg %p103
        %p376 = pneg %p127
        %p377 = pneg %p124
        %s378 = sand.u32 %s27, 1
        %s379 = scalar_lea.sflag [#allocation12], %s378
        %s380 = sand.u32 %s140, 1
        %s381 = smul.addr %s380, 4096
        %s382 = scalar_lea.vmem [#allocation11], %s381
        %p383 = pneg %p153
        %p384 = pneg %p150
        %s385 = sand.u32 %s27, 1
        %s386 = scalar_lea.sflag [#allocation12], %s385
        %s387 = sand.u32 %s166, 1
        %s388 = smul.addr %s387, 128
        %s389 = scalar_lea.vmem [#allocation13], %s388
        %p390 = pneg %p179
        %p391 = pneg %p176
        %p392 = pneg %p205
        %p393 = pneg %p202
        %s394 = sand.u32 %s192, 1
        %s395 = scalar_lea.sflag [#allocation4], %s394
        %s396 = sand.u32 %s192, 1
        %s397 = smul.addr %s396, 128
        %s398 = scalar_lea.vmem [#allocation14], %s397
        %s399 = smul.u32 128, %s27
        %s400 = smul.u32 128, %s27
        %s401 = smul.u32 128, %s27
        %v402 = vld [vmem:[#allocation2] sm:$0x1]
        %v403 = vld [vmem:[#allocation5] sm:$0xff]
        %v404 = vld [vmem:[#allocation7] sm:$0x1]
        %vm405 = vcmask 64512
        %v407 = vsel %vm405, %v402, 0
        %409 = vmatprep.subr.mxu0 0.0
        %410 = vmatpush1.msra.mxu0 %v403
        %411 = vmatprep.subr.mxu0 0.0
        %412 = vmatpush1.msra.mxu0 0.0
        %413 = vmatprep.subr.mxu0 0.0
        %414 = vmatpush1.msra.mxu0 0.0
        %415 = vmatprep.subr.mxu0 0.0
        %416 = vmatpush1.msra.mxu0 0.0
        %417 = vmatprep.subr.mxu0 0.0
        %418 = vmatpush1.msra.mxu0 0.0
        %419 = vmatprep.subr.mxu0 0.0
        %420 = vmatpush1.msra.mxu0 0.0
        %421 = vmatprep.subr.mxu0 0.0
        %422 = vmatpush1.msra.mxu0 0.0
        %423 = vmatprep.subr.mxu0 0.0
        %424 = vmatpush1.msra.mxu0 0.0
        %425 = vmatprep.subr.mxu0 0.0
        %426 = vmatpush1.msra.mxu0 0.0
        %427 = vmatprep.subr.mxu0 0.0
        %428 = vmatpush1.msra.mxu0 0.0
        %429 = vmatprep.subr.mxu0 0.0
        %430 = vmatpush1.msra.mxu0 0.0
        %431 = vmatprep.subr.mxu0 0.0
        %432 = vmatpush1.msra.mxu0 0.0
        %433 = vmatprep.subr.mxu0 0.0
        %434 = vmatpush1.msra.mxu0 0.0
        %435 = vmatprep.subr.mxu0 0.0
        %436 = vmatpush1.msra.mxu0 0.0
        %437 = vmatprep.subr.mxu0 0.0
        %438 = vmatpush1.msra.mxu0 0.0
        %439 = vmatprep.subr.mxu0 0.0
        %440 = vmatpush1.msra.mxu0 0.0
        %441 = vmatprep.subr.mxu0 0.0
        %442 = vmatpush1.msra.mxu0 0.0
        %443 = vmatprep.subr.mxu0 0.0
        %444 = vmatpush1.msra.mxu0 0.0
        %445 = vmatprep.subr.mxu0 0.0
        %446 = vmatpush1.msra.mxu0 0.0
        %447 = vmatprep.subr.mxu0 0.0
        %448 = vmatpush1.msra.mxu0 0.0
        %449 = vmatprep.subr.mxu0 0.0
        %450 = vmatpush1.msra.mxu0 0.0
        %451 = vmatprep.subr.mxu0 0.0
        %452 = vmatpush1.msra.mxu0 0.0
        %453 = vmatprep.subr.mxu0 0.0
        %454 = vmatpush1.msra.mxu0 0.0
        %455 = vmatprep.subr.mxu0 0.0
        %456 = vmatpush1.msra.mxu0 0.0
        %457 = vmatprep.subr.mxu0 0.0
        %458 = vmatpush1.msra.mxu0 0.0
        %459 = vmatprep.subr.mxu0 0.0
        %460 = vmatpush1.msra.mxu0 0.0
        %461 = vmatprep.subr.mxu0 0.0
        %462 = vmatpush1.msra.mxu0 0.0
        %463 = vmatprep.subr.mxu0 0.0
        %464 = vmatpush1.msra.mxu0 0.0
        %465 = vmatprep.subr.mxu0 0.0
        %466 = vmatpush1.msra.mxu0 0.0
        %467 = vmatprep.subr.mxu0 0.0
        %468 = vmatpush1.msra.mxu0 0.0
        %469 = vmatprep.subr.mxu0 0.0
        %470 = vmatpush1.msra.mxu0 0.0
        %471 = vmatprep.subr.mxu0 0.0
        %472 = vmatpush1.msra.mxu0 0.0
        %473 = vmatprep.mubr.f32.mxu0 0.0
        %474 = vmatmul.mubr.f32.gmra.mrb[0].mxu0 %v407
        %v475 = vpop.f32.mrb[0].mxu0
        %v476 = vadd.f32 %v404, %v475
        %v477 = vpop.f32.mrb[0].mxu0
        %478 = vdwg.mxu0
        %vm479 = vcmp.gt.f32.partialorder %v476, 0.0
        %v480 = vmul.f32 %v476, 0.2
        %v481 = vsel %vm479, %v476, %v480
        %v482 = vld [vmem:[#allocation8] sm:$0xff]
        %v483 = vld [vmem:[#allocation8 + $0x8] sm:$0xff]
        %v484 = vld [vmem:[#allocation8 + $0x10] sm:$0xff]
        %v485 = vld [vmem:[#allocation8 + $0x18] sm:$0xff]
        %v486 = vld [vmem:[#allocation8 + $0x20] sm:$0xff]
        %v487 = vld [vmem:[#allocation8 + $0x28] sm:$0xff]
        %v488 = vld [vmem:[#allocation8 + $0x30] sm:$0xff]
        %v489 = vld [vmem:[#allocation8 + $0x38] sm:$0xff]
        %v490 = vld [vmem:[#allocation10] sm:$0x1]
        %vm491 = vcmask 523264
        %v493 = vsel %vm491, %v481, 0
        %495 = vmatprep.subr.mxu0 0.0
        %496 = vmatpush1.msra.mxu0 %v482
        %497 = vmatprep.subr.mxu0 0.0
        %498 = vmatpush1.msra.mxu0 %v483
        %499 = vmatprep.subr.mxu0 0.0
        %500 = vmatpush1.msra.mxu0 %v484
        %501 = vmatprep.subr.mxu0 0.0
        %502 = vmatpush1.msra.mxu0 %v485
        %503 = vmatprep.subr.mxu0 0.0
        %504 = vmatpush1.msra.mxu0 %v486
        %505 = vmatprep.subr.mxu0 0.0
        %506 = vmatpush1.msra.mxu0 %v487
        %507 = vmatprep.subr.mxu0 0.0
        %508 = vmatpush1.msra.mxu0 %v488
        %509 = vmatprep.subr.mxu0 0.0
        %510 = vmatpush1.msra.mxu0 %v489
        %511 = vmatprep.subr.mxu0 0.0
        %512 = vmatpush1.msra.mxu0 0.0
        %513 = vmatprep.subr.mxu0 0.0
        %514 = vmatpush1.msra.mxu0 0.0
        %515 = vmatprep.subr.mxu0 0.0
        %516 = vmatpush1.msra.mxu0 0.0
        %517 = vmatprep.subr.mxu0 0.0
        %518 = vmatpush1.msra.mxu0 0.0
        %519 = vmatprep.subr.mxu0 0.0
        %520 = vmatpush1.msra.mxu0 0.0
        %521 = vmatprep.subr.mxu0 0.0
        %522 = vmatpush1.msra.mxu0 0.0
        %523 = vmatprep.subr.mxu0 0.0
        %524 = vmatpush1.msra.mxu0 0.0
        %525 = vmatprep.subr.mxu0 0.0
        %526 = vmatpush1.msra.mxu0 0.0
        %527 = vmatprep.subr.mxu0 0.0
        %528 = vmatpush1.msra.mxu0 0.0
        %529 = vmatprep.subr.mxu0 0.0
        %530 = vmatpush1.msra.mxu0 0.0
        %531 = vmatprep.subr.mxu0 0.0
        %532 = vmatpush1.msra.mxu0 0.0
        %533 = vmatprep.subr.mxu0 0.0
        %534 = vmatpush1.msra.mxu0 0.0
        %535 = vmatprep.subr.mxu0 0.0
        %536 = vmatpush1.msra.mxu0 0.0
        %537 = vmatprep.subr.mxu0 0.0
        %538 = vmatpush1.msra.mxu0 0.0
        %539 = vmatprep.subr.mxu0 0.0
        %540 = vmatpush1.msra.mxu0 0.0
        %541 = vmatprep.subr.mxu0 0.0
        %542 = vmatpush1.msra.mxu0 0.0
        %543 = vmatprep.subr.mxu0 0.0
        %544 = vmatpush1.msra.mxu0 0.0
        %545 = vmatprep.subr.mxu0 0.0
        %546 = vmatpush1.msra.mxu0 0.0
        %547 = vmatprep.subr.mxu0 0.0
        %548 = vmatpush1.msra.mxu0 0.0
        %549 = vmatprep.subr.mxu0 0.0
        %550 = vmatpush1.msra.mxu0 0.0
        %551 = vmatprep.subr.mxu0 0.0
        %552 = vmatpush1.msra.mxu0 0.0
        %553 = vmatprep.subr.mxu0 0.0
        %554 = vmatpush1.msra.mxu0 0.0
        %555 = vmatprep.subr.mxu0 0.0
        %556 = vmatpush1.msra.mxu0 0.0
        %557 = vmatprep.subr.mxu0 0.0
        %558 = vmatpush1.msra.mxu0 0.0
        %559 = vmatprep.mubr.f32.mxu0 0.0
        %560 = vmatmul.mubr.f32.gmra.mrb[0].mxu0 %v493
        %v561 = vpop.f32.mrb[0].mxu0
        %v562 = vadd.f32 %v490, %v561
        %v563 = vpop.f32.mrb[0].mxu0
        %564 = vdwg.mxu0
        %vm565 = vcmp.gt.f32.partialorder %v562, 0.0
        %v566 = vmul.f32 %v562, 0.2
        %v567 = vsel %vm565, %v562, %v566
        %s568 = scalar_lea.vmem [#allocation8], 64
        %v569 = vld [vmem:[%s568] sm:$0xff]
        %v570 = vld [vmem:[%s568 + $0x8] sm:$0xff]
        %v571 = vld [vmem:[%s568 + $0x10] sm:$0xff]
        %v572 = vld [vmem:[%s568 + $0x18] sm:$0xff]
        %v573 = vld [vmem:[%s568 + $0x20] sm:$0xff]
        %v574 = vld [vmem:[%s568 + $0x28] sm:$0xff]
        %v575 = vld [vmem:[%s568 + $0x30] sm:$0xff]
        %v576 = vld [vmem:[%s568 + $0x38] sm:$0xff]
        %s577 = scalar_lea.vmem [#allocation10], 1
        %v578 = vld [vmem:[%s577] sm:$0x1]
        %v580 = vsel %vm491, %v567, 0
        %582 = vmatprep.subr.mxu0 0.0
        %583 = vmatpush1.msra.mxu0 %v569
        %584 = vmatprep.subr.mxu0 0.0
        %585 = vmatpush1.msra.mxu0 %v570
        %586 = vmatprep.subr.mxu0 0.0
        %587 = vmatpush1.msra.mxu0 %v571
        %588 = vmatprep.subr.mxu0 0.0
        %589 = vmatpush1.msra.mxu0 %v572
        %590 = vmatprep.subr.mxu0 0.0
        %591 = vmatpush1.msra.mxu0 %v573
        %592 = vmatprep.subr.mxu0 0.0
        %593 = vmatpush1.msra.mxu0 %v574
        %594 = vmatprep.subr.mxu0 0.0
        %595 = vmatpush1.msra.mxu0 %v575
        %596 = vmatprep.subr.mxu0 0.0
        %597 = vmatpush1.msra.mxu0 %v576
        %598 = vmatprep.subr.mxu0 0.0
        %599 = vmatpush1.msra.mxu0 0.0
        %600 = vmatprep.subr.mxu0 0.0
        %601 = vmatpush1.msra.mxu0 0.0
        %602 = vmatprep.subr.mxu0 0.0
        %603 = vmatpush1.msra.mxu0 0.0
        %604 = vmatprep.subr.mxu0 0.0
        %605 = vmatpush1.msra.mxu0 0.0
        %606 = vmatprep.subr.mxu0 0.0
        %607 = vmatpush1.msra.mxu0 0.0
        %608 = vmatprep.subr.mxu0 0.0
        %609 = vmatpush1.msra.mxu0 0.0
        %610 = vmatprep.subr.mxu0 0.0
        %611 = vmatpush1.msra.mxu0 0.0
        %612 = vmatprep.subr.mxu0 0.0
        %613 = vmatpush1.msra.mxu0 0.0
        %614 = vmatprep.subr.mxu0 0.0
        %615 = vmatpush1.msra.mxu0 0.0
        %616 = vmatprep.subr.mxu0 0.0
        %617 = vmatpush1.msra.mxu0 0.0
        %618 = vmatprep.subr.mxu0 0.0
        %619 = vmatpush1.msra.mxu0 0.0
        %620 = vmatprep.subr.mxu0 0.0
        %621 = vmatpush1.msra.mxu0 0.0
        %622 = vmatprep.subr.mxu0 0.0
        %623 = vmatpush1.msra.mxu0 0.0
        %624 = vmatprep.subr.mxu0 0.0
        %625 = vmatpush1.msra.mxu0 0.0
        %626 = vmatprep.subr.mxu0 0.0
        %627 = vmatpush1.msra.mxu0 0.0
        %628 = vmatprep.subr.mxu0 0.0
        %629 = vmatpush1.msra.mxu0 0.0
        %630 = vmatprep.subr.mxu0 0.0
        %631 = vmatpush1.msra.mxu0 0.0
        %632 = vmatprep.subr.mxu0 0.0
        %633 = vmatpush1.msra.mxu0 0.0
        %634 = vmatprep.subr.mxu0 0.0
        %635 = vmatpush1.msra.mxu0 0.0
        %636 = vmatprep.subr.mxu0 0.0
        %637 = vmatpush1.msra.mxu0 0.0
        %638 = vmatprep.subr.mxu0 0.0
        %639 = vmatpush1.msra.mxu0 0.0
        %640 = vmatprep.subr.mxu0 0.0
        %641 = vmatpush1.msra.mxu0 0.0
        %642 = vmatprep.subr.mxu0 0.0
        %643 = vmatpush1.msra.mxu0 0.0
        %644 = vmatprep.subr.mxu0 0.0
        %645 = vmatpush1.msra.mxu0 0.0
        %646 = vmatprep.mubr.f32.mxu0 0.0
        %647 = vmatmul.mubr.f32.gmra.mrb[0].mxu0 %v580
        %v648 = vpop.f32.mrb[0].mxu0
        %v649 = vadd.f32 %v578, %v648
        %v650 = vpop.f32.mrb[0].mxu0
        %651 = vdwg.mxu0
        %v652 = vld [vmem:[%s354] sm:$0xff]
        %v653 = vld [vmem:[%s354 + $0x8] sm:$0xff]
        %v654 = vld [vmem:[%s354 + $0x10] sm:$0xff]
        %v655 = vld [vmem:[%s354 + $0x18] sm:$0xff]
        %v656 = vld [vmem:[%s354 + $0x20] sm:$0xff]
        %v657 = vld [vmem:[%s354 + $0x28] sm:$0xff]
        %v658 = vld [vmem:[%s354 + $0x30] sm:$0xff]
        %v659 = vld [vmem:[%s354 + $0x38] sm:$0xff]
        %v660 = vld [vmem:[%s354 + $0x40] sm:$0xff]
        %v661 = vld [vmem:[%s354 + $0x48] sm:$0xff]
        %v662 = vld [vmem:[%s354 + $0x50] sm:$0xff]
        %v663 = vld [vmem:[%s354 + $0x58] sm:$0xff]
        %v664 = vld [vmem:[%s354 + $0x60] sm:$0xff]
        %v665 = vld [vmem:[%s354 + $0x68] sm:$0xff]
        %v666 = vld [vmem:[%s354 + $0x70] sm:$0xff]
        %v667 = vld [vmem:[%s354 + $0x78] sm:$0xff]
        %v668 = vld [vmem:[%s354 + $0x80] sm:$0xff]
        %v669 = vld [vmem:[%s354 + $0x88] sm:$0xff]
        %v670 = vld [vmem:[%s354 + $0x90] sm:$0xff]
        %v671 = vld [vmem:[%s354 + $0x98] sm:$0xff]
        %v672 = vld [vmem:[%s354 + $0xa0] sm:$0xff]
        %v673 = vld [vmem:[%s354 + $0xa8] sm:$0xff]
        %v674 = vld [vmem:[%s354 + $0xb0] sm:$0xff]
        %v675 = vld [vmem:[%s354 + $0xb8] sm:$0xff]
        %v676 = vld [vmem:[%s354 + $0xc0] sm:$0xff]
        %v677 = vld [vmem:[%s354 + $0xc8] sm:$0xff]
        %v678 = vld [vmem:[%s354 + $0xd0] sm:$0xff]
        %v679 = vld [vmem:[%s354 + $0xd8] sm:$0xff]
        %v680 = vld [vmem:[%s354 + $0xe0] sm:$0xff]
        %v681 = vld [vmem:[%s354 + $0xe8] sm:$0xff]
        %v682 = vld [vmem:[%s354 + $0xf0] sm:$0xff]
        %v683 = vld [vmem:[%s354 + $0xf8] sm:$0xff]
        %v684 = vld [vmem:[%s354 + $0x100] sm:$0xff]
        %v685 = vld [vmem:[%s354 + $0x108] sm:$0xff]
        %v686 = vld [vmem:[%s354 + $0x110] sm:$0xff]
        %v687 = vld [vmem:[%s354 + $0x118] sm:$0xff]
        %v688 = vld [vmem:[%s354 + $0x120] sm:$0xff]
        %v689 = vld [vmem:[%s354 + $0x128] sm:$0xff]
        %v690 = vld [vmem:[%s354 + $0x130] sm:$0xff]
        %v691 = vld [vmem:[%s354 + $0x138] sm:$0xff]
        %v692 = vld [vmem:[%s354 + $0x140] sm:$0xff]
        %v693 = vld [vmem:[%s354 + $0x148] sm:$0xff]
        %v694 = vld [vmem:[%s354 + $0x150] sm:$0xff]
        %v695 = vld [vmem:[%s354 + $0x158] sm:$0xff]
        %v696 = vld [vmem:[%s354 + $0x160] sm:$0xff]
        %v697 = vld [vmem:[%s354 + $0x168] sm:$0xff]
        %v698 = vld [vmem:[%s354 + $0x170] sm:$0xff]
        %v699 = vld [vmem:[%s354 + $0x178] sm:$0xff]
        %v700 = vld [vmem:[%s354 + $0x180] sm:$0xff]
        %v701 = vld [vmem:[%s354 + $0x188] sm:$0xff]
        %v702 = vld [vmem:[%s354 + $0x190] sm:$0xff]
        %v703 = vld [vmem:[%s354 + $0x198] sm:$0xff]
        %v704 = vld [vmem:[%s354 + $0x1a0] sm:$0xff]
        %v705 = vld [vmem:[%s354 + $0x1a8] sm:$0xff]
        %v706 = vld [vmem:[%s354 + $0x1b0] sm:$0xff]
        %v707 = vld [vmem:[%s354 + $0x1b8] sm:$0xff]
        %v708 = vld [vmem:[%s354 + $0x1c0] sm:$0xff]
        %v709 = vld [vmem:[%s354 + $0x1c8] sm:$0xff]
        %v710 = vld [vmem:[%s354 + $0x1d0] sm:$0xff]
        %v711 = vld [vmem:[%s354 + $0x1d8] sm:$0xff]
        %v712 = vld [vmem:[%s354 + $0x1e0] sm:$0xff]
        %v713 = vld [vmem:[%s354 + $0x1e8] sm:$0xff]
        %v714 = vld [vmem:[%s354 + $0x1f0] sm:$0xff]
        %v715 = vld [vmem:[%s354 + $0x1f8] sm:$0xff]
        %v716 = vld [vmem:[%s354 + $0x200] sm:$0xff]
        %v717 = vld [vmem:[%s354 + $0x208] sm:$0xff]
        %v718 = vld [vmem:[%s354 + $0x210] sm:$0xff]
        %v719 = vld [vmem:[%s354 + $0x218] sm:$0xff]
        %v720 = vld [vmem:[%s354 + $0x220] sm:$0xff]
        %v721 = vld [vmem:[%s354 + $0x228] sm:$0xff]
        %v722 = vld [vmem:[%s354 + $0x230] sm:$0xff]
        %v723 = vld [vmem:[%s354 + $0x238] sm:$0xff]
        %v724 = vld [vmem:[%s354 + $0x240] sm:$0xff]
        %v725 = vld [vmem:[%s354 + $0x248] sm:$0xff]
        %v726 = vld [vmem:[%s354 + $0x250] sm:$0xff]
        %v727 = vld [vmem:[%s354 + $0x258] sm:$0xff]
        %v728 = vld [vmem:[%s354 + $0x260] sm:$0xff]
        %v729 = vld [vmem:[%s354 + $0x268] sm:$0xff]
        %v730 = vld [vmem:[%s354 + $0x270] sm:$0xff]
        %v731 = vld [vmem:[%s354 + $0x278] sm:$0xff]
        %v732 = vld [vmem:[%s354 + $0x280] sm:$0xff]
        %v733 = vld [vmem:[%s354 + $0x288] sm:$0xff]
        %v734 = vld [vmem:[%s354 + $0x290] sm:$0xff]
        %v735 = vld [vmem:[%s354 + $0x298] sm:$0xff]
        %v736 = vld [vmem:[%s354 + $0x2a0] sm:$0xff]
        %v737 = vld [vmem:[%s354 + $0x2a8] sm:$0xff]
        %v738 = vld [vmem:[%s354 + $0x2b0] sm:$0xff]
        %v739 = vld [vmem:[%s354 + $0x2b8] sm:$0xff]
        %v740 = vld [vmem:[%s354 + $0x2c0] sm:$0xff]
        %v741 = vld [vmem:[%s354 + $0x2c8] sm:$0xff]
        %v742 = vld [vmem:[%s354 + $0x2d0] sm:$0xff]
        %v743 = vld [vmem:[%s354 + $0x2d8] sm:$0xff]
        %v744 = vld [vmem:[%s354 + $0x2e0] sm:$0xff]
        %v745 = vld [vmem:[%s354 + $0x2e8] sm:$0xff]
        %v746 = vld [vmem:[%s354 + $0x2f0] sm:$0xff]
        %v747 = vld [vmem:[%s354 + $0x2f8] sm:$0xff]
        %v748 = vld [vmem:[%s354 + $0x300] sm:$0xff]
        %v749 = vld [vmem:[%s354 + $0x308] sm:$0xff]
        %v750 = vld [vmem:[%s354 + $0x310] sm:$0xff]
        %v751 = vld [vmem:[%s354 + $0x318] sm:$0xff]
        %v752 = vld [vmem:[%s354 + $0x320] sm:$0xff]
        %v753 = vld [vmem:[%s354 + $0x328] sm:$0xff]
        %v754 = vld [vmem:[%s354 + $0x330] sm:$0xff]
        %v755 = vld [vmem:[%s354 + $0x338] sm:$0xff]
        %v756 = vld [vmem:[%s354 + $0x340] sm:$0xff]
        %v757 = vld [vmem:[%s354 + $0x348] sm:$0xff]
        %v758 = vld [vmem:[%s354 + $0x350] sm:$0xff]
        %v759 = vld [vmem:[%s354 + $0x358] sm:$0xff]
        %v760 = vld [vmem:[%s354 + $0x360] sm:$0xff]
        %v761 = vld [vmem:[%s354 + $0x368] sm:$0xff]
        %v762 = vld [vmem:[%s354 + $0x370] sm:$0xff]
        %v763 = vld [vmem:[%s354 + $0x378] sm:$0xff]
        %v764 = vld [vmem:[%s354 + $0x380] sm:$0xff]
        %v765 = vld [vmem:[%s354 + $0x388] sm:$0xff]
        %v766 = vld [vmem:[%s354 + $0x390] sm:$0xff]
        %v767 = vld [vmem:[%s354 + $0x398] sm:$0xff]
        %v768 = vld [vmem:[%s354 + $0x3a0] sm:$0xff]
        %v769 = vld [vmem:[%s354 + $0x3a8] sm:$0xff]
        %v770 = vld [vmem:[%s354 + $0x3b0] sm:$0xff]
        %v771 = vld [vmem:[%s354 + $0x3b8] sm:$0xff]
        %v772 = vld [vmem:[%s354 + $0x3c0] sm:$0xff]
        %v773 = vld [vmem:[%s354 + $0x3c8] sm:$0xff]
        %v774 = vld [vmem:[%s354 + $0x3d0] sm:$0xff]
        %v775 = vld [vmem:[%s354 + $0x3d8] sm:$0xff]
        %v776 = vld [vmem:[%s354 + $0x3e0] sm:$0xff]
        %v777 = vld [vmem:[%s354 + $0x3e8] sm:$0xff]
        %v778 = vld [vmem:[%s354 + $0x3f0] sm:$0xff]
        %v779 = vld [vmem:[%s354 + $0x3f8] sm:$0xff]
        %v780 = vld [vmem:[%s354 + $0x400] sm:$0xff]
        %v781 = vld [vmem:[%s354 + $0x408] sm:$0xff]
        %v782 = vld [vmem:[%s354 + $0x410] sm:$0xff]
        %v783 = vld [vmem:[%s354 + $0x418] sm:$0xff]
        %v784 = vld [vmem:[%s354 + $0x420] sm:$0xff]
        %v785 = vld [vmem:[%s354 + $0x428] sm:$0xff]
        %v786 = vld [vmem:[%s354 + $0x430] sm:$0xff]
        %v787 = vld [vmem:[%s354 + $0x438] sm:$0xff]
        %v788 = vld [vmem:[%s354 + $0x440] sm:$0xff]
        %v789 = vld [vmem:[%s354 + $0x448] sm:$0xff]
        %v790 = vld [vmem:[%s354 + $0x450] sm:$0xff]
        %v791 = vld [vmem:[%s354 + $0x458] sm:$0xff]
        %v792 = vld [vmem:[%s354 + $0x460] sm:$0xff]
        %v793 = vld [vmem:[%s354 + $0x468] sm:$0xff]
        %v794 = vld [vmem:[%s354 + $0x470] sm:$0xff]
        %v795 = vld [vmem:[%s354 + $0x478] sm:$0xff]
        %v796 = vld [vmem:[%s354 + $0x480] sm:$0xff]
        %v797 = vld [vmem:[%s354 + $0x488] sm:$0xff]
        %v798 = vld [vmem:[%s354 + $0x490] sm:$0xff]
        %v799 = vld [vmem:[%s354 + $0x498] sm:$0xff]
        %v800 = vld [vmem:[%s354 + $0x4a0] sm:$0xff]
        %v801 = vld [vmem:[%s354 + $0x4a8] sm:$0xff]
        %v802 = vld [vmem:[%s354 + $0x4b0] sm:$0xff]
        %v803 = vld [vmem:[%s354 + $0x4b8] sm:$0xff]
        %v804 = vld [vmem:[%s354 + $0x4c0] sm:$0xff]
        %v805 = vld [vmem:[%s354 + $0x4c8] sm:$0xff]
        %v806 = vld [vmem:[%s354 + $0x4d0] sm:$0xff]
        %v807 = vld [vmem:[%s354 + $0x4d8] sm:$0xff]
        %v808 = vld [vmem:[%s354 + $0x4e0] sm:$0xff]
        %v809 = vld [vmem:[%s354 + $0x4e8] sm:$0xff]
        %v810 = vld [vmem:[%s354 + $0x4f0] sm:$0xff]
        %v811 = vld [vmem:[%s354 + $0x4f8] sm:$0xff]
        %v812 = vld [vmem:[%s354 + $0x500] sm:$0xff]
        %v813 = vld [vmem:[%s354 + $0x508] sm:$0xff]
        %v814 = vld [vmem:[%s354 + $0x510] sm:$0xff]
        %v815 = vld [vmem:[%s354 + $0x518] sm:$0xff]
        %v816 = vld [vmem:[%s354 + $0x520] sm:$0xff]
        %v817 = vld [vmem:[%s354 + $0x528] sm:$0xff]
        %v818 = vld [vmem:[%s354 + $0x530] sm:$0xff]
        %v819 = vld [vmem:[%s354 + $0x538] sm:$0xff]
        %v820 = vld [vmem:[%s354 + $0x540] sm:$0xff]
        %v821 = vld [vmem:[%s354 + $0x548] sm:$0xff]
        %v822 = vld [vmem:[%s354 + $0x550] sm:$0xff]
        %v823 = vld [vmem:[%s354 + $0x558] sm:$0xff]
        %v824 = vld [vmem:[%s354 + $0x560] sm:$0xff]
        %v825 = vld [vmem:[%s354 + $0x568] sm:$0xff]
        %v826 = vld [vmem:[%s354 + $0x570] sm:$0xff]
        %v827 = vld [vmem:[%s354 + $0x578] sm:$0xff]
        %v828 = vld [vmem:[%s354 + $0x580] sm:$0xff]
        %v829 = vld [vmem:[%s354 + $0x588] sm:$0xff]
        %v830 = vld [vmem:[%s354 + $0x590] sm:$0xff]
        %v831 = vld [vmem:[%s354 + $0x598] sm:$0xff]
        %v832 = vld [vmem:[%s354 + $0x5a0] sm:$0xff]
        %v833 = vld [vmem:[%s354 + $0x5a8] sm:$0xff]
        %v834 = vld [vmem:[%s354 + $0x5b0] sm:$0xff]
        %v835 = vld [vmem:[%s354 + $0x5b8] sm:$0xff]
        %v836 = vld [vmem:[%s354 + $0x5c0] sm:$0xff]
        %v837 = vld [vmem:[%s354 + $0x5c8] sm:$0xff]
        %v838 = vld [vmem:[%s354 + $0x5d0] sm:$0xff]
        %v839 = vld [vmem:[%s354 + $0x5d8] sm:$0xff]
        %v840 = vld [vmem:[%s354 + $0x5e0] sm:$0xff]
        %v841 = vld [vmem:[%s354 + $0x5e8] sm:$0xff]
        %v842 = vld [vmem:[%s354 + $0x5f0] sm:$0xff]
        %v843 = vld [vmem:[%s354 + $0x5f8] sm:$0xff]
        %v844 = vld [vmem:[%s354 + $0x600] sm:$0xff]
        %v845 = vld [vmem:[%s354 + $0x608] sm:$0xff]
        %v846 = vld [vmem:[%s354 + $0x610] sm:$0xff]
        %v847 = vld [vmem:[%s354 + $0x618] sm:$0xff]
        %v848 = vld [vmem:[%s354 + $0x620] sm:$0xff]
        %v849 = vld [vmem:[%s354 + $0x628] sm:$0xff]
        %v850 = vld [vmem:[%s354 + $0x630] sm:$0xff]
        %v851 = vld [vmem:[%s354 + $0x638] sm:$0xff]
        %v852 = vld [vmem:[%s354 + $0x640] sm:$0xff]
        %v853 = vld [vmem:[%s354 + $0x648] sm:$0xff]
        %v854 = vld [vmem:[%s354 + $0x650] sm:$0xff]
        %v855 = vld [vmem:[%s354 + $0x658] sm:$0xff]
        %v856 = vld [vmem:[%s354 + $0x660] sm:$0xff]
        %v857 = vld [vmem:[%s354 + $0x668] sm:$0xff]
        %v858 = vld [vmem:[%s354 + $0x670] sm:$0xff]
        %v859 = vld [vmem:[%s354 + $0x678] sm:$0xff]
        %v860 = vld [vmem:[%s354 + $0x680] sm:$0xff]
        %v861 = vld [vmem:[%s354 + $0x688] sm:$0xff]
        %v862 = vld [vmem:[%s354 + $0x690] sm:$0xff]
        %v863 = vld [vmem:[%s354 + $0x698] sm:$0xff]
        %v864 = vld [vmem:[%s354 + $0x6a0] sm:$0xff]
        %v865 = vld [vmem:[%s354 + $0x6a8] sm:$0xff]
        %v866 = vld [vmem:[%s354 + $0x6b0] sm:$0xff]
        %v867 = vld [vmem:[%s354 + $0x6b8] sm:$0xff]
        %v868 = vld [vmem:[%s354 + $0x6c0] sm:$0xff]
        %v869 = vld [vmem:[%s354 + $0x6c8] sm:$0xff]
        %v870 = vld [vmem:[%s354 + $0x6d0] sm:$0xff]
        %v871 = vld [vmem:[%s354 + $0x6d8] sm:$0xff]
        %v872 = vld [vmem:[%s354 + $0x6e0] sm:$0xff]
        %v873 = vld [vmem:[%s354 + $0x6e8] sm:$0xff]
        %v874 = vld [vmem:[%s354 + $0x6f0] sm:$0xff]
        %v875 = vld [vmem:[%s354 + $0x6f8] sm:$0xff]
        %v876 = vld [vmem:[%s354 + $0x700] sm:$0xff]
        %v877 = vld [vmem:[%s354 + $0x708] sm:$0xff]
        %v878 = vld [vmem:[%s354 + $0x710] sm:$0xff]
        %v879 = vld [vmem:[%s354 + $0x718] sm:$0xff]
        %v880 = vld [vmem:[%s354 + $0x720] sm:$0xff]
        %v881 = vld [vmem:[%s354 + $0x728] sm:$0xff]
        %v882 = vld [vmem:[%s354 + $0x730] sm:$0xff]
        %v883 = vld [vmem:[%s354 + $0x738] sm:$0xff]
        %v884 = vld [vmem:[%s354 + $0x740] sm:$0xff]
        %v885 = vld [vmem:[%s354 + $0x748] sm:$0xff]
        %v886 = vld [vmem:[%s354 + $0x750] sm:$0xff]
        %v887 = vld [vmem:[%s354 + $0x758] sm:$0xff]
        %v888 = vld [vmem:[%s354 + $0x760] sm:$0xff]
        %v889 = vld [vmem:[%s354 + $0x768] sm:$0xff]
        %v890 = vld [vmem:[%s354 + $0x770] sm:$0xff]
        %v891 = vld [vmem:[%s354 + $0x778] sm:$0xff]
        %v892 = vld [vmem:[%s354 + $0x780] sm:$0xff]
        %v893 = vld [vmem:[%s354 + $0x788] sm:$0xff]
        %v894 = vld [vmem:[%s354 + $0x790] sm:$0xff]
        %v895 = vld [vmem:[%s354 + $0x798] sm:$0xff]
        %v896 = vld [vmem:[%s354 + $0x7a0] sm:$0xff]
        %v897 = vld [vmem:[%s354 + $0x7a8] sm:$0xff]
        %v898 = vld [vmem:[%s354 + $0x7b0] sm:$0xff]
        %v899 = vld [vmem:[%s354 + $0x7b8] sm:$0xff]
        %v900 = vld [vmem:[%s354 + $0x7c0] sm:$0xff]
        %v901 = vld [vmem:[%s354 + $0x7c8] sm:$0xff]
        %v902 = vld [vmem:[%s354 + $0x7d0] sm:$0xff]
        %v903 = vld [vmem:[%s354 + $0x7d8] sm:$0xff]
        %v904 = vld [vmem:[%s354 + $0x7e0] sm:$0xff]
        %v905 = vld [vmem:[%s354 + $0x7e8] sm:$0xff]
        %v906 = vld [vmem:[%s354 + $0x7f0] sm:$0xff]
        %v907 = vld [vmem:[%s354 + $0x7f8] sm:$0xff]
        %v908 = vld [vmem:[%s354 + $0x800] sm:$0xff]
        %v909 = vld [vmem:[%s354 + $0x808] sm:$0xff]
        %v910 = vld [vmem:[%s354 + $0x810] sm:$0xff]
        %v911 = vld [vmem:[%s354 + $0x818] sm:$0xff]
        %v912 = vld [vmem:[%s354 + $0x820] sm:$0xff]
        %v913 = vld [vmem:[%s354 + $0x828] sm:$0xff]
        %v914 = vld [vmem:[%s354 + $0x830] sm:$0xff]
        %v915 = vld [vmem:[%s354 + $0x838] sm:$0xff]
        %v916 = vld [vmem:[%s354 + $0x840] sm:$0xff]
        %v917 = vld [vmem:[%s354 + $0x848] sm:$0xff]
        %v918 = vld [vmem:[%s354 + $0x850] sm:$0xff]
        %v919 = vld [vmem:[%s354 + $0x858] sm:$0xff]
        %v920 = vld [vmem:[%s354 + $0x860] sm:$0xff]
        %v921 = vld [vmem:[%s354 + $0x868] sm:$0xff]
        %v922 = vld [vmem:[%s354 + $0x870] sm:$0xff]
        %v923 = vld [vmem:[%s354 + $0x878] sm:$0xff]
        %v924 = vld [vmem:[%s354 + $0x880] sm:$0xff]
        %v925 = vld [vmem:[%s354 + $0x888] sm:$0xff]
        %v926 = vld [vmem:[%s354 + $0x890] sm:$0xff]
        %v927 = vld [vmem:[%s354 + $0x898] sm:$0xff]
        %v928 = vld [vmem:[%s354 + $0x8a0] sm:$0xff]
        %v929 = vld [vmem:[%s354 + $0x8a8] sm:$0xff]
        %v930 = vld [vmem:[%s354 + $0x8b0] sm:$0xff]
        %v931 = vld [vmem:[%s354 + $0x8b8] sm:$0xff]
        %v932 = vld [vmem:[%s354 + $0x8c0] sm:$0xff]
        %v933 = vld [vmem:[%s354 + $0x8c8] sm:$0xff]
        %v934 = vld [vmem:[%s354 + $0x8d0] sm:$0xff]
        %v935 = vld [vmem:[%s354 + $0x8d8] sm:$0xff]
        %v936 = vld [vmem:[%s354 + $0x8e0] sm:$0xff]
        %v937 = vld [vmem:[%s354 + $0x8e8] sm:$0xff]
        %v938 = vld [vmem:[%s354 + $0x8f0] sm:$0xff]
        %v939 = vld [vmem:[%s354 + $0x8f8] sm:$0xff]
        %v940 = vld [vmem:[%s354 + $0x900] sm:$0xff]
        %v941 = vld [vmem:[%s354 + $0x908] sm:$0xff]
        %v942 = vld [vmem:[%s354 + $0x910] sm:$0xff]
        %v943 = vld [vmem:[%s354 + $0x918] sm:$0xff]
        %v944 = vld [vmem:[%s354 + $0x920] sm:$0xff]
        %v945 = vld [vmem:[%s354 + $0x928] sm:$0xff]
        %v946 = vld [vmem:[%s354 + $0x930] sm:$0xff]
        %v947 = vld [vmem:[%s354 + $0x938] sm:$0xff]
        %v948 = vld [vmem:[%s354 + $0x940] sm:$0xff]
        %v949 = vld [vmem:[%s354 + $0x948] sm:$0xff]
        %v950 = vld [vmem:[%s354 + $0x950] sm:$0xff]
        %v951 = vld [vmem:[%s354 + $0x958] sm:$0xff]
        %v952 = vld [vmem:[%s354 + $0x960] sm:$0xff]
        %v953 = vld [vmem:[%s354 + $0x968] sm:$0xff]
        %v954 = vld [vmem:[%s354 + $0x970] sm:$0xff]
        %v955 = vld [vmem:[%s354 + $0x978] sm:$0xff]
        %v956 = vld [vmem:[%s354 + $0x980] sm:$0xff]
        %v957 = vld [vmem:[%s354 + $0x988] sm:$0xff]
        %v958 = vld [vmem:[%s354 + $0x990] sm:$0xff]
        %v959 = vld [vmem:[%s354 + $0x998] sm:$0xff]
        %v960 = vld [vmem:[%s354 + $0x9a0] sm:$0xff]
        %v961 = vld [vmem:[%s354 + $0x9a8] sm:$0xff]
        %v962 = vld [vmem:[%s354 + $0x9b0] sm:$0xff]
        %v963 = vld [vmem:[%s354 + $0x9b8] sm:$0xff]
        %v964 = vld [vmem:[%s354 + $0x9c0] sm:$0xff]
        %v965 = vld [vmem:[%s354 + $0x9c8] sm:$0xff]
        %v966 = vld [vmem:[%s354 + $0x9d0] sm:$0xff]
        %v967 = vld [vmem:[%s354 + $0x9d8] sm:$0xff]
        %v968 = vld [vmem:[%s354 + $0x9e0] sm:$0xff]
        %v969 = vld [vmem:[%s354 + $0x9e8] sm:$0xff]
        %v970 = vld [vmem:[%s354 + $0x9f0] sm:$0xff]
        %v971 = vld [vmem:[%s354 + $0x9f8] sm:$0xff]
        %v972 = vld [vmem:[%s354 + $0xa00] sm:$0xff]
        %v973 = vld [vmem:[%s354 + $0xa08] sm:$0xff]
        %v974 = vld [vmem:[%s354 + $0xa10] sm:$0xff]
        %v975 = vld [vmem:[%s354 + $0xa18] sm:$0xff]
        %v976 = vld [vmem:[%s354 + $0xa20] sm:$0xff]
        %v977 = vld [vmem:[%s354 + $0xa28] sm:$0xff]
        %v978 = vld [vmem:[%s354 + $0xa30] sm:$0xff]
        %v979 = vld [vmem:[%s354 + $0xa38] sm:$0xff]
        %v980 = vld [vmem:[%s354 + $0xa40] sm:$0xff]
        %v981 = vld [vmem:[%s354 + $0xa48] sm:$0xff]
        %v982 = vld [vmem:[%s354 + $0xa50] sm:$0xff]
        %v983 = vld [vmem:[%s354 + $0xa58] sm:$0xff]
        %v984 = vld [vmem:[%s354 + $0xa60] sm:$0xff]
        %v985 = vld [vmem:[%s354 + $0xa68] sm:$0xff]
        %v986 = vld [vmem:[%s354 + $0xa70] sm:$0xff]
        %v987 = vld [vmem:[%s354 + $0xa78] sm:$0xff]
        %v988 = vld [vmem:[%s354 + $0xa80] sm:$0xff]
        %v989 = vld [vmem:[%s354 + $0xa88] sm:$0xff]
        %v990 = vld [vmem:[%s354 + $0xa90] sm:$0xff]
        %v991 = vld [vmem:[%s354 + $0xa98] sm:$0xff]
        %v992 = vld [vmem:[%s354 + $0xaa0] sm:$0xff]
        %v993 = vld [vmem:[%s354 + $0xaa8] sm:$0xff]
        %v994 = vld [vmem:[%s354 + $0xab0] sm:$0xff]
        %v995 = vld [vmem:[%s354 + $0xab8] sm:$0xff]
        %v996 = vld [vmem:[%s354 + $0xac0] sm:$0xff]
        %v997 = vld [vmem:[%s354 + $0xac8] sm:$0xff]
        %v998 = vld [vmem:[%s354 + $0xad0] sm:$0xff]
        %v999 = vld [vmem:[%s354 + $0xad8] sm:$0xff]
        %v1000 = vld [vmem:[%s354 + $0xae0] sm:$0xff]
        %v1001 = vld [vmem:[%s354 + $0xae8] sm:$0xff]
        %v1002 = vld [vmem:[%s354 + $0xaf0] sm:$0xff]
        %v1003 = vld [vmem:[%s354 + $0xaf8] sm:$0xff]
        %v1004 = vld [vmem:[%s354 + $0xb00] sm:$0xff]
        %v1005 = vld [vmem:[%s354 + $0xb08] sm:$0xff]
        %v1006 = vld [vmem:[%s354 + $0xb10] sm:$0xff]
        %v1007 = vld [vmem:[%s354 + $0xb18] sm:$0xff]
        %v1008 = vld [vmem:[%s354 + $0xb20] sm:$0xff]
        %v1009 = vld [vmem:[%s354 + $0xb28] sm:$0xff]
        %v1010 = vld [vmem:[%s354 + $0xb30] sm:$0xff]
        %v1011 = vld [vmem:[%s354 + $0xb38] sm:$0xff]
        %v1012 = vld [vmem:[%s354 + $0xb40] sm:$0xff]
        %v1013 = vld [vmem:[%s354 + $0xb48] sm:$0xff]
        %v1014 = vld [vmem:[%s354 + $0xb50] sm:$0xff]
        %v1015 = vld [vmem:[%s354 + $0xb58] sm:$0xff]
        %v1016 = vld [vmem:[%s354 + $0xb60] sm:$0xff]
        %v1017 = vld [vmem:[%s354 + $0xb68] sm:$0xff]
        %v1018 = vld [vmem:[%s354 + $0xb70] sm:$0xff]
        %v1019 = vld [vmem:[%s354 + $0xb78] sm:$0xff]
        %v1020 = vld [vmem:[%s354 + $0xb80] sm:$0xff]
        %v1021 = vld [vmem:[%s354 + $0xb88] sm:$0xff]
        %v1022 = vld [vmem:[%s354 + $0xb90] sm:$0xff]
        %v1023 = vld [vmem:[%s354 + $0xb98] sm:$0xff]
        %v1024 = vld [vmem:[%s354 + $0xba0] sm:$0xff]
        %v1025 = vld [vmem:[%s354 + $0xba8] sm:$0xff]
        %v1026 = vld [vmem:[%s354 + $0xbb0] sm:$0xff]
        %v1027 = vld [vmem:[%s354 + $0xbb8] sm:$0xff]
        %v1028 = vld [vmem:[%s354 + $0xbc0] sm:$0xff]
        %v1029 = vld [vmem:[%s354 + $0xbc8] sm:$0xff]
        %v1030 = vld [vmem:[%s354 + $0xbd0] sm:$0xff]
        %v1031 = vld [vmem:[%s354 + $0xbd8] sm:$0xff]
        %v1032 = vld [vmem:[%s354 + $0xbe0] sm:$0xff]
        %v1033 = vld [vmem:[%s354 + $0xbe8] sm:$0xff]
        %v1034 = vld [vmem:[%s354 + $0xbf0] sm:$0xff]
        %v1035 = vld [vmem:[%s354 + $0xbf8] sm:$0xff]
        %v1036 = vld [vmem:[%s354 + $0xc00] sm:$0xff]
        %v1037 = vld [vmem:[%s354 + $0xc08] sm:$0xff]
        %v1038 = vld [vmem:[%s354 + $0xc10] sm:$0xff]
        %v1039 = vld [vmem:[%s354 + $0xc18] sm:$0xff]
        %v1040 = vld [vmem:[%s354 + $0xc20] sm:$0xff]
        %v1041 = vld [vmem:[%s354 + $0xc28] sm:$0xff]
        %v1042 = vld [vmem:[%s354 + $0xc30] sm:$0xff]
        %v1043 = vld [vmem:[%s354 + $0xc38] sm:$0xff]
        %v1044 = vld [vmem:[%s354 + $0xc40] sm:$0xff]
        %v1045 = vld [vmem:[%s354 + $0xc48] sm:$0xff]
        %v1046 = vld [vmem:[%s354 + $0xc50] sm:$0xff]
        %v1047 = vld [vmem:[%s354 + $0xc58] sm:$0xff]
        %v1048 = vld [vmem:[%s354 + $0xc60] sm:$0xff]
        %v1049 = vld [vmem:[%s354 + $0xc68] sm:$0xff]
        %v1050 = vld [vmem:[%s354 + $0xc70] sm:$0xff]
        %v1051 = vld [vmem:[%s354 + $0xc78] sm:$0xff]
        %v1052 = vld [vmem:[%s354 + $0xc80] sm:$0xff]
        %v1053 = vld [vmem:[%s354 + $0xc88] sm:$0xff]
        %v1054 = vld [vmem:[%s354 + $0xc90] sm:$0xff]
        %v1055 = vld [vmem:[%s354 + $0xc98] sm:$0xff]
        %v1056 = vld [vmem:[%s354 + $0xca0] sm:$0xff]
        %v1057 = vld [vmem:[%s354 + $0xca8] sm:$0xff]
        %v1058 = vld [vmem:[%s354 + $0xcb0] sm:$0xff]
        %v1059 = vld [vmem:[%s354 + $0xcb8] sm:$0xff]
        %v1060 = vld [vmem:[%s354 + $0xcc0] sm:$0xff]
        %v1061 = vld [vmem:[%s354 + $0xcc8] sm:$0xff]
        %v1062 = vld [vmem:[%s354 + $0xcd0] sm:$0xff]
        %v1063 = vld [vmem:[%s354 + $0xcd8] sm:$0xff]
        %v1064 = vld [vmem:[%s354 + $0xce0] sm:$0xff]
        %v1065 = vld [vmem:[%s354 + $0xce8] sm:$0xff]
        %v1066 = vld [vmem:[%s354 + $0xcf0] sm:$0xff]
        %v1067 = vld [vmem:[%s354 + $0xcf8] sm:$0xff]
        %v1068 = vld [vmem:[%s354 + $0xd00] sm:$0xff]
        %v1069 = vld [vmem:[%s354 + $0xd08] sm:$0xff]
        %v1070 = vld [vmem:[%s354 + $0xd10] sm:$0xff]
        %v1071 = vld [vmem:[%s354 + $0xd18] sm:$0xff]
        %v1072 = vld [vmem:[%s354 + $0xd20] sm:$0xff]
        %v1073 = vld [vmem:[%s354 + $0xd28] sm:$0xff]
        %v1074 = vld [vmem:[%s354 + $0xd30] sm:$0xff]
        %v1075 = vld [vmem:[%s354 + $0xd38] sm:$0xff]
        %v1076 = vld [vmem:[%s354 + $0xd40] sm:$0xff]
        %v1077 = vld [vmem:[%s354 + $0xd48] sm:$0xff]
        %v1078 = vld [vmem:[%s354 + $0xd50] sm:$0xff]
        %v1079 = vld [vmem:[%s354 + $0xd58] sm:$0xff]
        %v1080 = vld [vmem:[%s354 + $0xd60] sm:$0xff]
        %v1081 = vld [vmem:[%s354 + $0xd68] sm:$0xff]
        %v1082 = vld [vmem:[%s354 + $0xd70] sm:$0xff]
        %v1083 = vld [vmem:[%s354 + $0xd78] sm:$0xff]
        %v1084 = vld [vmem:[%s354 + $0xd80] sm:$0xff]
        %v1085 = vld [vmem:[%s354 + $0xd88] sm:$0xff]
        %v1086 = vld [vmem:[%s354 + $0xd90] sm:$0xff]
        %v1087 = vld [vmem:[%s354 + $0xd98] sm:$0xff]
        %v1088 = vld [vmem:[%s354 + $0xda0] sm:$0xff]
        %v1089 = vld [vmem:[%s354 + $0xda8] sm:$0xff]
        %v1090 = vld [vmem:[%s354 + $0xdb0] sm:$0xff]
        %v1091 = vld [vmem:[%s354 + $0xdb8] sm:$0xff]
        %v1092 = vld [vmem:[%s354 + $0xdc0] sm:$0xff]
        %v1093 = vld [vmem:[%s354 + $0xdc8] sm:$0xff]
        %v1094 = vld [vmem:[%s354 + $0xdd0] sm:$0xff]
        %v1095 = vld [vmem:[%s354 + $0xdd8] sm:$0xff]
        %v1096 = vld [vmem:[%s354 + $0xde0] sm:$0xff]
        %v1097 = vld [vmem:[%s354 + $0xde8] sm:$0xff]
        %v1098 = vld [vmem:[%s354 + $0xdf0] sm:$0xff]
        %v1099 = vld [vmem:[%s354 + $0xdf8] sm:$0xff]
        %v1100 = vld [vmem:[%s354 + $0xe00] sm:$0xff]
        %v1101 = vld [vmem:[%s354 + $0xe08] sm:$0xff]
        %v1102 = vld [vmem:[%s354 + $0xe10] sm:$0xff]
        %v1103 = vld [vmem:[%s354 + $0xe18] sm:$0xff]
        %v1104 = vld [vmem:[%s354 + $0xe20] sm:$0xff]
        %v1105 = vld [vmem:[%s354 + $0xe28] sm:$0xff]
        %v1106 = vld [vmem:[%s354 + $0xe30] sm:$0xff]
        %v1107 = vld [vmem:[%s354 + $0xe38] sm:$0xff]
        %v1108 = vld [vmem:[%s354 + $0xe40] sm:$0xff]
        %v1109 = vld [vmem:[%s354 + $0xe48] sm:$0xff]
        %v1110 = vld [vmem:[%s354 + $0xe50] sm:$0xff]
        %v1111 = vld [vmem:[%s354 + $0xe58] sm:$0xff]
        %v1112 = vld [vmem:[%s354 + $0xe60] sm:$0xff]
        %v1113 = vld [vmem:[%s354 + $0xe68] sm:$0xff]
        %v1114 = vld [vmem:[%s354 + $0xe70] sm:$0xff]
        %v1115 = vld [vmem:[%s354 + $0xe78] sm:$0xff]
        %v1116 = vld [vmem:[%s354 + $0xe80] sm:$0xff]
        %v1117 = vld [vmem:[%s354 + $0xe88] sm:$0xff]
        %v1118 = vld [vmem:[%s354 + $0xe90] sm:$0xff]
        %v1119 = vld [vmem:[%s354 + $0xe98] sm:$0xff]
        %v1120 = vld [vmem:[%s354 + $0xea0] sm:$0xff]
        %v1121 = vld [vmem:[%s354 + $0xea8] sm:$0xff]
        %v1122 = vld [vmem:[%s354 + $0xeb0] sm:$0xff]
        %v1123 = vld [vmem:[%s354 + $0xeb8] sm:$0xff]
        %v1124 = vld [vmem:[%s354 + $0xec0] sm:$0xff]
        %v1125 = vld [vmem:[%s354 + $0xec8] sm:$0xff]
        %v1126 = vld [vmem:[%s354 + $0xed0] sm:$0xff]
        %v1127 = vld [vmem:[%s354 + $0xed8] sm:$0xff]
        %v1128 = vld [vmem:[%s354 + $0xee0] sm:$0xff]
        %v1129 = vld [vmem:[%s354 + $0xee8] sm:$0xff]
        %v1130 = vld [vmem:[%s354 + $0xef0] sm:$0xff]
        %v1131 = vld [vmem:[%s354 + $0xef8] sm:$0xff]
        %v1132 = vld [vmem:[%s354 + $0xf00] sm:$0xff]
        %v1133 = vld [vmem:[%s354 + $0xf08] sm:$0xff]
        %v1134 = vld [vmem:[%s354 + $0xf10] sm:$0xff]
        %v1135 = vld [vmem:[%s354 + $0xf18] sm:$0xff]
        %v1136 = vld [vmem:[%s354 + $0xf20] sm:$0xff]
        %v1137 = vld [vmem:[%s354 + $0xf28] sm:$0xff]
        %v1138 = vld [vmem:[%s354 + $0xf30] sm:$0xff]
        %v1139 = vld [vmem:[%s354 + $0xf38] sm:$0xff]
        %v1140 = vld [vmem:[%s354 + $0xf40] sm:$0xff]
        %v1141 = vld [vmem:[%s354 + $0xf48] sm:$0xff]
        %v1142 = vld [vmem:[%s354 + $0xf50] sm:$0xff]
        %v1143 = vld [vmem:[%s354 + $0xf58] sm:$0xff]
        %v1144 = vld [vmem:[%s354 + $0xf60] sm:$0xff]
        %v1145 = vld [vmem:[%s354 + $0xf68] sm:$0xff]
        %v1146 = vld [vmem:[%s354 + $0xf70] sm:$0xff]
        %v1147 = vld [vmem:[%s354 + $0xf78] sm:$0xff]
        %v1148 = vld [vmem:[%s354 + $0xf80] sm:$0xff]
        %v1149 = vld [vmem:[%s354 + $0xf88] sm:$0xff]
        %v1150 = vld [vmem:[%s354 + $0xf90] sm:$0xff]
        %v1151 = vld [vmem:[%s354 + $0xf98] sm:$0xff]
        %v1152 = vld [vmem:[%s354 + $0xfa0] sm:$0xff]
        %v1153 = vld [vmem:[%s354 + $0xfa8] sm:$0xff]
        %v1154 = vld [vmem:[%s354 + $0xfb0] sm:$0xff]
        %v1155 = vld [vmem:[%s354 + $0xfb8] sm:$0xff]
        %v1156 = vld [vmem:[%s354 + $0xfc0] sm:$0xff]
        %v1157 = vld [vmem:[%s354 + $0xfc8] sm:$0xff]
        %v1158 = vld [vmem:[%s354 + $0xfd0] sm:$0xff]
        %v1159 = vld [vmem:[%s354 + $0xfd8] sm:$0xff]
        %v1160 = vld [vmem:[%s354 + $0xfe0] sm:$0xff]
        %v1161 = vld [vmem:[%s354 + $0xfe8] sm:$0xff]
        %v1162 = vld [vmem:[%s354 + $0xff0] sm:$0xff]
        %v1163 = vld [vmem:[%s354 + $0xff8] sm:$0xff]
        %v1164 = vunpack.c.l.bf16 %v652
        %v1165 = vunpack.c.h.bf16 %v652
        %v1166 = vunpack.c.l.bf16 %v653
        %v1167 = vunpack.c.h.bf16 %v653
        %v1168 = vunpack.c.l.bf16 %v654
        %v1169 = vunpack.c.h.bf16 %v654
        %v1170 = vunpack.c.l.bf16 %v655
        %v1171 = vunpack.c.h.bf16 %v655
        %v1172 = vunpack.c.l.bf16 %v656
        %v1173 = vunpack.c.h.bf16 %v656
        %v1174 = vunpack.c.l.bf16 %v657
        %v1175 = vunpack.c.h.bf16 %v657
        %v1176 = vunpack.c.l.bf16 %v658
        %v1177 = vunpack.c.h.bf16 %v658
        %v1178 = vunpack.c.l.bf16 %v659
        %v1179 = vunpack.c.h.bf16 %v659
        %v1180 = vunpack.c.l.bf16 %v660
        %v1181 = vunpack.c.h.bf16 %v660
        %v1182 = vunpack.c.l.bf16 %v661
        %v1183 = vunpack.c.h.bf16 %v661
        %v1184 = vunpack.c.l.bf16 %v662
        %v1185 = vunpack.c.h.bf16 %v662
        %v1186 = vunpack.c.l.bf16 %v663
        %v1187 = vunpack.c.h.bf16 %v663
        %v1188 = vunpack.c.l.bf16 %v664
        %v1189 = vunpack.c.h.bf16 %v664
        %v1190 = vunpack.c.l.bf16 %v665
        %v1191 = vunpack.c.h.bf16 %v665
        %v1192 = vunpack.c.l.bf16 %v666
        %v1193 = vunpack.c.h.bf16 %v666
        %v1194 = vunpack.c.l.bf16 %v667
        %v1195 = vunpack.c.h.bf16 %v667
        %v1196 = vunpack.c.l.bf16 %v668
        %v1197 = vunpack.c.h.bf16 %v668
        %v1198 = vunpack.c.l.bf16 %v669
        %v1199 = vunpack.c.h.bf16 %v669
        %v1200 = vunpack.c.l.bf16 %v670
        %v1201 = vunpack.c.h.bf16 %v670
        %v1202 = vunpack.c.l.bf16 %v671
        %v1203 = vunpack.c.h.bf16 %v671
        %v1204 = vunpack.c.l.bf16 %v672
        %v1205 = vunpack.c.h.bf16 %v672
        %v1206 = vunpack.c.l.bf16 %v673
        %v1207 = vunpack.c.h.bf16 %v673
        %v1208 = vunpack.c.l.bf16 %v674
        %v1209 = vunpack.c.h.bf16 %v674
        %v1210 = vunpack.c.l.bf16 %v675
        %v1211 = vunpack.c.h.bf16 %v675
        %v1212 = vunpack.c.l.bf16 %v676
        %v1213 = vunpack.c.h.bf16 %v676
        %v1214 = vunpack.c.l.bf16 %v677
        %v1215 = vunpack.c.h.bf16 %v677
        %v1216 = vunpack.c.l.bf16 %v678
        %v1217 = vunpack.c.h.bf16 %v678
        %v1218 = vunpack.c.l.bf16 %v679
        %v1219 = vunpack.c.h.bf16 %v679
        %v1220 = vunpack.c.l.bf16 %v680
        %v1221 = vunpack.c.h.bf16 %v680
        %v1222 = vunpack.c.l.bf16 %v681
        %v1223 = vunpack.c.h.bf16 %v681
        %v1224 = vunpack.c.l.bf16 %v682
        %v1225 = vunpack.c.h.bf16 %v682
        %v1226 = vunpack.c.l.bf16 %v683
        %v1227 = vunpack.c.h.bf16 %v683
        %v1228 = vunpack.c.l.bf16 %v684
        %v1229 = vunpack.c.h.bf16 %v684
        %v1230 = vunpack.c.l.bf16 %v685
        %v1231 = vunpack.c.h.bf16 %v685
        %v1232 = vunpack.c.l.bf16 %v686
        %v1233 = vunpack.c.h.bf16 %v686
        %v1234 = vunpack.c.l.bf16 %v687
        %v1235 = vunpack.c.h.bf16 %v687
        %v1236 = vunpack.c.l.bf16 %v688
        %v1237 = vunpack.c.h.bf16 %v688
        %v1238 = vunpack.c.l.bf16 %v689
        %v1239 = vunpack.c.h.bf16 %v689
        %v1240 = vunpack.c.l.bf16 %v690
        %v1241 = vunpack.c.h.bf16 %v690
        %v1242 = vunpack.c.l.bf16 %v691
        %v1243 = vunpack.c.h.bf16 %v691
        %v1244 = vunpack.c.l.bf16 %v692
        %v1245 = vunpack.c.h.bf16 %v692
        %v1246 = vunpack.c.l.bf16 %v693
        %v1247 = vunpack.c.h.bf16 %v693
        %v1248 = vunpack.c.l.bf16 %v694
        %v1249 = vunpack.c.h.bf16 %v694
        %v1250 = vunpack.c.l.bf16 %v695
        %v1251 = vunpack.c.h.bf16 %v695
        %v1252 = vunpack.c.l.bf16 %v696
        %v1253 = vunpack.c.h.bf16 %v696
        %v1254 = vunpack.c.l.bf16 %v697
        %v1255 = vunpack.c.h.bf16 %v697
        %v1256 = vunpack.c.l.bf16 %v698
        %v1257 = vunpack.c.h.bf16 %v698
        %v1258 = vunpack.c.l.bf16 %v699
        %v1259 = vunpack.c.h.bf16 %v699
        %v1260 = vunpack.c.l.bf16 %v700
        %v1261 = vunpack.c.h.bf16 %v700
        %v1262 = vunpack.c.l.bf16 %v701
        %v1263 = vunpack.c.h.bf16 %v701
        %v1264 = vunpack.c.l.bf16 %v702
        %v1265 = vunpack.c.h.bf16 %v702
        %v1266 = vunpack.c.l.bf16 %v703
        %v1267 = vunpack.c.h.bf16 %v703
        %v1268 = vunpack.c.l.bf16 %v704
        %v1269 = vunpack.c.h.bf16 %v704
        %v1270 = vunpack.c.l.bf16 %v705
        %v1271 = vunpack.c.h.bf16 %v705
        %v1272 = vunpack.c.l.bf16 %v706
        %v1273 = vunpack.c.h.bf16 %v706
        %v1274 = vunpack.c.l.bf16 %v707
        %v1275 = vunpack.c.h.bf16 %v707
        %v1276 = vunpack.c.l.bf16 %v708
        %v1277 = vunpack.c.h.bf16 %v708
        %v1278 = vunpack.c.l.bf16 %v709
        %v1279 = vunpack.c.h.bf16 %v709
        %v1280 = vunpack.c.l.bf16 %v710
        %v1281 = vunpack.c.h.bf16 %v710
        %v1282 = vunpack.c.l.bf16 %v711
        %v1283 = vunpack.c.h.bf16 %v711
        %v1284 = vunpack.c.l.bf16 %v712
        %v1285 = vunpack.c.h.bf16 %v712
        %v1286 = vunpack.c.l.bf16 %v713
        %v1287 = vunpack.c.h.bf16 %v713
        %v1288 = vunpack.c.l.bf16 %v714
        %v1289 = vunpack.c.h.bf16 %v714
        %v1290 = vunpack.c.l.bf16 %v715
        %v1291 = vunpack.c.h.bf16 %v715
        %v1292 = vunpack.c.l.bf16 %v716
        %v1293 = vunpack.c.h.bf16 %v716
        %v1294 = vunpack.c.l.bf16 %v717
        %v1295 = vunpack.c.h.bf16 %v717
        %v1296 = vunpack.c.l.bf16 %v718
        %v1297 = vunpack.c.h.bf16 %v718
        %v1298 = vunpack.c.l.bf16 %v719
        %v1299 = vunpack.c.h.bf16 %v719
        %v1300 = vunpack.c.l.bf16 %v720
        %v1301 = vunpack.c.h.bf16 %v720
        %v1302 = vunpack.c.l.bf16 %v721
        %v1303 = vunpack.c.h.bf16 %v721
        %v1304 = vunpack.c.l.bf16 %v722
        %v1305 = vunpack.c.h.bf16 %v722
        %v1306 = vunpack.c.l.bf16 %v723
        %v1307 = vunpack.c.h.bf16 %v723
        %v1308 = vunpack.c.l.bf16 %v724
        %v1309 = vunpack.c.h.bf16 %v724
        %v1310 = vunpack.c.l.bf16 %v725
        %v1311 = vunpack.c.h.bf16 %v725
        %v1312 = vunpack.c.l.bf16 %v726
        %v1313 = vunpack.c.h.bf16 %v726
        %v1314 = vunpack.c.l.bf16 %v727
        %v1315 = vunpack.c.h.bf16 %v727
        %v1316 = vunpack.c.l.bf16 %v728
        %v1317 = vunpack.c.h.bf16 %v728
        %v1318 = vunpack.c.l.bf16 %v729
        %v1319 = vunpack.c.h.bf16 %v729
        %v1320 = vunpack.c.l.bf16 %v730
        %v1321 = vunpack.c.h.bf16 %v730
        %v1322 = vunpack.c.l.bf16 %v731
        %v1323 = vunpack.c.h.bf16 %v731
        %v1324 = vunpack.c.l.bf16 %v732
        %v1325 = vunpack.c.h.bf16 %v732
        %v1326 = vunpack.c.l.bf16 %v733
        %v1327 = vunpack.c.h.bf16 %v733
        %v1328 = vunpack.c.l.bf16 %v734
        %v1329 = vunpack.c.h.bf16 %v734
        %v1330 = vunpack.c.l.bf16 %v735
        %v1331 = vunpack.c.h.bf16 %v735
        %v1332 = vunpack.c.l.bf16 %v736
        %v1333 = vunpack.c.h.bf16 %v736
        %v1334 = vunpack.c.l.bf16 %v737
        %v1335 = vunpack.c.h.bf16 %v737
        %v1336 = vunpack.c.l.bf16 %v738
        %v1337 = vunpack.c.h.bf16 %v738
        %v1338 = vunpack.c.l.bf16 %v739
        %v1339 = vunpack.c.h.bf16 %v739
        %v1340 = vunpack.c.l.bf16 %v740
        %v1341 = vunpack.c.h.bf16 %v740
        %v1342 = vunpack.c.l.bf16 %v741
        %v1343 = vunpack.c.h.bf16 %v741
        %v1344 = vunpack.c.l.bf16 %v742
        %v1345 = vunpack.c.h.bf16 %v742
        %v1346 = vunpack.c.l.bf16 %v743
        %v1347 = vunpack.c.h.bf16 %v743
        %v1348 = vunpack.c.l.bf16 %v744
        %v1349 = vunpack.c.h.bf16 %v744
        %v1350 = vunpack.c.l.bf16 %v745
        %v1351 = vunpack.c.h.bf16 %v745
        %v1352 = vunpack.c.l.bf16 %v746
        %v1353 = vunpack.c.h.bf16 %v746
        %v1354 = vunpack.c.l.bf16 %v747
        %v1355 = vunpack.c.h.bf16 %v747
        %v1356 = vunpack.c.l.bf16 %v748
        %v1357 = vunpack.c.h.bf16 %v748
        %v1358 = vunpack.c.l.bf16 %v749
        %v1359 = vunpack.c.h.bf16 %v749
        %v1360 = vunpack.c.l.bf16 %v750
        %v1361 = vunpack.c.h.bf16 %v750
        %v1362 = vunpack.c.l.bf16 %v751
        %v1363 = vunpack.c.h.bf16 %v751
        %v1364 = vunpack.c.l.bf16 %v752
        %v1365 = vunpack.c.h.bf16 %v752
        %v1366 = vunpack.c.l.bf16 %v753
        %v1367 = vunpack.c.h.bf16 %v753
        %v1368 = vunpack.c.l.bf16 %v754
        %v1369 = vunpack.c.h.bf16 %v754
        %v1370 = vunpack.c.l.bf16 %v755
        %v1371 = vunpack.c.h.bf16 %v755
        %v1372 = vunpack.c.l.bf16 %v756
        %v1373 = vunpack.c.h.bf16 %v756
        %v1374 = vunpack.c.l.bf16 %v757
        %v1375 = vunpack.c.h.bf16 %v757
        %v1376 = vunpack.c.l.bf16 %v758
        %v1377 = vunpack.c.h.bf16 %v758
        %v1378 = vunpack.c.l.bf16 %v759
        %v1379 = vunpack.c.h.bf16 %v759
        %v1380 = vunpack.c.l.bf16 %v760
        %v1381 = vunpack.c.h.bf16 %v760
        %v1382 = vunpack.c.l.bf16 %v761
        %v1383 = vunpack.c.h.bf16 %v761
        %v1384 = vunpack.c.l.bf16 %v762
        %v1385 = vunpack.c.h.bf16 %v762
        %v1386 = vunpack.c.l.bf16 %v763
        %v1387 = vunpack.c.h.bf16 %v763
        %v1388 = vunpack.c.l.bf16 %v764
        %v1389 = vunpack.c.h.bf16 %v764
        %v1390 = vunpack.c.l.bf16 %v765
        %v1391 = vunpack.c.h.bf16 %v765
        %v1392 = vunpack.c.l.bf16 %v766
        %v1393 = vunpack.c.h.bf16 %v766
        %v1394 = vunpack.c.l.bf16 %v767
        %v1395 = vunpack.c.h.bf16 %v767
        %v1396 = vunpack.c.l.bf16 %v768
        %v1397 = vunpack.c.h.bf16 %v768
        %v1398 = vunpack.c.l.bf16 %v769
        %v1399 = vunpack.c.h.bf16 %v769
        %v1400 = vunpack.c.l.bf16 %v770
        %v1401 = vunpack.c.h.bf16 %v770
        %v1402 = vunpack.c.l.bf16 %v771
        %v1403 = vunpack.c.h.bf16 %v771
        %v1404 = vunpack.c.l.bf16 %v772
        %v1405 = vunpack.c.h.bf16 %v772
        %v1406 = vunpack.c.l.bf16 %v773
        %v1407 = vunpack.c.h.bf16 %v773
        %v1408 = vunpack.c.l.bf16 %v774
        %v1409 = vunpack.c.h.bf16 %v774
        %v1410 = vunpack.c.l.bf16 %v775
        %v1411 = vunpack.c.h.bf16 %v775
        %v1412 = vunpack.c.l.bf16 %v776
        %v1413 = vunpack.c.h.bf16 %v776
        %v1414 = vunpack.c.l.bf16 %v777
        %v1415 = vunpack.c.h.bf16 %v777
        %v1416 = vunpack.c.l.bf16 %v778
        %v1417 = vunpack.c.h.bf16 %v778
        %v1418 = vunpack.c.l.bf16 %v779
        %v1419 = vunpack.c.h.bf16 %v779
        %v1420 = vunpack.c.l.bf16 %v780
        %v1421 = vunpack.c.h.bf16 %v780
        %v1422 = vunpack.c.l.bf16 %v781
        %v1423 = vunpack.c.h.bf16 %v781
        %v1424 = vunpack.c.l.bf16 %v782
        %v1425 = vunpack.c.h.bf16 %v782
        %v1426 = vunpack.c.l.bf16 %v783
        %v1427 = vunpack.c.h.bf16 %v783
        %v1428 = vunpack.c.l.bf16 %v784
        %v1429 = vunpack.c.h.bf16 %v784
        %v1430 = vunpack.c.l.bf16 %v785
        %v1431 = vunpack.c.h.bf16 %v785
        %v1432 = vunpack.c.l.bf16 %v786
        %v1433 = vunpack.c.h.bf16 %v786
        %v1434 = vunpack.c.l.bf16 %v787
        %v1435 = vunpack.c.h.bf16 %v787
        %v1436 = vunpack.c.l.bf16 %v788
        %v1437 = vunpack.c.h.bf16 %v788
        %v1438 = vunpack.c.l.bf16 %v789
        %v1439 = vunpack.c.h.bf16 %v789
        %v1440 = vunpack.c.l.bf16 %v790
        %v1441 = vunpack.c.h.bf16 %v790
        %v1442 = vunpack.c.l.bf16 %v791
        %v1443 = vunpack.c.h.bf16 %v791
        %v1444 = vunpack.c.l.bf16 %v792
        %v1445 = vunpack.c.h.bf16 %v792
        %v1446 = vunpack.c.l.bf16 %v793
        %v1447 = vunpack.c.h.bf16 %v793
        %v1448 = vunpack.c.l.bf16 %v794
        %v1449 = vunpack.c.h.bf16 %v794
        %v1450 = vunpack.c.l.bf16 %v795
        %v1451 = vunpack.c.h.bf16 %v795
        %v1452 = vunpack.c.l.bf16 %v796
        %v1453 = vunpack.c.h.bf16 %v796
        %v1454 = vunpack.c.l.bf16 %v797
        %v1455 = vunpack.c.h.bf16 %v797
        %v1456 = vunpack.c.l.bf16 %v798
        %v1457 = vunpack.c.h.bf16 %v798
        %v1458 = vunpack.c.l.bf16 %v799
        %v1459 = vunpack.c.h.bf16 %v799
        %v1460 = vunpack.c.l.bf16 %v800
        %v1461 = vunpack.c.h.bf16 %v800
        %v1462 = vunpack.c.l.bf16 %v801
        %v1463 = vunpack.c.h.bf16 %v801
        %v1464 = vunpack.c.l.bf16 %v802
        %v1465 = vunpack.c.h.bf16 %v802
        %v1466 = vunpack.c.l.bf16 %v803
        %v1467 = vunpack.c.h.bf16 %v803
        %v1468 = vunpack.c.l.bf16 %v804
        %v1469 = vunpack.c.h.bf16 %v804
        %v1470 = vunpack.c.l.bf16 %v805
        %v1471 = vunpack.c.h.bf16 %v805
        %v1472 = vunpack.c.l.bf16 %v806
        %v1473 = vunpack.c.h.bf16 %v806
        %v1474 = vunpack.c.l.bf16 %v807
        %v1475 = vunpack.c.h.bf16 %v807
        %v1476 = vunpack.c.l.bf16 %v808
        %v1477 = vunpack.c.h.bf16 %v808
        %v1478 = vunpack.c.l.bf16 %v809
        %v1479 = vunpack.c.h.bf16 %v809
        %v1480 = vunpack.c.l.bf16 %v810
        %v1481 = vunpack.c.h.bf16 %v810
        %v1482 = vunpack.c.l.bf16 %v811
        %v1483 = vunpack.c.h.bf16 %v811
        %v1484 = vunpack.c.l.bf16 %v812
        %v1485 = vunpack.c.h.bf16 %v812
        %v1486 = vunpack.c.l.bf16 %v813
        %v1487 = vunpack.c.h.bf16 %v813
        %v1488 = vunpack.c.l.bf16 %v814
        %v1489 = vunpack.c.h.bf16 %v814
        %v1490 = vunpack.c.l.bf16 %v815
        %v1491 = vunpack.c.h.bf16 %v815
        %v1492 = vunpack.c.l.bf16 %v816
        %v1493 = vunpack.c.h.bf16 %v816
        %v1494 = vunpack.c.l.bf16 %v817
        %v1495 = vunpack.c.h.bf16 %v817
        %v1496 = vunpack.c.l.bf16 %v818
        %v1497 = vunpack.c.h.bf16 %v818
        %v1498 = vunpack.c.l.bf16 %v819
        %v1499 = vunpack.c.h.bf16 %v819
        %v1500 = vunpack.c.l.bf16 %v820
        %v1501 = vunpack.c.h.bf16 %v820
        %v1502 = vunpack.c.l.bf16 %v821
        %v1503 = vunpack.c.h.bf16 %v821
        %v1504 = vunpack.c.l.bf16 %v822
        %v1505 = vunpack.c.h.bf16 %v822
        %v1506 = vunpack.c.l.bf16 %v823
        %v1507 = vunpack.c.h.bf16 %v823
        %v1508 = vunpack.c.l.bf16 %v824
        %v1509 = vunpack.c.h.bf16 %v824
        %v1510 = vunpack.c.l.bf16 %v825
        %v1511 = vunpack.c.h.bf16 %v825
        %v1512 = vunpack.c.l.bf16 %v826
        %v1513 = vunpack.c.h.bf16 %v826
        %v1514 = vunpack.c.l.bf16 %v827
        %v1515 = vunpack.c.h.bf16 %v827
        %v1516 = vunpack.c.l.bf16 %v828
        %v1517 = vunpack.c.h.bf16 %v828
        %v1518 = vunpack.c.l.bf16 %v829
        %v1519 = vunpack.c.h.bf16 %v829
        %v1520 = vunpack.c.l.bf16 %v830
        %v1521 = vunpack.c.h.bf16 %v830
        %v1522 = vunpack.c.l.bf16 %v831
        %v1523 = vunpack.c.h.bf16 %v831
        %v1524 = vunpack.c.l.bf16 %v832
        %v1525 = vunpack.c.h.bf16 %v832
        %v1526 = vunpack.c.l.bf16 %v833
        %v1527 = vunpack.c.h.bf16 %v833
        %v1528 = vunpack.c.l.bf16 %v834
        %v1529 = vunpack.c.h.bf16 %v834
        %v1530 = vunpack.c.l.bf16 %v835
        %v1531 = vunpack.c.h.bf16 %v835
        %v1532 = vunpack.c.l.bf16 %v836
        %v1533 = vunpack.c.h.bf16 %v836
        %v1534 = vunpack.c.l.bf16 %v837
        %v1535 = vunpack.c.h.bf16 %v837
        %v1536 = vunpack.c.l.bf16 %v838
        %v1537 = vunpack.c.h.bf16 %v838
        %v1538 = vunpack.c.l.bf16 %v839
        %v1539 = vunpack.c.h.bf16 %v839
        %v1540 = vunpack.c.l.bf16 %v840
        %v1541 = vunpack.c.h.bf16 %v840
        %v1542 = vunpack.c.l.bf16 %v841
        %v1543 = vunpack.c.h.bf16 %v841
        %v1544 = vunpack.c.l.bf16 %v842
        %v1545 = vunpack.c.h.bf16 %v842
        %v1546 = vunpack.c.l.bf16 %v843
        %v1547 = vunpack.c.h.bf16 %v843
        %v1548 = vunpack.c.l.bf16 %v844
        %v1549 = vunpack.c.h.bf16 %v844
        %v1550 = vunpack.c.l.bf16 %v845
        %v1551 = vunpack.c.h.bf16 %v845
        %v1552 = vunpack.c.l.bf16 %v846
        %v1553 = vunpack.c.h.bf16 %v846
        %v1554 = vunpack.c.l.bf16 %v847
        %v1555 = vunpack.c.h.bf16 %v847
        %v1556 = vunpack.c.l.bf16 %v848
        %v1557 = vunpack.c.h.bf16 %v848
        %v1558 = vunpack.c.l.bf16 %v849
        %v1559 = vunpack.c.h.bf16 %v849
        %v1560 = vunpack.c.l.bf16 %v850
        %v1561 = vunpack.c.h.bf16 %v850
        %v1562 = vunpack.c.l.bf16 %v851
        %v1563 = vunpack.c.h.bf16 %v851
        %v1564 = vunpack.c.l.bf16 %v852
        %v1565 = vunpack.c.h.bf16 %v852
        %v1566 = vunpack.c.l.bf16 %v853
        %v1567 = vunpack.c.h.bf16 %v853
        %v1568 = vunpack.c.l.bf16 %v854
        %v1569 = vunpack.c.h.bf16 %v854
        %v1570 = vunpack.c.l.bf16 %v855
        %v1571 = vunpack.c.h.bf16 %v855
        %v1572 = vunpack.c.l.bf16 %v856
        %v1573 = vunpack.c.h.bf16 %v856
        %v1574 = vunpack.c.l.bf16 %v857
        %v1575 = vunpack.c.h.bf16 %v857
        %v1576 = vunpack.c.l.bf16 %v858
        %v1577 = vunpack.c.h.bf16 %v858
        %v1578 = vunpack.c.l.bf16 %v859
        %v1579 = vunpack.c.h.bf16 %v859
        %v1580 = vunpack.c.l.bf16 %v860
        %v1581 = vunpack.c.h.bf16 %v860
        %v1582 = vunpack.c.l.bf16 %v861
        %v1583 = vunpack.c.h.bf16 %v861
        %v1584 = vunpack.c.l.bf16 %v862
        %v1585 = vunpack.c.h.bf16 %v862
        %v1586 = vunpack.c.l.bf16 %v863
        %v1587 = vunpack.c.h.bf16 %v863
        %v1588 = vunpack.c.l.bf16 %v864
        %v1589 = vunpack.c.h.bf16 %v864
        %v1590 = vunpack.c.l.bf16 %v865
        %v1591 = vunpack.c.h.bf16 %v865
        %v1592 = vunpack.c.l.bf16 %v866
        %v1593 = vunpack.c.h.bf16 %v866
        %v1594 = vunpack.c.l.bf16 %v867
        %v1595 = vunpack.c.h.bf16 %v867
        %v1596 = vunpack.c.l.bf16 %v868
        %v1597 = vunpack.c.h.bf16 %v868
        %v1598 = vunpack.c.l.bf16 %v869
        %v1599 = vunpack.c.h.bf16 %v869
        %v1600 = vunpack.c.l.bf16 %v870
        %v1601 = vunpack.c.h.bf16 %v870
        %v1602 = vunpack.c.l.bf16 %v871
        %v1603 = vunpack.c.h.bf16 %v871
        %v1604 = vunpack.c.l.bf16 %v872
        %v1605 = vunpack.c.h.bf16 %v872
        %v1606 = vunpack.c.l.bf16 %v873
        %v1607 = vunpack.c.h.bf16 %v873
        %v1608 = vunpack.c.l.bf16 %v874
        %v1609 = vunpack.c.h.bf16 %v874
        %v1610 = vunpack.c.l.bf16 %v875
        %v1611 = vunpack.c.h.bf16 %v875
        %v1612 = vunpack.c.l.bf16 %v876
        %v1613 = vunpack.c.h.bf16 %v876
        %v1614 = vunpack.c.l.bf16 %v877
        %v1615 = vunpack.c.h.bf16 %v877
        %v1616 = vunpack.c.l.bf16 %v878
        %v1617 = vunpack.c.h.bf16 %v878
        %v1618 = vunpack.c.l.bf16 %v879
        %v1619 = vunpack.c.h.bf16 %v879
        %v1620 = vunpack.c.l.bf16 %v880
        %v1621 = vunpack.c.h.bf16 %v880
        %v1622 = vunpack.c.l.bf16 %v881
        %v1623 = vunpack.c.h.bf16 %v881
        %v1624 = vunpack.c.l.bf16 %v882
        %v1625 = vunpack.c.h.bf16 %v882
        %v1626 = vunpack.c.l.bf16 %v883
        %v1627 = vunpack.c.h.bf16 %v883
        %v1628 = vunpack.c.l.bf16 %v884
        %v1629 = vunpack.c.h.bf16 %v884
        %v1630 = vunpack.c.l.bf16 %v885
        %v1631 = vunpack.c.h.bf16 %v885
        %v1632 = vunpack.c.l.bf16 %v886
        %v1633 = vunpack.c.h.bf16 %v886
        %v1634 = vunpack.c.l.bf16 %v887
        %v1635 = vunpack.c.h.bf16 %v887
        %v1636 = vunpack.c.l.bf16 %v888
        %v1637 = vunpack.c.h.bf16 %v888
        %v1638 = vunpack.c.l.bf16 %v889
        %v1639 = vunpack.c.h.bf16 %v889
        %v1640 = vunpack.c.l.bf16 %v890
        %v1641 = vunpack.c.h.bf16 %v890
        %v1642 = vunpack.c.l.bf16 %v891
        %v1643 = vunpack.c.h.bf16 %v891
        %v1644 = vunpack.c.l.bf16 %v892
        %v1645 = vunpack.c.h.bf16 %v892
        %v1646 = vunpack.c.l.bf16 %v893
        %v1647 = vunpack.c.h.bf16 %v893
        %v1648 = vunpack.c.l.bf16 %v894
        %v1649 = vunpack.c.h.bf16 %v894
        %v1650 = vunpack.c.l.bf16 %v895
        %v1651 = vunpack.c.h.bf16 %v895
        %v1652 = vunpack.c.l.bf16 %v896
        %v1653 = vunpack.c.h.bf16 %v896
        %v1654 = vunpack.c.l.bf16 %v897
        %v1655 = vunpack.c.h.bf16 %v897
        %v1656 = vunpack.c.l.bf16 %v898
        %v1657 = vunpack.c.h.bf16 %v898
        %v1658 = vunpack.c.l.bf16 %v899
        %v1659 = vunpack.c.h.bf16 %v899
        %v1660 = vunpack.c.l.bf16 %v900
        %v1661 = vunpack.c.h.bf16 %v900
        %v1662 = vunpack.c.l.bf16 %v901
        %v1663 = vunpack.c.h.bf16 %v901
        %v1664 = vunpack.c.l.bf16 %v902
        %v1665 = vunpack.c.h.bf16 %v902
        %v1666 = vunpack.c.l.bf16 %v903
        %v1667 = vunpack.c.h.bf16 %v903
        %v1668 = vunpack.c.l.bf16 %v904
        %v1669 = vunpack.c.h.bf16 %v904
        %v1670 = vunpack.c.l.bf16 %v905
        %v1671 = vunpack.c.h.bf16 %v905
        %v1672 = vunpack.c.l.bf16 %v906
        %v1673 = vunpack.c.h.bf16 %v906
        %v1674 = vunpack.c.l.bf16 %v907
        %v1675 = vunpack.c.h.bf16 %v907
        %v1676 = vunpack.c.l.bf16 %v908
        %v1677 = vunpack.c.h.bf16 %v908
        %v1678 = vunpack.c.l.bf16 %v909
        %v1679 = vunpack.c.h.bf16 %v909
        %v1680 = vunpack.c.l.bf16 %v910
        %v1681 = vunpack.c.h.bf16 %v910
        %v1682 = vunpack.c.l.bf16 %v911
        %v1683 = vunpack.c.h.bf16 %v911
        %v1684 = vunpack.c.l.bf16 %v912
        %v1685 = vunpack.c.h.bf16 %v912
        %v1686 = vunpack.c.l.bf16 %v913
        %v1687 = vunpack.c.h.bf16 %v913
        %v1688 = vunpack.c.l.bf16 %v914
        %v1689 = vunpack.c.h.bf16 %v914
        %v1690 = vunpack.c.l.bf16 %v915
        %v1691 = vunpack.c.h.bf16 %v915
        %v1692 = vunpack.c.l.bf16 %v916
        %v1693 = vunpack.c.h.bf16 %v916
        %v1694 = vunpack.c.l.bf16 %v917
        %v1695 = vunpack.c.h.bf16 %v917
        %v1696 = vunpack.c.l.bf16 %v918
        %v1697 = vunpack.c.h.bf16 %v918
        %v1698 = vunpack.c.l.bf16 %v919
        %v1699 = vunpack.c.h.bf16 %v919
        %v1700 = vunpack.c.l.bf16 %v920
        %v1701 = vunpack.c.h.bf16 %v920
        %v1702 = vunpack.c.l.bf16 %v921
        %v1703 = vunpack.c.h.bf16 %v921
        %v1704 = vunpack.c.l.bf16 %v922
        %v1705 = vunpack.c.h.bf16 %v922
        %v1706 = vunpack.c.l.bf16 %v923
        %v1707 = vunpack.c.h.bf16 %v923
        %v1708 = vunpack.c.l.bf16 %v924
        %v1709 = vunpack.c.h.bf16 %v924
        %v1710 = vunpack.c.l.bf16 %v925
        %v1711 = vunpack.c.h.bf16 %v925
        %v1712 = vunpack.c.l.bf16 %v926
        %v1713 = vunpack.c.h.bf16 %v926
        %v1714 = vunpack.c.l.bf16 %v927
        %v1715 = vunpack.c.h.bf16 %v927
        %v1716 = vunpack.c.l.bf16 %v928
        %v1717 = vunpack.c.h.bf16 %v928
        %v1718 = vunpack.c.l.bf16 %v929
        %v1719 = vunpack.c.h.bf16 %v929
        %v1720 = vunpack.c.l.bf16 %v930
        %v1721 = vunpack.c.h.bf16 %v930
        %v1722 = vunpack.c.l.bf16 %v931
        %v1723 = vunpack.c.h.bf16 %v931
        %v1724 = vunpack.c.l.bf16 %v932
        %v1725 = vunpack.c.h.bf16 %v932
        %v1726 = vunpack.c.l.bf16 %v933
        %v1727 = vunpack.c.h.bf16 %v933
        %v1728 = vunpack.c.l.bf16 %v934
        %v1729 = vunpack.c.h.bf16 %v934
        %v1730 = vunpack.c.l.bf16 %v935
        %v1731 = vunpack.c.h.bf16 %v935
        %v1732 = vunpack.c.l.bf16 %v936
        %v1733 = vunpack.c.h.bf16 %v936
        %v1734 = vunpack.c.l.bf16 %v937
        %v1735 = vunpack.c.h.bf16 %v937
        %v1736 = vunpack.c.l.bf16 %v938
        %v1737 = vunpack.c.h.bf16 %v938
        %v1738 = vunpack.c.l.bf16 %v939
        %v1739 = vunpack.c.h.bf16 %v939
        %v1740 = vunpack.c.l.bf16 %v940
        %v1741 = vunpack.c.h.bf16 %v940
        %v1742 = vunpack.c.l.bf16 %v941
        %v1743 = vunpack.c.h.bf16 %v941
        %v1744 = vunpack.c.l.bf16 %v942
        %v1745 = vunpack.c.h.bf16 %v942
        %v1746 = vunpack.c.l.bf16 %v943
        %v1747 = vunpack.c.h.bf16 %v943
        %v1748 = vunpack.c.l.bf16 %v944
        %v1749 = vunpack.c.h.bf16 %v944
        %v1750 = vunpack.c.l.bf16 %v945
        %v1751 = vunpack.c.h.bf16 %v945
        %v1752 = vunpack.c.l.bf16 %v946
        %v1753 = vunpack.c.h.bf16 %v946
        %v1754 = vunpack.c.l.bf16 %v947
        %v1755 = vunpack.c.h.bf16 %v947
        %v1756 = vunpack.c.l.bf16 %v948
        %v1757 = vunpack.c.h.bf16 %v948
        %v1758 = vunpack.c.l.bf16 %v949
        %v1759 = vunpack.c.h.bf16 %v949
        %v1760 = vunpack.c.l.bf16 %v950
        %v1761 = vunpack.c.h.bf16 %v950
        %v1762 = vunpack.c.l.bf16 %v951
        %v1763 = vunpack.c.h.bf16 %v951
        %v1764 = vunpack.c.l.bf16 %v952
        %v1765 = vunpack.c.h.bf16 %v952
        %v1766 = vunpack.c.l.bf16 %v953
        %v1767 = vunpack.c.h.bf16 %v953
        %v1768 = vunpack.c.l.bf16 %v954
        %v1769 = vunpack.c.h.bf16 %v954
        %v1770 = vunpack.c.l.bf16 %v955
        %v1771 = vunpack.c.h.bf16 %v955
        %v1772 = vunpack.c.l.bf16 %v956
        %v1773 = vunpack.c.h.bf16 %v956
        %v1774 = vunpack.c.l.bf16 %v957
        %v1775 = vunpack.c.h.bf16 %v957
        %v1776 = vunpack.c.l.bf16 %v958
        %v1777 = vunpack.c.h.bf16 %v958
        %v1778 = vunpack.c.l.bf16 %v959
        %v1779 = vunpack.c.h.bf16 %v959
        %v1780 = vunpack.c.l.bf16 %v960
        %v1781 = vunpack.c.h.bf16 %v960
        %v1782 = vunpack.c.l.bf16 %v961
        %v1783 = vunpack.c.h.bf16 %v961
        %v1784 = vunpack.c.l.bf16 %v962
        %v1785 = vunpack.c.h.bf16 %v962
        %v1786 = vunpack.c.l.bf16 %v963
        %v1787 = vunpack.c.h.bf16 %v963
        %v1788 = vunpack.c.l.bf16 %v964
        %v1789 = vunpack.c.h.bf16 %v964
        %v1790 = vunpack.c.l.bf16 %v965
        %v1791 = vunpack.c.h.bf16 %v965
        %v1792 = vunpack.c.l.bf16 %v966
        %v1793 = vunpack.c.h.bf16 %v966
        %v1794 = vunpack.c.l.bf16 %v967
        %v1795 = vunpack.c.h.bf16 %v967
        %v1796 = vunpack.c.l.bf16 %v968
        %v1797 = vunpack.c.h.bf16 %v968
        %v1798 = vunpack.c.l.bf16 %v969
        %v1799 = vunpack.c.h.bf16 %v969
        %v1800 = vunpack.c.l.bf16 %v970
        %v1801 = vunpack.c.h.bf16 %v970
        %v1802 = vunpack.c.l.bf16 %v971
        %v1803 = vunpack.c.h.bf16 %v971
        %v1804 = vunpack.c.l.bf16 %v972
        %v1805 = vunpack.c.h.bf16 %v972
        %v1806 = vunpack.c.l.bf16 %v973
        %v1807 = vunpack.c.h.bf16 %v973
        %v1808 = vunpack.c.l.bf16 %v974
        %v1809 = vunpack.c.h.bf16 %v974
        %v1810 = vunpack.c.l.bf16 %v975
        %v1811 = vunpack.c.h.bf16 %v975
        %v1812 = vunpack.c.l.bf16 %v976
        %v1813 = vunpack.c.h.bf16 %v976
        %v1814 = vunpack.c.l.bf16 %v977
        %v1815 = vunpack.c.h.bf16 %v977
        %v1816 = vunpack.c.l.bf16 %v978
        %v1817 = vunpack.c.h.bf16 %v978
        %v1818 = vunpack.c.l.bf16 %v979
        %v1819 = vunpack.c.h.bf16 %v979
        %v1820 = vunpack.c.l.bf16 %v980
        %v1821 = vunpack.c.h.bf16 %v980
        %v1822 = vunpack.c.l.bf16 %v981
        %v1823 = vunpack.c.h.bf16 %v981
        %v1824 = vunpack.c.l.bf16 %v982
        %v1825 = vunpack.c.h.bf16 %v982
        %v1826 = vunpack.c.l.bf16 %v983
        %v1827 = vunpack.c.h.bf16 %v983
        %v1828 = vunpack.c.l.bf16 %v984
        %v1829 = vunpack.c.h.bf16 %v984
        %v1830 = vunpack.c.l.bf16 %v985
        %v1831 = vunpack.c.h.bf16 %v985
        %v1832 = vunpack.c.l.bf16 %v986
        %v1833 = vunpack.c.h.bf16 %v986
        %v1834 = vunpack.c.l.bf16 %v987
        %v1835 = vunpack.c.h.bf16 %v987
        %v1836 = vunpack.c.l.bf16 %v988
        %v1837 = vunpack.c.h.bf16 %v988
        %v1838 = vunpack.c.l.bf16 %v989
        %v1839 = vunpack.c.h.bf16 %v989
        %v1840 = vunpack.c.l.bf16 %v990
        %v1841 = vunpack.c.h.bf16 %v990
        %v1842 = vunpack.c.l.bf16 %v991
        %v1843 = vunpack.c.h.bf16 %v991
        %v1844 = vunpack.c.l.bf16 %v992
        %v1845 = vunpack.c.h.bf16 %v992
        %v1846 = vunpack.c.l.bf16 %v993
        %v1847 = vunpack.c.h.bf16 %v993
        %v1848 = vunpack.c.l.bf16 %v994
        %v1849 = vunpack.c.h.bf16 %v994
        %v1850 = vunpack.c.l.bf16 %v995
        %v1851 = vunpack.c.h.bf16 %v995
        %v1852 = vunpack.c.l.bf16 %v996
        %v1853 = vunpack.c.h.bf16 %v996
        %v1854 = vunpack.c.l.bf16 %v997
        %v1855 = vunpack.c.h.bf16 %v997
        %v1856 = vunpack.c.l.bf16 %v998
        %v1857 = vunpack.c.h.bf16 %v998
        %v1858 = vunpack.c.l.bf16 %v999
        %v1859 = vunpack.c.h.bf16 %v999
        %v1860 = vunpack.c.l.bf16 %v1000
        %v1861 = vunpack.c.h.bf16 %v1000
        %v1862 = vunpack.c.l.bf16 %v1001
        %v1863 = vunpack.c.h.bf16 %v1001
        %v1864 = vunpack.c.l.bf16 %v1002
        %v1865 = vunpack.c.h.bf16 %v1002
        %v1866 = vunpack.c.l.bf16 %v1003
        %v1867 = vunpack.c.h.bf16 %v1003
        %v1868 = vunpack.c.l.bf16 %v1004
        %v1869 = vunpack.c.h.bf16 %v1004
        %v1870 = vunpack.c.l.bf16 %v1005
        %v1871 = vunpack.c.h.bf16 %v1005
        %v1872 = vunpack.c.l.bf16 %v1006
        %v1873 = vunpack.c.h.bf16 %v1006
        %v1874 = vunpack.c.l.bf16 %v1007
        %v1875 = vunpack.c.h.bf16 %v1007
        %v1876 = vunpack.c.l.bf16 %v1008
        %v1877 = vunpack.c.h.bf16 %v1008
        %v1878 = vunpack.c.l.bf16 %v1009
        %v1879 = vunpack.c.h.bf16 %v1009
        %v1880 = vunpack.c.l.bf16 %v1010
        %v1881 = vunpack.c.h.bf16 %v1010
        %v1882 = vunpack.c.l.bf16 %v1011
        %v1883 = vunpack.c.h.bf16 %v1011
        %v1884 = vunpack.c.l.bf16 %v1012
        %v1885 = vunpack.c.h.bf16 %v1012
        %v1886 = vunpack.c.l.bf16 %v1013
        %v1887 = vunpack.c.h.bf16 %v1013
        %v1888 = vunpack.c.l.bf16 %v1014
        %v1889 = vunpack.c.h.bf16 %v1014
        %v1890 = vunpack.c.l.bf16 %v1015
        %v1891 = vunpack.c.h.bf16 %v1015
        %v1892 = vunpack.c.l.bf16 %v1016
        %v1893 = vunpack.c.h.bf16 %v1016
        %v1894 = vunpack.c.l.bf16 %v1017
        %v1895 = vunpack.c.h.bf16 %v1017
        %v1896 = vunpack.c.l.bf16 %v1018
        %v1897 = vunpack.c.h.bf16 %v1018
        %v1898 = vunpack.c.l.bf16 %v1019
        %v1899 = vunpack.c.h.bf16 %v1019
        %v1900 = vunpack.c.l.bf16 %v1020
        %v1901 = vunpack.c.h.bf16 %v1020
        %v1902 = vunpack.c.l.bf16 %v1021
        %v1903 = vunpack.c.h.bf16 %v1021
        %v1904 = vunpack.c.l.bf16 %v1022
        %v1905 = vunpack.c.h.bf16 %v1022
        %v1906 = vunpack.c.l.bf16 %v1023
        %v1907 = vunpack.c.h.bf16 %v1023
        %v1908 = vunpack.c.l.bf16 %v1024
        %v1909 = vunpack.c.h.bf16 %v1024
        %v1910 = vunpack.c.l.bf16 %v1025
        %v1911 = vunpack.c.h.bf16 %v1025
        %v1912 = vunpack.c.l.bf16 %v1026
        %v1913 = vunpack.c.h.bf16 %v1026
        %v1914 = vunpack.c.l.bf16 %v1027
        %v1915 = vunpack.c.h.bf16 %v1027
        %v1916 = vunpack.c.l.bf16 %v1028
        %v1917 = vunpack.c.h.bf16 %v1028
        %v1918 = vunpack.c.l.bf16 %v1029
        %v1919 = vunpack.c.h.bf16 %v1029
        %v1920 = vunpack.c.l.bf16 %v1030
        %v1921 = vunpack.c.h.bf16 %v1030
        %v1922 = vunpack.c.l.bf16 %v1031
        %v1923 = vunpack.c.h.bf16 %v1031
        %v1924 = vunpack.c.l.bf16 %v1032
        %v1925 = vunpack.c.h.bf16 %v1032
        %v1926 = vunpack.c.l.bf16 %v1033
        %v1927 = vunpack.c.h.bf16 %v1033
        %v1928 = vunpack.c.l.bf16 %v1034
        %v1929 = vunpack.c.h.bf16 %v1034
        %v1930 = vunpack.c.l.bf16 %v1035
        %v1931 = vunpack.c.h.bf16 %v1035
        %v1932 = vunpack.c.l.bf16 %v1036
        %v1933 = vunpack.c.h.bf16 %v1036
        %v1934 = vunpack.c.l.bf16 %v1037
        %v1935 = vunpack.c.h.bf16 %v1037
        %v1936 = vunpack.c.l.bf16 %v1038
        %v1937 = vunpack.c.h.bf16 %v1038
        %v1938 = vunpack.c.l.bf16 %v1039
        %v1939 = vunpack.c.h.bf16 %v1039
        %v1940 = vunpack.c.l.bf16 %v1040
        %v1941 = vunpack.c.h.bf16 %v1040
        %v1942 = vunpack.c.l.bf16 %v1041
        %v1943 = vunpack.c.h.bf16 %v1041
        %v1944 = vunpack.c.l.bf16 %v1042
        %v1945 = vunpack.c.h.bf16 %v1042
        %v1946 = vunpack.c.l.bf16 %v1043
        %v1947 = vunpack.c.h.bf16 %v1043
        %v1948 = vunpack.c.l.bf16 %v1044
        %v1949 = vunpack.c.h.bf16 %v1044
        %v1950 = vunpack.c.l.bf16 %v1045
        %v1951 = vunpack.c.h.bf16 %v1045
        %v1952 = vunpack.c.l.bf16 %v1046
        %v1953 = vunpack.c.h.bf16 %v1046
        %v1954 = vunpack.c.l.bf16 %v1047
        %v1955 = vunpack.c.h.bf16 %v1047
        %v1956 = vunpack.c.l.bf16 %v1048
        %v1957 = vunpack.c.h.bf16 %v1048
        %v1958 = vunpack.c.l.bf16 %v1049
        %v1959 = vunpack.c.h.bf16 %v1049
        %v1960 = vunpack.c.l.bf16 %v1050
        %v1961 = vunpack.c.h.bf16 %v1050
        %v1962 = vunpack.c.l.bf16 %v1051
        %v1963 = vunpack.c.h.bf16 %v1051
        %v1964 = vunpack.c.l.bf16 %v1052
        %v1965 = vunpack.c.h.bf16 %v1052
        %v1966 = vunpack.c.l.bf16 %v1053
        %v1967 = vunpack.c.h.bf16 %v1053
        %v1968 = vunpack.c.l.bf16 %v1054
        %v1969 = vunpack.c.h.bf16 %v1054
        %v1970 = vunpack.c.l.bf16 %v1055
        %v1971 = vunpack.c.h.bf16 %v1055
        %v1972 = vunpack.c.l.bf16 %v1056
        %v1973 = vunpack.c.h.bf16 %v1056
        %v1974 = vunpack.c.l.bf16 %v1057
        %v1975 = vunpack.c.h.bf16 %v1057
        %v1976 = vunpack.c.l.bf16 %v1058
        %v1977 = vunpack.c.h.bf16 %v1058
        %v1978 = vunpack.c.l.bf16 %v1059
        %v1979 = vunpack.c.h.bf16 %v1059
        %v1980 = vunpack.c.l.bf16 %v1060
        %v1981 = vunpack.c.h.bf16 %v1060
        %v1982 = vunpack.c.l.bf16 %v1061
        %v1983 = vunpack.c.h.bf16 %v1061
        %v1984 = vunpack.c.l.bf16 %v1062
        %v1985 = vunpack.c.h.bf16 %v1062
        %v1986 = vunpack.c.l.bf16 %v1063
        %v1987 = vunpack.c.h.bf16 %v1063
        %v1988 = vunpack.c.l.bf16 %v1064
        %v1989 = vunpack.c.h.bf16 %v1064
        %v1990 = vunpack.c.l.bf16 %v1065
        %v1991 = vunpack.c.h.bf16 %v1065
        %v1992 = vunpack.c.l.bf16 %v1066
        %v1993 = vunpack.c.h.bf16 %v1066
        %v1994 = vunpack.c.l.bf16 %v1067
        %v1995 = vunpack.c.h.bf16 %v1067
        %v1996 = vunpack.c.l.bf16 %v1068
        %v1997 = vunpack.c.h.bf16 %v1068
        %v1998 = vunpack.c.l.bf16 %v1069
        %v1999 = vunpack.c.h.bf16 %v1069
        %v2000 = vunpack.c.l.bf16 %v1070
        %v2001 = vunpack.c.h.bf16 %v1070
        %v2002 = vunpack.c.l.bf16 %v1071
        %v2003 = vunpack.c.h.bf16 %v1071
        %v2004 = vunpack.c.l.bf16 %v1072
        %v2005 = vunpack.c.h.bf16 %v1072
        %v2006 = vunpack.c.l.bf16 %v1073
        %v2007 = vunpack.c.h.bf16 %v1073
        %v2008 = vunpack.c.l.bf16 %v1074
        %v2009 = vunpack.c.h.bf16 %v1074
        %v2010 = vunpack.c.l.bf16 %v1075
        %v2011 = vunpack.c.h.bf16 %v1075
        %v2012 = vunpack.c.l.bf16 %v1076
        %v2013 = vunpack.c.h.bf16 %v1076
        %v2014 = vunpack.c.l.bf16 %v1077
        %v2015 = vunpack.c.h.bf16 %v1077
        %v2016 = vunpack.c.l.bf16 %v1078
        %v2017 = vunpack.c.h.bf16 %v1078
        %v2018 = vunpack.c.l.bf16 %v1079
        %v2019 = vunpack.c.h.bf16 %v1079
        %v2020 = vunpack.c.l.bf16 %v1080
        %v2021 = vunpack.c.h.bf16 %v1080
        %v2022 = vunpack.c.l.bf16 %v1081
        %v2023 = vunpack.c.h.bf16 %v1081
        %v2024 = vunpack.c.l.bf16 %v1082
        %v2025 = vunpack.c.h.bf16 %v1082
        %v2026 = vunpack.c.l.bf16 %v1083
        %v2027 = vunpack.c.h.bf16 %v1083
        %v2028 = vunpack.c.l.bf16 %v1084
        %v2029 = vunpack.c.h.bf16 %v1084
        %v2030 = vunpack.c.l.bf16 %v1085
        %v2031 = vunpack.c.h.bf16 %v1085
        %v2032 = vunpack.c.l.bf16 %v1086
        %v2033 = vunpack.c.h.bf16 %v1086
        %v2034 = vunpack.c.l.bf16 %v1087
        %v2035 = vunpack.c.h.bf16 %v1087
        %v2036 = vunpack.c.l.bf16 %v1088
        %v2037 = vunpack.c.h.bf16 %v1088
        %v2038 = vunpack.c.l.bf16 %v1089
        %v2039 = vunpack.c.h.bf16 %v1089
        %v2040 = vunpack.c.l.bf16 %v1090
        %v2041 = vunpack.c.h.bf16 %v1090
        %v2042 = vunpack.c.l.bf16 %v1091
        %v2043 = vunpack.c.h.bf16 %v1091
        %v2044 = vunpack.c.l.bf16 %v1092
        %v2045 = vunpack.c.h.bf16 %v1092
        %v2046 = vunpack.c.l.bf16 %v1093
        %v2047 = vunpack.c.h.bf16 %v1093
        %v2048 = vunpack.c.l.bf16 %v1094
        %v2049 = vunpack.c.h.bf16 %v1094
        %v2050 = vunpack.c.l.bf16 %v1095
        %v2051 = vunpack.c.h.bf16 %v1095
        %v2052 = vunpack.c.l.bf16 %v1096
        %v2053 = vunpack.c.h.bf16 %v1096
        %v2054 = vunpack.c.l.bf16 %v1097
        %v2055 = vunpack.c.h.bf16 %v1097
        %v2056 = vunpack.c.l.bf16 %v1098
        %v2057 = vunpack.c.h.bf16 %v1098
        %v2058 = vunpack.c.l.bf16 %v1099
        %v2059 = vunpack.c.h.bf16 %v1099
        %v2060 = vunpack.c.l.bf16 %v1100
        %v2061 = vunpack.c.h.bf16 %v1100
        %v2062 = vunpack.c.l.bf16 %v1101
        %v2063 = vunpack.c.h.bf16 %v1101
        %v2064 = vunpack.c.l.bf16 %v1102
        %v2065 = vunpack.c.h.bf16 %v1102
        %v2066 = vunpack.c.l.bf16 %v1103
        %v2067 = vunpack.c.h.bf16 %v1103
        %v2068 = vunpack.c.l.bf16 %v1104
        %v2069 = vunpack.c.h.bf16 %v1104
        %v2070 = vunpack.c.l.bf16 %v1105
        %v2071 = vunpack.c.h.bf16 %v1105
        %v2072 = vunpack.c.l.bf16 %v1106
        %v2073 = vunpack.c.h.bf16 %v1106
        %v2074 = vunpack.c.l.bf16 %v1107
        %v2075 = vunpack.c.h.bf16 %v1107
        %v2076 = vunpack.c.l.bf16 %v1108
        %v2077 = vunpack.c.h.bf16 %v1108
        %v2078 = vunpack.c.l.bf16 %v1109
        %v2079 = vunpack.c.h.bf16 %v1109
        %v2080 = vunpack.c.l.bf16 %v1110
        %v2081 = vunpack.c.h.bf16 %v1110
        %v2082 = vunpack.c.l.bf16 %v1111
        %v2083 = vunpack.c.h.bf16 %v1111
        %v2084 = vunpack.c.l.bf16 %v1112
        %v2085 = vunpack.c.h.bf16 %v1112
        %v2086 = vunpack.c.l.bf16 %v1113
        %v2087 = vunpack.c.h.bf16 %v1113
        %v2088 = vunpack.c.l.bf16 %v1114
        %v2089 = vunpack.c.h.bf16 %v1114
        %v2090 = vunpack.c.l.bf16 %v1115
        %v2091 = vunpack.c.h.bf16 %v1115
        %v2092 = vunpack.c.l.bf16 %v1116
        %v2093 = vunpack.c.h.bf16 %v1116
        %v2094 = vunpack.c.l.bf16 %v1117
        %v2095 = vunpack.c.h.bf16 %v1117
        %v2096 = vunpack.c.l.bf16 %v1118
        %v2097 = vunpack.c.h.bf16 %v1118
        %v2098 = vunpack.c.l.bf16 %v1119
        %v2099 = vunpack.c.h.bf16 %v1119
        %v2100 = vunpack.c.l.bf16 %v1120
        %v2101 = vunpack.c.h.bf16 %v1120
        %v2102 = vunpack.c.l.bf16 %v1121
        %v2103 = vunpack.c.h.bf16 %v1121
        %v2104 = vunpack.c.l.bf16 %v1122
        %v2105 = vunpack.c.h.bf16 %v1122
        %v2106 = vunpack.c.l.bf16 %v1123
        %v2107 = vunpack.c.h.bf16 %v1123
        %v2108 = vunpack.c.l.bf16 %v1124
        %v2109 = vunpack.c.h.bf16 %v1124
        %v2110 = vunpack.c.l.bf16 %v1125
        %v2111 = vunpack.c.h.bf16 %v1125
        %v2112 = vunpack.c.l.bf16 %v1126
        %v2113 = vunpack.c.h.bf16 %v1126
        %v2114 = vunpack.c.l.bf16 %v1127
        %v2115 = vunpack.c.h.bf16 %v1127
        %v2116 = vunpack.c.l.bf16 %v1128
        %v2117 = vunpack.c.h.bf16 %v1128
        %v2118 = vunpack.c.l.bf16 %v1129
        %v2119 = vunpack.c.h.bf16 %v1129
        %v2120 = vunpack.c.l.bf16 %v1130
        %v2121 = vunpack.c.h.bf16 %v1130
        %v2122 = vunpack.c.l.bf16 %v1131
        %v2123 = vunpack.c.h.bf16 %v1131
        %v2124 = vunpack.c.l.bf16 %v1132
        %v2125 = vunpack.c.h.bf16 %v1132
        %v2126 = vunpack.c.l.bf16 %v1133
        %v2127 = vunpack.c.h.bf16 %v1133
        %v2128 = vunpack.c.l.bf16 %v1134
        %v2129 = vunpack.c.h.bf16 %v1134
        %v2130 = vunpack.c.l.bf16 %v1135
        %v2131 = vunpack.c.h.bf16 %v1135
        %v2132 = vunpack.c.l.bf16 %v1136
        %v2133 = vunpack.c.h.bf16 %v1136
        %v2134 = vunpack.c.l.bf16 %v1137
        %v2135 = vunpack.c.h.bf16 %v1137
        %v2136 = vunpack.c.l.bf16 %v1138
        %v2137 = vunpack.c.h.bf16 %v1138
        %v2138 = vunpack.c.l.bf16 %v1139
        %v2139 = vunpack.c.h.bf16 %v1139
        %v2140 = vunpack.c.l.bf16 %v1140
        %v2141 = vunpack.c.h.bf16 %v1140
        %v2142 = vunpack.c.l.bf16 %v1141
        %v2143 = vunpack.c.h.bf16 %v1141
        %v2144 = vunpack.c.l.bf16 %v1142
        %v2145 = vunpack.c.h.bf16 %v1142
        %v2146 = vunpack.c.l.bf16 %v1143
        %v2147 = vunpack.c.h.bf16 %v1143
        %v2148 = vunpack.c.l.bf16 %v1144
        %v2149 = vunpack.c.h.bf16 %v1144
        %v2150 = vunpack.c.l.bf16 %v1145
        %v2151 = vunpack.c.h.bf16 %v1145
        %v2152 = vunpack.c.l.bf16 %v1146
        %v2153 = vunpack.c.h.bf16 %v1146
        %v2154 = vunpack.c.l.bf16 %v1147
        %v2155 = vunpack.c.h.bf16 %v1147
        %v2156 = vunpack.c.l.bf16 %v1148
        %v2157 = vunpack.c.h.bf16 %v1148
        %v2158 = vunpack.c.l.bf16 %v1149
        %v2159 = vunpack.c.h.bf16 %v1149
        %v2160 = vunpack.c.l.bf16 %v1150
        %v2161 = vunpack.c.h.bf16 %v1150
        %v2162 = vunpack.c.l.bf16 %v1151
        %v2163 = vunpack.c.h.bf16 %v1151
        %v2164 = vunpack.c.l.bf16 %v1152
        %v2165 = vunpack.c.h.bf16 %v1152
        %v2166 = vunpack.c.l.bf16 %v1153
        %v2167 = vunpack.c.h.bf16 %v1153
        %v2168 = vunpack.c.l.bf16 %v1154
        %v2169 = vunpack.c.h.bf16 %v1154
        %v2170 = vunpack.c.l.bf16 %v1155
        %v2171 = vunpack.c.h.bf16 %v1155
        %v2172 = vunpack.c.l.bf16 %v1156
        %v2173 = vunpack.c.h.bf16 %v1156
        %v2174 = vunpack.c.l.bf16 %v1157
        %v2175 = vunpack.c.h.bf16 %v1157
        %v2176 = vunpack.c.l.bf16 %v1158
        %v2177 = vunpack.c.h.bf16 %v1158
        %v2178 = vunpack.c.l.bf16 %v1159
        %v2179 = vunpack.c.h.bf16 %v1159
        %v2180 = vunpack.c.l.bf16 %v1160
        %v2181 = vunpack.c.h.bf16 %v1160
        %v2182 = vunpack.c.l.bf16 %v1161
        %v2183 = vunpack.c.h.bf16 %v1161
        %v2184 = vunpack.c.l.bf16 %v1162
        %v2185 = vunpack.c.h.bf16 %v1162
        %v2186 = vunpack.c.l.bf16 %v1163
        %v2187 = vunpack.c.h.bf16 %v1163
        %v2188 = vld [vmem:[%s363] sm:$0xff]
        %v2189 = vld [vmem:[%s363 + $0x8] sm:$0xff]
        %v2190 = vld [vmem:[%s363 + $0x10] sm:$0xff]
        %v2191 = vld [vmem:[%s363 + $0x18] sm:$0xff]
        %v2192 = vld [vmem:[%s363 + $0x20] sm:$0xff]
        %v2193 = vld [vmem:[%s363 + $0x28] sm:$0xff]
        %v2194 = vld [vmem:[%s363 + $0x30] sm:$0xff]
        %v2195 = vld [vmem:[%s363 + $0x38] sm:$0xff]
        %v2196 = vld [vmem:[%s363 + $0x40] sm:$0xff]
        %v2197 = vld [vmem:[%s363 + $0x48] sm:$0xff]
        %v2198 = vld [vmem:[%s363 + $0x50] sm:$0xff]
        %v2199 = vld [vmem:[%s363 + $0x58] sm:$0xff]
        %v2200 = vld [vmem:[%s363 + $0x60] sm:$0xff]
        %v2201 = vld [vmem:[%s363 + $0x68] sm:$0xff]
        %v2202 = vld [vmem:[%s363 + $0x70] sm:$0xff]
        %v2203 = vld [vmem:[%s363 + $0x78] sm:$0xff]
        %v2220 = vlaneseq
        %v2221 = vshrl.u32 %v2220, 7
        %v2222 = vsub.s32 0, %v2221
        %v2223 = vrot.slane %v2188, %v2222
        %v2224 = vlaneseq
        %v2225 = vshrl.u32 %v2224, 7
        %v2226 = vsub.s32 1, %v2225
        %v2227 = vrot.slane %v2188, %v2226
        %v2228 = vlaneseq
        %v2229 = vshrl.u32 %v2228, 7
        %v2230 = vsub.s32 2, %v2229
        %v2231 = vrot.slane %v2188, %v2230
        %v2232 = vlaneseq
        %v2233 = vshrl.u32 %v2232, 7
        %v2234 = vsub.s32 3, %v2233
        %v2235 = vrot.slane %v2188, %v2234
        %v2236 = vlaneseq
        %v2237 = vshrl.u32 %v2236, 7
        %v2238 = vsub.s32 4, %v2237
        %v2239 = vrot.slane %v2188, %v2238
        %v2240 = vlaneseq
        %v2241 = vshrl.u32 %v2240, 7
        %v2242 = vsub.s32 5, %v2241
        %v2243 = vrot.slane %v2188, %v2242
        %v2244 = vlaneseq
        %v2245 = vshrl.u32 %v2244, 7
        %v2246 = vsub.s32 6, %v2245
        %v2247 = vrot.slane %v2188, %v2246
        %v2248 = vlaneseq
        %v2249 = vshrl.u32 %v2248, 7
        %v2250 = vsub.s32 7, %v2249
        %v2251 = vrot.slane %v2188, %v2250
        %v2252 = vlaneseq
        %v2253 = vshrl.u32 %v2252, 7
        %v2254 = vsub.s32 0, %v2253
        %v2255 = vrot.slane %v2189, %v2254
        %v2256 = vlaneseq
        %v2257 = vshrl.u32 %v2256, 7
        %v2258 = vsub.s32 1, %v2257
        %v2259 = vrot.slane %v2189, %v2258
        %v2260 = vlaneseq
        %v2261 = vshrl.u32 %v2260, 7
        %v2262 = vsub.s32 2, %v2261
        %v2263 = vrot.slane %v2189, %v2262
        %v2264 = vlaneseq
        %v2265 = vshrl.u32 %v2264, 7
        %v2266 = vsub.s32 3, %v2265
        %v2267 = vrot.slane %v2189, %v2266
        %v2268 = vlaneseq
        %v2269 = vshrl.u32 %v2268, 7
        %v2270 = vsub.s32 4, %v2269
        %v2271 = vrot.slane %v2189, %v2270
        %v2272 = vlaneseq
        %v2273 = vshrl.u32 %v2272, 7
        %v2274 = vsub.s32 5, %v2273
        %v2275 = vrot.slane %v2189, %v2274
        %v2276 = vlaneseq
        %v2277 = vshrl.u32 %v2276, 7
        %v2278 = vsub.s32 6, %v2277
        %v2279 = vrot.slane %v2189, %v2278
        %v2280 = vlaneseq
        %v2281 = vshrl.u32 %v2280, 7
        %v2282 = vsub.s32 7, %v2281
        %v2283 = vrot.slane %v2189, %v2282
        %v2284 = vlaneseq
        %v2285 = vshrl.u32 %v2284, 7
        %v2286 = vsub.s32 0, %v2285
        %v2287 = vrot.slane %v2190, %v2286
        %v2288 = vlaneseq
        %v2289 = vshrl.u32 %v2288, 7
        %v2290 = vsub.s32 1, %v2289
        %v2291 = vrot.slane %v2190, %v2290
        %v2292 = vlaneseq
        %v2293 = vshrl.u32 %v2292, 7
        %v2294 = vsub.s32 2, %v2293
        %v2295 = vrot.slane %v2190, %v2294
        %v2296 = vlaneseq
        %v2297 = vshrl.u32 %v2296, 7
        %v2298 = vsub.s32 3, %v2297
        %v2299 = vrot.slane %v2190, %v2298
        %v2300 = vlaneseq
        %v2301 = vshrl.u32 %v2300, 7
        %v2302 = vsub.s32 4, %v2301
        %v2303 = vrot.slane %v2190, %v2302
        %v2304 = vlaneseq
        %v2305 = vshrl.u32 %v2304, 7
        %v2306 = vsub.s32 5, %v2305
        %v2307 = vrot.slane %v2190, %v2306
        %v2308 = vlaneseq
        %v2309 = vshrl.u32 %v2308, 7
        %v2310 = vsub.s32 6, %v2309
        %v2311 = vrot.slane %v2190, %v2310
        %v2312 = vlaneseq
        %v2313 = vshrl.u32 %v2312, 7
        %v2314 = vsub.s32 7, %v2313
        %v2315 = vrot.slane %v2190, %v2314
        %v2316 = vlaneseq
        %v2317 = vshrl.u32 %v2316, 7
        %v2318 = vsub.s32 0, %v2317
        %v2319 = vrot.slane %v2191, %v2318
        %v2320 = vlaneseq
        %v2321 = vshrl.u32 %v2320, 7
        %v2322 = vsub.s32 1, %v2321
        %v2323 = vrot.slane %v2191, %v2322
        %v2324 = vlaneseq
        %v2325 = vshrl.u32 %v2324, 7
        %v2326 = vsub.s32 2, %v2325
        %v2327 = vrot.slane %v2191, %v2326
        %v2328 = vlaneseq
        %v2329 = vshrl.u32 %v2328, 7
        %v2330 = vsub.s32 3, %v2329
        %v2331 = vrot.slane %v2191, %v2330
        %v2332 = vlaneseq
        %v2333 = vshrl.u32 %v2332, 7
        %v2334 = vsub.s32 4, %v2333
        %v2335 = vrot.slane %v2191, %v2334
        %v2336 = vlaneseq
        %v2337 = vshrl.u32 %v2336, 7
        %v2338 = vsub.s32 5, %v2337
        %v2339 = vrot.slane %v2191, %v2338
        %v2340 = vlaneseq
        %v2341 = vshrl.u32 %v2340, 7
        %v2342 = vsub.s32 6, %v2341
        %v2343 = vrot.slane %v2191, %v2342
        %v2344 = vlaneseq
        %v2345 = vshrl.u32 %v2344, 7
        %v2346 = vsub.s32 7, %v2345
        %v2347 = vrot.slane %v2191, %v2346
        %v2348 = vlaneseq
        %v2349 = vshrl.u32 %v2348, 7
        %v2350 = vsub.s32 0, %v2349
        %v2351 = vrot.slane %v2192, %v2350
        %v2352 = vlaneseq
        %v2353 = vshrl.u32 %v2352, 7
        %v2354 = vsub.s32 1, %v2353
        %v2355 = vrot.slane %v2192, %v2354
        %v2356 = vlaneseq
        %v2357 = vshrl.u32 %v2356, 7
        %v2358 = vsub.s32 2, %v2357
        %v2359 = vrot.slane %v2192, %v2358
        %v2360 = vlaneseq
        %v2361 = vshrl.u32 %v2360, 7
        %v2362 = vsub.s32 3, %v2361
        %v2363 = vrot.slane %v2192, %v2362
        %v2364 = vlaneseq
        %v2365 = vshrl.u32 %v2364, 7
        %v2366 = vsub.s32 4, %v2365
        %v2367 = vrot.slane %v2192, %v2366
        %v2368 = vlaneseq
        %v2369 = vshrl.u32 %v2368, 7
        %v2370 = vsub.s32 5, %v2369
        %v2371 = vrot.slane %v2192, %v2370
        %v2372 = vlaneseq
        %v2373 = vshrl.u32 %v2372, 7
        %v2374 = vsub.s32 6, %v2373
        %v2375 = vrot.slane %v2192, %v2374
        %v2376 = vlaneseq
        %v2377 = vshrl.u32 %v2376, 7
        %v2378 = vsub.s32 7, %v2377
        %v2379 = vrot.slane %v2192, %v2378
        %v2380 = vlaneseq
        %v2381 = vshrl.u32 %v2380, 7
        %v2382 = vsub.s32 0, %v2381
        %v2383 = vrot.slane %v2193, %v2382
        %v2384 = vlaneseq
        %v2385 = vshrl.u32 %v2384, 7
        %v2386 = vsub.s32 1, %v2385
        %v2387 = vrot.slane %v2193, %v2386
        %v2388 = vlaneseq
        %v2389 = vshrl.u32 %v2388, 7
        %v2390 = vsub.s32 2, %v2389
        %v2391 = vrot.slane %v2193, %v2390
        %v2392 = vlaneseq
        %v2393 = vshrl.u32 %v2392, 7
        %v2394 = vsub.s32 3, %v2393
        %v2395 = vrot.slane %v2193, %v2394
        %v2396 = vlaneseq
        %v2397 = vshrl.u32 %v2396, 7
        %v2398 = vsub.s32 4, %v2397
        %v2399 = vrot.slane %v2193, %v2398
        %v2400 = vlaneseq
        %v2401 = vshrl.u32 %v2400, 7
        %v2402 = vsub.s32 5, %v2401
        %v2403 = vrot.slane %v2193, %v2402
        %v2404 = vlaneseq
        %v2405 = vshrl.u32 %v2404, 7
        %v2406 = vsub.s32 6, %v2405
        %v2407 = vrot.slane %v2193, %v2406
        %v2408 = vlaneseq
        %v2409 = vshrl.u32 %v2408, 7
        %v2410 = vsub.s32 7, %v2409
        %v2411 = vrot.slane %v2193, %v2410
        %v2412 = vlaneseq
        %v2413 = vshrl.u32 %v2412, 7
        %v2414 = vsub.s32 0, %v2413
        %v2415 = vrot.slane %v2194, %v2414
        %v2416 = vlaneseq
        %v2417 = vshrl.u32 %v2416, 7
        %v2418 = vsub.s32 1, %v2417
        %v2419 = vrot.slane %v2194, %v2418
        %v2420 = vlaneseq
        %v2421 = vshrl.u32 %v2420, 7
        %v2422 = vsub.s32 2, %v2421
        %v2423 = vrot.slane %v2194, %v2422
        %v2424 = vlaneseq
        %v2425 = vshrl.u32 %v2424, 7
        %v2426 = vsub.s32 3, %v2425
        %v2427 = vrot.slane %v2194, %v2426
        %v2428 = vlaneseq
        %v2429 = vshrl.u32 %v2428, 7
        %v2430 = vsub.s32 4, %v2429
        %v2431 = vrot.slane %v2194, %v2430
        %v2432 = vlaneseq
        %v2433 = vshrl.u32 %v2432, 7
        %v2434 = vsub.s32 5, %v2433
        %v2435 = vrot.slane %v2194, %v2434
        %v2436 = vlaneseq
        %v2437 = vshrl.u32 %v2436, 7
        %v2438 = vsub.s32 6, %v2437
        %v2439 = vrot.slane %v2194, %v2438
        %v2440 = vlaneseq
        %v2441 = vshrl.u32 %v2440, 7
        %v2442 = vsub.s32 7, %v2441
        %v2443 = vrot.slane %v2194, %v2442
        %v2444 = vlaneseq
        %v2445 = vshrl.u32 %v2444, 7
        %v2446 = vsub.s32 0, %v2445
        %v2447 = vrot.slane %v2195, %v2446
        %v2448 = vlaneseq
        %v2449 = vshrl.u32 %v2448, 7
        %v2450 = vsub.s32 1, %v2449
        %v2451 = vrot.slane %v2195, %v2450
        %v2452 = vlaneseq
        %v2453 = vshrl.u32 %v2452, 7
        %v2454 = vsub.s32 2, %v2453
        %v2455 = vrot.slane %v2195, %v2454
        %v2456 = vlaneseq
        %v2457 = vshrl.u32 %v2456, 7
        %v2458 = vsub.s32 3, %v2457
        %v2459 = vrot.slane %v2195, %v2458
        %v2460 = vlaneseq
        %v2461 = vshrl.u32 %v2460, 7
        %v2462 = vsub.s32 4, %v2461
        %v2463 = vrot.slane %v2195, %v2462
        %v2464 = vlaneseq
        %v2465 = vshrl.u32 %v2464, 7
        %v2466 = vsub.s32 5, %v2465
        %v2467 = vrot.slane %v2195, %v2466
        %v2468 = vlaneseq
        %v2469 = vshrl.u32 %v2468, 7
        %v2470 = vsub.s32 6, %v2469
        %v2471 = vrot.slane %v2195, %v2470
        %v2472 = vlaneseq
        %v2473 = vshrl.u32 %v2472, 7
        %v2474 = vsub.s32 7, %v2473
        %v2475 = vrot.slane %v2195, %v2474
        %v2476 = vlaneseq
        %v2477 = vshrl.u32 %v2476, 7
        %v2478 = vsub.s32 0, %v2477
        %v2479 = vrot.slane %v2196, %v2478
        %v2480 = vlaneseq
        %v2481 = vshrl.u32 %v2480, 7
        %v2482 = vsub.s32 1, %v2481
        %v2483 = vrot.slane %v2196, %v2482
        %v2484 = vlaneseq
        %v2485 = vshrl.u32 %v2484, 7
        %v2486 = vsub.s32 2, %v2485
        %v2487 = vrot.slane %v2196, %v2486
        %v2488 = vlaneseq
        %v2489 = vshrl.u32 %v2488, 7
        %v2490 = vsub.s32 3, %v2489
        %v2491 = vrot.slane %v2196, %v2490
        %v2492 = vlaneseq
        %v2493 = vshrl.u32 %v2492, 7
        %v2494 = vsub.s32 4, %v2493
        %v2495 = vrot.slane %v2196, %v2494
        %v2496 = vlaneseq
        %v2497 = vshrl.u32 %v2496, 7
        %v2498 = vsub.s32 5, %v2497
        %v2499 = vrot.slane %v2196, %v2498
        %v2500 = vlaneseq
        %v2501 = vshrl.u32 %v2500, 7
        %v2502 = vsub.s32 6, %v2501
        %v2503 = vrot.slane %v2196, %v2502
        %v2504 = vlaneseq
        %v2505 = vshrl.u32 %v2504, 7
        %v2506 = vsub.s32 7, %v2505
        %v2507 = vrot.slane %v2196, %v2506
        %v2508 = vlaneseq
        %v2509 = vshrl.u32 %v2508, 7
        %v2510 = vsub.s32 0, %v2509
        %v2511 = vrot.slane %v2197, %v2510
        %v2512 = vlaneseq
        %v2513 = vshrl.u32 %v2512, 7
        %v2514 = vsub.s32 1, %v2513
        %v2515 = vrot.slane %v2197, %v2514
        %v2516 = vlaneseq
        %v2517 = vshrl.u32 %v2516, 7
        %v2518 = vsub.s32 2, %v2517
        %v2519 = vrot.slane %v2197, %v2518
        %v2520 = vlaneseq
        %v2521 = vshrl.u32 %v2520, 7
        %v2522 = vsub.s32 3, %v2521
        %v2523 = vrot.slane %v2197, %v2522
        %v2524 = vlaneseq
        %v2525 = vshrl.u32 %v2524, 7
        %v2526 = vsub.s32 4, %v2525
        %v2527 = vrot.slane %v2197, %v2526
        %v2528 = vlaneseq
        %v2529 = vshrl.u32 %v2528, 7
        %v2530 = vsub.s32 5, %v2529
        %v2531 = vrot.slane %v2197, %v2530
        %v2532 = vlaneseq
        %v2533 = vshrl.u32 %v2532, 7
        %v2534 = vsub.s32 6, %v2533
        %v2535 = vrot.slane %v2197, %v2534
        %v2536 = vlaneseq
        %v2537 = vshrl.u32 %v2536, 7
        %v2538 = vsub.s32 7, %v2537
        %v2539 = vrot.slane %v2197, %v2538
        %v2540 = vlaneseq
        %v2541 = vshrl.u32 %v2540, 7
        %v2542 = vsub.s32 0, %v2541
        %v2543 = vrot.slane %v2198, %v2542
        %v2544 = vlaneseq
        %v2545 = vshrl.u32 %v2544, 7
        %v2546 = vsub.s32 1, %v2545
        %v2547 = vrot.slane %v2198, %v2546
        %v2548 = vlaneseq
        %v2549 = vshrl.u32 %v2548, 7
        %v2550 = vsub.s32 2, %v2549
        %v2551 = vrot.slane %v2198, %v2550
        %v2552 = vlaneseq
        %v2553 = vshrl.u32 %v2552, 7
        %v2554 = vsub.s32 3, %v2553
        %v2555 = vrot.slane %v2198, %v2554
        %v2556 = vlaneseq
        %v2557 = vshrl.u32 %v2556, 7
        %v2558 = vsub.s32 4, %v2557
        %v2559 = vrot.slane %v2198, %v2558
        %v2560 = vlaneseq
        %v2561 = vshrl.u32 %v2560, 7
        %v2562 = vsub.s32 5, %v2561
        %v2563 = vrot.slane %v2198, %v2562
        %v2564 = vlaneseq
        %v2565 = vshrl.u32 %v2564, 7
        %v2566 = vsub.s32 6, %v2565
        %v2567 = vrot.slane %v2198, %v2566
        %v2568 = vlaneseq
        %v2569 = vshrl.u32 %v2568, 7
        %v2570 = vsub.s32 7, %v2569
        %v2571 = vrot.slane %v2198, %v2570
        %v2572 = vlaneseq
        %v2573 = vshrl.u32 %v2572, 7
        %v2574 = vsub.s32 0, %v2573
        %v2575 = vrot.slane %v2199, %v2574
        %v2576 = vlaneseq
        %v2577 = vshrl.u32 %v2576, 7
        %v2578 = vsub.s32 1, %v2577
        %v2579 = vrot.slane %v2199, %v2578
        %v2580 = vlaneseq
        %v2581 = vshrl.u32 %v2580, 7
        %v2582 = vsub.s32 2, %v2581
        %v2583 = vrot.slane %v2199, %v2582
        %v2584 = vlaneseq
        %v2585 = vshrl.u32 %v2584, 7
        %v2586 = vsub.s32 3, %v2585
        %v2587 = vrot.slane %v2199, %v2586
        %v2588 = vlaneseq
        %v2589 = vshrl.u32 %v2588, 7
        %v2590 = vsub.s32 4, %v2589
        %v2591 = vrot.slane %v2199, %v2590
        %v2592 = vlaneseq
        %v2593 = vshrl.u32 %v2592, 7
        %v2594 = vsub.s32 5, %v2593
        %v2595 = vrot.slane %v2199, %v2594
        %v2596 = vlaneseq
        %v2597 = vshrl.u32 %v2596, 7
        %v2598 = vsub.s32 6, %v2597
        %v2599 = vrot.slane %v2199, %v2598
        %v2600 = vlaneseq
        %v2601 = vshrl.u32 %v2600, 7
        %v2602 = vsub.s32 7, %v2601
        %v2603 = vrot.slane %v2199, %v2602
        %v2604 = vlaneseq
        %v2605 = vshrl.u32 %v2604, 7
        %v2606 = vsub.s32 0, %v2605
        %v2607 = vrot.slane %v2200, %v2606
        %v2608 = vlaneseq
        %v2609 = vshrl.u32 %v2608, 7
        %v2610 = vsub.s32 1, %v2609
        %v2611 = vrot.slane %v2200, %v2610
        %v2612 = vlaneseq
        %v2613 = vshrl.u32 %v2612, 7
        %v2614 = vsub.s32 2, %v2613
        %v2615 = vrot.slane %v2200, %v2614
        %v2616 = vlaneseq
        %v2617 = vshrl.u32 %v2616, 7
        %v2618 = vsub.s32 3, %v2617
        %v2619 = vrot.slane %v2200, %v2618
        %v2620 = vlaneseq
        %v2621 = vshrl.u32 %v2620, 7
        %v2622 = vsub.s32 4, %v2621
        %v2623 = vrot.slane %v2200, %v2622
        %v2624 = vlaneseq
        %v2625 = vshrl.u32 %v2624, 7
        %v2626 = vsub.s32 5, %v2625
        %v2627 = vrot.slane %v2200, %v2626
        %v2628 = vlaneseq
        %v2629 = vshrl.u32 %v2628, 7
        %v2630 = vsub.s32 6, %v2629
        %v2631 = vrot.slane %v2200, %v2630
        %v2632 = vlaneseq
        %v2633 = vshrl.u32 %v2632, 7
        %v2634 = vsub.s32 7, %v2633
        %v2635 = vrot.slane %v2200, %v2634
        %v2636 = vlaneseq
        %v2637 = vshrl.u32 %v2636, 7
        %v2638 = vsub.s32 0, %v2637
        %v2639 = vrot.slane %v2201, %v2638
        %v2640 = vlaneseq
        %v2641 = vshrl.u32 %v2640, 7
        %v2642 = vsub.s32 1, %v2641
        %v2643 = vrot.slane %v2201, %v2642
        %v2644 = vlaneseq
        %v2645 = vshrl.u32 %v2644, 7
        %v2646 = vsub.s32 2, %v2645
        %v2647 = vrot.slane %v2201, %v2646
        %v2648 = vlaneseq
        %v2649 = vshrl.u32 %v2648, 7
        %v2650 = vsub.s32 3, %v2649
        %v2651 = vrot.slane %v2201, %v2650
        %v2652 = vlaneseq
        %v2653 = vshrl.u32 %v2652, 7
        %v2654 = vsub.s32 4, %v2653
        %v2655 = vrot.slane %v2201, %v2654
        %v2656 = vlaneseq
        %v2657 = vshrl.u32 %v2656, 7
        %v2658 = vsub.s32 5, %v2657
        %v2659 = vrot.slane %v2201, %v2658
        %v2660 = vlaneseq
        %v2661 = vshrl.u32 %v2660, 7
        %v2662 = vsub.s32 6, %v2661
        %v2663 = vrot.slane %v2201, %v2662
        %v2664 = vlaneseq
        %v2665 = vshrl.u32 %v2664, 7
        %v2666 = vsub.s32 7, %v2665
        %v2667 = vrot.slane %v2201, %v2666
        %v2668 = vlaneseq
        %v2669 = vshrl.u32 %v2668, 7
        %v2670 = vsub.s32 0, %v2669
        %v2671 = vrot.slane %v2202, %v2670
        %v2672 = vlaneseq
        %v2673 = vshrl.u32 %v2672, 7
        %v2674 = vsub.s32 1, %v2673
        %v2675 = vrot.slane %v2202, %v2674
        %v2676 = vlaneseq
        %v2677 = vshrl.u32 %v2676, 7
        %v2678 = vsub.s32 2, %v2677
        %v2679 = vrot.slane %v2202, %v2678
        %v2680 = vlaneseq
        %v2681 = vshrl.u32 %v2680, 7
        %v2682 = vsub.s32 3, %v2681
        %v2683 = vrot.slane %v2202, %v2682
        %v2684 = vlaneseq
        %v2685 = vshrl.u32 %v2684, 7
        %v2686 = vsub.s32 4, %v2685
        %v2687 = vrot.slane %v2202, %v2686
        %v2688 = vlaneseq
        %v2689 = vshrl.u32 %v2688, 7
        %v2690 = vsub.s32 5, %v2689
        %v2691 = vrot.slane %v2202, %v2690
        %v2692 = vlaneseq
        %v2693 = vshrl.u32 %v2692, 7
        %v2694 = vsub.s32 6, %v2693
        %v2695 = vrot.slane %v2202, %v2694
        %v2696 = vlaneseq
        %v2697 = vshrl.u32 %v2696, 7
        %v2698 = vsub.s32 7, %v2697
        %v2699 = vrot.slane %v2202, %v2698
        %v2700 = vlaneseq
        %v2701 = vshrl.u32 %v2700, 7
        %v2702 = vsub.s32 0, %v2701
        %v2703 = vrot.slane %v2203, %v2702
        %v2704 = vlaneseq
        %v2705 = vshrl.u32 %v2704, 7
        %v2706 = vsub.s32 1, %v2705
        %v2707 = vrot.slane %v2203, %v2706
        %v2708 = vlaneseq
        %v2709 = vshrl.u32 %v2708, 7
        %v2710 = vsub.s32 2, %v2709
        %v2711 = vrot.slane %v2203, %v2710
        %v2712 = vlaneseq
        %v2713 = vshrl.u32 %v2712, 7
        %v2714 = vsub.s32 3, %v2713
        %v2715 = vrot.slane %v2203, %v2714
        %v2716 = vlaneseq
        %v2717 = vshrl.u32 %v2716, 7
        %v2718 = vsub.s32 4, %v2717
        %v2719 = vrot.slane %v2203, %v2718
        %v2720 = vlaneseq
        %v2721 = vshrl.u32 %v2720, 7
        %v2722 = vsub.s32 5, %v2721
        %v2723 = vrot.slane %v2203, %v2722
        %v2724 = vlaneseq
        %v2725 = vshrl.u32 %v2724, 7
        %v2726 = vsub.s32 6, %v2725
        %v2727 = vrot.slane %v2203, %v2726
        %v2728 = vlaneseq
        %v2729 = vshrl.u32 %v2728, 7
        %v2730 = vsub.s32 7, %v2729
        %v2731 = vrot.slane %v2203, %v2730
        %v2861 = vsel %vm491, %v649, 0
        %2863 = vmatprep.subr.mxu0 %v1165
        %2864 = vmatpush1.msra.mxu0 %v1164
        %2865 = vmatprep.subr.mxu0 %v1293
        %2866 = vmatpush1.msra.mxu0 %v1292
        %2867 = vmatprep.subr.mxu0 %v1421
        %2868 = vmatpush1.msra.mxu0 %v1420
        %2869 = vmatprep.subr.mxu0 %v1549
        %2870 = vmatpush1.msra.mxu0 %v1548
        %2871 = vmatprep.subr.mxu0 %v1677
        %2872 = vmatpush1.msra.mxu0 %v1676
        %2873 = vmatprep.subr.mxu0 %v1805
        %2874 = vmatpush1.msra.mxu0 %v1804
        %2875 = vmatprep.subr.mxu0 %v1933
        %2876 = vmatpush1.msra.mxu0 %v1932
        %2877 = vmatprep.subr.mxu0 %v2061
        %2878 = vmatpush1.msra.mxu0 %v2060
        %2879 = vmatprep.subr.mxu0 0.0
        %2880 = vmatpush1.msra.mxu0 0.0
        %2881 = vmatprep.subr.mxu0 0.0
        %2882 = vmatpush1.msra.mxu0 0.0
        %2883 = vmatprep.subr.mxu0 0.0
        %2884 = vmatpush1.msra.mxu0 0.0
        %2885 = vmatprep.subr.mxu0 0.0
        %2886 = vmatpush1.msra.mxu0 0.0
        %2887 = vmatprep.subr.mxu0 0.0
        %2888 = vmatpush1.msra.mxu0 0.0
        %2889 = vmatprep.subr.mxu0 0.0
        %2890 = vmatpush1.msra.mxu0 0.0
        %2891 = vmatprep.subr.mxu0 0.0
        %2892 = vmatpush1.msra.mxu0 0.0
        %2893 = vmatprep.subr.mxu0 0.0
        %2894 = vmatpush1.msra.mxu0 0.0
        %2895 = vmatprep.subr.mxu0 0.0
        %2896 = vmatpush1.msra.mxu0 0.0
        %2897 = vmatprep.subr.mxu0 0.0
        %2898 = vmatpush1.msra.mxu0 0.0
        %2899 = vmatprep.subr.mxu0 0.0
        %2900 = vmatpush1.msra.mxu0 0.0
        %2901 = vmatprep.subr.mxu0 0.0
        %2902 = vmatpush1.msra.mxu0 0.0
        %2903 = vmatprep.subr.mxu0 0.0
        %2904 = vmatpush1.msra.mxu0 0.0
        %2905 = vmatprep.subr.mxu0 0.0
        %2906 = vmatpush1.msra.mxu0 0.0
        %2907 = vmatprep.subr.mxu0 0.0
        %2908 = vmatpush1.msra.mxu0 0.0
        %2909 = vmatprep.subr.mxu0 0.0
        %2910 = vmatpush1.msra.mxu0 0.0
        %2911 = vmatprep.subr.mxu0 0.0
        %2912 = vmatpush1.msra.mxu0 0.0
        %2913 = vmatprep.subr.mxu0 0.0
        %2914 = vmatpush1.msra.mxu0 0.0
        %2915 = vmatprep.subr.mxu0 0.0
        %2916 = vmatpush1.msra.mxu0 0.0
        %2917 = vmatprep.subr.mxu0 0.0
        %2918 = vmatpush1.msra.mxu0 0.0
        %2919 = vmatprep.subr.mxu0 0.0
        %2920 = vmatpush1.msra.mxu0 0.0
        %2921 = vmatprep.subr.mxu0 0.0
        %2922 = vmatpush1.msra.mxu0 0.0
        %2923 = vmatprep.subr.mxu0 0.0
        %2924 = vmatpush1.msra.mxu0 0.0
        %2925 = vmatprep.subr.mxu0 0.0
        %2926 = vmatpush1.msra.mxu0 0.0
        %2927 = vmatprep.mubr.f32.mxu0 0.0
        %2928 = vmatmul.mubr.f32.gmra.mrb[0].mxu0 %v2861
        %v2929 = vpop.f32.mrb[0].mxu0
        %v2930 = vadd.f32 %v2223, %v2929
        %v2931 = vpop.f32.mrb[0].mxu0
        %v2932 = vadd.f32 %v2227, %v2931
        %2933 = vdwg.mxu0
        %2934 = vmatprep.subr.mxu0 %v1167
        %2935 = vmatpush1.msra.mxu0 %v1166
        %2936 = vmatprep.subr.mxu0 %v1295
        %2937 = vmatpush1.msra.mxu0 %v1294
        %2938 = vmatprep.subr.mxu0 %v1423
        %2939 = vmatpush1.msra.mxu0 %v1422
        %2940 = vmatprep.subr.mxu0 %v1551
        %2941 = vmatpush1.msra.mxu0 %v1550
        %2942 = vmatprep.subr.mxu0 %v1679
        %2943 = vmatpush1.msra.mxu0 %v1678
        %2944 = vmatprep.subr.mxu0 %v1807
        %2945 = vmatpush1.msra.mxu0 %v1806
        %2946 = vmatprep.subr.mxu0 %v1935
        %2947 = vmatpush1.msra.mxu0 %v1934
        %2948 = vmatprep.subr.mxu0 %v2063
        %2949 = vmatpush1.msra.mxu0 %v2062
        %2950 = vmatprep.subr.mxu0 0.0
        %2951 = vmatpush1.msra.mxu0 0.0
        %2952 = vmatprep.subr.mxu0 0.0
        %2953 = vmatpush1.msra.mxu0 0.0
        %2954 = vmatprep.subr.mxu0 0.0
        %2955 = vmatpush1.msra.mxu0 0.0
        %2956 = vmatprep.subr.mxu0 0.0
        %2957 = vmatpush1.msra.mxu0 0.0
        %2958 = vmatprep.subr.mxu0 0.0
        %2959 = vmatpush1.msra.mxu0 0.0
        %2960 = vmatprep.subr.mxu0 0.0
        %2961 = vmatpush1.msra.mxu0 0.0
        %2962 = vmatprep.subr.mxu0 0.0
        %2963 = vmatpush1.msra.mxu0 0.0
        %2964 = vmatprep.subr.mxu0 0.0
        %2965 = vmatpush1.msra.mxu0 0.0
        %2966 = vmatprep.subr.mxu0 0.0
        %2967 = vmatpush1.msra.mxu0 0.0
        %2968 = vmatprep.subr.mxu0 0.0
        %2969 = vmatpush1.msra.mxu0 0.0
        %2970 = vmatprep.subr.mxu0 0.0
        %2971 = vmatpush1.msra.mxu0 0.0
        %2972 = vmatprep.subr.mxu0 0.0
        %2973 = vmatpush1.msra.mxu0 0.0
        %2974 = vmatprep.subr.mxu0 0.0
        %2975 = vmatpush1.msra.mxu0 0.0
        %2976 = vmatprep.subr.mxu0 0.0
        %2977 = vmatpush1.msra.mxu0 0.0
        %2978 = vmatprep.subr.mxu0 0.0
        %2979 = vmatpush1.msra.mxu0 0.0
        %2980 = vmatprep.subr.mxu0 0.0
        %2981 = vmatpush1.msra.mxu0 0.0
        %2982 = vmatprep.subr.mxu0 0.0
        %2983 = vmatpush1.msra.mxu0 0.0
        %2984 = vmatprep.subr.mxu0 0.0
        %2985 = vmatpush1.msra.mxu0 0.0
        %2986 = vmatprep.subr.mxu0 0.0
        %2987 = vmatpush1.msra.mxu0 0.0
        %2988 = vmatprep.subr.mxu0 0.0
        %2989 = vmatpush1.msra.mxu0 0.0
        %2990 = vmatprep.subr.mxu0 0.0
        %2991 = vmatpush1.msra.mxu0 0.0
        %2992 = vmatprep.subr.mxu0 0.0
        %2993 = vmatpush1.msra.mxu0 0.0
        %2994 = vmatprep.subr.mxu0 0.0
        %2995 = vmatpush1.msra.mxu0 0.0
        %2996 = vmatprep.subr.mxu0 0.0
        %2997 = vmatpush1.msra.mxu0 0.0
        %2998 = vmatprep.mubr.f32.mxu0 0.0
        %2999 = vmatmul.mubr.f32.gmra.mrb[0].mxu0 %v2861
        %v3000 = vpop.f32.mrb[0].mxu0
        %v3001 = vadd.f32 %v2231, %v3000
        %v3002 = vpop.f32.mrb[0].mxu0
        %v3003 = vadd.f32 %v2235, %v3002
        %3004 = vdwg.mxu0
        %3005 = vmatprep.subr.mxu0 %v1169
        %3006 = vmatpush1.msra.mxu0 %v1168
        %3007 = vmatprep.subr.mxu0 %v1297
        %3008 = vmatpush1.msra.mxu0 %v1296
        %3009 = vmatprep.subr.mxu0 %v1425
        %3010 = vmatpush1.msra.mxu0 %v1424
        %3011 = vmatprep.subr.mxu0 %v1553
        %3012 = vmatpush1.msra.mxu0 %v1552
        %3013 = vmatprep.subr.mxu0 %v1681
        %3014 = vmatpush1.msra.mxu0 %v1680
        %3015 = vmatprep.subr.mxu0 %v1809
        %3016 = vmatpush1.msra.mxu0 %v1808
        %3017 = vmatprep.subr.mxu0 %v1937
        %3018 = vmatpush1.msra.mxu0 %v1936
        %3019 = vmatprep.subr.mxu0 %v2065
        %3020 = vmatpush1.msra.mxu0 %v2064
        %3021 = vmatprep.subr.mxu0 0.0
        %3022 = vmatpush1.msra.mxu0 0.0
        %3023 = vmatprep.subr.mxu0 0.0
        %3024 = vmatpush1.msra.mxu0 0.0
        %3025 = vmatprep.subr.mxu0 0.0
        %3026 = vmatpush1.msra.mxu0 0.0
        %3027 = vmatprep.subr.mxu0 0.0
        %3028 = vmatpush1.msra.mxu0 0.0
        %3029 = vmatprep.subr.mxu0 0.0
        %3030 = vmatpush1.msra.mxu0 0.0
        %3031 = vmatprep.subr.mxu0 0.0
        %3032 = vmatpush1.msra.mxu0 0.0
        %3033 = vmatprep.subr.mxu0 0.0
        %3034 = vmatpush1.msra.mxu0 0.0
        %3035 = vmatprep.subr.mxu0 0.0
        %3036 = vmatpush1.msra.mxu0 0.0
        %3037 = vmatprep.subr.mxu0 0.0
        %3038 = vmatpush1.msra.mxu0 0.0
        %3039 = vmatprep.subr.mxu0 0.0
        %3040 = vmatpush1.msra.mxu0 0.0
        %3041 = vmatprep.subr.mxu0 0.0
        %3042 = vmatpush1.msra.mxu0 0.0
        %3043 = vmatprep.subr.mxu0 0.0
        %3044 = vmatpush1.msra.mxu0 0.0
        %3045 = vmatprep.subr.mxu0 0.0
        %3046 = vmatpush1.msra.mxu0 0.0
        %3047 = vmatprep.subr.mxu0 0.0
        %3048 = vmatpush1.msra.mxu0 0.0
        %3049 = vmatprep.subr.mxu0 0.0
        %3050 = vmatpush1.msra.mxu0 0.0
        %3051 = vmatprep.subr.mxu0 0.0
        %3052 = vmatpush1.msra.mxu0 0.0
        %3053 = vmatprep.subr.mxu0 0.0
        %3054 = vmatpush1.msra.mxu0 0.0
        %3055 = vmatprep.subr.mxu0 0.0
        %3056 = vmatpush1.msra.mxu0 0.0
        %3057 = vmatprep.subr.mxu0 0.0
        %3058 = vmatpush1.msra.mxu0 0.0
        %3059 = vmatprep.subr.mxu0 0.0
        %3060 = vmatpush1.msra.mxu0 0.0
        %3061 = vmatprep.subr.mxu0 0.0
        %3062 = vmatpush1.msra.mxu0 0.0
        %3063 = vmatprep.subr.mxu0 0.0
        %3064 = vmatpush1.msra.mxu0 0.0
        %3065 = vmatprep.subr.mxu0 0.0
        %3066 = vmatpush1.msra.mxu0 0.0
        %3067 = vmatprep.subr.mxu0 0.0
        %3068 = vmatpush1.msra.mxu0 0.0
        %3069 = vmatprep.mubr.f32.mxu0 0.0
        %3070 = vmatmul.mubr.f32.gmra.mrb[0].mxu0 %v2861
        %v3071 = vpop.f32.mrb[0].mxu0
        %v3072 = vadd.f32 %v2239, %v3071
        %v3073 = vpop.f32.mrb[0].mxu0
        %v3074 = vadd.f32 %v2243, %v3073
        %3075 = vdwg.mxu0
        %3076 = vmatprep.subr.mxu0 %v1171
        %3077 = vmatpush1.msra.mxu0 %v1170
        %3078 = vmatprep.subr.mxu0 %v1299
        %3079 = vmatpush1.msra.mxu0 %v1298
        %3080 = vmatprep.subr.mxu0 %v1427
        %3081 = vmatpush1.msra.mxu0 %v1426
        %3082 = vmatprep.subr.mxu0 %v1555
        %3083 = vmatpush1.msra.mxu0 %v1554
        %3084 = vmatprep.subr.mxu0 %v1683
        %3085 = vmatpush1.msra.mxu0 %v1682
        %3086 = vmatprep.subr.mxu0 %v1811
        %3087 = vmatpush1.msra.mxu0 %v1810
        %3088 = vmatprep.subr.mxu0 %v1939
        %3089 = vmatpush1.msra.mxu0 %v1938
        %3090 = vmatprep.subr.mxu0 %v2067
        %3091 = vmatpush1.msra.mxu0 %v2066
        %3092 = vmatprep.subr.mxu0 0.0
        %3093 = vmatpush1.msra.mxu0 0.0
        %3094 = vmatprep.subr.mxu0 0.0
        %3095 = vmatpush1.msra.mxu0 0.0
        %3096 = vmatprep.subr.mxu0 0.0
        %3097 = vmatpush1.msra.mxu0 0.0
        %3098 = vmatprep.subr.mxu0 0.0
        %3099 = vmatpush1.msra.mxu0 0.0
        %3100 = vmatprep.subr.mxu0 0.0
        %3101 = vmatpush1.msra.mxu0 0.0
        %3102 = vmatprep.subr.mxu0 0.0
        %3103 = vmatpush1.msra.mxu0 0.0
        %3104 = vmatprep.subr.mxu0 0.0
        %3105 = vmatpush1.msra.mxu0 0.0
        %3106 = vmatprep.subr.mxu0 0.0
        %3107 = vmatpush1.msra.mxu0 0.0
        %3108 = vmatprep.subr.mxu0 0.0
        %3109 = vmatpush1.msra.mxu0 0.0
        %3110 = vmatprep.subr.mxu0 0.0
        %3111 = vmatpush1.msra.mxu0 0.0
        %3112 = vmatprep.subr.mxu0 0.0
        %3113 = vmatpush1.msra.mxu0 0.0
        %3114 = vmatprep.subr.mxu0 0.0
        %3115 = vmatpush1.msra.mxu0 0.0
        %3116 = vmatprep.subr.mxu0 0.0
        %3117 = vmatpush1.msra.mxu0 0.0
        %3118 = vmatprep.subr.mxu0 0.0
        %3119 = vmatpush1.msra.mxu0 0.0
        %3120 = vmatprep.subr.mxu0 0.0
        %3121 = vmatpush1.msra.mxu0 0.0
        %3122 = vmatprep.subr.mxu0 0.0
        %3123 = vmatpush1.msra.mxu0 0.0
        %3124 = vmatprep.subr.mxu0 0.0
        %3125 = vmatpush1.msra.mxu0 0.0
        %3126 = vmatprep.subr.mxu0 0.0
        %3127 = vmatpush1.msra.mxu0 0.0
        %3128 = vmatprep.subr.mxu0 0.0
        %3129 = vmatpush1.msra.mxu0 0.0
        %3130 = vmatprep.subr.mxu0 0.0
        %3131 = vmatpush1.msra.mxu0 0.0
        %3132 = vmatprep.subr.mxu0 0.0
        %3133 = vmatpush1.msra.mxu0 0.0
        %3134 = vmatprep.subr.mxu0 0.0
        %3135 = vmatpush1.msra.mxu0 0.0
        %3136 = vmatprep.subr.mxu0 0.0
        %3137 = vmatpush1.msra.mxu0 0.0
        %3138 = vmatprep.subr.mxu0 0.0
        %3139 = vmatpush1.msra.mxu0 0.0
        %3140 = vmatprep.mubr.f32.mxu0 0.0
        %3141 = vmatmul.mubr.f32.gmra.mrb[0].mxu0 %v2861
        %v3142 = vpop.f32.mrb[0].mxu0
        %v3143 = vadd.f32 %v2247, %v3142
        %v3144 = vpop.f32.mrb[0].mxu0
        %v3145 = vadd.f32 %v2251, %v3144
        %3146 = vdwg.mxu0
        %3147 = vmatprep.subr.mxu0 %v1173
        %3148 = vmatpush1.msra.mxu0 %v1172
        %3149 = vmatprep.subr.mxu0 %v1301
        %3150 = vmatpush1.msra.mxu0 %v1300
        %3151 = vmatprep.subr.mxu0 %v1429
        %3152 = vmatpush1.msra.mxu0 %v1428
        %3153 = vmatprep.subr.mxu0 %v1557
        %3154 = vmatpush1.msra.mxu0 %v1556
        %3155 = vmatprep.subr.mxu0 %v1685
        %3156 = vmatpush1.msra.mxu0 %v1684
        %3157 = vmatprep.subr.mxu0 %v1813
        %3158 = vmatpush1.msra.mxu0 %v1812
        %3159 = vmatprep.subr.mxu0 %v1941
        %3160 = vmatpush1.msra.mxu0 %v1940
        %3161 = vmatprep.subr.mxu0 %v2069
        %3162 = vmatpush1.msra.mxu0 %v2068
        %3163 = vmatprep.subr.mxu0 0.0
        %3164 = vmatpush1.msra.mxu0 0.0
        %3165 = vmatprep.subr.mxu0 0.0
        %3166 = vmatpush1.msra.mxu0 0.0
        %3167 = vmatprep.subr.mxu0 0.0
        %3168 = vmatpush1.msra.mxu0 0.0
        %3169 = vmatprep.subr.mxu0 0.0
        %3170 = vmatpush1.msra.mxu0 0.0
        %3171 = vmatprep.subr.mxu0 0.0
        %3172 = vmatpush1.msra.mxu0 0.0
        %3173 = vmatprep.subr.mxu0 0.0
        %3174 = vmatpush1.msra.mxu0 0.0
        %3175 = vmatprep.subr.mxu0 0.0
        %3176 = vmatpush1.msra.mxu0 0.0
        %3177 = vmatprep.subr.mxu0 0.0
        %3178 = vmatpush1.msra.mxu0 0.0
        %3179 = vmatprep.subr.mxu0 0.0
        %3180 = vmatpush1.msra.mxu0 0.0
        %3181 = vmatprep.subr.mxu0 0.0
        %3182 = vmatpush1.msra.mxu0 0.0
        %3183 = vmatprep.subr.mxu0 0.0
        %3184 = vmatpush1.msra.mxu0 0.0
        %3185 = vmatprep.subr.mxu0 0.0
        %3186 = vmatpush1.msra.mxu0 0.0
        %3187 = vmatprep.subr.mxu0 0.0
        %3188 = vmatpush1.msra.mxu0 0.0
        %3189 = vmatprep.subr.mxu0 0.0
        %3190 = vmatpush1.msra.mxu0 0.0
        %3191 = vmatprep.subr.mxu0 0.0
        %3192 = vmatpush1.msra.mxu0 0.0
        %3193 = vmatprep.subr.mxu0 0.0
        %3194 = vmatpush1.msra.mxu0 0.0
        %3195 = vmatprep.subr.mxu0 0.0
        %3196 = vmatpush1.msra.mxu0 0.0
        %3197 = vmatprep.subr.mxu0 0.0
        %3198 = vmatpush1.msra.mxu0 0.0
        %3199 = vmatprep.subr.mxu0 0.0
        %3200 = vmatpush1.msra.mxu0 0.0
        %3201 = vmatprep.subr.mxu0 0.0
        %3202 = vmatpush1.msra.mxu0 0.0
        %3203 = vmatprep.subr.mxu0 0.0
        %3204 = vmatpush1.msra.mxu0 0.0
        %3205 = vmatprep.subr.mxu0 0.0
        %3206 = vmatpush1.msra.mxu0 0.0
        %3207 = vmatprep.subr.mxu0 0.0
        %3208 = vmatpush1.msra.mxu0 0.0
        %3209 = vmatprep.subr.mxu0 0.0
        %3210 = vmatpush1.msra.mxu0 0.0
        %3211 = vmatprep.mubr.f32.mxu0 0.0
        %3212 = vmatmul.mubr.f32.gmra.mrb[0].mxu0 %v2861
        %v3213 = vpop.f32.mrb[0].mxu0
        %v3214 = vadd.f32 %v2255, %v3213
        %v3215 = vpop.f32.mrb[0].mxu0
        %v3216 = vadd.f32 %v2259, %v3215
        %3217 = vdwg.mxu0
        %3218 = vmatprep.subr.mxu0 %v1175
        %3219 = vmatpush1.msra.mxu0 %v1174
        %3220 = vmatprep.subr.mxu0 %v1303
        %3221 = vmatpush1.msra.mxu0 %v1302
        %3222 = vmatprep.subr.mxu0 %v1431
        %3223 = vmatpush1.msra.mxu0 %v1430
        %3224 = vmatprep.subr.mxu0 %v1559
        %3225 = vmatpush1.msra.mxu0 %v1558
        %3226 = vmatprep.subr.mxu0 %v1687
        %3227 = vmatpush1.msra.mxu0 %v1686
        %3228 = vmatprep.subr.mxu0 %v1815
        %3229 = vmatpush1.msra.mxu0 %v1814
        %3230 = vmatprep.subr.mxu0 %v1943
        %3231 = vmatpush1.msra.mxu0 %v1942
        %3232 = vmatprep.subr.mxu0 %v2071
        %3233 = vmatpush1.msra.mxu0 %v2070
        %3234 = vmatprep.subr.mxu0 0.0
        %3235 = vmatpush1.msra.mxu0 0.0
        %3236 = vmatprep.subr.mxu0 0.0
        %3237 = vmatpush1.msra.mxu0 0.0
        %3238 = vmatprep.subr.mxu0 0.0
        %3239 = vmatpush1.msra.mxu0 0.0
        %3240 = vmatprep.subr.mxu0 0.0
        %3241 = vmatpush1.msra.mxu0 0.0
        %3242 = vmatprep.subr.mxu0 0.0
        %3243 = vmatpush1.msra.mxu0 0.0
        %3244 = vmatprep.subr.mxu0 0.0
        %3245 = vmatpush1.msra.mxu0 0.0
        %3246 = vmatprep.subr.mxu0 0.0
        %3247 = vmatpush1.msra.mxu0 0.0
        %3248 = vmatprep.subr.mxu0 0.0
        %3249 = vmatpush1.msra.mxu0 0.0
        %3250 = vmatprep.subr.mxu0 0.0
        %3251 = vmatpush1.msra.mxu0 0.0
        %3252 = vmatprep.subr.mxu0 0.0
        %3253 = vmatpush1.msra.mxu0 0.0
        %3254 = vmatprep.subr.mxu0 0.0
        %3255 = vmatpush1.msra.mxu0 0.0
        %3256 = vmatprep.subr.mxu0 0.0
        %3257 = vmatpush1.msra.mxu0 0.0
        %3258 = vmatprep.subr.mxu0 0.0
        %3259 = vmatpush1.msra.mxu0 0.0
        %3260 = vmatprep.subr.mxu0 0.0
        %3261 = vmatpush1.msra.mxu0 0.0
        %3262 = vmatprep.subr.mxu0 0.0
        %3263 = vmatpush1.msra.mxu0 0.0
        %3264 = vmatprep.subr.mxu0 0.0
        %3265 = vmatpush1.msra.mxu0 0.0
        %3266 = vmatprep.subr.mxu0 0.0
        %3267 = vmatpush1.msra.mxu0 0.0
        %3268 = vmatprep.subr.mxu0 0.0
        %3269 = vmatpush1.msra.mxu0 0.0
        %3270 = vmatprep.subr.mxu0 0.0
        %3271 = vmatpush1.msra.mxu0 0.0
        %3272 = vmatprep.subr.mxu0 0.0
        %3273 = vmatpush1.msra.mxu0 0.0
        %3274 = vmatprep.subr.mxu0 0.0
        %3275 = vmatpush1.msra.mxu0 0.0
        %3276 = vmatprep.subr.mxu0 0.0
        %3277 = vmatpush1.msra.mxu0 0.0
        %3278 = vmatprep.subr.mxu0 0.0
        %3279 = vmatpush1.msra.mxu0 0.0
        %3280 = vmatprep.subr.mxu0 0.0
        %3281 = vmatpush1.msra.mxu0 0.0
        %3282 = vmatprep.mubr.f32.mxu0 0.0
        %3283 = vmatmul.mubr.f32.gmra.mrb[0].mxu0 %v2861
        %v3284 = vpop.f32.mrb[0].mxu0
        %v3285 = vadd.f32 %v2263, %v3284
        %v3286 = vpop.f32.mrb[0].mxu0
        %v3287 = vadd.f32 %v2267, %v3286
        %3288 = vdwg.mxu0
        %3289 = vmatprep.subr.mxu0 %v1177
        %3290 = vmatpush1.msra.mxu0 %v1176
        %3291 = vmatprep.subr.mxu0 %v1305
        %3292 = vmatpush1.msra.mxu0 %v1304
        %3293 = vmatprep.subr.mxu0 %v1433
        %3294 = vmatpush1.msra.mxu0 %v1432
        %3295 = vmatprep.subr.mxu0 %v1561
        %3296 = vmatpush1.msra.mxu0 %v1560
        %3297 = vmatprep.subr.mxu0 %v1689
        %3298 = vmatpush1.msra.mxu0 %v1688
        %3299 = vmatprep.subr.mxu0 %v1817
        %3300 = vmatpush1.msra.mxu0 %v1816
        %3301 = vmatprep.subr.mxu0 %v1945
        %3302 = vmatpush1.msra.mxu0 %v1944
        %3303 = vmatprep.subr.mxu0 %v2073
        %3304 = vmatpush1.msra.mxu0 %v2072
        %3305 = vmatprep.subr.mxu0 0.0
        %3306 = vmatpush1.msra.mxu0 0.0
        %3307 = vmatprep.subr.mxu0 0.0
        %3308 = vmatpush1.msra.mxu0 0.0
        %3309 = vmatprep.subr.mxu0 0.0
        %3310 = vmatpush1.msra.mxu0 0.0
        %3311 = vmatprep.subr.mxu0 0.0
        %3312 = vmatpush1.msra.mxu0 0.0
        %3313 = vmatprep.subr.mxu0 0.0
        %3314 = vmatpush1.msra.mxu0 0.0
        %3315 = vmatprep.subr.mxu0 0.0
        %3316 = vmatpush1.msra.mxu0 0.0
        %3317 = vmatprep.subr.mxu0 0.0
        %3318 = vmatpush1.msra.mxu0 0.0
        %3319 = vmatprep.subr.mxu0 0.0
        %3320 = vmatpush1.msra.mxu0 0.0
        %3321 = vmatprep.subr.mxu0 0.0
        %3322 = vmatpush1.msra.mxu0 0.0
        %3323 = vmatprep.subr.mxu0 0.0
        %3324 = vmatpush1.msra.mxu0 0.0
        %3325 = vmatprep.subr.mxu0 0.0
        %3326 = vmatpush1.msra.mxu0 0.0
        %3327 = vmatprep.subr.mxu0 0.0
        %3328 = vmatpush1.msra.mxu0 0.0
        %3329 = vmatprep.subr.mxu0 0.0
        %3330 = vmatpush1.msra.mxu0 0.0
        %3331 = vmatprep.subr.mxu0 0.0
        %3332 = vmatpush1.msra.mxu0 0.0
        %3333 = vmatprep.subr.mxu0 0.0
        %3334 = vmatpush1.msra.mxu0 0.0
        %3335 = vmatprep.subr.mxu0 0.0
        %3336 = vmatpush1.msra.mxu0 0.0
        %3337 = vmatprep.subr.mxu0 0.0
        %3338 = vmatpush1.msra.mxu0 0.0
        %3339 = vmatprep.subr.mxu0 0.0
        %3340 = vmatpush1.msra.mxu0 0.0
        %3341 = vmatprep.subr.mxu0 0.0
        %3342 = vmatpush1.msra.mxu0 0.0
        %3343 = vmatprep.subr.mxu0 0.0
        %3344 = vmatpush1.msra.mxu0 0.0
        %3345 = vmatprep.subr.mxu0 0.0
        %3346 = vmatpush1.msra.mxu0 0.0
        %3347 = vmatprep.subr.mxu0 0.0
        %3348 = vmatpush1.msra.mxu0 0.0
        %3349 = vmatprep.subr.mxu0 0.0
        %3350 = vmatpush1.msra.mxu0 0.0
        %3351 = vmatprep.subr.mxu0 0.0
        %3352 = vmatpush1.msra.mxu0 0.0
        %3353 = vmatprep.mubr.f32.mxu0 0.0
        %3354 = vmatmul.mubr.f32.gmra.mrb[0].mxu0 %v2861
        %v3355 = vpop.f32.mrb[0].mxu0
        %v3356 = vadd.f32 %v2271, %v3355
        %v3357 = vpop.f32.mrb[0].mxu0
        %v3358 = vadd.f32 %v2275, %v3357
        %3359 = vdwg.mxu0
        %3360 = vmatprep.subr.mxu0 %v1179
        %3361 = vmatpush1.msra.mxu0 %v1178
        %3362 = vmatprep.subr.mxu0 %v1307
        %3363 = vmatpush1.msra.mxu0 %v1306
        %3364 = vmatprep.subr.mxu0 %v1435
        %3365 = vmatpush1.msra.mxu0 %v1434
        %3366 = vmatprep.subr.mxu0 %v1563
        %3367 = vmatpush1.msra.mxu0 %v1562
        %3368 = vmatprep.subr.mxu0 %v1691
        %3369 = vmatpush1.msra.mxu0 %v1690
        %3370 = vmatprep.subr.mxu0 %v1819
        %3371 = vmatpush1.msra.mxu0 %v1818
        %3372 = vmatprep.subr.mxu0 %v1947
        %3373 = vmatpush1.msra.mxu0 %v1946
        %3374 = vmatprep.subr.mxu0 %v2075
        %3375 = vmatpush1.msra.mxu0 %v2074
        %3376 = vmatprep.subr.mxu0 0.0
        %3377 = vmatpush1.msra.mxu0 0.0
        %3378 = vmatprep.subr.mxu0 0.0
        %3379 = vmatpush1.msra.mxu0 0.0
        %3380 = vmatprep.subr.mxu0 0.0
        %3381 = vmatpush1.msra.mxu0 0.0
        %3382 = vmatprep.subr.mxu0 0.0
        %3383 = vmatpush1.msra.mxu0 0.0
        %3384 = vmatprep.subr.mxu0 0.0
        %3385 = vmatpush1.msra.mxu0 0.0
        %3386 = vmatprep.subr.mxu0 0.0
        %3387 = vmatpush1.msra.mxu0 0.0
        %3388 = vmatprep.subr.mxu0 0.0
        %3389 = vmatpush1.msra.mxu0 0.0
        %3390 = vmatprep.subr.mxu0 0.0
        %3391 = vmatpush1.msra.mxu0 0.0
        %3392 = vmatprep.subr.mxu0 0.0
        %3393 = vmatpush1.msra.mxu0 0.0
        %3394 = vmatprep.subr.mxu0 0.0
        %3395 = vmatpush1.msra.mxu0 0.0
        %3396 = vmatprep.subr.mxu0 0.0
        %3397 = vmatpush1.msra.mxu0 0.0
        %3398 = vmatprep.subr.mxu0 0.0
        %3399 = vmatpush1.msra.mxu0 0.0
        %3400 = vmatprep.subr.mxu0 0.0
        %3401 = vmatpush1.msra.mxu0 0.0
        %3402 = vmatprep.subr.mxu0 0.0
        %3403 = vmatpush1.msra.mxu0 0.0
        %3404 = vmatprep.subr.mxu0 0.0
        %3405 = vmatpush1.msra.mxu0 0.0
        %3406 = vmatprep.subr.mxu0 0.0
        %3407 = vmatpush1.msra.mxu0 0.0
        %3408 = vmatprep.subr.mxu0 0.0
        %3409 = vmatpush1.msra.mxu0 0.0
        %3410 = vmatprep.subr.mxu0 0.0
        %3411 = vmatpush1.msra.mxu0 0.0
        %3412 = vmatprep.subr.mxu0 0.0
        %3413 = vmatpush1.msra.mxu0 0.0
        %3414 = vmatprep.subr.mxu0 0.0
        %3415 = vmatpush1.msra.mxu0 0.0
        %3416 = vmatprep.subr.mxu0 0.0
        %3417 = vmatpush1.msra.mxu0 0.0
        %3418 = vmatprep.subr.mxu0 0.0
        %3419 = vmatpush1.msra.mxu0 0.0
        %3420 = vmatprep.subr.mxu0 0.0
        %3421 = vmatpush1.msra.mxu0 0.0
        %3422 = vmatprep.subr.mxu0 0.0
        %3423 = vmatpush1.msra.mxu0 0.0
        %3424 = vmatprep.mubr.f32.mxu0 0.0
        %3425 = vmatmul.mubr.f32.gmra.mrb[0].mxu0 %v2861
        %v3426 = vpop.f32.mrb[0].mxu0
        %v3427 = vadd.f32 %v2279, %v3426
        %v3428 = vpop.f32.mrb[0].mxu0
        %v3429 = vadd.f32 %v2283, %v3428
        %3430 = vdwg.mxu0
        %3431 = vmatprep.subr.mxu0 %v1181
        %3432 = vmatpush1.msra.mxu0 %v1180
        %3433 = vmatprep.subr.mxu0 %v1309
        %3434 = vmatpush1.msra.mxu0 %v1308
        %3435 = vmatprep.subr.mxu0 %v1437
        %3436 = vmatpush1.msra.mxu0 %v1436
        %3437 = vmatprep.subr.mxu0 %v1565
        %3438 = vmatpush1.msra.mxu0 %v1564
        %3439 = vmatprep.subr.mxu0 %v1693
        %3440 = vmatpush1.msra.mxu0 %v1692
        %3441 = vmatprep.subr.mxu0 %v1821
        %3442 = vmatpush1.msra.mxu0 %v1820
        %3443 = vmatprep.subr.mxu0 %v1949
        %3444 = vmatpush1.msra.mxu0 %v1948
        %3445 = vmatprep.subr.mxu0 %v2077
        %3446 = vmatpush1.msra.mxu0 %v2076
        %3447 = vmatprep.subr.mxu0 0.0
        %3448 = vmatpush1.msra.mxu0 0.0
        %3449 = vmatprep.subr.mxu0 0.0
        %3450 = vmatpush1.msra.mxu0 0.0
        %3451 = vmatprep.subr.mxu0 0.0
        %3452 = vmatpush1.msra.mxu0 0.0
        %3453 = vmatprep.subr.mxu0 0.0
        %3454 = vmatpush1.msra.mxu0 0.0
        %3455 = vmatprep.subr.mxu0 0.0
        %3456 = vmatpush1.msra.mxu0 0.0
        %3457 = vmatprep.subr.mxu0 0.0
        %3458 = vmatpush1.msra.mxu0 0.0
        %3459 = vmatprep.subr.mxu0 0.0
        %3460 = vmatpush1.msra.mxu0 0.0
        %3461 = vmatprep.subr.mxu0 0.0
        %3462 = vmatpush1.msra.mxu0 0.0
        %3463 = vmatprep.subr.mxu0 0.0
        %3464 = vmatpush1.msra.mxu0 0.0
        %3465 = vmatprep.subr.mxu0 0.0
        %3466 = vmatpush1.msra.mxu0 0.0
        %3467 = vmatprep.subr.mxu0 0.0
        %3468 = vmatpush1.msra.mxu0 0.0
        %3469 = vmatprep.subr.mxu0 0.0
        %3470 = vmatpush1.msra.mxu0 0.0
        %3471 = vmatprep.subr.mxu0 0.0
        %3472 = vmatpush1.msra.mxu0 0.0
        %3473 = vmatprep.subr.mxu0 0.0
        %3474 = vmatpush1.msra.mxu0 0.0
        %3475 = vmatprep.subr.mxu0 0.0
        %3476 = vmatpush1.msra.mxu0 0.0
        %3477 = vmatprep.subr.mxu0 0.0
        %3478 = vmatpush1.msra.mxu0 0.0
        %3479 = vmatprep.subr.mxu0 0.0
        %3480 = vmatpush1.msra.mxu0 0.0
        %3481 = vmatprep.subr.mxu0 0.0
        %3482 = vmatpush1.msra.mxu0 0.0
        %3483 = vmatprep.subr.mxu0 0.0
        %3484 = vmatpush1.msra.mxu0 0.0
        %3485 = vmatprep.subr.mxu0 0.0
        %3486 = vmatpush1.msra.mxu0 0.0
        %3487 = vmatprep.subr.mxu0 0.0
        %3488 = vmatpush1.msra.mxu0 0.0
        %3489 = vmatprep.subr.mxu0 0.0
        %3490 = vmatpush1.msra.mxu0 0.0
        %3491 = vmatprep.subr.mxu0 0.0
        %3492 = vmatpush1.msra.mxu0 0.0
        %3493 = vmatprep.subr.mxu0 0.0
        %3494 = vmatpush1.msra.mxu0 0.0
        %3495 = vmatprep.mubr.f32.mxu0 0.0
        %3496 = vmatmul.mubr.f32.gmra.mrb[0].mxu0 %v2861
        %v3497 = vpop.f32.mrb[0].mxu0
        %v3498 = vadd.f32 %v2287, %v3497
        %v3499 = vpop.f32.mrb[0].mxu0
        %v3500 = vadd.f32 %v2291, %v3499
        %3501 = vdwg.mxu0
        %3502 = vmatprep.subr.mxu0 %v1183
        %3503 = vmatpush1.msra.mxu0 %v1182
        %3504 = vmatprep.subr.mxu0 %v1311
        %3505 = vmatpush1.msra.mxu0 %v1310
        %3506 = vmatprep.subr.mxu0 %v1439
        %3507 = vmatpush1.msra.mxu0 %v1438
        %3508 = vmatprep.subr.mxu0 %v1567
        %3509 = vmatpush1.msra.mxu0 %v1566
        %3510 = vmatprep.subr.mxu0 %v1695
        %3511 = vmatpush1.msra.mxu0 %v1694
        %3512 = vmatprep.subr.mxu0 %v1823
        %3513 = vmatpush1.msra.mxu0 %v1822
        %3514 = vmatprep.subr.mxu0 %v1951
        %3515 = vmatpush1.msra.mxu0 %v1950
        %3516 = vmatprep.subr.mxu0 %v2079
        %3517 = vmatpush1.msra.mxu0 %v2078
        %3518 = vmatprep.subr.mxu0 0.0
        %3519 = vmatpush1.msra.mxu0 0.0
        %3520 = vmatprep.subr.mxu0 0.0
        %3521 = vmatpush1.msra.mxu0 0.0
        %3522 = vmatprep.subr.mxu0 0.0
        %3523 = vmatpush1.msra.mxu0 0.0
        %3524 = vmatprep.subr.mxu0 0.0
        %3525 = vmatpush1.msra.mxu0 0.0
        %3526 = vmatprep.subr.mxu0 0.0
        %3527 = vmatpush1.msra.mxu0 0.0
        %3528 = vmatprep.subr.mxu0 0.0
        %3529 = vmatpush1.msra.mxu0 0.0
        %3530 = vmatprep.subr.mxu0 0.0
        %3531 = vmatpush1.msra.mxu0 0.0
        %3532 = vmatprep.subr.mxu0 0.0
        %3533 = vmatpush1.msra.mxu0 0.0
        %3534 = vmatprep.subr.mxu0 0.0
        %3535 = vmatpush1.msra.mxu0 0.0
        %3536 = vmatprep.subr.mxu0 0.0
        %3537 = vmatpush1.msra.mxu0 0.0
        %3538 = vmatprep.subr.mxu0 0.0
        %3539 = vmatpush1.msra.mxu0 0.0
        %3540 = vmatprep.subr.mxu0 0.0
        %3541 = vmatpush1.msra.mxu0 0.0
        %3542 = vmatprep.subr.mxu0 0.0
        %3543 = vmatpush1.msra.mxu0 0.0
        %3544 = vmatprep.subr.mxu0 0.0
        %3545 = vmatpush1.msra.mxu0 0.0
        %3546 = vmatprep.subr.mxu0 0.0
        %3547 = vmatpush1.msra.mxu0 0.0
        %3548 = vmatprep.subr.mxu0 0.0
        %3549 = vmatpush1.msra.mxu0 0.0
        %3550 = vmatprep.subr.mxu0 0.0
        %3551 = vmatpush1.msra.mxu0 0.0
        %3552 = vmatprep.subr.mxu0 0.0
        %3553 = vmatpush1.msra.mxu0 0.0
        %3554 = vmatprep.subr.mxu0 0.0
        %3555 = vmatpush1.msra.mxu0 0.0
        %3556 = vmatprep.subr.mxu0 0.0
        %3557 = vmatpush1.msra.mxu0 0.0
        %3558 = vmatprep.subr.mxu0 0.0
        %3559 = vmatpush1.msra.mxu0 0.0
        %3560 = vmatprep.subr.mxu0 0.0
        %3561 = vmatpush1.msra.mxu0 0.0
        %3562 = vmatprep.subr.mxu0 0.0
        %3563 = vmatpush1.msra.mxu0 0.0
        %3564 = vmatprep.subr.mxu0 0.0
        %3565 = vmatpush1.msra.mxu0 0.0
        %3566 = vmatprep.mubr.f32.mxu0 0.0
        %3567 = vmatmul.mubr.f32.gmra.mrb[0].mxu0 %v2861
        %v3568 = vpop.f32.mrb[0].mxu0
        %v3569 = vadd.f32 %v2295, %v3568
        %v3570 = vpop.f32.mrb[0].mxu0
        %v3571 = vadd.f32 %v2299, %v3570
        %3572 = vdwg.mxu0
        %3573 = vmatprep.subr.mxu0 %v1185
        %3574 = vmatpush1.msra.mxu0 %v1184
        %3575 = vmatprep.subr.mxu0 %v1313
        %3576 = vmatpush1.msra.mxu0 %v1312
        %3577 = vmatprep.subr.mxu0 %v1441
        %3578 = vmatpush1.msra.mxu0 %v1440
        %3579 = vmatprep.subr.mxu0 %v1569
        %3580 = vmatpush1.msra.mxu0 %v1568
        %3581 = vmatprep.subr.mxu0 %v1697
        %3582 = vmatpush1.msra.mxu0 %v1696
        %3583 = vmatprep.subr.mxu0 %v1825
        %3584 = vmatpush1.msra.mxu0 %v1824
        %3585 = vmatprep.subr.mxu0 %v1953
        %3586 = vmatpush1.msra.mxu0 %v1952
        %3587 = vmatprep.subr.mxu0 %v2081
        %3588 = vmatpush1.msra.mxu0 %v2080
        %3589 = vmatprep.subr.mxu0 0.0
        %3590 = vmatpush1.msra.mxu0 0.0
        %3591 = vmatprep.subr.mxu0 0.0
        %3592 = vmatpush1.msra.mxu0 0.0
        %3593 = vmatprep.subr.mxu0 0.0
        %3594 = vmatpush1.msra.mxu0 0.0
        %3595 = vmatprep.subr.mxu0 0.0
        %3596 = vmatpush1.msra.mxu0 0.0
        %3597 = vmatprep.subr.mxu0 0.0
        %3598 = vmatpush1.msra.mxu0 0.0
        %3599 = vmatprep.subr.mxu0 0.0
        %3600 = vmatpush1.msra.mxu0 0.0
        %3601 = vmatprep.subr.mxu0 0.0
        %3602 = vmatpush1.msra.mxu0 0.0
        %3603 = vmatprep.subr.mxu0 0.0
        %3604 = vmatpush1.msra.mxu0 0.0
        %3605 = vmatprep.subr.mxu0 0.0
        %3606 = vmatpush1.msra.mxu0 0.0
        %3607 = vmatprep.subr.mxu0 0.0
        %3608 = vmatpush1.msra.mxu0 0.0
        %3609 = vmatprep.subr.mxu0 0.0
        %3610 = vmatpush1.msra.mxu0 0.0
        %3611 = vmatprep.subr.mxu0 0.0
        %3612 = vmatpush1.msra.mxu0 0.0
        %3613 = vmatprep.subr.mxu0 0.0
        %3614 = vmatpush1.msra.mxu0 0.0
        %3615 = vmatprep.subr.mxu0 0.0
        %3616 = vmatpush1.msra.mxu0 0.0
        %3617 = vmatprep.subr.mxu0 0.0
        %3618 = vmatpush1.msra.mxu0 0.0
        %3619 = vmatprep.subr.mxu0 0.0
        %3620 = vmatpush1.msra.mxu0 0.0
        %3621 = vmatprep.subr.mxu0 0.0
        %3622 = vmatpush1.msra.mxu0 0.0
        %3623 = vmatprep.subr.mxu0 0.0
        %3624 = vmatpush1.msra.mxu0 0.0
        %3625 = vmatprep.subr.mxu0 0.0
        %3626 = vmatpush1.msra.mxu0 0.0
        %3627 = vmatprep.subr.mxu0 0.0
        %3628 = vmatpush1.msra.mxu0 0.0
        %3629 = vmatprep.subr.mxu0 0.0
        %3630 = vmatpush1.msra.mxu0 0.0
        %3631 = vmatprep.subr.mxu0 0.0
        %3632 = vmatpush1.msra.mxu0 0.0
        %3633 = vmatprep.subr.mxu0 0.0
        %3634 = vmatpush1.msra.mxu0 0.0
        %3635 = vmatprep.subr.mxu0 0.0
        %3636 = vmatpush1.msra.mxu0 0.0
        %3637 = vmatprep.mubr.f32.mxu0 0.0
        %3638 = vmatmul.mubr.f32.gmra.mrb[0].mxu0 %v2861
        %v3639 = vpop.f32.mrb[0].mxu0
        %v3640 = vadd.f32 %v2303, %v3639
        %v3641 = vpop.f32.mrb[0].mxu0
        %v3642 = vadd.f32 %v2307, %v3641
        %3643 = vdwg.mxu0
        %3644 = vmatprep.subr.mxu0 %v1187
        %3645 = vmatpush1.msra.mxu0 %v1186
        %3646 = vmatprep.subr.mxu0 %v1315
        %3647 = vmatpush1.msra.mxu0 %v1314
        %3648 = vmatprep.subr.mxu0 %v1443
        %3649 = vmatpush1.msra.mxu0 %v1442
        %3650 = vmatprep.subr.mxu0 %v1571
        %3651 = vmatpush1.msra.mxu0 %v1570
        %3652 = vmatprep.subr.mxu0 %v1699
        %3653 = vmatpush1.msra.mxu0 %v1698
        %3654 = vmatprep.subr.mxu0 %v1827
        %3655 = vmatpush1.msra.mxu0 %v1826
        %3656 = vmatprep.subr.mxu0 %v1955
        %3657 = vmatpush1.msra.mxu0 %v1954
        %3658 = vmatprep.subr.mxu0 %v2083
        %3659 = vmatpush1.msra.mxu0 %v2082
        %3660 = vmatprep.subr.mxu0 0.0
        %3661 = vmatpush1.msra.mxu0 0.0
        %3662 = vmatprep.subr.mxu0 0.0
        %3663 = vmatpush1.msra.mxu0 0.0
        %3664 = vmatprep.subr.mxu0 0.0
        %3665 = vmatpush1.msra.mxu0 0.0
        %3666 = vmatprep.subr.mxu0 0.0
        %3667 = vmatpush1.msra.mxu0 0.0
        %3668 = vmatprep.subr.mxu0 0.0
        %3669 = vmatpush1.msra.mxu0 0.0
        %3670 = vmatprep.subr.mxu0 0.0
        %3671 = vmatpush1.msra.mxu0 0.0
        %3672 = vmatprep.subr.mxu0 0.0
        %3673 = vmatpush1.msra.mxu0 0.0
        %3674 = vmatprep.subr.mxu0 0.0
        %3675 = vmatpush1.msra.mxu0 0.0
        %3676 = vmatprep.subr.mxu0 0.0
        %3677 = vmatpush1.msra.mxu0 0.0
        %3678 = vmatprep.subr.mxu0 0.0
        %3679 = vmatpush1.msra.mxu0 0.0
        %3680 = vmatprep.subr.mxu0 0.0
        %3681 = vmatpush1.msra.mxu0 0.0
        %3682 = vmatprep.subr.mxu0 0.0
        %3683 = vmatpush1.msra.mxu0 0.0
        %3684 = vmatprep.subr.mxu0 0.0
        %3685 = vmatpush1.msra.mxu0 0.0
        %3686 = vmatprep.subr.mxu0 0.0
        %3687 = vmatpush1.msra.mxu0 0.0
        %3688 = vmatprep.subr.mxu0 0.0
        %3689 = vmatpush1.msra.mxu0 0.0
        %3690 = vmatprep.subr.mxu0 0.0
        %3691 = vmatpush1.msra.mxu0 0.0
        %3692 = vmatprep.subr.mxu0 0.0
        %3693 = vmatpush1.msra.mxu0 0.0
        %3694 = vmatprep.subr.mxu0 0.0
        %3695 = vmatpush1.msra.mxu0 0.0
        %3696 = vmatprep.subr.mxu0 0.0
        %3697 = vmatpush1.msra.mxu0 0.0
        %3698 = vmatprep.subr.mxu0 0.0
        %3699 = vmatpush1.msra.mxu0 0.0
        %3700 = vmatprep.subr.mxu0 0.0
        %3701 = vmatpush1.msra.mxu0 0.0
        %3702 = vmatprep.subr.mxu0 0.0
        %3703 = vmatpush1.msra.mxu0 0.0
        %3704 = vmatprep.subr.mxu0 0.0
        %3705 = vmatpush1.msra.mxu0 0.0
        %3706 = vmatprep.subr.mxu0 0.0
        %3707 = vmatpush1.msra.mxu0 0.0
        %3708 = vmatprep.mubr.f32.mxu0 0.0
        %3709 = vmatmul.mubr.f32.gmra.mrb[0].mxu0 %v2861
        %v3710 = vpop.f32.mrb[0].mxu0
        %v3711 = vadd.f32 %v2311, %v3710
        %v3712 = vpop.f32.mrb[0].mxu0
        %v3713 = vadd.f32 %v2315, %v3712
        %3714 = vdwg.mxu0
        %3715 = vmatprep.subr.mxu0 %v1189
        %3716 = vmatpush1.msra.mxu0 %v1188
        %3717 = vmatprep.subr.mxu0 %v1317
        %3718 = vmatpush1.msra.mxu0 %v1316
        %3719 = vmatprep.subr.mxu0 %v1445
        %3720 = vmatpush1.msra.mxu0 %v1444
        %3721 = vmatprep.subr.mxu0 %v1573
        %3722 = vmatpush1.msra.mxu0 %v1572
        %3723 = vmatprep.subr.mxu0 %v1701
        %3724 = vmatpush1.msra.mxu0 %v1700
        %3725 = vmatprep.subr.mxu0 %v1829
        %3726 = vmatpush1.msra.mxu0 %v1828
        %3727 = vmatprep.subr.mxu0 %v1957
        %3728 = vmatpush1.msra.mxu0 %v1956
        %3729 = vmatprep.subr.mxu0 %v2085
        %3730 = vmatpush1.msra.mxu0 %v2084
        %3731 = vmatprep.subr.mxu0 0.0
        %3732 = vmatpush1.msra.mxu0 0.0
        %3733 = vmatprep.subr.mxu0 0.0
        %3734 = vmatpush1.msra.mxu0 0.0
        %3735 = vmatprep.subr.mxu0 0.0
        %3736 = vmatpush1.msra.mxu0 0.0
        %3737 = vmatprep.subr.mxu0 0.0
        %3738 = vmatpush1.msra.mxu0 0.0
        %3739 = vmatprep.subr.mxu0 0.0
        %3740 = vmatpush1.msra.mxu0 0.0
        %3741 = vmatprep.subr.mxu0 0.0
        %3742 = vmatpush1.msra.mxu0 0.0
        %3743 = vmatprep.subr.mxu0 0.0
        %3744 = vmatpush1.msra.mxu0 0.0
        %3745 = vmatprep.subr.mxu0 0.0
        %3746 = vmatpush1.msra.mxu0 0.0
        %3747 = vmatprep.subr.mxu0 0.0
        %3748 = vmatpush1.msra.mxu0 0.0
        %3749 = vmatprep.subr.mxu0 0.0
        %3750 = vmatpush1.msra.mxu0 0.0
        %3751 = vmatprep.subr.mxu0 0.0
        %3752 = vmatpush1.msra.mxu0 0.0
        %3753 = vmatprep.subr.mxu0 0.0
        %3754 = vmatpush1.msra.mxu0 0.0
        %3755 = vmatprep.subr.mxu0 0.0
        %3756 = vmatpush1.msra.mxu0 0.0
        %3757 = vmatprep.subr.mxu0 0.0
        %3758 = vmatpush1.msra.mxu0 0.0
        %3759 = vmatprep.subr.mxu0 0.0
        %3760 = vmatpush1.msra.mxu0 0.0
        %3761 = vmatprep.subr.mxu0 0.0
        %3762 = vmatpush1.msra.mxu0 0.0
        %3763 = vmatprep.subr.mxu0 0.0
        %3764 = vmatpush1.msra.mxu0 0.0
        %3765 = vmatprep.subr.mxu0 0.0
        %3766 = vmatpush1.msra.mxu0 0.0
        %3767 = vmatprep.subr.mxu0 0.0
        %3768 = vmatpush1.msra.mxu0 0.0
        %3769 = vmatprep.subr.mxu0 0.0
        %3770 = vmatpush1.msra.mxu0 0.0
        %3771 = vmatprep.subr.mxu0 0.0
        %3772 = vmatpush1.msra.mxu0 0.0
        %3773 = vmatprep.subr.mxu0 0.0
        %3774 = vmatpush1.msra.mxu0 0.0
        %3775 = vmatprep.subr.mxu0 0.0
        %3776 = vmatpush1.msra.mxu0 0.0
        %3777 = vmatprep.subr.mxu0 0.0
        %3778 = vmatpush1.msra.mxu0 0.0
        %3779 = vmatprep.mubr.f32.mxu0 0.0
        %3780 = vmatmul.mubr.f32.gmra.mrb[0].mxu0 %v2861
        %v3781 = vpop.f32.mrb[0].mxu0
        %v3782 = vadd.f32 %v2319, %v3781
        %v3783 = vpop.f32.mrb[0].mxu0
        %v3784 = vadd.f32 %v2323, %v3783
        %3785 = vdwg.mxu0
        %3786 = vmatprep.subr.mxu0 %v1191
        %3787 = vmatpush1.msra.mxu0 %v1190
        %3788 = vmatprep.subr.mxu0 %v1319
        %3789 = vmatpush1.msra.mxu0 %v1318
        %3790 = vmatprep.subr.mxu0 %v1447
        %3791 = vmatpush1.msra.mxu0 %v1446
        %3792 = vmatprep.subr.mxu0 %v1575
        %3793 = vmatpush1.msra.mxu0 %v1574
        %3794 = vmatprep.subr.mxu0 %v1703
        %3795 = vmatpush1.msra.mxu0 %v1702
        %3796 = vmatprep.subr.mxu0 %v1831
        %3797 = vmatpush1.msra.mxu0 %v1830
        %3798 = vmatprep.subr.mxu0 %v1959
        %3799 = vmatpush1.msra.mxu0 %v1958
        %3800 = vmatprep.subr.mxu0 %v2087
        %3801 = vmatpush1.msra.mxu0 %v2086
        %3802 = vmatprep.subr.mxu0 0.0
        %3803 = vmatpush1.msra.mxu0 0.0
        %3804 = vmatprep.subr.mxu0 0.0
        %3805 = vmatpush1.msra.mxu0 0.0
        %3806 = vmatprep.subr.mxu0 0.0
        %3807 = vmatpush1.msra.mxu0 0.0
        %3808 = vmatprep.subr.mxu0 0.0
        %3809 = vmatpush1.msra.mxu0 0.0
        %3810 = vmatprep.subr.mxu0 0.0
        %3811 = vmatpush1.msra.mxu0 0.0
        %3812 = vmatprep.subr.mxu0 0.0
        %3813 = vmatpush1.msra.mxu0 0.0
        %3814 = vmatprep.subr.mxu0 0.0
        %3815 = vmatpush1.msra.mxu0 0.0
        %3816 = vmatprep.subr.mxu0 0.0
        %3817 = vmatpush1.msra.mxu0 0.0
        %3818 = vmatprep.subr.mxu0 0.0
        %3819 = vmatpush1.msra.mxu0 0.0
        %3820 = vmatprep.subr.mxu0 0.0
        %3821 = vmatpush1.msra.mxu0 0.0
        %3822 = vmatprep.subr.mxu0 0.0
        %3823 = vmatpush1.msra.mxu0 0.0
        %3824 = vmatprep.subr.mxu0 0.0
        %3825 = vmatpush1.msra.mxu0 0.0
        %3826 = vmatprep.subr.mxu0 0.0
        %3827 = vmatpush1.msra.mxu0 0.0
        %3828 = vmatprep.subr.mxu0 0.0
        %3829 = vmatpush1.msra.mxu0 0.0
        %3830 = vmatprep.subr.mxu0 0.0
        %3831 = vmatpush1.msra.mxu0 0.0
        %3832 = vmatprep.subr.mxu0 0.0
        %3833 = vmatpush1.msra.mxu0 0.0
        %3834 = vmatprep.subr.mxu0 0.0
        %3835 = vmatpush1.msra.mxu0 0.0
        %3836 = vmatprep.subr.mxu0 0.0
        %3837 = vmatpush1.msra.mxu0 0.0
        %3838 = vmatprep.subr.mxu0 0.0
        %3839 = vmatpush1.msra.mxu0 0.0
        %3840 = vmatprep.subr.mxu0 0.0
        %3841 = vmatpush1.msra.mxu0 0.0
        %3842 = vmatprep.subr.mxu0 0.0
        %3843 = vmatpush1.msra.mxu0 0.0
        %3844 = vmatprep.subr.mxu0 0.0
        %3845 = vmatpush1.msra.mxu0 0.0
        %3846 = vmatprep.subr.mxu0 0.0
        %3847 = vmatpush1.msra.mxu0 0.0
        %3848 = vmatprep.subr.mxu0 0.0
        %3849 = vmatpush1.msra.mxu0 0.0
        %3850 = vmatprep.mubr.f32.mxu0 0.0
        %3851 = vmatmul.mubr.f32.gmra.mrb[0].mxu0 %v2861
        %v3852 = vpop.f32.mrb[0].mxu0
        %v3853 = vadd.f32 %v2327, %v3852
        %v3854 = vpop.f32.mrb[0].mxu0
        %v3855 = vadd.f32 %v2331, %v3854
        %3856 = vdwg.mxu0
        %3857 = vmatprep.subr.mxu0 %v1193
        %3858 = vmatpush1.msra.mxu0 %v1192
        %3859 = vmatprep.subr.mxu0 %v1321
        %3860 = vmatpush1.msra.mxu0 %v1320
        %3861 = vmatprep.subr.mxu0 %v1449
        %3862 = vmatpush1.msra.mxu0 %v1448
        %3863 = vmatprep.subr.mxu0 %v1577
        %3864 = vmatpush1.msra.mxu0 %v1576
        %3865 = vmatprep.subr.mxu0 %v1705
        %3866 = vmatpush1.msra.mxu0 %v1704
        %3867 = vmatprep.subr.mxu0 %v1833
        %3868 = vmatpush1.msra.mxu0 %v1832
        %3869 = vmatprep.subr.mxu0 %v1961
        %3870 = vmatpush1.msra.mxu0 %v1960
        %3871 = vmatprep.subr.mxu0 %v2089
        %3872 = vmatpush1.msra.mxu0 %v2088
        %3873 = vmatprep.subr.mxu0 0.0
        %3874 = vmatpush1.msra.mxu0 0.0
        %3875 = vmatprep.subr.mxu0 0.0
        %3876 = vmatpush1.msra.mxu0 0.0
        %3877 = vmatprep.subr.mxu0 0.0
        %3878 = vmatpush1.msra.mxu0 0.0
        %3879 = vmatprep.subr.mxu0 0.0
        %3880 = vmatpush1.msra.mxu0 0.0
        %3881 = vmatprep.subr.mxu0 0.0
        %3882 = vmatpush1.msra.mxu0 0.0
        %3883 = vmatprep.subr.mxu0 0.0
        %3884 = vmatpush1.msra.mxu0 0.0
        %3885 = vmatprep.subr.mxu0 0.0
        %3886 = vmatpush1.msra.mxu0 0.0
        %3887 = vmatprep.subr.mxu0 0.0
        %3888 = vmatpush1.msra.mxu0 0.0
        %3889 = vmatprep.subr.mxu0 0.0
        %3890 = vmatpush1.msra.mxu0 0.0
        %3891 = vmatprep.subr.mxu0 0.0
        %3892 = vmatpush1.msra.mxu0 0.0
        %3893 = vmatprep.subr.mxu0 0.0
        %3894 = vmatpush1.msra.mxu0 0.0
        %3895 = vmatprep.subr.mxu0 0.0
        %3896 = vmatpush1.msra.mxu0 0.0
        %3897 = vmatprep.subr.mxu0 0.0
        %3898 = vmatpush1.msra.mxu0 0.0
        %3899 = vmatprep.subr.mxu0 0.0
        %3900 = vmatpush1.msra.mxu0 0.0
        %3901 = vmatprep.subr.mxu0 0.0
        %3902 = vmatpush1.msra.mxu0 0.0
        %3903 = vmatprep.subr.mxu0 0.0
        %3904 = vmatpush1.msra.mxu0 0.0
        %3905 = vmatprep.subr.mxu0 0.0
        %3906 = vmatpush1.msra.mxu0 0.0
        %3907 = vmatprep.subr.mxu0 0.0
        %3908 = vmatpush1.msra.mxu0 0.0
        %3909 = vmatprep.subr.mxu0 0.0
        %3910 = vmatpush1.msra.mxu0 0.0
        %3911 = vmatprep.subr.mxu0 0.0
        %3912 = vmatpush1.msra.mxu0 0.0
        %3913 = vmatprep.subr.mxu0 0.0
        %3914 = vmatpush1.msra.mxu0 0.0
        %3915 = vmatprep.subr.mxu0 0.0
        %3916 = vmatpush1.msra.mxu0 0.0
        %3917 = vmatprep.subr.mxu0 0.0
        %3918 = vmatpush1.msra.mxu0 0.0
        %3919 = vmatprep.subr.mxu0 0.0
        %3920 = vmatpush1.msra.mxu0 0.0
        %3921 = vmatprep.mubr.f32.mxu0 0.0
        %3922 = vmatmul.mubr.f32.gmra.mrb[0].mxu0 %v2861
        %v3923 = vpop.f32.mrb[0].mxu0
        %v3924 = vadd.f32 %v2335, %v3923
        %v3925 = vpop.f32.mrb[0].mxu0
        %v3926 = vadd.f32 %v2339, %v3925
        %3927 = vdwg.mxu0
        %3928 = vmatprep.subr.mxu0 %v1195
        %3929 = vmatpush1.msra.mxu0 %v1194
        %3930 = vmatprep.subr.mxu0 %v1323
        %3931 = vmatpush1.msra.mxu0 %v1322
        %3932 = vmatprep.subr.mxu0 %v1451
        %3933 = vmatpush1.msra.mxu0 %v1450
        %3934 = vmatprep.subr.mxu0 %v1579
        %3935 = vmatpush1.msra.mxu0 %v1578
        %3936 = vmatprep.subr.mxu0 %v1707
        %3937 = vmatpush1.msra.mxu0 %v1706
        %3938 = vmatprep.subr.mxu0 %v1835
        %3939 = vmatpush1.msra.mxu0 %v1834
        %3940 = vmatprep.subr.mxu0 %v1963
        %3941 = vmatpush1.msra.mxu0 %v1962
        %3942 = vmatprep.subr.mxu0 %v2091
        %3943 = vmatpush1.msra.mxu0 %v2090
        %3944 = vmatprep.subr.mxu0 0.0
        %3945 = vmatpush1.msra.mxu0 0.0
        %3946 = vmatprep.subr.mxu0 0.0
        %3947 = vmatpush1.msra.mxu0 0.0
        %3948 = vmatprep.subr.mxu0 0.0
        %3949 = vmatpush1.msra.mxu0 0.0
        %3950 = vmatprep.subr.mxu0 0.0
        %3951 = vmatpush1.msra.mxu0 0.0
        %3952 = vmatprep.subr.mxu0 0.0
        %3953 = vmatpush1.msra.mxu0 0.0
        %3954 = vmatprep.subr.mxu0 0.0
        %3955 = vmatpush1.msra.mxu0 0.0
        %3956 = vmatprep.subr.mxu0 0.0
        %3957 = vmatpush1.msra.mxu0 0.0
        %3958 = vmatprep.subr.mxu0 0.0
        %3959 = vmatpush1.msra.mxu0 0.0
        %3960 = vmatprep.subr.mxu0 0.0
        %3961 = vmatpush1.msra.mxu0 0.0
        %3962 = vmatprep.subr.mxu0 0.0
        %3963 = vmatpush1.msra.mxu0 0.0
        %3964 = vmatprep.subr.mxu0 0.0
        %3965 = vmatpush1.msra.mxu0 0.0
        %3966 = vmatprep.subr.mxu0 0.0
        %3967 = vmatpush1.msra.mxu0 0.0
        %3968 = vmatprep.subr.mxu0 0.0
        %3969 = vmatpush1.msra.mxu0 0.0
        %3970 = vmatprep.subr.mxu0 0.0
        %3971 = vmatpush1.msra.mxu0 0.0
        %3972 = vmatprep.subr.mxu0 0.0
        %3973 = vmatpush1.msra.mxu0 0.0
        %3974 = vmatprep.subr.mxu0 0.0
        %3975 = vmatpush1.msra.mxu0 0.0
        %3976 = vmatprep.subr.mxu0 0.0
        %3977 = vmatpush1.msra.mxu0 0.0
        %3978 = vmatprep.subr.mxu0 0.0
        %3979 = vmatpush1.msra.mxu0 0.0
        %3980 = vmatprep.subr.mxu0 0.0
        %3981 = vmatpush1.msra.mxu0 0.0
        %3982 = vmatprep.subr.mxu0 0.0
        %3983 = vmatpush1.msra.mxu0 0.0
        %3984 = vmatprep.subr.mxu0 0.0
        %3985 = vmatpush1.msra.mxu0 0.0
        %3986 = vmatprep.subr.mxu0 0.0
        %3987 = vmatpush1.msra.mxu0 0.0
        %3988 = vmatprep.subr.mxu0 0.0
        %3989 = vmatpush1.msra.mxu0 0.0
        %3990 = vmatprep.subr.mxu0 0.0
        %3991 = vmatpush1.msra.mxu0 0.0
        %3992 = vmatprep.mubr.f32.mxu0 0.0
        %3993 = vmatmul.mubr.f32.gmra.mrb[0].mxu0 %v2861
        %v3994 = vpop.f32.mrb[0].mxu0
        %v3995 = vadd.f32 %v2343, %v3994
        %v3996 = vpop.f32.mrb[0].mxu0
        %v3997 = vadd.f32 %v2347, %v3996
        %3998 = vdwg.mxu0
        %3999 = vmatprep.subr.mxu0 %v1197
        %4000 = vmatpush1.msra.mxu0 %v1196
        %4001 = vmatprep.subr.mxu0 %v1325
        %4002 = vmatpush1.msra.mxu0 %v1324
        %4003 = vmatprep.subr.mxu0 %v1453
        %4004 = vmatpush1.msra.mxu0 %v1452
        %4005 = vmatprep.subr.mxu0 %v1581
        %4006 = vmatpush1.msra.mxu0 %v1580
        %4007 = vmatprep.subr.mxu0 %v1709
        %4008 = vmatpush1.msra.mxu0 %v1708
        %4009 = vmatprep.subr.mxu0 %v1837
        %4010 = vmatpush1.msra.mxu0 %v1836
        %4011 = vmatprep.subr.mxu0 %v1965
        %4012 = vmatpush1.msra.mxu0 %v1964
        %4013 = vmatprep.subr.mxu0 %v2093
        %4014 = vmatpush1.msra.mxu0 %v2092
        %4015 = vmatprep.subr.mxu0 0.0
        %4016 = vmatpush1.msra.mxu0 0.0
        %4017 = vmatprep.subr.mxu0 0.0
        %4018 = vmatpush1.msra.mxu0 0.0
        %4019 = vmatprep.subr.mxu0 0.0
        %4020 = vmatpush1.msra.mxu0 0.0
        %4021 = vmatprep.subr.mxu0 0.0
        %4022 = vmatpush1.msra.mxu0 0.0
        %4023 = vmatprep.subr.mxu0 0.0
        %4024 = vmatpush1.msra.mxu0 0.0
        %4025 = vmatprep.subr.mxu0 0.0
        %4026 = vmatpush1.msra.mxu0 0.0
        %4027 = vmatprep.subr.mxu0 0.0
        %4028 = vmatpush1.msra.mxu0 0.0
        %4029 = vmatprep.subr.mxu0 0.0
        %4030 = vmatpush1.msra.mxu0 0.0
        %4031 = vmatprep.subr.mxu0 0.0
        %4032 = vmatpush1.msra.mxu0 0.0
        %4033 = vmatprep.subr.mxu0 0.0
        %4034 = vmatpush1.msra.mxu0 0.0
        %4035 = vmatprep.subr.mxu0 0.0
        %4036 = vmatpush1.msra.mxu0 0.0
        %4037 = vmatprep.subr.mxu0 0.0
        %4038 = vmatpush1.msra.mxu0 0.0
        %4039 = vmatprep.subr.mxu0 0.0
        %4040 = vmatpush1.msra.mxu0 0.0
        %4041 = vmatprep.subr.mxu0 0.0
        %4042 = vmatpush1.msra.mxu0 0.0
        %4043 = vmatprep.subr.mxu0 0.0
        %4044 = vmatpush1.msra.mxu0 0.0
        %4045 = vmatprep.subr.mxu0 0.0
        %4046 = vmatpush1.msra.mxu0 0.0
        %4047 = vmatprep.subr.mxu0 0.0
        %4048 = vmatpush1.msra.mxu0 0.0
        %4049 = vmatprep.subr.mxu0 0.0
        %4050 = vmatpush1.msra.mxu0 0.0
        %4051 = vmatprep.subr.mxu0 0.0
        %4052 = vmatpush1.msra.mxu0 0.0
        %4053 = vmatprep.subr.mxu0 0.0
        %4054 = vmatpush1.msra.mxu0 0.0
        %4055 = vmatprep.subr.mxu0 0.0
        %4056 = vmatpush1.msra.mxu0 0.0
        %4057 = vmatprep.subr.mxu0 0.0
        %4058 = vmatpush1.msra.mxu0 0.0
        %4059 = vmatprep.subr.mxu0 0.0
        %4060 = vmatpush1.msra.mxu0 0.0
        %4061 = vmatprep.subr.mxu0 0.0
        %4062 = vmatpush1.msra.mxu0 0.0
        %4063 = vmatprep.mubr.f32.mxu0 0.0
        %4064 = vmatmul.mubr.f32.gmra.mrb[0].mxu0 %v2861
        %v4065 = vpop.f32.mrb[0].mxu0
        %v4066 = vadd.f32 %v2351, %v4065
        %v4067 = vpop.f32.mrb[0].mxu0
        %v4068 = vadd.f32 %v2355, %v4067
        %4069 = vdwg.mxu0
        %4070 = vmatprep.subr.mxu0 %v1199
        %4071 = vmatpush1.msra.mxu0 %v1198
        %4072 = vmatprep.subr.mxu0 %v1327
        %4073 = vmatpush1.msra.mxu0 %v1326
        %4074 = vmatprep.subr.mxu0 %v1455
        %4075 = vmatpush1.msra.mxu0 %v1454
        %4076 = vmatprep.subr.mxu0 %v1583
        %4077 = vmatpush1.msra.mxu0 %v1582
        %4078 = vmatprep.subr.mxu0 %v1711
        %4079 = vmatpush1.msra.mxu0 %v1710
        %4080 = vmatprep.subr.mxu0 %v1839
        %4081 = vmatpush1.msra.mxu0 %v1838
        %4082 = vmatprep.subr.mxu0 %v1967
        %4083 = vmatpush1.msra.mxu0 %v1966
        %4084 = vmatprep.subr.mxu0 %v2095
        %4085 = vmatpush1.msra.mxu0 %v2094
        %4086 = vmatprep.subr.mxu0 0.0
        %4087 = vmatpush1.msra.mxu0 0.0
        %4088 = vmatprep.subr.mxu0 0.0
        %4089 = vmatpush1.msra.mxu0 0.0
        %4090 = vmatprep.subr.mxu0 0.0
        %4091 = vmatpush1.msra.mxu0 0.0
        %4092 = vmatprep.subr.mxu0 0.0
        %4093 = vmatpush1.msra.mxu0 0.0
        %4094 = vmatprep.subr.mxu0 0.0
        %4095 = vmatpush1.msra.mxu0 0.0
        %4096 = vmatprep.subr.mxu0 0.0
        %4097 = vmatpush1.msra.mxu0 0.0
        %4098 = vmatprep.subr.mxu0 0.0
        %4099 = vmatpush1.msra.mxu0 0.0
        %4100 = vmatprep.subr.mxu0 0.0
        %4101 = vmatpush1.msra.mxu0 0.0
        %4102 = vmatprep.subr.mxu0 0.0
        %4103 = vmatpush1.msra.mxu0 0.0
        %4104 = vmatprep.subr.mxu0 0.0
        %4105 = vmatpush1.msra.mxu0 0.0
        %4106 = vmatprep.subr.mxu0 0.0
        %4107 = vmatpush1.msra.mxu0 0.0
        %4108 = vmatprep.subr.mxu0 0.0
        %4109 = vmatpush1.msra.mxu0 0.0
        %4110 = vmatprep.subr.mxu0 0.0
        %4111 = vmatpush1.msra.mxu0 0.0
        %4112 = vmatprep.subr.mxu0 0.0
        %4113 = vmatpush1.msra.mxu0 0.0
        %4114 = vmatprep.subr.mxu0 0.0
        %4115 = vmatpush1.msra.mxu0 0.0
        %4116 = vmatprep.subr.mxu0 0.0
        %4117 = vmatpush1.msra.mxu0 0.0
        %4118 = vmatprep.subr.mxu0 0.0
        %4119 = vmatpush1.msra.mxu0 0.0
        %4120 = vmatprep.subr.mxu0 0.0
        %4121 = vmatpush1.msra.mxu0 0.0
        %4122 = vmatprep.subr.mxu0 0.0
        %4123 = vmatpush1.msra.mxu0 0.0
        %4124 = vmatprep.subr.mxu0 0.0
        %4125 = vmatpush1.msra.mxu0 0.0
        %4126 = vmatprep.subr.mxu0 0.0
        %4127 = vmatpush1.msra.mxu0 0.0
        %4128 = vmatprep.subr.mxu0 0.0
        %4129 = vmatpush1.msra.mxu0 0.0
        %4130 = vmatprep.subr.mxu0 0.0
        %4131 = vmatpush1.msra.mxu0 0.0
        %4132 = vmatprep.subr.mxu0 0.0
        %4133 = vmatpush1.msra.mxu0 0.0
        %4134 = vmatprep.mubr.f32.mxu0 0.0
        %4135 = vmatmul.mubr.f32.gmra.mrb[0].mxu0 %v2861
        %v4136 = vpop.f32.mrb[0].mxu0
        %v4137 = vadd.f32 %v2359, %v4136
        %v4138 = vpop.f32.mrb[0].mxu0
        %v4139 = vadd.f32 %v2363, %v4138
        %4140 = vdwg.mxu0
        %4141 = vmatprep.subr.mxu0 %v1201
        %4142 = vmatpush1.msra.mxu0 %v1200
        %4143 = vmatprep.subr.mxu0 %v1329
        %4144 = vmatpush1.msra.mxu0 %v1328
        %4145 = vmatprep.subr.mxu0 %v1457
        %4146 = vmatpush1.msra.mxu0 %v1456
        %4147 = vmatprep.subr.mxu0 %v1585
        %4148 = vmatpush1.msra.mxu0 %v1584
        %4149 = vmatprep.subr.mxu0 %v1713
        %4150 = vmatpush1.msra.mxu0 %v1712
        %4151 = vmatprep.subr.mxu0 %v1841
        %4152 = vmatpush1.msra.mxu0 %v1840
        %4153 = vmatprep.subr.mxu0 %v1969
        %4154 = vmatpush1.msra.mxu0 %v1968
        %4155 = vmatprep.subr.mxu0 %v2097
        %4156 = vmatpush1.msra.mxu0 %v2096
        %4157 = vmatprep.subr.mxu0 0.0
        %4158 = vmatpush1.msra.mxu0 0.0
        %4159 = vmatprep.subr.mxu0 0.0
        %4160 = vmatpush1.msra.mxu0 0.0
        %4161 = vmatprep.subr.mxu0 0.0
        %4162 = vmatpush1.msra.mxu0 0.0
        %4163 = vmatprep.subr.mxu0 0.0
        %4164 = vmatpush1.msra.mxu0 0.0
        %4165 = vmatprep.subr.mxu0 0.0
        %4166 = vmatpush1.msra.mxu0 0.0
        %4167 = vmatprep.subr.mxu0 0.0
        %4168 = vmatpush1.msra.mxu0 0.0
        %4169 = vmatprep.subr.mxu0 0.0
        %4170 = vmatpush1.msra.mxu0 0.0
        %4171 = vmatprep.subr.mxu0 0.0
        %4172 = vmatpush1.msra.mxu0 0.0
        %4173 = vmatprep.subr.mxu0 0.0
        %4174 = vmatpush1.msra.mxu0 0.0
        %4175 = vmatprep.subr.mxu0 0.0
        %4176 = vmatpush1.msra.mxu0 0.0
        %4177 = vmatprep.subr.mxu0 0.0
        %4178 = vmatpush1.msra.mxu0 0.0
        %4179 = vmatprep.subr.mxu0 0.0
        %4180 = vmatpush1.msra.mxu0 0.0
        %4181 = vmatprep.subr.mxu0 0.0
        %4182 = vmatpush1.msra.mxu0 0.0
        %4183 = vmatprep.subr.mxu0 0.0
        %4184 = vmatpush1.msra.mxu0 0.0
        %4185 = vmatprep.subr.mxu0 0.0
        %4186 = vmatpush1.msra.mxu0 0.0
        %4187 = vmatprep.subr.mxu0 0.0
        %4188 = vmatpush1.msra.mxu0 0.0
        %4189 = vmatprep.subr.mxu0 0.0
        %4190 = vmatpush1.msra.mxu0 0.0
        %4191 = vmatprep.subr.mxu0 0.0
        %4192 = vmatpush1.msra.mxu0 0.0
        %4193 = vmatprep.subr.mxu0 0.0
        %4194 = vmatpush1.msra.mxu0 0.0
        %4195 = vmatprep.subr.mxu0 0.0
        %4196 = vmatpush1.msra.mxu0 0.0
        %4197 = vmatprep.subr.mxu0 0.0
        %4198 = vmatpush1.msra.mxu0 0.0
        %4199 = vmatprep.subr.mxu0 0.0
        %4200 = vmatpush1.msra.mxu0 0.0
        %4201 = vmatprep.subr.mxu0 0.0
        %4202 = vmatpush1.msra.mxu0 0.0
        %4203 = vmatprep.subr.mxu0 0.0
        %4204 = vmatpush1.msra.mxu0 0.0
        %4205 = vmatprep.mubr.f32.mxu0 0.0
        %4206 = vmatmul.mubr.f32.gmra.mrb[0].mxu0 %v2861
        %v4207 = vpop.f32.mrb[0].mxu0
        %v4208 = vadd.f32 %v2367, %v4207
        %v4209 = vpop.f32.mrb[0].mxu0
        %v4210 = vadd.f32 %v2371, %v4209
        %4211 = vdwg.mxu0
        %4212 = vmatprep.subr.mxu0 %v1203
        %4213 = vmatpush1.msra.mxu0 %v1202
        %4214 = vmatprep.subr.mxu0 %v1331
        %4215 = vmatpush1.msra.mxu0 %v1330
        %4216 = vmatprep.subr.mxu0 %v1459
        %4217 = vmatpush1.msra.mxu0 %v1458
        %4218 = vmatprep.subr.mxu0 %v1587
        %4219 = vmatpush1.msra.mxu0 %v1586
        %4220 = vmatprep.subr.mxu0 %v1715
        %4221 = vmatpush1.msra.mxu0 %v1714
        %4222 = vmatprep.subr.mxu0 %v1843
        %4223 = vmatpush1.msra.mxu0 %v1842
        %4224 = vmatprep.subr.mxu0 %v1971
        %4225 = vmatpush1.msra.mxu0 %v1970
        %4226 = vmatprep.subr.mxu0 %v2099
        %4227 = vmatpush1.msra.mxu0 %v2098
        %4228 = vmatprep.subr.mxu0 0.0
        %4229 = vmatpush1.msra.mxu0 0.0
        %4230 = vmatprep.subr.mxu0 0.0
        %4231 = vmatpush1.msra.mxu0 0.0
        %4232 = vmatprep.subr.mxu0 0.0
        %4233 = vmatpush1.msra.mxu0 0.0
        %4234 = vmatprep.subr.mxu0 0.0
        %4235 = vmatpush1.msra.mxu0 0.0
        %4236 = vmatprep.subr.mxu0 0.0
        %4237 = vmatpush1.msra.mxu0 0.0
        %4238 = vmatprep.subr.mxu0 0.0
        %4239 = vmatpush1.msra.mxu0 0.0
        %4240 = vmatprep.subr.mxu0 0.0
        %4241 = vmatpush1.msra.mxu0 0.0
        %4242 = vmatprep.subr.mxu0 0.0
        %4243 = vmatpush1.msra.mxu0 0.0
        %4244 = vmatprep.subr.mxu0 0.0
        %4245 = vmatpush1.msra.mxu0 0.0
        %4246 = vmatprep.subr.mxu0 0.0
        %4247 = vmatpush1.msra.mxu0 0.0
        %4248 = vmatprep.subr.mxu0 0.0
        %4249 = vmatpush1.msra.mxu0 0.0
        %4250 = vmatprep.subr.mxu0 0.0
        %4251 = vmatpush1.msra.mxu0 0.0
        %4252 = vmatprep.subr.mxu0 0.0
        %4253 = vmatpush1.msra.mxu0 0.0
        %4254 = vmatprep.subr.mxu0 0.0
        %4255 = vmatpush1.msra.mxu0 0.0
        %4256 = vmatprep.subr.mxu0 0.0
        %4257 = vmatpush1.msra.mxu0 0.0
        %4258 = vmatprep.subr.mxu0 0.0
        %4259 = vmatpush1.msra.mxu0 0.0
        %4260 = vmatprep.subr.mxu0 0.0
        %4261 = vmatpush1.msra.mxu0 0.0
        %4262 = vmatprep.subr.mxu0 0.0
        %4263 = vmatpush1.msra.mxu0 0.0
        %4264 = vmatprep.subr.mxu0 0.0
        %4265 = vmatpush1.msra.mxu0 0.0
        %4266 = vmatprep.subr.mxu0 0.0
        %4267 = vmatpush1.msra.mxu0 0.0
        %4268 = vmatprep.subr.mxu0 0.0
        %4269 = vmatpush1.msra.mxu0 0.0
        %4270 = vmatprep.subr.mxu0 0.0
        %4271 = vmatpush1.msra.mxu0 0.0
        %4272 = vmatprep.subr.mxu0 0.0
        %4273 = vmatpush1.msra.mxu0 0.0
        %4274 = vmatprep.subr.mxu0 0.0
        %4275 = vmatpush1.msra.mxu0 0.0
        %4276 = vmatprep.mubr.f32.mxu0 0.0
        %4277 = vmatmul.mubr.f32.gmra.mrb[0].mxu0 %v2861
        %v4278 = vpop.f32.mrb[0].mxu0
        %v4279 = vadd.f32 %v2375, %v4278
        %v4280 = vpop.f32.mrb[0].mxu0
        %v4281 = vadd.f32 %v2379, %v4280
        %4282 = vdwg.mxu0
        %4283 = vmatprep.subr.mxu0 %v1205
        %4284 = vmatpush1.msra.mxu0 %v1204
        %4285 = vmatprep.subr.mxu0 %v1333
        %4286 = vmatpush1.msra.mxu0 %v1332
        %4287 = vmatprep.subr.mxu0 %v1461
        %4288 = vmatpush1.msra.mxu0 %v1460
        %4289 = vmatprep.subr.mxu0 %v1589
        %4290 = vmatpush1.msra.mxu0 %v1588
        %4291 = vmatprep.subr.mxu0 %v1717
        %4292 = vmatpush1.msra.mxu0 %v1716
        %4293 = vmatprep.subr.mxu0 %v1845
        %4294 = vmatpush1.msra.mxu0 %v1844
        %4295 = vmatprep.subr.mxu0 %v1973
        %4296 = vmatpush1.msra.mxu0 %v1972
        %4297 = vmatprep.subr.mxu0 %v2101
        %4298 = vmatpush1.msra.mxu0 %v2100
        %4299 = vmatprep.subr.mxu0 0.0
        %4300 = vmatpush1.msra.mxu0 0.0
        %4301 = vmatprep.subr.mxu0 0.0
        %4302 = vmatpush1.msra.mxu0 0.0
        %4303 = vmatprep.subr.mxu0 0.0
        %4304 = vmatpush1.msra.mxu0 0.0
        %4305 = vmatprep.subr.mxu0 0.0
        %4306 = vmatpush1.msra.mxu0 0.0
        %4307 = vmatprep.subr.mxu0 0.0
        %4308 = vmatpush1.msra.mxu0 0.0
        %4309 = vmatprep.subr.mxu0 0.0
        %4310 = vmatpush1.msra.mxu0 0.0
        %4311 = vmatprep.subr.mxu0 0.0
        %4312 = vmatpush1.msra.mxu0 0.0
        %4313 = vmatprep.subr.mxu0 0.0
        %4314 = vmatpush1.msra.mxu0 0.0
        %4315 = vmatprep.subr.mxu0 0.0
        %4316 = vmatpush1.msra.mxu0 0.0
        %4317 = vmatprep.subr.mxu0 0.0
        %4318 = vmatpush1.msra.mxu0 0.0
        %4319 = vmatprep.subr.mxu0 0.0
        %4320 = vmatpush1.msra.mxu0 0.0
        %4321 = vmatprep.subr.mxu0 0.0
        %4322 = vmatpush1.msra.mxu0 0.0
        %4323 = vmatprep.subr.mxu0 0.0
        %4324 = vmatpush1.msra.mxu0 0.0
        %4325 = vmatprep.subr.mxu0 0.0
        %4326 = vmatpush1.msra.mxu0 0.0
        %4327 = vmatprep.subr.mxu0 0.0
        %4328 = vmatpush1.msra.mxu0 0.0
        %4329 = vmatprep.subr.mxu0 0.0
        %4330 = vmatpush1.msra.mxu0 0.0
        %4331 = vmatprep.subr.mxu0 0.0
        %4332 = vmatpush1.msra.mxu0 0.0
        %4333 = vmatprep.subr.mxu0 0.0
        %4334 = vmatpush1.msra.mxu0 0.0
        %4335 = vmatprep.subr.mxu0 0.0
        %4336 = vmatpush1.msra.mxu0 0.0
        %4337 = vmatprep.subr.mxu0 0.0
        %4338 = vmatpush1.msra.mxu0 0.0
        %4339 = vmatprep.subr.mxu0 0.0
        %4340 = vmatpush1.msra.mxu0 0.0
        %4341 = vmatprep.subr.mxu0 0.0
        %4342 = vmatpush1.msra.mxu0 0.0
        %4343 = vmatprep.subr.mxu0 0.0
        %4344 = vmatpush1.msra.mxu0 0.0
        %4345 = vmatprep.subr.mxu0 0.0
        %4346 = vmatpush1.msra.mxu0 0.0
        %4347 = vmatprep.mubr.f32.mxu0 0.0
        %4348 = vmatmul.mubr.f32.gmra.mrb[0].mxu0 %v2861
        %v4349 = vpop.f32.mrb[0].mxu0
        %v4350 = vadd.f32 %v2383, %v4349
        %v4351 = vpop.f32.mrb[0].mxu0
        %v4352 = vadd.f32 %v2387, %v4351
        %4353 = vdwg.mxu0
        %4354 = vmatprep.subr.mxu0 %v1207
        %4355 = vmatpush1.msra.mxu0 %v1206
        %4356 = vmatprep.subr.mxu0 %v1335
        %4357 = vmatpush1.msra.mxu0 %v1334
        %4358 = vmatprep.subr.mxu0 %v1463
        %4359 = vmatpush1.msra.mxu0 %v1462
        %4360 = vmatprep.subr.mxu0 %v1591
        %4361 = vmatpush1.msra.mxu0 %v1590
        %4362 = vmatprep.subr.mxu0 %v1719
        %4363 = vmatpush1.msra.mxu0 %v1718
        %4364 = vmatprep.subr.mxu0 %v1847
        %4365 = vmatpush1.msra.mxu0 %v1846
        %4366 = vmatprep.subr.mxu0 %v1975
        %4367 = vmatpush1.msra.mxu0 %v1974
        %4368 = vmatprep.subr.mxu0 %v2103
        %4369 = vmatpush1.msra.mxu0 %v2102
        %4370 = vmatprep.subr.mxu0 0.0
        %4371 = vmatpush1.msra.mxu0 0.0
        %4372 = vmatprep.subr.mxu0 0.0
        %4373 = vmatpush1.msra.mxu0 0.0
        %4374 = vmatprep.subr.mxu0 0.0
        %4375 = vmatpush1.msra.mxu0 0.0
        %4376 = vmatprep.subr.mxu0 0.0
        %4377 = vmatpush1.msra.mxu0 0.0
        %4378 = vmatprep.subr.mxu0 0.0
        %4379 = vmatpush1.msra.mxu0 0.0
        %4380 = vmatprep.subr.mxu0 0.0
        %4381 = vmatpush1.msra.mxu0 0.0
        %4382 = vmatprep.subr.mxu0 0.0
        %4383 = vmatpush1.msra.mxu0 0.0
        %4384 = vmatprep.subr.mxu0 0.0
        %4385 = vmatpush1.msra.mxu0 0.0
        %4386 = vmatprep.subr.mxu0 0.0
        %4387 = vmatpush1.msra.mxu0 0.0
        %4388 = vmatprep.subr.mxu0 0.0
        %4389 = vmatpush1.msra.mxu0 0.0
        %4390 = vmatprep.subr.mxu0 0.0
        %4391 = vmatpush1.msra.mxu0 0.0
        %4392 = vmatprep.subr.mxu0 0.0
        %4393 = vmatpush1.msra.mxu0 0.0
        %4394 = vmatprep.subr.mxu0 0.0
        %4395 = vmatpush1.msra.mxu0 0.0
        %4396 = vmatprep.subr.mxu0 0.0
        %4397 = vmatpush1.msra.mxu0 0.0
        %4398 = vmatprep.subr.mxu0 0.0
        %4399 = vmatpush1.msra.mxu0 0.0
        %4400 = vmatprep.subr.mxu0 0.0
        %4401 = vmatpush1.msra.mxu0 0.0
        %4402 = vmatprep.subr.mxu0 0.0
        %4403 = vmatpush1.msra.mxu0 0.0
        %4404 = vmatprep.subr.mxu0 0.0
        %4405 = vmatpush1.msra.mxu0 0.0
        %4406 = vmatprep.subr.mxu0 0.0
        %4407 = vmatpush1.msra.mxu0 0.0
        %4408 = vmatprep.subr.mxu0 0.0
        %4409 = vmatpush1.msra.mxu0 0.0
        %4410 = vmatprep.subr.mxu0 0.0
        %4411 = vmatpush1.msra.mxu0 0.0
        %4412 = vmatprep.subr.mxu0 0.0
        %4413 = vmatpush1.msra.mxu0 0.0
        %4414 = vmatprep.subr.mxu0 0.0
        %4415 = vmatpush1.msra.mxu0 0.0
        %4416 = vmatprep.subr.mxu0 0.0
        %4417 = vmatpush1.msra.mxu0 0.0
        %4418 = vmatprep.mubr.f32.mxu0 0.0
        %4419 = vmatmul.mubr.f32.gmra.mrb[0].mxu0 %v2861
        %v4420 = vpop.f32.mrb[0].mxu0
        %v4421 = vadd.f32 %v2391, %v4420
        %v4422 = vpop.f32.mrb[0].mxu0
        %v4423 = vadd.f32 %v2395, %v4422
        %4424 = vdwg.mxu0
        %4425 = vmatprep.subr.mxu0 %v1209
        %4426 = vmatpush1.msra.mxu0 %v1208
        %4427 = vmatprep.subr.mxu0 %v1337
        %4428 = vmatpush1.msra.mxu0 %v1336
        %4429 = vmatprep.subr.mxu0 %v1465
        %4430 = vmatpush1.msra.mxu0 %v1464
        %4431 = vmatprep.subr.mxu0 %v1593
        %4432 = vmatpush1.msra.mxu0 %v1592
        %4433 = vmatprep.subr.mxu0 %v1721
        %4434 = vmatpush1.msra.mxu0 %v1720
        %4435 = vmatprep.subr.mxu0 %v1849
        %4436 = vmatpush1.msra.mxu0 %v1848
        %4437 = vmatprep.subr.mxu0 %v1977
        %4438 = vmatpush1.msra.mxu0 %v1976
        %4439 = vmatprep.subr.mxu0 %v2105
        %4440 = vmatpush1.msra.mxu0 %v2104
        %4441 = vmatprep.subr.mxu0 0.0
        %4442 = vmatpush1.msra.mxu0 0.0
        %4443 = vmatprep.subr.mxu0 0.0
        %4444 = vmatpush1.msra.mxu0 0.0
        %4445 = vmatprep.subr.mxu0 0.0
        %4446 = vmatpush1.msra.mxu0 0.0
        %4447 = vmatprep.subr.mxu0 0.0
        %4448 = vmatpush1.msra.mxu0 0.0
        %4449 = vmatprep.subr.mxu0 0.0
        %4450 = vmatpush1.msra.mxu0 0.0
        %4451 = vmatprep.subr.mxu0 0.0
        %4452 = vmatpush1.msra.mxu0 0.0
        %4453 = vmatprep.subr.mxu0 0.0
        %4454 = vmatpush1.msra.mxu0 0.0
        %4455 = vmatprep.subr.mxu0 0.0
        %4456 = vmatpush1.msra.mxu0 0.0
        %4457 = vmatprep.subr.mxu0 0.0
        %4458 = vmatpush1.msra.mxu0 0.0
        %4459 = vmatprep.subr.mxu0 0.0
        %4460 = vmatpush1.msra.mxu0 0.0
        %4461 = vmatprep.subr.mxu0 0.0
        %4462 = vmatpush1.msra.mxu0 0.0
        %4463 = vmatprep.subr.mxu0 0.0
        %4464 = vmatpush1.msra.mxu0 0.0
        %4465 = vmatprep.subr.mxu0 0.0
        %4466 = vmatpush1.msra.mxu0 0.0
        %4467 = vmatprep.subr.mxu0 0.0
        %4468 = vmatpush1.msra.mxu0 0.0
        %4469 = vmatprep.subr.mxu0 0.0
        %4470 = vmatpush1.msra.mxu0 0.0
        %4471 = vmatprep.subr.mxu0 0.0
        %4472 = vmatpush1.msra.mxu0 0.0
        %4473 = vmatprep.subr.mxu0 0.0
        %4474 = vmatpush1.msra.mxu0 0.0
        %4475 = vmatprep.subr.mxu0 0.0
        %4476 = vmatpush1.msra.mxu0 0.0
        %4477 = vmatprep.subr.mxu0 0.0
        %4478 = vmatpush1.msra.mxu0 0.0
        %4479 = vmatprep.subr.mxu0 0.0
        %4480 = vmatpush1.msra.mxu0 0.0
        %4481 = vmatprep.subr.mxu0 0.0
        %4482 = vmatpush1.msra.mxu0 0.0
        %4483 = vmatprep.subr.mxu0 0.0
        %4484 = vmatpush1.msra.mxu0 0.0
        %4485 = vmatprep.subr.mxu0 0.0
        %4486 = vmatpush1.msra.mxu0 0.0
        %4487 = vmatprep.subr.mxu0 0.0
        %4488 = vmatpush1.msra.mxu0 0.0
        %4489 = vmatprep.mubr.f32.mxu0 0.0
        %4490 = vmatmul.mubr.f32.gmra.mrb[0].mxu0 %v2861
        %v4491 = vpop.f32.mrb[0].mxu0
        %v4492 = vadd.f32 %v2399, %v4491
        %v4493 = vpop.f32.mrb[0].mxu0
        %v4494 = vadd.f32 %v2403, %v4493
        %4495 = vdwg.mxu0
        %4496 = vmatprep.subr.mxu0 %v1211
        %4497 = vmatpush1.msra.mxu0 %v1210
        %4498 = vmatprep.subr.mxu0 %v1339
        %4499 = vmatpush1.msra.mxu0 %v1338
        %4500 = vmatprep.subr.mxu0 %v1467
        %4501 = vmatpush1.msra.mxu0 %v1466
        %4502 = vmatprep.subr.mxu0 %v1595
        %4503 = vmatpush1.msra.mxu0 %v1594
        %4504 = vmatprep.subr.mxu0 %v1723
        %4505 = vmatpush1.msra.mxu0 %v1722
        %4506 = vmatprep.subr.mxu0 %v1851
        %4507 = vmatpush1.msra.mxu0 %v1850
        %4508 = vmatprep.subr.mxu0 %v1979
        %4509 = vmatpush1.msra.mxu0 %v1978
        %4510 = vmatprep.subr.mxu0 %v2107
        %4511 = vmatpush1.msra.mxu0 %v2106
        %4512 = vmatprep.subr.mxu0 0.0
        %4513 = vmatpush1.msra.mxu0 0.0
        %4514 = vmatprep.subr.mxu0 0.0
        %4515 = vmatpush1.msra.mxu0 0.0
        %4516 = vmatprep.subr.mxu0 0.0
        %4517 = vmatpush1.msra.mxu0 0.0
        %4518 = vmatprep.subr.mxu0 0.0
        %4519 = vmatpush1.msra.mxu0 0.0
        %4520 = vmatprep.subr.mxu0 0.0
        %4521 = vmatpush1.msra.mxu0 0.0
        %4522 = vmatprep.subr.mxu0 0.0
        %4523 = vmatpush1.msra.mxu0 0.0
        %4524 = vmatprep.subr.mxu0 0.0
        %4525 = vmatpush1.msra.mxu0 0.0
        %4526 = vmatprep.subr.mxu0 0.0
        %4527 = vmatpush1.msra.mxu0 0.0
        %4528 = vmatprep.subr.mxu0 0.0
        %4529 = vmatpush1.msra.mxu0 0.0
        %4530 = vmatprep.subr.mxu0 0.0
        %4531 = vmatpush1.msra.mxu0 0.0
        %4532 = vmatprep.subr.mxu0 0.0
        %4533 = vmatpush1.msra.mxu0 0.0
        %4534 = vmatprep.subr.mxu0 0.0
        %4535 = vmatpush1.msra.mxu0 0.0
        %4536 = vmatprep.subr.mxu0 0.0
        %4537 = vmatpush1.msra.mxu0 0.0
        %4538 = vmatprep.subr.mxu0 0.0
        %4539 = vmatpush1.msra.mxu0 0.0
        %4540 = vmatprep.subr.mxu0 0.0
        %4541 = vmatpush1.msra.mxu0 0.0
        %4542 = vmatprep.subr.mxu0 0.0
        %4543 = vmatpush1.msra.mxu0 0.0
        %4544 = vmatprep.subr.mxu0 0.0
        %4545 = vmatpush1.msra.mxu0 0.0
        %4546 = vmatprep.subr.mxu0 0.0
        %4547 = vmatpush1.msra.mxu0 0.0
        %4548 = vmatprep.subr.mxu0 0.0
        %4549 = vmatpush1.msra.mxu0 0.0
        %4550 = vmatprep.subr.mxu0 0.0
        %4551 = vmatpush1.msra.mxu0 0.0
        %4552 = vmatprep.subr.mxu0 0.0
        %4553 = vmatpush1.msra.mxu0 0.0
        %4554 = vmatprep.subr.mxu0 0.0
        %4555 = vmatpush1.msra.mxu0 0.0
        %4556 = vmatprep.subr.mxu0 0.0
        %4557 = vmatpush1.msra.mxu0 0.0
        %4558 = vmatprep.subr.mxu0 0.0
        %4559 = vmatpush1.msra.mxu0 0.0
        %4560 = vmatprep.mubr.f32.mxu0 0.0
        %4561 = vmatmul.mubr.f32.gmra.mrb[0].mxu0 %v2861
        %v4562 = vpop.f32.mrb[0].mxu0
        %v4563 = vadd.f32 %v2407, %v4562
        %v4564 = vpop.f32.mrb[0].mxu0
        %v4565 = vadd.f32 %v2411, %v4564
        %4566 = vdwg.mxu0
        %4567 = vmatprep.subr.mxu0 %v1213
        %4568 = vmatpush1.msra.mxu0 %v1212
        %4569 = vmatprep.subr.mxu0 %v1341
        %4570 = vmatpush1.msra.mxu0 %v1340
        %4571 = vmatprep.subr.mxu0 %v1469
        %4572 = vmatpush1.msra.mxu0 %v1468
        %4573 = vmatprep.subr.mxu0 %v1597
        %4574 = vmatpush1.msra.mxu0 %v1596
        %4575 = vmatprep.subr.mxu0 %v1725
        %4576 = vmatpush1.msra.mxu0 %v1724
        %4577 = vmatprep.subr.mxu0 %v1853
        %4578 = vmatpush1.msra.mxu0 %v1852
        %4579 = vmatprep.subr.mxu0 %v1981
        %4580 = vmatpush1.msra.mxu0 %v1980
        %4581 = vmatprep.subr.mxu0 %v2109
        %4582 = vmatpush1.msra.mxu0 %v2108
        %4583 = vmatprep.subr.mxu0 0.0
        %4584 = vmatpush1.msra.mxu0 0.0
        %4585 = vmatprep.subr.mxu0 0.0
        %4586 = vmatpush1.msra.mxu0 0.0
        %4587 = vmatprep.subr.mxu0 0.0
        %4588 = vmatpush1.msra.mxu0 0.0
        %4589 = vmatprep.subr.mxu0 0.0
        %4590 = vmatpush1.msra.mxu0 0.0
        %4591 = vmatprep.subr.mxu0 0.0
        %4592 = vmatpush1.msra.mxu0 0.0
        %4593 = vmatprep.subr.mxu0 0.0
        %4594 = vmatpush1.msra.mxu0 0.0
        %4595 = vmatprep.subr.mxu0 0.0
        %4596 = vmatpush1.msra.mxu0 0.0
        %4597 = vmatprep.subr.mxu0 0.0
        %4598 = vmatpush1.msra.mxu0 0.0
        %4599 = vmatprep.subr.mxu0 0.0
        %4600 = vmatpush1.msra.mxu0 0.0
        %4601 = vmatprep.subr.mxu0 0.0
        %4602 = vmatpush1.msra.mxu0 0.0
        %4603 = vmatprep.subr.mxu0 0.0
        %4604 = vmatpush1.msra.mxu0 0.0
        %4605 = vmatprep.subr.mxu0 0.0
        %4606 = vmatpush1.msra.mxu0 0.0
        %4607 = vmatprep.subr.mxu0 0.0
        %4608 = vmatpush1.msra.mxu0 0.0
        %4609 = vmatprep.subr.mxu0 0.0
        %4610 = vmatpush1.msra.mxu0 0.0
        %4611 = vmatprep.subr.mxu0 0.0
        %4612 = vmatpush1.msra.mxu0 0.0
        %4613 = vmatprep.subr.mxu0 0.0
        %4614 = vmatpush1.msra.mxu0 0.0
        %4615 = vmatprep.subr.mxu0 0.0
        %4616 = vmatpush1.msra.mxu0 0.0
        %4617 = vmatprep.subr.mxu0 0.0
        %4618 = vmatpush1.msra.mxu0 0.0
        %4619 = vmatprep.subr.mxu0 0.0
        %4620 = vmatpush1.msra.mxu0 0.0
        %4621 = vmatprep.subr.mxu0 0.0
        %4622 = vmatpush1.msra.mxu0 0.0
        %4623 = vmatprep.subr.mxu0 0.0
        %4624 = vmatpush1.msra.mxu0 0.0
        %4625 = vmatprep.subr.mxu0 0.0
        %4626 = vmatpush1.msra.mxu0 0.0
        %4627 = vmatprep.subr.mxu0 0.0
        %4628 = vmatpush1.msra.mxu0 0.0
        %4629 = vmatprep.subr.mxu0 0.0
        %4630 = vmatpush1.msra.mxu0 0.0
        %4631 = vmatprep.mubr.f32.mxu0 0.0
        %4632 = vmatmul.mubr.f32.gmra.mrb[0].mxu0 %v2861
        %v4633 = vpop.f32.mrb[0].mxu0
        %v4634 = vadd.f32 %v2415, %v4633
        %v4635 = vpop.f32.mrb[0].mxu0
        %v4636 = vadd.f32 %v2419, %v4635
        %4637 = vdwg.mxu0
        %4638 = vmatprep.subr.mxu0 %v1215
        %4639 = vmatpush1.msra.mxu0 %v1214
        %4640 = vmatprep.subr.mxu0 %v1343
        %4641 = vmatpush1.msra.mxu0 %v1342
        %4642 = vmatprep.subr.mxu0 %v1471
        %4643 = vmatpush1.msra.mxu0 %v1470
        %4644 = vmatprep.subr.mxu0 %v1599
        %4645 = vmatpush1.msra.mxu0 %v1598
        %4646 = vmatprep.subr.mxu0 %v1727
        %4647 = vmatpush1.msra.mxu0 %v1726
        %4648 = vmatprep.subr.mxu0 %v1855
        %4649 = vmatpush1.msra.mxu0 %v1854
        %4650 = vmatprep.subr.mxu0 %v1983
        %4651 = vmatpush1.msra.mxu0 %v1982
        %4652 = vmatprep.subr.mxu0 %v2111
        %4653 = vmatpush1.msra.mxu0 %v2110
        %4654 = vmatprep.subr.mxu0 0.0
        %4655 = vmatpush1.msra.mxu0 0.0
        %4656 = vmatprep.subr.mxu0 0.0
        %4657 = vmatpush1.msra.mxu0 0.0
        %4658 = vmatprep.subr.mxu0 0.0
        %4659 = vmatpush1.msra.mxu0 0.0
        %4660 = vmatprep.subr.mxu0 0.0
        %4661 = vmatpush1.msra.mxu0 0.0
        %4662 = vmatprep.subr.mxu0 0.0
        %4663 = vmatpush1.msra.mxu0 0.0
        %4664 = vmatprep.subr.mxu0 0.0
        %4665 = vmatpush1.msra.mxu0 0.0
        %4666 = vmatprep.subr.mxu0 0.0
        %4667 = vmatpush1.msra.mxu0 0.0
        %4668 = vmatprep.subr.mxu0 0.0
        %4669 = vmatpush1.msra.mxu0 0.0
        %4670 = vmatprep.subr.mxu0 0.0
        %4671 = vmatpush1.msra.mxu0 0.0
        %4672 = vmatprep.subr.mxu0 0.0
        %4673 = vmatpush1.msra.mxu0 0.0
        %4674 = vmatprep.subr.mxu0 0.0
        %4675 = vmatpush1.msra.mxu0 0.0
        %4676 = vmatprep.subr.mxu0 0.0
        %4677 = vmatpush1.msra.mxu0 0.0
        %4678 = vmatprep.subr.mxu0 0.0
        %4679 = vmatpush1.msra.mxu0 0.0
        %4680 = vmatprep.subr.mxu0 0.0
        %4681 = vmatpush1.msra.mxu0 0.0
        %4682 = vmatprep.subr.mxu0 0.0
        %4683 = vmatpush1.msra.mxu0 0.0
        %4684 = vmatprep.subr.mxu0 0.0
        %4685 = vmatpush1.msra.mxu0 0.0
        %4686 = vmatprep.subr.mxu0 0.0
        %4687 = vmatpush1.msra.mxu0 0.0
        %4688 = vmatprep.subr.mxu0 0.0
        %4689 = vmatpush1.msra.mxu0 0.0
        %4690 = vmatprep.subr.mxu0 0.0
        %4691 = vmatpush1.msra.mxu0 0.0
        %4692 = vmatprep.subr.mxu0 0.0
        %4693 = vmatpush1.msra.mxu0 0.0
        %4694 = vmatprep.subr.mxu0 0.0
        %4695 = vmatpush1.msra.mxu0 0.0
        %4696 = vmatprep.subr.mxu0 0.0
        %4697 = vmatpush1.msra.mxu0 0.0
        %4698 = vmatprep.subr.mxu0 0.0
        %4699 = vmatpush1.msra.mxu0 0.0
        %4700 = vmatprep.subr.mxu0 0.0
        %4701 = vmatpush1.msra.mxu0 0.0
        %4702 = vmatprep.mubr.f32.mxu0 0.0
        %4703 = vmatmul.mubr.f32.gmra.mrb[0].mxu0 %v2861
        %v4704 = vpop.f32.mrb[0].mxu0
        %v4705 = vadd.f32 %v2423, %v4704
        %v4706 = vpop.f32.mrb[0].mxu0
        %v4707 = vadd.f32 %v2427, %v4706
        %4708 = vdwg.mxu0
        %4709 = vmatprep.subr.mxu0 %v1217
        %4710 = vmatpush1.msra.mxu0 %v1216
        %4711 = vmatprep.subr.mxu0 %v1345
        %4712 = vmatpush1.msra.mxu0 %v1344
        %4713 = vmatprep.subr.mxu0 %v1473
        %4714 = vmatpush1.msra.mxu0 %v1472
        %4715 = vmatprep.subr.mxu0 %v1601
        %4716 = vmatpush1.msra.mxu0 %v1600
        %4717 = vmatprep.subr.mxu0 %v1729
        %4718 = vmatpush1.msra.mxu0 %v1728
        %4719 = vmatprep.subr.mxu0 %v1857
        %4720 = vmatpush1.msra.mxu0 %v1856
        %4721 = vmatprep.subr.mxu0 %v1985
        %4722 = vmatpush1.msra.mxu0 %v1984
        %4723 = vmatprep.subr.mxu0 %v2113
        %4724 = vmatpush1.msra.mxu0 %v2112
        %4725 = vmatprep.subr.mxu0 0.0
        %4726 = vmatpush1.msra.mxu0 0.0
        %4727 = vmatprep.subr.mxu0 0.0
        %4728 = vmatpush1.msra.mxu0 0.0
        %4729 = vmatprep.subr.mxu0 0.0
        %4730 = vmatpush1.msra.mxu0 0.0
        %4731 = vmatprep.subr.mxu0 0.0
        %4732 = vmatpush1.msra.mxu0 0.0
        %4733 = vmatprep.subr.mxu0 0.0
        %4734 = vmatpush1.msra.mxu0 0.0
        %4735 = vmatprep.subr.mxu0 0.0
        %4736 = vmatpush1.msra.mxu0 0.0
        %4737 = vmatprep.subr.mxu0 0.0
        %4738 = vmatpush1.msra.mxu0 0.0
        %4739 = vmatprep.subr.mxu0 0.0
        %4740 = vmatpush1.msra.mxu0 0.0
        %4741 = vmatprep.subr.mxu0 0.0
        %4742 = vmatpush1.msra.mxu0 0.0
        %4743 = vmatprep.subr.mxu0 0.0
        %4744 = vmatpush1.msra.mxu0 0.0
        %4745 = vmatprep.subr.mxu0 0.0
        %4746 = vmatpush1.msra.mxu0 0.0
        %4747 = vmatprep.subr.mxu0 0.0
        %4748 = vmatpush1.msra.mxu0 0.0
        %4749 = vmatprep.subr.mxu0 0.0
        %4750 = vmatpush1.msra.mxu0 0.0
        %4751 = vmatprep.subr.mxu0 0.0
        %4752 = vmatpush1.msra.mxu0 0.0
        %4753 = vmatprep.subr.mxu0 0.0
        %4754 = vmatpush1.msra.mxu0 0.0
        %4755 = vmatprep.subr.mxu0 0.0
        %4756 = vmatpush1.msra.mxu0 0.0
        %4757 = vmatprep.subr.mxu0 0.0
        %4758 = vmatpush1.msra.mxu0 0.0
        %4759 = vmatprep.subr.mxu0 0.0
        %4760 = vmatpush1.msra.mxu0 0.0
        %4761 = vmatprep.subr.mxu0 0.0
        %4762 = vmatpush1.msra.mxu0 0.0
        %4763 = vmatprep.subr.mxu0 0.0
        %4764 = vmatpush1.msra.mxu0 0.0
        %4765 = vmatprep.subr.mxu0 0.0
        %4766 = vmatpush1.msra.mxu0 0.0
        %4767 = vmatprep.subr.mxu0 0.0
        %4768 = vmatpush1.msra.mxu0 0.0
        %4769 = vmatprep.subr.mxu0 0.0
        %4770 = vmatpush1.msra.mxu0 0.0
        %4771 = vmatprep.subr.mxu0 0.0
        %4772 = vmatpush1.msra.mxu0 0.0
        %4773 = vmatprep.mubr.f32.mxu0 0.0
        %4774 = vmatmul.mubr.f32.gmra.mrb[0].mxu0 %v2861
        %v4775 = vpop.f32.mrb[0].mxu0
        %v4776 = vadd.f32 %v2431, %v4775
        %v4777 = vpop.f32.mrb[0].mxu0
        %v4778 = vadd.f32 %v2435, %v4777
        %4779 = vdwg.mxu0
        %4780 = vmatprep.subr.mxu0 %v1219
        %4781 = vmatpush1.msra.mxu0 %v1218
        %4782 = vmatprep.subr.mxu0 %v1347
        %4783 = vmatpush1.msra.mxu0 %v1346
        %4784 = vmatprep.subr.mxu0 %v1475
        %4785 = vmatpush1.msra.mxu0 %v1474
        %4786 = vmatprep.subr.mxu0 %v1603
        %4787 = vmatpush1.msra.mxu0 %v1602
        %4788 = vmatprep.subr.mxu0 %v1731
        %4789 = vmatpush1.msra.mxu0 %v1730
        %4790 = vmatprep.subr.mxu0 %v1859
        %4791 = vmatpush1.msra.mxu0 %v1858
        %4792 = vmatprep.subr.mxu0 %v1987
        %4793 = vmatpush1.msra.mxu0 %v1986
        %4794 = vmatprep.subr.mxu0 %v2115
        %4795 = vmatpush1.msra.mxu0 %v2114
        %4796 = vmatprep.subr.mxu0 0.0
        %4797 = vmatpush1.msra.mxu0 0.0
        %4798 = vmatprep.subr.mxu0 0.0
        %4799 = vmatpush1.msra.mxu0 0.0
        %4800 = vmatprep.subr.mxu0 0.0
        %4801 = vmatpush1.msra.mxu0 0.0
        %4802 = vmatprep.subr.mxu0 0.0
        %4803 = vmatpush1.msra.mxu0 0.0
        %4804 = vmatprep.subr.mxu0 0.0
        %4805 = vmatpush1.msra.mxu0 0.0
        %4806 = vmatprep.subr.mxu0 0.0
        %4807 = vmatpush1.msra.mxu0 0.0
        %4808 = vmatprep.subr.mxu0 0.0
        %4809 = vmatpush1.msra.mxu0 0.0
        %4810 = vmatprep.subr.mxu0 0.0
        %4811 = vmatpush1.msra.mxu0 0.0
        %4812 = vmatprep.subr.mxu0 0.0
        %4813 = vmatpush1.msra.mxu0 0.0
        %4814 = vmatprep.subr.mxu0 0.0
        %4815 = vmatpush1.msra.mxu0 0.0
        %4816 = vmatprep.subr.mxu0 0.0
        %4817 = vmatpush1.msra.mxu0 0.0
        %4818 = vmatprep.subr.mxu0 0.0
        %4819 = vmatpush1.msra.mxu0 0.0
        %4820 = vmatprep.subr.mxu0 0.0
        %4821 = vmatpush1.msra.mxu0 0.0
        %4822 = vmatprep.subr.mxu0 0.0
        %4823 = vmatpush1.msra.mxu0 0.0
        %4824 = vmatprep.subr.mxu0 0.0
        %4825 = vmatpush1.msra.mxu0 0.0
        %4826 = vmatprep.subr.mxu0 0.0
        %4827 = vmatpush1.msra.mxu0 0.0
        %4828 = vmatprep.subr.mxu0 0.0
        %4829 = vmatpush1.msra.mxu0 0.0
        %4830 = vmatprep.subr.mxu0 0.0
        %4831 = vmatpush1.msra.mxu0 0.0
        %4832 = vmatprep.subr.mxu0 0.0
        %4833 = vmatpush1.msra.mxu0 0.0
        %4834 = vmatprep.subr.mxu0 0.0
        %4835 = vmatpush1.msra.mxu0 0.0
        %4836 = vmatprep.subr.mxu0 0.0
        %4837 = vmatpush1.msra.mxu0 0.0
        %4838 = vmatprep.subr.mxu0 0.0
        %4839 = vmatpush1.msra.mxu0 0.0
        %4840 = vmatprep.subr.mxu0 0.0
        %4841 = vmatpush1.msra.mxu0 0.0
        %4842 = vmatprep.subr.mxu0 0.0
        %4843 = vmatpush1.msra.mxu0 0.0
        %4844 = vmatprep.mubr.f32.mxu0 0.0
        %4845 = vmatmul.mubr.f32.gmra.mrb[0].mxu0 %v2861
        %v4846 = vpop.f32.mrb[0].mxu0
        %v4847 = vadd.f32 %v2439, %v4846
        %v4848 = vpop.f32.mrb[0].mxu0
        %v4849 = vadd.f32 %v2443, %v4848
        %4850 = vdwg.mxu0
        %4851 = vmatprep.subr.mxu0 %v1221
        %4852 = vmatpush1.msra.mxu0 %v1220
        %4853 = vmatprep.subr.mxu0 %v1349
        %4854 = vmatpush1.msra.mxu0 %v1348
        %4855 = vmatprep.subr.mxu0 %v1477
        %4856 = vmatpush1.msra.mxu0 %v1476
        %4857 = vmatprep.subr.mxu0 %v1605
        %4858 = vmatpush1.msra.mxu0 %v1604
        %4859 = vmatprep.subr.mxu0 %v1733
        %4860 = vmatpush1.msra.mxu0 %v1732
        %4861 = vmatprep.subr.mxu0 %v1861
        %4862 = vmatpush1.msra.mxu0 %v1860
        %4863 = vmatprep.subr.mxu0 %v1989
        %4864 = vmatpush1.msra.mxu0 %v1988
        %4865 = vmatprep.subr.mxu0 %v2117
        %4866 = vmatpush1.msra.mxu0 %v2116
        %4867 = vmatprep.subr.mxu0 0.0
        %4868 = vmatpush1.msra.mxu0 0.0
        %4869 = vmatprep.subr.mxu0 0.0
        %4870 = vmatpush1.msra.mxu0 0.0
        %4871 = vmatprep.subr.mxu0 0.0
        %4872 = vmatpush1.msra.mxu0 0.0
        %4873 = vmatprep.subr.mxu0 0.0
        %4874 = vmatpush1.msra.mxu0 0.0
        %4875 = vmatprep.subr.mxu0 0.0
        %4876 = vmatpush1.msra.mxu0 0.0
        %4877 = vmatprep.subr.mxu0 0.0
        %4878 = vmatpush1.msra.mxu0 0.0
        %4879 = vmatprep.subr.mxu0 0.0
        %4880 = vmatpush1.msra.mxu0 0.0
        %4881 = vmatprep.subr.mxu0 0.0
        %4882 = vmatpush1.msra.mxu0 0.0
        %4883 = vmatprep.subr.mxu0 0.0
        %4884 = vmatpush1.msra.mxu0 0.0
        %4885 = vmatprep.subr.mxu0 0.0
        %4886 = vmatpush1.msra.mxu0 0.0
        %4887 = vmatprep.subr.mxu0 0.0
        %4888 = vmatpush1.msra.mxu0 0.0
        %4889 = vmatprep.subr.mxu0 0.0
        %4890 = vmatpush1.msra.mxu0 0.0
        %4891 = vmatprep.subr.mxu0 0.0
        %4892 = vmatpush1.msra.mxu0 0.0
        %4893 = vmatprep.subr.mxu0 0.0
        %4894 = vmatpush1.msra.mxu0 0.0
        %4895 = vmatprep.subr.mxu0 0.0
        %4896 = vmatpush1.msra.mxu0 0.0
        %4897 = vmatprep.subr.mxu0 0.0
        %4898 = vmatpush1.msra.mxu0 0.0
        %4899 = vmatprep.subr.mxu0 0.0
        %4900 = vmatpush1.msra.mxu0 0.0
        %4901 = vmatprep.subr.mxu0 0.0
        %4902 = vmatpush1.msra.mxu0 0.0
        %4903 = vmatprep.subr.mxu0 0.0
        %4904 = vmatpush1.msra.mxu0 0.0
        %4905 = vmatprep.subr.mxu0 0.0
        %4906 = vmatpush1.msra.mxu0 0.0
        %4907 = vmatprep.subr.mxu0 0.0
        %4908 = vmatpush1.msra.mxu0 0.0
        %4909 = vmatprep.subr.mxu0 0.0
        %4910 = vmatpush1.msra.mxu0 0.0
        %4911 = vmatprep.subr.mxu0 0.0
        %4912 = vmatpush1.msra.mxu0 0.0
        %4913 = vmatprep.subr.mxu0 0.0
        %4914 = vmatpush1.msra.mxu0 0.0
        %4915 = vmatprep.mubr.f32.mxu0 0.0
        %4916 = vmatmul.mubr.f32.gmra.mrb[0].mxu0 %v2861
        %v4917 = vpop.f32.mrb[0].mxu0
        %v4918 = vadd.f32 %v2447, %v4917
        %v4919 = vpop.f32.mrb[0].mxu0
        %v4920 = vadd.f32 %v2451, %v4919
        %4921 = vdwg.mxu0
        %4922 = vmatprep.subr.mxu0 %v1223
        %4923 = vmatpush1.msra.mxu0 %v1222
        %4924 = vmatprep.subr.mxu0 %v1351
        %4925 = vmatpush1.msra.mxu0 %v1350
        %4926 = vmatprep.subr.mxu0 %v1479
        %4927 = vmatpush1.msra.mxu0 %v1478
        %4928 = vmatprep.subr.mxu0 %v1607
        %4929 = vmatpush1.msra.mxu0 %v1606
        %4930 = vmatprep.subr.mxu0 %v1735
        %4931 = vmatpush1.msra.mxu0 %v1734
        %4932 = vmatprep.subr.mxu0 %v1863
        %4933 = vmatpush1.msra.mxu0 %v1862
        %4934 = vmatprep.subr.mxu0 %v1991
        %4935 = vmatpush1.msra.mxu0 %v1990
        %4936 = vmatprep.subr.mxu0 %v2119
        %4937 = vmatpush1.msra.mxu0 %v2118
        %4938 = vmatprep.subr.mxu0 0.0
        %4939 = vmatpush1.msra.mxu0 0.0
        %4940 = vmatprep.subr.mxu0 0.0
        %4941 = vmatpush1.msra.mxu0 0.0
        %4942 = vmatprep.subr.mxu0 0.0
        %4943 = vmatpush1.msra.mxu0 0.0
        %4944 = vmatprep.subr.mxu0 0.0
        %4945 = vmatpush1.msra.mxu0 0.0
        %4946 = vmatprep.subr.mxu0 0.0
        %4947 = vmatpush1.msra.mxu0 0.0
        %4948 = vmatprep.subr.mxu0 0.0
        %4949 = vmatpush1.msra.mxu0 0.0
        %4950 = vmatprep.subr.mxu0 0.0
        %4951 = vmatpush1.msra.mxu0 0.0
        %4952 = vmatprep.subr.mxu0 0.0
        %4953 = vmatpush1.msra.mxu0 0.0
        %4954 = vmatprep.subr.mxu0 0.0
        %4955 = vmatpush1.msra.mxu0 0.0
        %4956 = vmatprep.subr.mxu0 0.0
        %4957 = vmatpush1.msra.mxu0 0.0
        %4958 = vmatprep.subr.mxu0 0.0
        %4959 = vmatpush1.msra.mxu0 0.0
        %4960 = vmatprep.subr.mxu0 0.0
        %4961 = vmatpush1.msra.mxu0 0.0
        %4962 = vmatprep.subr.mxu0 0.0
        %4963 = vmatpush1.msra.mxu0 0.0
        %4964 = vmatprep.subr.mxu0 0.0
        %4965 = vmatpush1.msra.mxu0 0.0
        %4966 = vmatprep.subr.mxu0 0.0
        %4967 = vmatpush1.msra.mxu0 0.0
        %4968 = vmatprep.subr.mxu0 0.0
        %4969 = vmatpush1.msra.mxu0 0.0
        %4970 = vmatprep.subr.mxu0 0.0
        %4971 = vmatpush1.msra.mxu0 0.0
        %4972 = vmatprep.subr.mxu0 0.0
        %4973 = vmatpush1.msra.mxu0 0.0
        %4974 = vmatprep.subr.mxu0 0.0
        %4975 = vmatpush1.msra.mxu0 0.0
        %4976 = vmatprep.subr.mxu0 0.0
        %4977 = vmatpush1.msra.mxu0 0.0
        %4978 = vmatprep.subr.mxu0 0.0
        %4979 = vmatpush1.msra.mxu0 0.0
        %4980 = vmatprep.subr.mxu0 0.0
        %4981 = vmatpush1.msra.mxu0 0.0
        %4982 = vmatprep.subr.mxu0 0.0
        %4983 = vmatpush1.msra.mxu0 0.0
        %4984 = vmatprep.subr.mxu0 0.0
        %4985 = vmatpush1.msra.mxu0 0.0
        %4986 = vmatprep.mubr.f32.mxu0 0.0
        %4987 = vmatmul.mubr.f32.gmra.mrb[0].mxu0 %v2861
        %v4988 = vpop.f32.mrb[0].mxu0
        %v4989 = vadd.f32 %v2455, %v4988
        %v4990 = vpop.f32.mrb[0].mxu0
        %v4991 = vadd.f32 %v2459, %v4990
        %4992 = vdwg.mxu0
        %4993 = vmatprep.subr.mxu0 %v1225
        %4994 = vmatpush1.msra.mxu0 %v1224
        %4995 = vmatprep.subr.mxu0 %v1353
        %4996 = vmatpush1.msra.mxu0 %v1352
        %4997 = vmatprep.subr.mxu0 %v1481
        %4998 = vmatpush1.msra.mxu0 %v1480
        %4999 = vmatprep.subr.mxu0 %v1609
        %5000 = vmatpush1.msra.mxu0 %v1608
        %5001 = vmatprep.subr.mxu0 %v1737
        %5002 = vmatpush1.msra.mxu0 %v1736
        %5003 = vmatprep.subr.mxu0 %v1865
        %5004 = vmatpush1.msra.mxu0 %v1864
        %5005 = vmatprep.subr.mxu0 %v1993
        %5006 = vmatpush1.msra.mxu0 %v1992
        %5007 = vmatprep.subr.mxu0 %v2121
        %5008 = vmatpush1.msra.mxu0 %v2120
        %5009 = vmatprep.subr.mxu0 0.0
        %5010 = vmatpush1.msra.mxu0 0.0
        %5011 = vmatprep.subr.mxu0 0.0
        %5012 = vmatpush1.msra.mxu0 0.0
        %5013 = vmatprep.subr.mxu0 0.0
        %5014 = vmatpush1.msra.mxu0 0.0
        %5015 = vmatprep.subr.mxu0 0.0
        %5016 = vmatpush1.msra.mxu0 0.0
        %5017 = vmatprep.subr.mxu0 0.0
        %5018 = vmatpush1.msra.mxu0 0.0
        %5019 = vmatprep.subr.mxu0 0.0
        %5020 = vmatpush1.msra.mxu0 0.0
        %5021 = vmatprep.subr.mxu0 0.0
        %5022 = vmatpush1.msra.mxu0 0.0
        %5023 = vmatprep.subr.mxu0 0.0
        %5024 = vmatpush1.msra.mxu0 0.0
        %5025 = vmatprep.subr.mxu0 0.0
        %5026 = vmatpush1.msra.mxu0 0.0
        %5027 = vmatprep.subr.mxu0 0.0
        %5028 = vmatpush1.msra.mxu0 0.0
        %5029 = vmatprep.subr.mxu0 0.0
        %5030 = vmatpush1.msra.mxu0 0.0
        %5031 = vmatprep.subr.mxu0 0.0
        %5032 = vmatpush1.msra.mxu0 0.0
        %5033 = vmatprep.subr.mxu0 0.0
        %5034 = vmatpush1.msra.mxu0 0.0
        %5035 = vmatprep.subr.mxu0 0.0
        %5036 = vmatpush1.msra.mxu0 0.0
        %5037 = vmatprep.subr.mxu0 0.0
        %5038 = vmatpush1.msra.mxu0 0.0
        %5039 = vmatprep.subr.mxu0 0.0
        %5040 = vmatpush1.msra.mxu0 0.0
        %5041 = vmatprep.subr.mxu0 0.0
        %5042 = vmatpush1.msra.mxu0 0.0
        %5043 = vmatprep.subr.mxu0 0.0
        %5044 = vmatpush1.msra.mxu0 0.0
        %5045 = vmatprep.subr.mxu0 0.0
        %5046 = vmatpush1.msra.mxu0 0.0
        %5047 = vmatprep.subr.mxu0 0.0
        %5048 = vmatpush1.msra.mxu0 0.0
        %5049 = vmatprep.subr.mxu0 0.0
        %5050 = vmatpush1.msra.mxu0 0.0
        %5051 = vmatprep.subr.mxu0 0.0
        %5052 = vmatpush1.msra.mxu0 0.0
        %5053 = vmatprep.subr.mxu0 0.0
        %5054 = vmatpush1.msra.mxu0 0.0
        %5055 = vmatprep.subr.mxu0 0.0
        %5056 = vmatpush1.msra.mxu0 0.0
        %5057 = vmatprep.mubr.f32.mxu0 0.0
        %5058 = vmatmul.mubr.f32.gmra.mrb[0].mxu0 %v2861
        %v5059 = vpop.f32.mrb[0].mxu0
        %v5060 = vadd.f32 %v2463, %v5059
        %v5061 = vpop.f32.mrb[0].mxu0
        %v5062 = vadd.f32 %v2467, %v5061
        %5063 = vdwg.mxu0
        %5064 = vmatprep.subr.mxu0 %v1227
        %5065 = vmatpush1.msra.mxu0 %v1226
        %5066 = vmatprep.subr.mxu0 %v1355
        %5067 = vmatpush1.msra.mxu0 %v1354
        %5068 = vmatprep.subr.mxu0 %v1483
        %5069 = vmatpush1.msra.mxu0 %v1482
        %5070 = vmatprep.subr.mxu0 %v1611
        %5071 = vmatpush1.msra.mxu0 %v1610
        %5072 = vmatprep.subr.mxu0 %v1739
        %5073 = vmatpush1.msra.mxu0 %v1738
        %5074 = vmatprep.subr.mxu0 %v1867
        %5075 = vmatpush1.msra.mxu0 %v1866
        %5076 = vmatprep.subr.mxu0 %v1995
        %5077 = vmatpush1.msra.mxu0 %v1994
        %5078 = vmatprep.subr.mxu0 %v2123
        %5079 = vmatpush1.msra.mxu0 %v2122
        %5080 = vmatprep.subr.mxu0 0.0
        %5081 = vmatpush1.msra.mxu0 0.0
        %5082 = vmatprep.subr.mxu0 0.0
        %5083 = vmatpush1.msra.mxu0 0.0
        %5084 = vmatprep.subr.mxu0 0.0
        %5085 = vmatpush1.msra.mxu0 0.0
        %5086 = vmatprep.subr.mxu0 0.0
        %5087 = vmatpush1.msra.mxu0 0.0
        %5088 = vmatprep.subr.mxu0 0.0
        %5089 = vmatpush1.msra.mxu0 0.0
        %5090 = vmatprep.subr.mxu0 0.0
        %5091 = vmatpush1.msra.mxu0 0.0
        %5092 = vmatprep.subr.mxu0 0.0
        %5093 = vmatpush1.msra.mxu0 0.0
        %5094 = vmatprep.subr.mxu0 0.0
        %5095 = vmatpush1.msra.mxu0 0.0
        %5096 = vmatprep.subr.mxu0 0.0
        %5097 = vmatpush1.msra.mxu0 0.0
        %5098 = vmatprep.subr.mxu0 0.0
        %5099 = vmatpush1.msra.mxu0 0.0
        %5100 = vmatprep.subr.mxu0 0.0
        %5101 = vmatpush1.msra.mxu0 0.0
        %5102 = vmatprep.subr.mxu0 0.0
        %5103 = vmatpush1.msra.mxu0 0.0
        %5104 = vmatprep.subr.mxu0 0.0
        %5105 = vmatpush1.msra.mxu0 0.0
        %5106 = vmatprep.subr.mxu0 0.0
        %5107 = vmatpush1.msra.mxu0 0.0
        %5108 = vmatprep.subr.mxu0 0.0
        %5109 = vmatpush1.msra.mxu0 0.0
        %5110 = vmatprep.subr.mxu0 0.0
        %5111 = vmatpush1.msra.mxu0 0.0
        %5112 = vmatprep.subr.mxu0 0.0
        %5113 = vmatpush1.msra.mxu0 0.0
        %5114 = vmatprep.subr.mxu0 0.0
        %5115 = vmatpush1.msra.mxu0 0.0
        %5116 = vmatprep.subr.mxu0 0.0
        %5117 = vmatpush1.msra.mxu0 0.0
        %5118 = vmatprep.subr.mxu0 0.0
        %5119 = vmatpush1.msra.mxu0 0.0
        %5120 = vmatprep.subr.mxu0 0.0
        %5121 = vmatpush1.msra.mxu0 0.0
        %5122 = vmatprep.subr.mxu0 0.0
        %5123 = vmatpush1.msra.mxu0 0.0
        %5124 = vmatprep.subr.mxu0 0.0
        %5125 = vmatpush1.msra.mxu0 0.0
        %5126 = vmatprep.subr.mxu0 0.0
        %5127 = vmatpush1.msra.mxu0 0.0
        %5128 = vmatprep.mubr.f32.mxu0 0.0
        %5129 = vmatmul.mubr.f32.gmra.mrb[0].mxu0 %v2861
        %v5130 = vpop.f32.mrb[0].mxu0
        %v5131 = vadd.f32 %v2471, %v5130
        %v5132 = vpop.f32.mrb[0].mxu0
        %v5133 = vadd.f32 %v2475, %v5132
        %5134 = vdwg.mxu0
        %5135 = vmatprep.subr.mxu0 %v1229
        %5136 = vmatpush1.msra.mxu0 %v1228
        %5137 = vmatprep.subr.mxu0 %v1357
        %5138 = vmatpush1.msra.mxu0 %v1356
        %5139 = vmatprep.subr.mxu0 %v1485
        %5140 = vmatpush1.msra.mxu0 %v1484
        %5141 = vmatprep.subr.mxu0 %v1613
        %5142 = vmatpush1.msra.mxu0 %v1612
        %5143 = vmatprep.subr.mxu0 %v1741
        %5144 = vmatpush1.msra.mxu0 %v1740
        %5145 = vmatprep.subr.mxu0 %v1869
        %5146 = vmatpush1.msra.mxu0 %v1868
        %5147 = vmatprep.subr.mxu0 %v1997
        %5148 = vmatpush1.msra.mxu0 %v1996
        %5149 = vmatprep.subr.mxu0 %v2125
        %5150 = vmatpush1.msra.mxu0 %v2124
        %5151 = vmatprep.subr.mxu0 0.0
        %5152 = vmatpush1.msra.mxu0 0.0
        %5153 = vmatprep.subr.mxu0 0.0
        %5154 = vmatpush1.msra.mxu0 0.0
        %5155 = vmatprep.subr.mxu0 0.0
        %5156 = vmatpush1.msra.mxu0 0.0
        %5157 = vmatprep.subr.mxu0 0.0
        %5158 = vmatpush1.msra.mxu0 0.0
        %5159 = vmatprep.subr.mxu0 0.0
        %5160 = vmatpush1.msra.mxu0 0.0
        %5161 = vmatprep.subr.mxu0 0.0
        %5162 = vmatpush1.msra.mxu0 0.0
        %5163 = vmatprep.subr.mxu0 0.0
        %5164 = vmatpush1.msra.mxu0 0.0
        %5165 = vmatprep.subr.mxu0 0.0
        %5166 = vmatpush1.msra.mxu0 0.0
        %5167 = vmatprep.subr.mxu0 0.0
        %5168 = vmatpush1.msra.mxu0 0.0
        %5169 = vmatprep.subr.mxu0 0.0
        %5170 = vmatpush1.msra.mxu0 0.0
        %5171 = vmatprep.subr.mxu0 0.0
        %5172 = vmatpush1.msra.mxu0 0.0
        %5173 = vmatprep.subr.mxu0 0.0
        %5174 = vmatpush1.msra.mxu0 0.0
        %5175 = vmatprep.subr.mxu0 0.0
        %5176 = vmatpush1.msra.mxu0 0.0
        %5177 = vmatprep.subr.mxu0 0.0
        %5178 = vmatpush1.msra.mxu0 0.0
        %5179 = vmatprep.subr.mxu0 0.0
        %5180 = vmatpush1.msra.mxu0 0.0
        %5181 = vmatprep.subr.mxu0 0.0
        %5182 = vmatpush1.msra.mxu0 0.0
        %5183 = vmatprep.subr.mxu0 0.0
        %5184 = vmatpush1.msra.mxu0 0.0
        %5185 = vmatprep.subr.mxu0 0.0
        %5186 = vmatpush1.msra.mxu0 0.0
        %5187 = vmatprep.subr.mxu0 0.0
        %5188 = vmatpush1.msra.mxu0 0.0
        %5189 = vmatprep.subr.mxu0 0.0
        %5190 = vmatpush1.msra.mxu0 0.0
        %5191 = vmatprep.subr.mxu0 0.0
        %5192 = vmatpush1.msra.mxu0 0.0
        %5193 = vmatprep.subr.mxu0 0.0
        %5194 = vmatpush1.msra.mxu0 0.0
        %5195 = vmatprep.subr.mxu0 0.0
        %5196 = vmatpush1.msra.mxu0 0.0
        %5197 = vmatprep.subr.mxu0 0.0
        %5198 = vmatpush1.msra.mxu0 0.0
        %5199 = vmatprep.mubr.f32.mxu0 0.0
        %5200 = vmatmul.mubr.f32.gmra.mrb[0].mxu0 %v2861
        %v5201 = vpop.f32.mrb[0].mxu0
        %v5202 = vadd.f32 %v2479, %v5201
        %v5203 = vpop.f32.mrb[0].mxu0
        %v5204 = vadd.f32 %v2483, %v5203
        %5205 = vdwg.mxu0
        %5206 = vmatprep.subr.mxu0 %v1231
        %5207 = vmatpush1.msra.mxu0 %v1230
        %5208 = vmatprep.subr.mxu0 %v1359
        %5209 = vmatpush1.msra.mxu0 %v1358
        %5210 = vmatprep.subr.mxu0 %v1487
        %5211 = vmatpush1.msra.mxu0 %v1486
        %5212 = vmatprep.subr.mxu0 %v1615
        %5213 = vmatpush1.msra.mxu0 %v1614
        %5214 = vmatprep.subr.mxu0 %v1743
        %5215 = vmatpush1.msra.mxu0 %v1742
        %5216 = vmatprep.subr.mxu0 %v1871
        %5217 = vmatpush1.msra.mxu0 %v1870
        %5218 = vmatprep.subr.mxu0 %v1999
        %5219 = vmatpush1.msra.mxu0 %v1998
        %5220 = vmatprep.subr.mxu0 %v2127
        %5221 = vmatpush1.msra.mxu0 %v2126
        %5222 = vmatprep.subr.mxu0 0.0
        %5223 = vmatpush1.msra.mxu0 0.0
        %5224 = vmatprep.subr.mxu0 0.0
        %5225 = vmatpush1.msra.mxu0 0.0
        %5226 = vmatprep.subr.mxu0 0.0
        %5227 = vmatpush1.msra.mxu0 0.0
        %5228 = vmatprep.subr.mxu0 0.0
        %5229 = vmatpush1.msra.mxu0 0.0
        %5230 = vmatprep.subr.mxu0 0.0
        %5231 = vmatpush1.msra.mxu0 0.0
        %5232 = vmatprep.subr.mxu0 0.0
        %5233 = vmatpush1.msra.mxu0 0.0
        %5234 = vmatprep.subr.mxu0 0.0
        %5235 = vmatpush1.msra.mxu0 0.0
        %5236 = vmatprep.subr.mxu0 0.0
        %5237 = vmatpush1.msra.mxu0 0.0
        %5238 = vmatprep.subr.mxu0 0.0
        %5239 = vmatpush1.msra.mxu0 0.0
        %5240 = vmatprep.subr.mxu0 0.0
        %5241 = vmatpush1.msra.mxu0 0.0
        %5242 = vmatprep.subr.mxu0 0.0
        %5243 = vmatpush1.msra.mxu0 0.0
        %5244 = vmatprep.subr.mxu0 0.0
        %5245 = vmatpush1.msra.mxu0 0.0
        %5246 = vmatprep.subr.mxu0 0.0
        %5247 = vmatpush1.msra.mxu0 0.0
        %5248 = vmatprep.subr.mxu0 0.0
        %5249 = vmatpush1.msra.mxu0 0.0
        %5250 = vmatprep.subr.mxu0 0.0
        %5251 = vmatpush1.msra.mxu0 0.0
        %5252 = vmatprep.subr.mxu0 0.0
        %5253 = vmatpush1.msra.mxu0 0.0
        %5254 = vmatprep.subr.mxu0 0.0
        %5255 = vmatpush1.msra.mxu0 0.0
        %5256 = vmatprep.subr.mxu0 0.0
        %5257 = vmatpush1.msra.mxu0 0.0
        %5258 = vmatprep.subr.mxu0 0.0
        %5259 = vmatpush1.msra.mxu0 0.0
        %5260 = vmatprep.subr.mxu0 0.0
        %5261 = vmatpush1.msra.mxu0 0.0
        %5262 = vmatprep.subr.mxu0 0.0
        %5263 = vmatpush1.msra.mxu0 0.0
        %5264 = vmatprep.subr.mxu0 0.0
        %5265 = vmatpush1.msra.mxu0 0.0
        %5266 = vmatprep.subr.mxu0 0.0
        %5267 = vmatpush1.msra.mxu0 0.0
        %5268 = vmatprep.subr.mxu0 0.0
        %5269 = vmatpush1.msra.mxu0 0.0
        %5270 = vmatprep.mubr.f32.mxu0 0.0
        %5271 = vmatmul.mubr.f32.gmra.mrb[0].mxu0 %v2861
        %v5272 = vpop.f32.mrb[0].mxu0
        %v5273 = vadd.f32 %v2487, %v5272
        %v5274 = vpop.f32.mrb[0].mxu0
        %v5275 = vadd.f32 %v2491, %v5274
        %5276 = vdwg.mxu0
        %5277 = vmatprep.subr.mxu0 %v1233
        %5278 = vmatpush1.msra.mxu0 %v1232
        %5279 = vmatprep.subr.mxu0 %v1361
        %5280 = vmatpush1.msra.mxu0 %v1360
        %5281 = vmatprep.subr.mxu0 %v1489
        %5282 = vmatpush1.msra.mxu0 %v1488
        %5283 = vmatprep.subr.mxu0 %v1617
        %5284 = vmatpush1.msra.mxu0 %v1616
        %5285 = vmatprep.subr.mxu0 %v1745
        %5286 = vmatpush1.msra.mxu0 %v1744
        %5287 = vmatprep.subr.mxu0 %v1873
        %5288 = vmatpush1.msra.mxu0 %v1872
        %5289 = vmatprep.subr.mxu0 %v2001
        %5290 = vmatpush1.msra.mxu0 %v2000
        %5291 = vmatprep.subr.mxu0 %v2129
        %5292 = vmatpush1.msra.mxu0 %v2128
        %5293 = vmatprep.subr.mxu0 0.0
        %5294 = vmatpush1.msra.mxu0 0.0
        %5295 = vmatprep.subr.mxu0 0.0
        %5296 = vmatpush1.msra.mxu0 0.0
        %5297 = vmatprep.subr.mxu0 0.0
        %5298 = vmatpush1.msra.mxu0 0.0
        %5299 = vmatprep.subr.mxu0 0.0
        %5300 = vmatpush1.msra.mxu0 0.0
        %5301 = vmatprep.subr.mxu0 0.0
        %5302 = vmatpush1.msra.mxu0 0.0
        %5303 = vmatprep.subr.mxu0 0.0
        %5304 = vmatpush1.msra.mxu0 0.0
        %5305 = vmatprep.subr.mxu0 0.0
        %5306 = vmatpush1.msra.mxu0 0.0
        %5307 = vmatprep.subr.mxu0 0.0
        %5308 = vmatpush1.msra.mxu0 0.0
        %5309 = vmatprep.subr.mxu0 0.0
        %5310 = vmatpush1.msra.mxu0 0.0
        %5311 = vmatprep.subr.mxu0 0.0
        %5312 = vmatpush1.msra.mxu0 0.0
        %5313 = vmatprep.subr.mxu0 0.0
        %5314 = vmatpush1.msra.mxu0 0.0
        %5315 = vmatprep.subr.mxu0 0.0
        %5316 = vmatpush1.msra.mxu0 0.0
        %5317 = vmatprep.subr.mxu0 0.0
        %5318 = vmatpush1.msra.mxu0 0.0
        %5319 = vmatprep.subr.mxu0 0.0
        %5320 = vmatpush1.msra.mxu0 0.0
        %5321 = vmatprep.subr.mxu0 0.0
        %5322 = vmatpush1.msra.mxu0 0.0
        %5323 = vmatprep.subr.mxu0 0.0
        %5324 = vmatpush1.msra.mxu0 0.0
        %5325 = vmatprep.subr.mxu0 0.0
        %5326 = vmatpush1.msra.mxu0 0.0
        %5327 = vmatprep.subr.mxu0 0.0
        %5328 = vmatpush1.msra.mxu0 0.0
        %5329 = vmatprep.subr.mxu0 0.0
        %5330 = vmatpush1.msra.mxu0 0.0
        %5331 = vmatprep.subr.mxu0 0.0
        %5332 = vmatpush1.msra.mxu0 0.0
        %5333 = vmatprep.subr.mxu0 0.0
        %5334 = vmatpush1.msra.mxu0 0.0
        %5335 = vmatprep.subr.mxu0 0.0
        %5336 = vmatpush1.msra.mxu0 0.0
        %5337 = vmatprep.subr.mxu0 0.0
        %5338 = vmatpush1.msra.mxu0 0.0
        %5339 = vmatprep.subr.mxu0 0.0
        %5340 = vmatpush1.msra.mxu0 0.0
        %5341 = vmatprep.mubr.f32.mxu0 0.0
        %5342 = vmatmul.mubr.f32.gmra.mrb[0].mxu0 %v2861
        %v5343 = vpop.f32.mrb[0].mxu0
        %v5344 = vadd.f32 %v2495, %v5343
        %v5345 = vpop.f32.mrb[0].mxu0
        %v5346 = vadd.f32 %v2499, %v5345
        %5347 = vdwg.mxu0
        %5348 = vmatprep.subr.mxu0 %v1235
        %5349 = vmatpush1.msra.mxu0 %v1234
        %5350 = vmatprep.subr.mxu0 %v1363
        %5351 = vmatpush1.msra.mxu0 %v1362
        %5352 = vmatprep.subr.mxu0 %v1491
        %5353 = vmatpush1.msra.mxu0 %v1490
        %5354 = vmatprep.subr.mxu0 %v1619
        %5355 = vmatpush1.msra.mxu0 %v1618
        %5356 = vmatprep.subr.mxu0 %v1747
        %5357 = vmatpush1.msra.mxu0 %v1746
        %5358 = vmatprep.subr.mxu0 %v1875
        %5359 = vmatpush1.msra.mxu0 %v1874
        %5360 = vmatprep.subr.mxu0 %v2003
        %5361 = vmatpush1.msra.mxu0 %v2002
        %5362 = vmatprep.subr.mxu0 %v2131
        %5363 = vmatpush1.msra.mxu0 %v2130
        %5364 = vmatprep.subr.mxu0 0.0
        %5365 = vmatpush1.msra.mxu0 0.0
        %5366 = vmatprep.subr.mxu0 0.0
        %5367 = vmatpush1.msra.mxu0 0.0
        %5368 = vmatprep.subr.mxu0 0.0
        %5369 = vmatpush1.msra.mxu0 0.0
        %5370 = vmatprep.subr.mxu0 0.0
        %5371 = vmatpush1.msra.mxu0 0.0
        %5372 = vmatprep.subr.mxu0 0.0
        %5373 = vmatpush1.msra.mxu0 0.0
        %5374 = vmatprep.subr.mxu0 0.0
        %5375 = vmatpush1.msra.mxu0 0.0
        %5376 = vmatprep.subr.mxu0 0.0
        %5377 = vmatpush1.msra.mxu0 0.0
        %5378 = vmatprep.subr.mxu0 0.0
        %5379 = vmatpush1.msra.mxu0 0.0
        %5380 = vmatprep.subr.mxu0 0.0
        %5381 = vmatpush1.msra.mxu0 0.0
        %5382 = vmatprep.subr.mxu0 0.0
        %5383 = vmatpush1.msra.mxu0 0.0
        %5384 = vmatprep.subr.mxu0 0.0
        %5385 = vmatpush1.msra.mxu0 0.0
        %5386 = vmatprep.subr.mxu0 0.0
        %5387 = vmatpush1.msra.mxu0 0.0
        %5388 = vmatprep.subr.mxu0 0.0
        %5389 = vmatpush1.msra.mxu0 0.0
        %5390 = vmatprep.subr.mxu0 0.0
        %5391 = vmatpush1.msra.mxu0 0.0
        %5392 = vmatprep.subr.mxu0 0.0
        %5393 = vmatpush1.msra.mxu0 0.0
        %5394 = vmatprep.subr.mxu0 0.0
        %5395 = vmatpush1.msra.mxu0 0.0
        %5396 = vmatprep.subr.mxu0 0.0
        %5397 = vmatpush1.msra.mxu0 0.0
        %5398 = vmatprep.subr.mxu0 0.0
        %5399 = vmatpush1.msra.mxu0 0.0
        %5400 = vmatprep.subr.mxu0 0.0
        %5401 = vmatpush1.msra.mxu0 0.0
        %5402 = vmatprep.subr.mxu0 0.0
        %5403 = vmatpush1.msra.mxu0 0.0
        %5404 = vmatprep.subr.mxu0 0.0
        %5405 = vmatpush1.msra.mxu0 0.0
        %5406 = vmatprep.subr.mxu0 0.0
        %5407 = vmatpush1.msra.mxu0 0.0
        %5408 = vmatprep.subr.mxu0 0.0
        %5409 = vmatpush1.msra.mxu0 0.0
        %5410 = vmatprep.subr.mxu0 0.0
        %5411 = vmatpush1.msra.mxu0 0.0
        %5412 = vmatprep.mubr.f32.mxu0 0.0
        %5413 = vmatmul.mubr.f32.gmra.mrb[0].mxu0 %v2861
        %v5414 = vpop.f32.mrb[0].mxu0
        %v5415 = vadd.f32 %v2503, %v5414
        %v5416 = vpop.f32.mrb[0].mxu0
        %v5417 = vadd.f32 %v2507, %v5416
        %5418 = vdwg.mxu0
        %5419 = vmatprep.subr.mxu0 %v1237
        %5420 = vmatpush1.msra.mxu0 %v1236
        %5421 = vmatprep.subr.mxu0 %v1365
        %5422 = vmatpush1.msra.mxu0 %v1364
        %5423 = vmatprep.subr.mxu0 %v1493
        %5424 = vmatpush1.msra.mxu0 %v1492
        %5425 = vmatprep.subr.mxu0 %v1621
        %5426 = vmatpush1.msra.mxu0 %v1620
        %5427 = vmatprep.subr.mxu0 %v1749
        %5428 = vmatpush1.msra.mxu0 %v1748
        %5429 = vmatprep.subr.mxu0 %v1877
        %5430 = vmatpush1.msra.mxu0 %v1876
        %5431 = vmatprep.subr.mxu0 %v2005
        %5432 = vmatpush1.msra.mxu0 %v2004
        %5433 = vmatprep.subr.mxu0 %v2133
        %5434 = vmatpush1.msra.mxu0 %v2132
        %5435 = vmatprep.subr.mxu0 0.0
        %5436 = vmatpush1.msra.mxu0 0.0
        %5437 = vmatprep.subr.mxu0 0.0
        %5438 = vmatpush1.msra.mxu0 0.0
        %5439 = vmatprep.subr.mxu0 0.0
        %5440 = vmatpush1.msra.mxu0 0.0
        %5441 = vmatprep.subr.mxu0 0.0
        %5442 = vmatpush1.msra.mxu0 0.0
        %5443 = vmatprep.subr.mxu0 0.0
        %5444 = vmatpush1.msra.mxu0 0.0
        %5445 = vmatprep.subr.mxu0 0.0
        %5446 = vmatpush1.msra.mxu0 0.0
        %5447 = vmatprep.subr.mxu0 0.0
        %5448 = vmatpush1.msra.mxu0 0.0
        %5449 = vmatprep.subr.mxu0 0.0
        %5450 = vmatpush1.msra.mxu0 0.0
        %5451 = vmatprep.subr.mxu0 0.0
        %5452 = vmatpush1.msra.mxu0 0.0
        %5453 = vmatprep.subr.mxu0 0.0
        %5454 = vmatpush1.msra.mxu0 0.0
        %5455 = vmatprep.subr.mxu0 0.0
        %5456 = vmatpush1.msra.mxu0 0.0
        %5457 = vmatprep.subr.mxu0 0.0
        %5458 = vmatpush1.msra.mxu0 0.0
        %5459 = vmatprep.subr.mxu0 0.0
        %5460 = vmatpush1.msra.mxu0 0.0
        %5461 = vmatprep.subr.mxu0 0.0
        %5462 = vmatpush1.msra.mxu0 0.0
        %5463 = vmatprep.subr.mxu0 0.0
        %5464 = vmatpush1.msra.mxu0 0.0
        %5465 = vmatprep.subr.mxu0 0.0
        %5466 = vmatpush1.msra.mxu0 0.0
        %5467 = vmatprep.subr.mxu0 0.0
        %5468 = vmatpush1.msra.mxu0 0.0
        %5469 = vmatprep.subr.mxu0 0.0
        %5470 = vmatpush1.msra.mxu0 0.0
        %5471 = vmatprep.subr.mxu0 0.0
        %5472 = vmatpush1.msra.mxu0 0.0
        %5473 = vmatprep.subr.mxu0 0.0
        %5474 = vmatpush1.msra.mxu0 0.0
        %5475 = vmatprep.subr.mxu0 0.0
        %5476 = vmatpush1.msra.mxu0 0.0
        %5477 = vmatprep.subr.mxu0 0.0
        %5478 = vmatpush1.msra.mxu0 0.0
        %5479 = vmatprep.subr.mxu0 0.0
        %5480 = vmatpush1.msra.mxu0 0.0
        %5481 = vmatprep.subr.mxu0 0.0
        %5482 = vmatpush1.msra.mxu0 0.0
        %5483 = vmatprep.mubr.f32.mxu0 0.0
        %5484 = vmatmul.mubr.f32.gmra.mrb[0].mxu0 %v2861
        %v5485 = vpop.f32.mrb[0].mxu0
        %v5486 = vadd.f32 %v2511, %v5485
        %v5487 = vpop.f32.mrb[0].mxu0
        %v5488 = vadd.f32 %v2515, %v5487
        %5489 = vdwg.mxu0
        %5490 = vmatprep.subr.mxu0 %v1239
        %5491 = vmatpush1.msra.mxu0 %v1238
        %5492 = vmatprep.subr.mxu0 %v1367
        %5493 = vmatpush1.msra.mxu0 %v1366
        %5494 = vmatprep.subr.mxu0 %v1495
        %5495 = vmatpush1.msra.mxu0 %v1494
        %5496 = vmatprep.subr.mxu0 %v1623
        %5497 = vmatpush1.msra.mxu0 %v1622
        %5498 = vmatprep.subr.mxu0 %v1751
        %5499 = vmatpush1.msra.mxu0 %v1750
        %5500 = vmatprep.subr.mxu0 %v1879
        %5501 = vmatpush1.msra.mxu0 %v1878
        %5502 = vmatprep.subr.mxu0 %v2007
        %5503 = vmatpush1.msra.mxu0 %v2006
        %5504 = vmatprep.subr.mxu0 %v2135
        %5505 = vmatpush1.msra.mxu0 %v2134
        %5506 = vmatprep.subr.mxu0 0.0
        %5507 = vmatpush1.msra.mxu0 0.0
        %5508 = vmatprep.subr.mxu0 0.0
        %5509 = vmatpush1.msra.mxu0 0.0
        %5510 = vmatprep.subr.mxu0 0.0
        %5511 = vmatpush1.msra.mxu0 0.0
        %5512 = vmatprep.subr.mxu0 0.0
        %5513 = vmatpush1.msra.mxu0 0.0
        %5514 = vmatprep.subr.mxu0 0.0
        %5515 = vmatpush1.msra.mxu0 0.0
        %5516 = vmatprep.subr.mxu0 0.0
        %5517 = vmatpush1.msra.mxu0 0.0
        %5518 = vmatprep.subr.mxu0 0.0
        %5519 = vmatpush1.msra.mxu0 0.0
        %5520 = vmatprep.subr.mxu0 0.0
        %5521 = vmatpush1.msra.mxu0 0.0
        %5522 = vmatprep.subr.mxu0 0.0
        %5523 = vmatpush1.msra.mxu0 0.0
        %5524 = vmatprep.subr.mxu0 0.0
        %5525 = vmatpush1.msra.mxu0 0.0
        %5526 = vmatprep.subr.mxu0 0.0
        %5527 = vmatpush1.msra.mxu0 0.0
        %5528 = vmatprep.subr.mxu0 0.0
        %5529 = vmatpush1.msra.mxu0 0.0
        %5530 = vmatprep.subr.mxu0 0.0
        %5531 = vmatpush1.msra.mxu0 0.0
        %5532 = vmatprep.subr.mxu0 0.0
        %5533 = vmatpush1.msra.mxu0 0.0
        %5534 = vmatprep.subr.mxu0 0.0
        %5535 = vmatpush1.msra.mxu0 0.0
        %5536 = vmatprep.subr.mxu0 0.0
        %5537 = vmatpush1.msra.mxu0 0.0
        %5538 = vmatprep.subr.mxu0 0.0
        %5539 = vmatpush1.msra.mxu0 0.0
        %5540 = vmatprep.subr.mxu0 0.0
        %5541 = vmatpush1.msra.mxu0 0.0
        %5542 = vmatprep.subr.mxu0 0.0
        %5543 = vmatpush1.msra.mxu0 0.0
        %5544 = vmatprep.subr.mxu0 0.0
        %5545 = vmatpush1.msra.mxu0 0.0
        %5546 = vmatprep.subr.mxu0 0.0
        %5547 = vmatpush1.msra.mxu0 0.0
        %5548 = vmatprep.subr.mxu0 0.0
        %5549 = vmatpush1.msra.mxu0 0.0
        %5550 = vmatprep.subr.mxu0 0.0
        %5551 = vmatpush1.msra.mxu0 0.0
        %5552 = vmatprep.subr.mxu0 0.0
        %5553 = vmatpush1.msra.mxu0 0.0
        %5554 = vmatprep.mubr.f32.mxu0 0.0
        %5555 = vmatmul.mubr.f32.gmra.mrb[0].mxu0 %v2861
        %v5556 = vpop.f32.mrb[0].mxu0
        %v5557 = vadd.f32 %v2519, %v5556
        %v5558 = vpop.f32.mrb[0].mxu0
        %v5559 = vadd.f32 %v2523, %v5558
        %5560 = vdwg.mxu0
        %5561 = vmatprep.subr.mxu0 %v1241
        %5562 = vmatpush1.msra.mxu0 %v1240
        %5563 = vmatprep.subr.mxu0 %v1369
        %5564 = vmatpush1.msra.mxu0 %v1368
        %5565 = vmatprep.subr.mxu0 %v1497
        %5566 = vmatpush1.msra.mxu0 %v1496
        %5567 = vmatprep.subr.mxu0 %v1625
        %5568 = vmatpush1.msra.mxu0 %v1624
        %5569 = vmatprep.subr.mxu0 %v1753
        %5570 = vmatpush1.msra.mxu0 %v1752
        %5571 = vmatprep.subr.mxu0 %v1881
        %5572 = vmatpush1.msra.mxu0 %v1880
        %5573 = vmatprep.subr.mxu0 %v2009
        %5574 = vmatpush1.msra.mxu0 %v2008
        %5575 = vmatprep.subr.mxu0 %v2137
        %5576 = vmatpush1.msra.mxu0 %v2136
        %5577 = vmatprep.subr.mxu0 0.0
        %5578 = vmatpush1.msra.mxu0 0.0
        %5579 = vmatprep.subr.mxu0 0.0
        %5580 = vmatpush1.msra.mxu0 0.0
        %5581 = vmatprep.subr.mxu0 0.0
        %5582 = vmatpush1.msra.mxu0 0.0
        %5583 = vmatprep.subr.mxu0 0.0
        %5584 = vmatpush1.msra.mxu0 0.0
        %5585 = vmatprep.subr.mxu0 0.0
        %5586 = vmatpush1.msra.mxu0 0.0
        %5587 = vmatprep.subr.mxu0 0.0
        %5588 = vmatpush1.msra.mxu0 0.0
        %5589 = vmatprep.subr.mxu0 0.0
        %5590 = vmatpush1.msra.mxu0 0.0
        %5591 = vmatprep.subr.mxu0 0.0
        %5592 = vmatpush1.msra.mxu0 0.0
        %5593 = vmatprep.subr.mxu0 0.0
        %5594 = vmatpush1.msra.mxu0 0.0
        %5595 = vmatprep.subr.mxu0 0.0
        %5596 = vmatpush1.msra.mxu0 0.0
        %5597 = vmatprep.subr.mxu0 0.0
        %5598 = vmatpush1.msra.mxu0 0.0
        %5599 = vmatprep.subr.mxu0 0.0
        %5600 = vmatpush1.msra.mxu0 0.0
        %5601 = vmatprep.subr.mxu0 0.0
        %5602 = vmatpush1.msra.mxu0 0.0
        %5603 = vmatprep.subr.mxu0 0.0
        %5604 = vmatpush1.msra.mxu0 0.0
        %5605 = vmatprep.subr.mxu0 0.0
        %5606 = vmatpush1.msra.mxu0 0.0
        %5607 = vmatprep.subr.mxu0 0.0
        %5608 = vmatpush1.msra.mxu0 0.0
        %5609 = vmatprep.subr.mxu0 0.0
        %5610 = vmatpush1.msra.mxu0 0.0
        %5611 = vmatprep.subr.mxu0 0.0
        %5612 = vmatpush1.msra.mxu0 0.0
        %5613 = vmatprep.subr.mxu0 0.0
        %5614 = vmatpush1.msra.mxu0 0.0
        %5615 = vmatprep.subr.mxu0 0.0
        %5616 = vmatpush1.msra.mxu0 0.0
        %5617 = vmatprep.subr.mxu0 0.0
        %5618 = vmatpush1.msra.mxu0 0.0
        %5619 = vmatprep.subr.mxu0 0.0
        %5620 = vmatpush1.msra.mxu0 0.0
        %5621 = vmatprep.subr.mxu0 0.0
        %5622 = vmatpush1.msra.mxu0 0.0
        %5623 = vmatprep.subr.mxu0 0.0
        %5624 = vmatpush1.msra.mxu0 0.0
        %5625 = vmatprep.mubr.f32.mxu0 0.0
        %5626 = vmatmul.mubr.f32.gmra.mrb[0].mxu0 %v2861
        %v5627 = vpop.f32.mrb[0].mxu0
        %v5628 = vadd.f32 %v2527, %v5627
        %v5629 = vpop.f32.mrb[0].mxu0
        %v5630 = vadd.f32 %v2531, %v5629
        %5631 = vdwg.mxu0
        %5632 = vmatprep.subr.mxu0 %v1243
        %5633 = vmatpush1.msra.mxu0 %v1242
        %5634 = vmatprep.subr.mxu0 %v1371
        %5635 = vmatpush1.msra.mxu0 %v1370
        %5636 = vmatprep.subr.mxu0 %v1499
        %5637 = vmatpush1.msra.mxu0 %v1498
        %5638 = vmatprep.subr.mxu0 %v1627
        %5639 = vmatpush1.msra.mxu0 %v1626
        %5640 = vmatprep.subr.mxu0 %v1755
        %5641 = vmatpush1.msra.mxu0 %v1754
        %5642 = vmatprep.subr.mxu0 %v1883
        %5643 = vmatpush1.msra.mxu0 %v1882
        %5644 = vmatprep.subr.mxu0 %v2011
        %5645 = vmatpush1.msra.mxu0 %v2010
        %5646 = vmatprep.subr.mxu0 %v2139
        %5647 = vmatpush1.msra.mxu0 %v2138
        %5648 = vmatprep.subr.mxu0 0.0
        %5649 = vmatpush1.msra.mxu0 0.0
        %5650 = vmatprep.subr.mxu0 0.0
        %5651 = vmatpush1.msra.mxu0 0.0
        %5652 = vmatprep.subr.mxu0 0.0
        %5653 = vmatpush1.msra.mxu0 0.0
        %5654 = vmatprep.subr.mxu0 0.0
        %5655 = vmatpush1.msra.mxu0 0.0
        %5656 = vmatprep.subr.mxu0 0.0
        %5657 = vmatpush1.msra.mxu0 0.0
        %5658 = vmatprep.subr.mxu0 0.0
        %5659 = vmatpush1.msra.mxu0 0.0
        %5660 = vmatprep.subr.mxu0 0.0
        %5661 = vmatpush1.msra.mxu0 0.0
        %5662 = vmatprep.subr.mxu0 0.0
        %5663 = vmatpush1.msra.mxu0 0.0
        %5664 = vmatprep.subr.mxu0 0.0
        %5665 = vmatpush1.msra.mxu0 0.0
        %5666 = vmatprep.subr.mxu0 0.0
        %5667 = vmatpush1.msra.mxu0 0.0
        %5668 = vmatprep.subr.mxu0 0.0
        %5669 = vmatpush1.msra.mxu0 0.0
        %5670 = vmatprep.subr.mxu0 0.0
        %5671 = vmatpush1.msra.mxu0 0.0
        %5672 = vmatprep.subr.mxu0 0.0
        %5673 = vmatpush1.msra.mxu0 0.0
        %5674 = vmatprep.subr.mxu0 0.0
        %5675 = vmatpush1.msra.mxu0 0.0
        %5676 = vmatprep.subr.mxu0 0.0
        %5677 = vmatpush1.msra.mxu0 0.0
        %5678 = vmatprep.subr.mxu0 0.0
        %5679 = vmatpush1.msra.mxu0 0.0
        %5680 = vmatprep.subr.mxu0 0.0
        %5681 = vmatpush1.msra.mxu0 0.0
        %5682 = vmatprep.subr.mxu0 0.0
        %5683 = vmatpush1.msra.mxu0 0.0
        %5684 = vmatprep.subr.mxu0 0.0
        %5685 = vmatpush1.msra.mxu0 0.0
        %5686 = vmatprep.subr.mxu0 0.0
        %5687 = vmatpush1.msra.mxu0 0.0
        %5688 = vmatprep.subr.mxu0 0.0
        %5689 = vmatpush1.msra.mxu0 0.0
        %5690 = vmatprep.subr.mxu0 0.0
        %5691 = vmatpush1.msra.mxu0 0.0
        %5692 = vmatprep.subr.mxu0 0.0
        %5693 = vmatpush1.msra.mxu0 0.0
        %5694 = vmatprep.subr.mxu0 0.0
        %5695 = vmatpush1.msra.mxu0 0.0
        %5696 = vmatprep.mubr.f32.mxu0 0.0
        %5697 = vmatmul.mubr.f32.gmra.mrb[0].mxu0 %v2861
        %v5698 = vpop.f32.mrb[0].mxu0
        %v5699 = vadd.f32 %v2535, %v5698
        %v5700 = vpop.f32.mrb[0].mxu0
        %v5701 = vadd.f32 %v2539, %v5700
        %5702 = vdwg.mxu0
        %5703 = vmatprep.subr.mxu0 %v1245
        %5704 = vmatpush1.msra.mxu0 %v1244
        %5705 = vmatprep.subr.mxu0 %v1373
        %5706 = vmatpush1.msra.mxu0 %v1372
        %5707 = vmatprep.subr.mxu0 %v1501
        %5708 = vmatpush1.msra.mxu0 %v1500
        %5709 = vmatprep.subr.mxu0 %v1629
        %5710 = vmatpush1.msra.mxu0 %v1628
        %5711 = vmatprep.subr.mxu0 %v1757
        %5712 = vmatpush1.msra.mxu0 %v1756
        %5713 = vmatprep.subr.mxu0 %v1885
        %5714 = vmatpush1.msra.mxu0 %v1884
        %5715 = vmatprep.subr.mxu0 %v2013
        %5716 = vmatpush1.msra.mxu0 %v2012
        %5717 = vmatprep.subr.mxu0 %v2141
        %5718 = vmatpush1.msra.mxu0 %v2140
        %5719 = vmatprep.subr.mxu0 0.0
        %5720 = vmatpush1.msra.mxu0 0.0
        %5721 = vmatprep.subr.mxu0 0.0
        %5722 = vmatpush1.msra.mxu0 0.0
        %5723 = vmatprep.subr.mxu0 0.0
        %5724 = vmatpush1.msra.mxu0 0.0
        %5725 = vmatprep.subr.mxu0 0.0
        %5726 = vmatpush1.msra.mxu0 0.0
        %5727 = vmatprep.subr.mxu0 0.0
        %5728 = vmatpush1.msra.mxu0 0.0
        %5729 = vmatprep.subr.mxu0 0.0
        %5730 = vmatpush1.msra.mxu0 0.0
        %5731 = vmatprep.subr.mxu0 0.0
        %5732 = vmatpush1.msra.mxu0 0.0
        %5733 = vmatprep.subr.mxu0 0.0
        %5734 = vmatpush1.msra.mxu0 0.0
        %5735 = vmatprep.subr.mxu0 0.0
        %5736 = vmatpush1.msra.mxu0 0.0
        %5737 = vmatprep.subr.mxu0 0.0
        %5738 = vmatpush1.msra.mxu0 0.0
        %5739 = vmatprep.subr.mxu0 0.0
        %5740 = vmatpush1.msra.mxu0 0.0
        %5741 = vmatprep.subr.mxu0 0.0
        %5742 = vmatpush1.msra.mxu0 0.0
        %5743 = vmatprep.subr.mxu0 0.0
        %5744 = vmatpush1.msra.mxu0 0.0
        %5745 = vmatprep.subr.mxu0 0.0
        %5746 = vmatpush1.msra.mxu0 0.0
        %5747 = vmatprep.subr.mxu0 0.0
        %5748 = vmatpush1.msra.mxu0 0.0
        %5749 = vmatprep.subr.mxu0 0.0
        %5750 = vmatpush1.msra.mxu0 0.0
        %5751 = vmatprep.subr.mxu0 0.0
        %5752 = vmatpush1.msra.mxu0 0.0
        %5753 = vmatprep.subr.mxu0 0.0
        %5754 = vmatpush1.msra.mxu0 0.0
        %5755 = vmatprep.subr.mxu0 0.0
        %5756 = vmatpush1.msra.mxu0 0.0
        %5757 = vmatprep.subr.mxu0 0.0
        %5758 = vmatpush1.msra.mxu0 0.0
        %5759 = vmatprep.subr.mxu0 0.0
        %5760 = vmatpush1.msra.mxu0 0.0
        %5761 = vmatprep.subr.mxu0 0.0
        %5762 = vmatpush1.msra.mxu0 0.0
        %5763 = vmatprep.subr.mxu0 0.0
        %5764 = vmatpush1.msra.mxu0 0.0
        %5765 = vmatprep.subr.mxu0 0.0
        %5766 = vmatpush1.msra.mxu0 0.0
        %5767 = vmatprep.mubr.f32.mxu0 0.0
        %5768 = vmatmul.mubr.f32.gmra.mrb[0].mxu0 %v2861
        %v5769 = vpop.f32.mrb[0].mxu0
        %v5770 = vadd.f32 %v2543, %v5769
        %v5771 = vpop.f32.mrb[0].mxu0
        %v5772 = vadd.f32 %v2547, %v5771
        %5773 = vdwg.mxu0
        %5774 = vmatprep.subr.mxu0 %v1247
        %5775 = vmatpush1.msra.mxu0 %v1246
        %5776 = vmatprep.subr.mxu0 %v1375
        %5777 = vmatpush1.msra.mxu0 %v1374
        %5778 = vmatprep.subr.mxu0 %v1503
        %5779 = vmatpush1.msra.mxu0 %v1502
        %5780 = vmatprep.subr.mxu0 %v1631
        %5781 = vmatpush1.msra.mxu0 %v1630
        %5782 = vmatprep.subr.mxu0 %v1759
        %5783 = vmatpush1.msra.mxu0 %v1758
        %5784 = vmatprep.subr.mxu0 %v1887
        %5785 = vmatpush1.msra.mxu0 %v1886
        %5786 = vmatprep.subr.mxu0 %v2015
        %5787 = vmatpush1.msra.mxu0 %v2014
        %5788 = vmatprep.subr.mxu0 %v2143
        %5789 = vmatpush1.msra.mxu0 %v2142
        %5790 = vmatprep.subr.mxu0 0.0
        %5791 = vmatpush1.msra.mxu0 0.0
        %5792 = vmatprep.subr.mxu0 0.0
        %5793 = vmatpush1.msra.mxu0 0.0
        %5794 = vmatprep.subr.mxu0 0.0
        %5795 = vmatpush1.msra.mxu0 0.0
        %5796 = vmatprep.subr.mxu0 0.0
        %5797 = vmatpush1.msra.mxu0 0.0
        %5798 = vmatprep.subr.mxu0 0.0
        %5799 = vmatpush1.msra.mxu0 0.0
        %5800 = vmatprep.subr.mxu0 0.0
        %5801 = vmatpush1.msra.mxu0 0.0
        %5802 = vmatprep.subr.mxu0 0.0
        %5803 = vmatpush1.msra.mxu0 0.0
        %5804 = vmatprep.subr.mxu0 0.0
        %5805 = vmatpush1.msra.mxu0 0.0
        %5806 = vmatprep.subr.mxu0 0.0
        %5807 = vmatpush1.msra.mxu0 0.0
        %5808 = vmatprep.subr.mxu0 0.0
        %5809 = vmatpush1.msra.mxu0 0.0
        %5810 = vmatprep.subr.mxu0 0.0
        %5811 = vmatpush1.msra.mxu0 0.0
        %5812 = vmatprep.subr.mxu0 0.0
        %5813 = vmatpush1.msra.mxu0 0.0
        %5814 = vmatprep.subr.mxu0 0.0
        %5815 = vmatpush1.msra.mxu0 0.0
        %5816 = vmatprep.subr.mxu0 0.0
        %5817 = vmatpush1.msra.mxu0 0.0
        %5818 = vmatprep.subr.mxu0 0.0
        %5819 = vmatpush1.msra.mxu0 0.0
        %5820 = vmatprep.subr.mxu0 0.0
        %5821 = vmatpush1.msra.mxu0 0.0
        %5822 = vmatprep.subr.mxu0 0.0
        %5823 = vmatpush1.msra.mxu0 0.0
        %5824 = vmatprep.subr.mxu0 0.0
        %5825 = vmatpush1.msra.mxu0 0.0
        %5826 = vmatprep.subr.mxu0 0.0
        %5827 = vmatpush1.msra.mxu0 0.0
        %5828 = vmatprep.subr.mxu0 0.0
        %5829 = vmatpush1.msra.mxu0 0.0
        %5830 = vmatprep.subr.mxu0 0.0
        %5831 = vmatpush1.msra.mxu0 0.0
        %5832 = vmatprep.subr.mxu0 0.0
        %5833 = vmatpush1.msra.mxu0 0.0
        %5834 = vmatprep.subr.mxu0 0.0
        %5835 = vmatpush1.msra.mxu0 0.0
        %5836 = vmatprep.subr.mxu0 0.0
        %5837 = vmatpush1.msra.mxu0 0.0
        %5838 = vmatprep.mubr.f32.mxu0 0.0
        %5839 = vmatmul.mubr.f32.gmra.mrb[0].mxu0 %v2861
        %v5840 = vpop.f32.mrb[0].mxu0
        %v5841 = vadd.f32 %v2551, %v5840
        %v5842 = vpop.f32.mrb[0].mxu0
        %v5843 = vadd.f32 %v2555, %v5842
        %5844 = vdwg.mxu0
        %5845 = vmatprep.subr.mxu0 %v1249
        %5846 = vmatpush1.msra.mxu0 %v1248
        %5847 = vmatprep.subr.mxu0 %v1377
        %5848 = vmatpush1.msra.mxu0 %v1376
        %5849 = vmatprep.subr.mxu0 %v1505
        %5850 = vmatpush1.msra.mxu0 %v1504
        %5851 = vmatprep.subr.mxu0 %v1633
        %5852 = vmatpush1.msra.mxu0 %v1632
        %5853 = vmatprep.subr.mxu0 %v1761
        %5854 = vmatpush1.msra.mxu0 %v1760
        %5855 = vmatprep.subr.mxu0 %v1889
        %5856 = vmatpush1.msra.mxu0 %v1888
        %5857 = vmatprep.subr.mxu0 %v2017
        %5858 = vmatpush1.msra.mxu0 %v2016
        %5859 = vmatprep.subr.mxu0 %v2145
        %5860 = vmatpush1.msra.mxu0 %v2144
        %5861 = vmatprep.subr.mxu0 0.0
        %5862 = vmatpush1.msra.mxu0 0.0
        %5863 = vmatprep.subr.mxu0 0.0
        %5864 = vmatpush1.msra.mxu0 0.0
        %5865 = vmatprep.subr.mxu0 0.0
        %5866 = vmatpush1.msra.mxu0 0.0
        %5867 = vmatprep.subr.mxu0 0.0
        %5868 = vmatpush1.msra.mxu0 0.0
        %5869 = vmatprep.subr.mxu0 0.0
        %5870 = vmatpush1.msra.mxu0 0.0
        %5871 = vmatprep.subr.mxu0 0.0
        %5872 = vmatpush1.msra.mxu0 0.0
        %5873 = vmatprep.subr.mxu0 0.0
        %5874 = vmatpush1.msra.mxu0 0.0
        %5875 = vmatprep.subr.mxu0 0.0
        %5876 = vmatpush1.msra.mxu0 0.0
        %5877 = vmatprep.subr.mxu0 0.0
        %5878 = vmatpush1.msra.mxu0 0.0
        %5879 = vmatprep.subr.mxu0 0.0
        %5880 = vmatpush1.msra.mxu0 0.0
        %5881 = vmatprep.subr.mxu0 0.0
        %5882 = vmatpush1.msra.mxu0 0.0
        %5883 = vmatprep.subr.mxu0 0.0
        %5884 = vmatpush1.msra.mxu0 0.0
        %5885 = vmatprep.subr.mxu0 0.0
        %5886 = vmatpush1.msra.mxu0 0.0
        %5887 = vmatprep.subr.mxu0 0.0
        %5888 = vmatpush1.msra.mxu0 0.0
        %5889 = vmatprep.subr.mxu0 0.0
        %5890 = vmatpush1.msra.mxu0 0.0
        %5891 = vmatprep.subr.mxu0 0.0
        %5892 = vmatpush1.msra.mxu0 0.0
        %5893 = vmatprep.subr.mxu0 0.0
        %5894 = vmatpush1.msra.mxu0 0.0
        %5895 = vmatprep.subr.mxu0 0.0
        %5896 = vmatpush1.msra.mxu0 0.0
        %5897 = vmatprep.subr.mxu0 0.0
        %5898 = vmatpush1.msra.mxu0 0.0
        %5899 = vmatprep.subr.mxu0 0.0
        %5900 = vmatpush1.msra.mxu0 0.0
        %5901 = vmatprep.subr.mxu0 0.0
        %5902 = vmatpush1.msra.mxu0 0.0
        %5903 = vmatprep.subr.mxu0 0.0
        %5904 = vmatpush1.msra.mxu0 0.0
        %5905 = vmatprep.subr.mxu0 0.0
        %5906 = vmatpush1.msra.mxu0 0.0
        %5907 = vmatprep.subr.mxu0 0.0
        %5908 = vmatpush1.msra.mxu0 0.0
        %5909 = vmatprep.mubr.f32.mxu0 0.0
        %5910 = vmatmul.mubr.f32.gmra.mrb[0].mxu0 %v2861
        %v5911 = vpop.f32.mrb[0].mxu0
        %v5912 = vadd.f32 %v2559, %v5911
        %v5913 = vpop.f32.mrb[0].mxu0
        %v5914 = vadd.f32 %v2563, %v5913
        %5915 = vdwg.mxu0
        %5916 = vmatprep.subr.mxu0 %v1251
        %5917 = vmatpush1.msra.mxu0 %v1250
        %5918 = vmatprep.subr.mxu0 %v1379
        %5919 = vmatpush1.msra.mxu0 %v1378
        %5920 = vmatprep.subr.mxu0 %v1507
        %5921 = vmatpush1.msra.mxu0 %v1506
        %5922 = vmatprep.subr.mxu0 %v1635
        %5923 = vmatpush1.msra.mxu0 %v1634
        %5924 = vmatprep.subr.mxu0 %v1763
        %5925 = vmatpush1.msra.mxu0 %v1762
        %5926 = vmatprep.subr.mxu0 %v1891
        %5927 = vmatpush1.msra.mxu0 %v1890
        %5928 = vmatprep.subr.mxu0 %v2019
        %5929 = vmatpush1.msra.mxu0 %v2018
        %5930 = vmatprep.subr.mxu0 %v2147
        %5931 = vmatpush1.msra.mxu0 %v2146
        %5932 = vmatprep.subr.mxu0 0.0
        %5933 = vmatpush1.msra.mxu0 0.0
        %5934 = vmatprep.subr.mxu0 0.0
        %5935 = vmatpush1.msra.mxu0 0.0
        %5936 = vmatprep.subr.mxu0 0.0
        %5937 = vmatpush1.msra.mxu0 0.0
        %5938 = vmatprep.subr.mxu0 0.0
        %5939 = vmatpush1.msra.mxu0 0.0
        %5940 = vmatprep.subr.mxu0 0.0
        %5941 = vmatpush1.msra.mxu0 0.0
        %5942 = vmatprep.subr.mxu0 0.0
        %5943 = vmatpush1.msra.mxu0 0.0
        %5944 = vmatprep.subr.mxu0 0.0
        %5945 = vmatpush1.msra.mxu0 0.0
        %5946 = vmatprep.subr.mxu0 0.0
        %5947 = vmatpush1.msra.mxu0 0.0
        %5948 = vmatprep.subr.mxu0 0.0
        %5949 = vmatpush1.msra.mxu0 0.0
        %5950 = vmatprep.subr.mxu0 0.0
        %5951 = vmatpush1.msra.mxu0 0.0
        %5952 = vmatprep.subr.mxu0 0.0
        %5953 = vmatpush1.msra.mxu0 0.0
        %5954 = vmatprep.subr.mxu0 0.0
        %5955 = vmatpush1.msra.mxu0 0.0
        %5956 = vmatprep.subr.mxu0 0.0
        %5957 = vmatpush1.msra.mxu0 0.0
        %5958 = vmatprep.subr.mxu0 0.0
        %5959 = vmatpush1.msra.mxu0 0.0
        %5960 = vmatprep.subr.mxu0 0.0
        %5961 = vmatpush1.msra.mxu0 0.0
        %5962 = vmatprep.subr.mxu0 0.0
        %5963 = vmatpush1.msra.mxu0 0.0
        %5964 = vmatprep.subr.mxu0 0.0
        %5965 = vmatpush1.msra.mxu0 0.0
        %5966 = vmatprep.subr.mxu0 0.0
        %5967 = vmatpush1.msra.mxu0 0.0
        %5968 = vmatprep.subr.mxu0 0.0
        %5969 = vmatpush1.msra.mxu0 0.0
        %5970 = vmatprep.subr.mxu0 0.0
        %5971 = vmatpush1.msra.mxu0 0.0
        %5972 = vmatprep.subr.mxu0 0.0
        %5973 = vmatpush1.msra.mxu0 0.0
        %5974 = vmatprep.subr.mxu0 0.0
        %5975 = vmatpush1.msra.mxu0 0.0
        %5976 = vmatprep.subr.mxu0 0.0
        %5977 = vmatpush1.msra.mxu0 0.0
        %5978 = vmatprep.subr.mxu0 0.0
        %5979 = vmatpush1.msra.mxu0 0.0
        %5980 = vmatprep.mubr.f32.mxu0 0.0
        %5981 = vmatmul.mubr.f32.gmra.mrb[0].mxu0 %v2861
        %v5982 = vpop.f32.mrb[0].mxu0
        %v5983 = vadd.f32 %v2567, %v5982
        %v5984 = vpop.f32.mrb[0].mxu0
        %v5985 = vadd.f32 %v2571, %v5984
        %5986 = vdwg.mxu0
        %5987 = vmatprep.subr.mxu0 %v1253
        %5988 = vmatpush1.msra.mxu0 %v1252
        %5989 = vmatprep.subr.mxu0 %v1381
        %5990 = vmatpush1.msra.mxu0 %v1380
        %5991 = vmatprep.subr.mxu0 %v1509
        %5992 = vmatpush1.msra.mxu0 %v1508
        %5993 = vmatprep.subr.mxu0 %v1637
        %5994 = vmatpush1.msra.mxu0 %v1636
        %5995 = vmatprep.subr.mxu0 %v1765
        %5996 = vmatpush1.msra.mxu0 %v1764
        %5997 = vmatprep.subr.mxu0 %v1893
        %5998 = vmatpush1.msra.mxu0 %v1892
        %5999 = vmatprep.subr.mxu0 %v2021
        %6000 = vmatpush1.msra.mxu0 %v2020
        %6001 = vmatprep.subr.mxu0 %v2149
        %6002 = vmatpush1.msra.mxu0 %v2148
        %6003 = vmatprep.subr.mxu0 0.0
        %6004 = vmatpush1.msra.mxu0 0.0
        %6005 = vmatprep.subr.mxu0 0.0
        %6006 = vmatpush1.msra.mxu0 0.0
        %6007 = vmatprep.subr.mxu0 0.0
        %6008 = vmatpush1.msra.mxu0 0.0
        %6009 = vmatprep.subr.mxu0 0.0
        %6010 = vmatpush1.msra.mxu0 0.0
        %6011 = vmatprep.subr.mxu0 0.0
        %6012 = vmatpush1.msra.mxu0 0.0
        %6013 = vmatprep.subr.mxu0 0.0
        %6014 = vmatpush1.msra.mxu0 0.0
        %6015 = vmatprep.subr.mxu0 0.0
        %6016 = vmatpush1.msra.mxu0 0.0
        %6017 = vmatprep.subr.mxu0 0.0
        %6018 = vmatpush1.msra.mxu0 0.0
        %6019 = vmatprep.subr.mxu0 0.0
        %6020 = vmatpush1.msra.mxu0 0.0
        %6021 = vmatprep.subr.mxu0 0.0
        %6022 = vmatpush1.msra.mxu0 0.0
        %6023 = vmatprep.subr.mxu0 0.0
        %6024 = vmatpush1.msra.mxu0 0.0
        %6025 = vmatprep.subr.mxu0 0.0
        %6026 = vmatpush1.msra.mxu0 0.0
        %6027 = vmatprep.subr.mxu0 0.0
        %6028 = vmatpush1.msra.mxu0 0.0
        %6029 = vmatprep.subr.mxu0 0.0
        %6030 = vmatpush1.msra.mxu0 0.0
        %6031 = vmatprep.subr.mxu0 0.0
        %6032 = vmatpush1.msra.mxu0 0.0
        %6033 = vmatprep.subr.mxu0 0.0
        %6034 = vmatpush1.msra.mxu0 0.0
        %6035 = vmatprep.subr.mxu0 0.0
        %6036 = vmatpush1.msra.mxu0 0.0
        %6037 = vmatprep.subr.mxu0 0.0
        %6038 = vmatpush1.msra.mxu0 0.0
        %6039 = vmatprep.subr.mxu0 0.0
        %6040 = vmatpush1.msra.mxu0 0.0
        %6041 = vmatprep.subr.mxu0 0.0
        %6042 = vmatpush1.msra.mxu0 0.0
        %6043 = vmatprep.subr.mxu0 0.0
        %6044 = vmatpush1.msra.mxu0 0.0
        %6045 = vmatprep.subr.mxu0 0.0
        %6046 = vmatpush1.msra.mxu0 0.0
        %6047 = vmatprep.subr.mxu0 0.0
        %6048 = vmatpush1.msra.mxu0 0.0
        %6049 = vmatprep.subr.mxu0 0.0
        %6050 = vmatpush1.msra.mxu0 0.0
        %6051 = vmatprep.mubr.f32.mxu0 0.0
        %6052 = vmatmul.mubr.f32.gmra.mrb[0].mxu0 %v2861
        %v6053 = vpop.f32.mrb[0].mxu0
        %v6054 = vadd.f32 %v2575, %v6053
        %v6055 = vpop.f32.mrb[0].mxu0
        %v6056 = vadd.f32 %v2579, %v6055
        %6057 = vdwg.mxu0
        %6058 = vmatprep.subr.mxu0 %v1255
        %6059 = vmatpush1.msra.mxu0 %v1254
        %6060 = vmatprep.subr.mxu0 %v1383
        %6061 = vmatpush1.msra.mxu0 %v1382
        %6062 = vmatprep.subr.mxu0 %v1511
        %6063 = vmatpush1.msra.mxu0 %v1510
        %6064 = vmatprep.subr.mxu0 %v1639
        %6065 = vmatpush1.msra.mxu0 %v1638
        %6066 = vmatprep.subr.mxu0 %v1767
        %6067 = vmatpush1.msra.mxu0 %v1766
        %6068 = vmatprep.subr.mxu0 %v1895
        %6069 = vmatpush1.msra.mxu0 %v1894
        %6070 = vmatprep.subr.mxu0 %v2023
        %6071 = vmatpush1.msra.mxu0 %v2022
        %6072 = vmatprep.subr.mxu0 %v2151
        %6073 = vmatpush1.msra.mxu0 %v2150
        %6074 = vmatprep.subr.mxu0 0.0
        %6075 = vmatpush1.msra.mxu0 0.0
        %6076 = vmatprep.subr.mxu0 0.0
        %6077 = vmatpush1.msra.mxu0 0.0
        %6078 = vmatprep.subr.mxu0 0.0
        %6079 = vmatpush1.msra.mxu0 0.0
        %6080 = vmatprep.subr.mxu0 0.0
        %6081 = vmatpush1.msra.mxu0 0.0
        %6082 = vmatprep.subr.mxu0 0.0
        %6083 = vmatpush1.msra.mxu0 0.0
        %6084 = vmatprep.subr.mxu0 0.0
        %6085 = vmatpush1.msra.mxu0 0.0
        %6086 = vmatprep.subr.mxu0 0.0
        %6087 = vmatpush1.msra.mxu0 0.0
        %6088 = vmatprep.subr.mxu0 0.0
        %6089 = vmatpush1.msra.mxu0 0.0
        %6090 = vmatprep.subr.mxu0 0.0
        %6091 = vmatpush1.msra.mxu0 0.0
        %6092 = vmatprep.subr.mxu0 0.0
        %6093 = vmatpush1.msra.mxu0 0.0
        %6094 = vmatprep.subr.mxu0 0.0
        %6095 = vmatpush1.msra.mxu0 0.0
        %6096 = vmatprep.subr.mxu0 0.0
        %6097 = vmatpush1.msra.mxu0 0.0
        %6098 = vmatprep.subr.mxu0 0.0
        %6099 = vmatpush1.msra.mxu0 0.0
        %6100 = vmatprep.subr.mxu0 0.0
        %6101 = vmatpush1.msra.mxu0 0.0
        %6102 = vmatprep.subr.mxu0 0.0
        %6103 = vmatpush1.msra.mxu0 0.0
        %6104 = vmatprep.subr.mxu0 0.0
        %6105 = vmatpush1.msra.mxu0 0.0
        %6106 = vmatprep.subr.mxu0 0.0
        %6107 = vmatpush1.msra.mxu0 0.0
        %6108 = vmatprep.subr.mxu0 0.0
        %6109 = vmatpush1.msra.mxu0 0.0
        %6110 = vmatprep.subr.mxu0 0.0
        %6111 = vmatpush1.msra.mxu0 0.0
        %6112 = vmatprep.subr.mxu0 0.0
        %6113 = vmatpush1.msra.mxu0 0.0
        %6114 = vmatprep.subr.mxu0 0.0
        %6115 = vmatpush1.msra.mxu0 0.0
        %6116 = vmatprep.subr.mxu0 0.0
        %6117 = vmatpush1.msra.mxu0 0.0
        %6118 = vmatprep.subr.mxu0 0.0
        %6119 = vmatpush1.msra.mxu0 0.0
        %6120 = vmatprep.subr.mxu0 0.0
        %6121 = vmatpush1.msra.mxu0 0.0
        %6122 = vmatprep.mubr.f32.mxu0 0.0
        %6123 = vmatmul.mubr.f32.gmra.mrb[0].mxu0 %v2861
        %v6124 = vpop.f32.mrb[0].mxu0
        %v6125 = vadd.f32 %v2583, %v6124
        %v6126 = vpop.f32.mrb[0].mxu0
        %v6127 = vadd.f32 %v2587, %v6126
        %6128 = vdwg.mxu0
        %6129 = vmatprep.subr.mxu0 %v1257
        %6130 = vmatpush1.msra.mxu0 %v1256
        %6131 = vmatprep.subr.mxu0 %v1385
        %6132 = vmatpush1.msra.mxu0 %v1384
        %6133 = vmatprep.subr.mxu0 %v1513
        %6134 = vmatpush1.msra.mxu0 %v1512
        %6135 = vmatprep.subr.mxu0 %v1641
        %6136 = vmatpush1.msra.mxu0 %v1640
        %6137 = vmatprep.subr.mxu0 %v1769
        %6138 = vmatpush1.msra.mxu0 %v1768
        %6139 = vmatprep.subr.mxu0 %v1897
        %6140 = vmatpush1.msra.mxu0 %v1896
        %6141 = vmatprep.subr.mxu0 %v2025
        %6142 = vmatpush1.msra.mxu0 %v2024
        %6143 = vmatprep.subr.mxu0 %v2153
        %6144 = vmatpush1.msra.mxu0 %v2152
        %6145 = vmatprep.subr.mxu0 0.0
        %6146 = vmatpush1.msra.mxu0 0.0
        %6147 = vmatprep.subr.mxu0 0.0
        %6148 = vmatpush1.msra.mxu0 0.0
        %6149 = vmatprep.subr.mxu0 0.0
        %6150 = vmatpush1.msra.mxu0 0.0
        %6151 = vmatprep.subr.mxu0 0.0
        %6152 = vmatpush1.msra.mxu0 0.0
        %6153 = vmatprep.subr.mxu0 0.0
        %6154 = vmatpush1.msra.mxu0 0.0
        %6155 = vmatprep.subr.mxu0 0.0
        %6156 = vmatpush1.msra.mxu0 0.0
        %6157 = vmatprep.subr.mxu0 0.0
        %6158 = vmatpush1.msra.mxu0 0.0
        %6159 = vmatprep.subr.mxu0 0.0
        %6160 = vmatpush1.msra.mxu0 0.0
        %6161 = vmatprep.subr.mxu0 0.0
        %6162 = vmatpush1.msra.mxu0 0.0
        %6163 = vmatprep.subr.mxu0 0.0
        %6164 = vmatpush1.msra.mxu0 0.0
        %6165 = vmatprep.subr.mxu0 0.0
        %6166 = vmatpush1.msra.mxu0 0.0
        %6167 = vmatprep.subr.mxu0 0.0
        %6168 = vmatpush1.msra.mxu0 0.0
        %6169 = vmatprep.subr.mxu0 0.0
        %6170 = vmatpush1.msra.mxu0 0.0
        %6171 = vmatprep.subr.mxu0 0.0
        %6172 = vmatpush1.msra.mxu0 0.0
        %6173 = vmatprep.subr.mxu0 0.0
        %6174 = vmatpush1.msra.mxu0 0.0
        %6175 = vmatprep.subr.mxu0 0.0
        %6176 = vmatpush1.msra.mxu0 0.0
        %6177 = vmatprep.subr.mxu0 0.0
        %6178 = vmatpush1.msra.mxu0 0.0
        %6179 = vmatprep.subr.mxu0 0.0
        %6180 = vmatpush1.msra.mxu0 0.0
        %6181 = vmatprep.subr.mxu0 0.0
        %6182 = vmatpush1.msra.mxu0 0.0
        %6183 = vmatprep.subr.mxu0 0.0
        %6184 = vmatpush1.msra.mxu0 0.0
        %6185 = vmatprep.subr.mxu0 0.0
        %6186 = vmatpush1.msra.mxu0 0.0
        %6187 = vmatprep.subr.mxu0 0.0
        %6188 = vmatpush1.msra.mxu0 0.0
        %6189 = vmatprep.subr.mxu0 0.0
        %6190 = vmatpush1.msra.mxu0 0.0
        %6191 = vmatprep.subr.mxu0 0.0
        %6192 = vmatpush1.msra.mxu0 0.0
        %6193 = vmatprep.mubr.f32.mxu0 0.0
        %6194 = vmatmul.mubr.f32.gmra.mrb[0].mxu0 %v2861
        %v6195 = vpop.f32.mrb[0].mxu0
        %v6196 = vadd.f32 %v2591, %v6195
        %v6197 = vpop.f32.mrb[0].mxu0
        %v6198 = vadd.f32 %v2595, %v6197
        %6199 = vdwg.mxu0
        %6200 = vmatprep.subr.mxu0 %v1259
        %6201 = vmatpush1.msra.mxu0 %v1258
        %6202 = vmatprep.subr.mxu0 %v1387
        %6203 = vmatpush1.msra.mxu0 %v1386
        %6204 = vmatprep.subr.mxu0 %v1515
        %6205 = vmatpush1.msra.mxu0 %v1514
        %6206 = vmatprep.subr.mxu0 %v1643
        %6207 = vmatpush1.msra.mxu0 %v1642
        %6208 = vmatprep.subr.mxu0 %v1771
        %6209 = vmatpush1.msra.mxu0 %v1770
        %6210 = vmatprep.subr.mxu0 %v1899
        %6211 = vmatpush1.msra.mxu0 %v1898
        %6212 = vmatprep.subr.mxu0 %v2027
        %6213 = vmatpush1.msra.mxu0 %v2026
        %6214 = vmatprep.subr.mxu0 %v2155
        %6215 = vmatpush1.msra.mxu0 %v2154
        %6216 = vmatprep.subr.mxu0 0.0
        %6217 = vmatpush1.msra.mxu0 0.0
        %6218 = vmatprep.subr.mxu0 0.0
        %6219 = vmatpush1.msra.mxu0 0.0
        %6220 = vmatprep.subr.mxu0 0.0
        %6221 = vmatpush1.msra.mxu0 0.0
        %6222 = vmatprep.subr.mxu0 0.0
        %6223 = vmatpush1.msra.mxu0 0.0
        %6224 = vmatprep.subr.mxu0 0.0
        %6225 = vmatpush1.msra.mxu0 0.0
        %6226 = vmatprep.subr.mxu0 0.0
        %6227 = vmatpush1.msra.mxu0 0.0
        %6228 = vmatprep.subr.mxu0 0.0
        %6229 = vmatpush1.msra.mxu0 0.0
        %6230 = vmatprep.subr.mxu0 0.0
        %6231 = vmatpush1.msra.mxu0 0.0
        %6232 = vmatprep.subr.mxu0 0.0
        %6233 = vmatpush1.msra.mxu0 0.0
        %6234 = vmatprep.subr.mxu0 0.0
        %6235 = vmatpush1.msra.mxu0 0.0
        %6236 = vmatprep.subr.mxu0 0.0
        %6237 = vmatpush1.msra.mxu0 0.0
        %6238 = vmatprep.subr.mxu0 0.0
        %6239 = vmatpush1.msra.mxu0 0.0
        %6240 = vmatprep.subr.mxu0 0.0
        %6241 = vmatpush1.msra.mxu0 0.0
        %6242 = vmatprep.subr.mxu0 0.0
        %6243 = vmatpush1.msra.mxu0 0.0
        %6244 = vmatprep.subr.mxu0 0.0
        %6245 = vmatpush1.msra.mxu0 0.0
        %6246 = vmatprep.subr.mxu0 0.0
        %6247 = vmatpush1.msra.mxu0 0.0
        %6248 = vmatprep.subr.mxu0 0.0
        %6249 = vmatpush1.msra.mxu0 0.0
        %6250 = vmatprep.subr.mxu0 0.0
        %6251 = vmatpush1.msra.mxu0 0.0
        %6252 = vmatprep.subr.mxu0 0.0
        %6253 = vmatpush1.msra.mxu0 0.0
        %6254 = vmatprep.subr.mxu0 0.0
        %6255 = vmatpush1.msra.mxu0 0.0
        %6256 = vmatprep.subr.mxu0 0.0
        %6257 = vmatpush1.msra.mxu0 0.0
        %6258 = vmatprep.subr.mxu0 0.0
        %6259 = vmatpush1.msra.mxu0 0.0
        %6260 = vmatprep.subr.mxu0 0.0
        %6261 = vmatpush1.msra.mxu0 0.0
        %6262 = vmatprep.subr.mxu0 0.0
        %6263 = vmatpush1.msra.mxu0 0.0
        %6264 = vmatprep.mubr.f32.mxu0 0.0
        %6265 = vmatmul.mubr.f32.gmra.mrb[0].mxu0 %v2861
        %v6266 = vpop.f32.mrb[0].mxu0
        %v6267 = vadd.f32 %v2599, %v6266
        %v6268 = vpop.f32.mrb[0].mxu0
        %v6269 = vadd.f32 %v2603, %v6268
        %6270 = vdwg.mxu0
        %6271 = vmatprep.subr.mxu0 %v1261
        %6272 = vmatpush1.msra.mxu0 %v1260
        %6273 = vmatprep.subr.mxu0 %v1389
        %6274 = vmatpush1.msra.mxu0 %v1388
        %6275 = vmatprep.subr.mxu0 %v1517
        %6276 = vmatpush1.msra.mxu0 %v1516
        %6277 = vmatprep.subr.mxu0 %v1645
        %6278 = vmatpush1.msra.mxu0 %v1644
        %6279 = vmatprep.subr.mxu0 %v1773
        %6280 = vmatpush1.msra.mxu0 %v1772
        %6281 = vmatprep.subr.mxu0 %v1901
        %6282 = vmatpush1.msra.mxu0 %v1900
        %6283 = vmatprep.subr.mxu0 %v2029
        %6284 = vmatpush1.msra.mxu0 %v2028
        %6285 = vmatprep.subr.mxu0 %v2157
        %6286 = vmatpush1.msra.mxu0 %v2156
        %6287 = vmatprep.subr.mxu0 0.0
        %6288 = vmatpush1.msra.mxu0 0.0
        %6289 = vmatprep.subr.mxu0 0.0
        %6290 = vmatpush1.msra.mxu0 0.0
        %6291 = vmatprep.subr.mxu0 0.0
        %6292 = vmatpush1.msra.mxu0 0.0
        %6293 = vmatprep.subr.mxu0 0.0
        %6294 = vmatpush1.msra.mxu0 0.0
        %6295 = vmatprep.subr.mxu0 0.0
        %6296 = vmatpush1.msra.mxu0 0.0
        %6297 = vmatprep.subr.mxu0 0.0
        %6298 = vmatpush1.msra.mxu0 0.0
        %6299 = vmatprep.subr.mxu0 0.0
        %6300 = vmatpush1.msra.mxu0 0.0
        %6301 = vmatprep.subr.mxu0 0.0
        %6302 = vmatpush1.msra.mxu0 0.0
        %6303 = vmatprep.subr.mxu0 0.0
        %6304 = vmatpush1.msra.mxu0 0.0
        %6305 = vmatprep.subr.mxu0 0.0
        %6306 = vmatpush1.msra.mxu0 0.0
        %6307 = vmatprep.subr.mxu0 0.0
        %6308 = vmatpush1.msra.mxu0 0.0
        %6309 = vmatprep.subr.mxu0 0.0
        %6310 = vmatpush1.msra.mxu0 0.0
        %6311 = vmatprep.subr.mxu0 0.0
        %6312 = vmatpush1.msra.mxu0 0.0
        %6313 = vmatprep.subr.mxu0 0.0
        %6314 = vmatpush1.msra.mxu0 0.0
        %6315 = vmatprep.subr.mxu0 0.0
        %6316 = vmatpush1.msra.mxu0 0.0
        %6317 = vmatprep.subr.mxu0 0.0
        %6318 = vmatpush1.msra.mxu0 0.0
        %6319 = vmatprep.subr.mxu0 0.0
        %6320 = vmatpush1.msra.mxu0 0.0
        %6321 = vmatprep.subr.mxu0 0.0
        %6322 = vmatpush1.msra.mxu0 0.0
        %6323 = vmatprep.subr.mxu0 0.0
        %6324 = vmatpush1.msra.mxu0 0.0
        %6325 = vmatprep.subr.mxu0 0.0
        %6326 = vmatpush1.msra.mxu0 0.0
        %6327 = vmatprep.subr.mxu0 0.0
        %6328 = vmatpush1.msra.mxu0 0.0
        %6329 = vmatprep.subr.mxu0 0.0
        %6330 = vmatpush1.msra.mxu0 0.0
        %6331 = vmatprep.subr.mxu0 0.0
        %6332 = vmatpush1.msra.mxu0 0.0
        %6333 = vmatprep.subr.mxu0 0.0
        %6334 = vmatpush1.msra.mxu0 0.0
        %6335 = vmatprep.mubr.f32.mxu0 0.0
        %6336 = vmatmul.mubr.f32.gmra.mrb[0].mxu0 %v2861
        %v6337 = vpop.f32.mrb[0].mxu0
        %v6338 = vadd.f32 %v2607, %v6337
        %v6339 = vpop.f32.mrb[0].mxu0
        %v6340 = vadd.f32 %v2611, %v6339
        %6341 = vdwg.mxu0
        %6342 = vmatprep.subr.mxu0 %v1263
        %6343 = vmatpush1.msra.mxu0 %v1262
        %6344 = vmatprep.subr.mxu0 %v1391
        %6345 = vmatpush1.msra.mxu0 %v1390
        %6346 = vmatprep.subr.mxu0 %v1519
        %6347 = vmatpush1.msra.mxu0 %v1518
        %6348 = vmatprep.subr.mxu0 %v1647
        %6349 = vmatpush1.msra.mxu0 %v1646
        %6350 = vmatprep.subr.mxu0 %v1775
        %6351 = vmatpush1.msra.mxu0 %v1774
        %6352 = vmatprep.subr.mxu0 %v1903
        %6353 = vmatpush1.msra.mxu0 %v1902
        %6354 = vmatprep.subr.mxu0 %v2031
        %6355 = vmatpush1.msra.mxu0 %v2030
        %6356 = vmatprep.subr.mxu0 %v2159
        %6357 = vmatpush1.msra.mxu0 %v2158
        %6358 = vmatprep.subr.mxu0 0.0
        %6359 = vmatpush1.msra.mxu0 0.0
        %6360 = vmatprep.subr.mxu0 0.0
        %6361 = vmatpush1.msra.mxu0 0.0
        %6362 = vmatprep.subr.mxu0 0.0
        %6363 = vmatpush1.msra.mxu0 0.0
        %6364 = vmatprep.subr.mxu0 0.0
        %6365 = vmatpush1.msra.mxu0 0.0
        %6366 = vmatprep.subr.mxu0 0.0
        %6367 = vmatpush1.msra.mxu0 0.0
        %6368 = vmatprep.subr.mxu0 0.0
        %6369 = vmatpush1.msra.mxu0 0.0
        %6370 = vmatprep.subr.mxu0 0.0
        %6371 = vmatpush1.msra.mxu0 0.0
        %6372 = vmatprep.subr.mxu0 0.0
        %6373 = vmatpush1.msra.mxu0 0.0
        %6374 = vmatprep.subr.mxu0 0.0
        %6375 = vmatpush1.msra.mxu0 0.0
        %6376 = vmatprep.subr.mxu0 0.0
        %6377 = vmatpush1.msra.mxu0 0.0
        %6378 = vmatprep.subr.mxu0 0.0
        %6379 = vmatpush1.msra.mxu0 0.0
        %6380 = vmatprep.subr.mxu0 0.0
        %6381 = vmatpush1.msra.mxu0 0.0
        %6382 = vmatprep.subr.mxu0 0.0
        %6383 = vmatpush1.msra.mxu0 0.0
        %6384 = vmatprep.subr.mxu0 0.0
        %6385 = vmatpush1.msra.mxu0 0.0
        %6386 = vmatprep.subr.mxu0 0.0
        %6387 = vmatpush1.msra.mxu0 0.0
        %6388 = vmatprep.subr.mxu0 0.0
        %6389 = vmatpush1.msra.mxu0 0.0
        %6390 = vmatprep.subr.mxu0 0.0
        %6391 = vmatpush1.msra.mxu0 0.0
        %6392 = vmatprep.subr.mxu0 0.0
        %6393 = vmatpush1.msra.mxu0 0.0
        %6394 = vmatprep.subr.mxu0 0.0
        %6395 = vmatpush1.msra.mxu0 0.0
        %6396 = vmatprep.subr.mxu0 0.0
        %6397 = vmatpush1.msra.mxu0 0.0
        %6398 = vmatprep.subr.mxu0 0.0
        %6399 = vmatpush1.msra.mxu0 0.0
        %6400 = vmatprep.subr.mxu0 0.0
        %6401 = vmatpush1.msra.mxu0 0.0
        %6402 = vmatprep.subr.mxu0 0.0
        %6403 = vmatpush1.msra.mxu0 0.0
        %6404 = vmatprep.subr.mxu0 0.0
        %6405 = vmatpush1.msra.mxu0 0.0
        %6406 = vmatprep.mubr.f32.mxu0 0.0
        %6407 = vmatmul.mubr.f32.gmra.mrb[0].mxu0 %v2861
        %v6408 = vpop.f32.mrb[0].mxu0
        %v6409 = vadd.f32 %v2615, %v6408
        %v6410 = vpop.f32.mrb[0].mxu0
        %v6411 = vadd.f32 %v2619, %v6410
        %6412 = vdwg.mxu0
        %6413 = vmatprep.subr.mxu0 %v1265
        %6414 = vmatpush1.msra.mxu0 %v1264
        %6415 = vmatprep.subr.mxu0 %v1393
        %6416 = vmatpush1.msra.mxu0 %v1392
        %6417 = vmatprep.subr.mxu0 %v1521
        %6418 = vmatpush1.msra.mxu0 %v1520
        %6419 = vmatprep.subr.mxu0 %v1649
        %6420 = vmatpush1.msra.mxu0 %v1648
        %6421 = vmatprep.subr.mxu0 %v1777
        %6422 = vmatpush1.msra.mxu0 %v1776
        %6423 = vmatprep.subr.mxu0 %v1905
        %6424 = vmatpush1.msra.mxu0 %v1904
        %6425 = vmatprep.subr.mxu0 %v2033
        %6426 = vmatpush1.msra.mxu0 %v2032
        %6427 = vmatprep.subr.mxu0 %v2161
        %6428 = vmatpush1.msra.mxu0 %v2160
        %6429 = vmatprep.subr.mxu0 0.0
        %6430 = vmatpush1.msra.mxu0 0.0
        %6431 = vmatprep.subr.mxu0 0.0
        %6432 = vmatpush1.msra.mxu0 0.0
        %6433 = vmatprep.subr.mxu0 0.0
        %6434 = vmatpush1.msra.mxu0 0.0
        %6435 = vmatprep.subr.mxu0 0.0
        %6436 = vmatpush1.msra.mxu0 0.0
        %6437 = vmatprep.subr.mxu0 0.0
        %6438 = vmatpush1.msra.mxu0 0.0
        %6439 = vmatprep.subr.mxu0 0.0
        %6440 = vmatpush1.msra.mxu0 0.0
        %6441 = vmatprep.subr.mxu0 0.0
        %6442 = vmatpush1.msra.mxu0 0.0
        %6443 = vmatprep.subr.mxu0 0.0
        %6444 = vmatpush1.msra.mxu0 0.0
        %6445 = vmatprep.subr.mxu0 0.0
        %6446 = vmatpush1.msra.mxu0 0.0
        %6447 = vmatprep.subr.mxu0 0.0
        %6448 = vmatpush1.msra.mxu0 0.0
        %6449 = vmatprep.subr.mxu0 0.0
        %6450 = vmatpush1.msra.mxu0 0.0
        %6451 = vmatprep.subr.mxu0 0.0
        %6452 = vmatpush1.msra.mxu0 0.0
        %6453 = vmatprep.subr.mxu0 0.0
        %6454 = vmatpush1.msra.mxu0 0.0
        %6455 = vmatprep.subr.mxu0 0.0
        %6456 = vmatpush1.msra.mxu0 0.0
        %6457 = vmatprep.subr.mxu0 0.0
        %6458 = vmatpush1.msra.mxu0 0.0
        %6459 = vmatprep.subr.mxu0 0.0
        %6460 = vmatpush1.msra.mxu0 0.0
        %6461 = vmatprep.subr.mxu0 0.0
        %6462 = vmatpush1.msra.mxu0 0.0
        %6463 = vmatprep.subr.mxu0 0.0
        %6464 = vmatpush1.msra.mxu0 0.0
        %6465 = vmatprep.subr.mxu0 0.0
        %6466 = vmatpush1.msra.mxu0 0.0
        %6467 = vmatprep.subr.mxu0 0.0
        %6468 = vmatpush1.msra.mxu0 0.0
        %6469 = vmatprep.subr.mxu0 0.0
        %6470 = vmatpush1.msra.mxu0 0.0
        %6471 = vmatprep.subr.mxu0 0.0
        %6472 = vmatpush1.msra.mxu0 0.0
        %6473 = vmatprep.subr.mxu0 0.0
        %6474 = vmatpush1.msra.mxu0 0.0
        %6475 = vmatprep.subr.mxu0 0.0
        %6476 = vmatpush1.msra.mxu0 0.0
        %6477 = vmatprep.mubr.f32.mxu0 0.0
        %6478 = vmatmul.mubr.f32.gmra.mrb[0].mxu0 %v2861
        %v6479 = vpop.f32.mrb[0].mxu0
        %v6480 = vadd.f32 %v2623, %v6479
        %v6481 = vpop.f32.mrb[0].mxu0
        %v6482 = vadd.f32 %v2627, %v6481
        %6483 = vdwg.mxu0
        %6484 = vmatprep.subr.mxu0 %v1267
        %6485 = vmatpush1.msra.mxu0 %v1266
        %6486 = vmatprep.subr.mxu0 %v1395
        %6487 = vmatpush1.msra.mxu0 %v1394
        %6488 = vmatprep.subr.mxu0 %v1523
        %6489 = vmatpush1.msra.mxu0 %v1522
        %6490 = vmatprep.subr.mxu0 %v1651
        %6491 = vmatpush1.msra.mxu0 %v1650
        %6492 = vmatprep.subr.mxu0 %v1779
        %6493 = vmatpush1.msra.mxu0 %v1778
        %6494 = vmatprep.subr.mxu0 %v1907
        %6495 = vmatpush1.msra.mxu0 %v1906
        %6496 = vmatprep.subr.mxu0 %v2035
        %6497 = vmatpush1.msra.mxu0 %v2034
        %6498 = vmatprep.subr.mxu0 %v2163
        %6499 = vmatpush1.msra.mxu0 %v2162
        %6500 = vmatprep.subr.mxu0 0.0
        %6501 = vmatpush1.msra.mxu0 0.0
        %6502 = vmatprep.subr.mxu0 0.0
        %6503 = vmatpush1.msra.mxu0 0.0
        %6504 = vmatprep.subr.mxu0 0.0
        %6505 = vmatpush1.msra.mxu0 0.0
        %6506 = vmatprep.subr.mxu0 0.0
        %6507 = vmatpush1.msra.mxu0 0.0
        %6508 = vmatprep.subr.mxu0 0.0
        %6509 = vmatpush1.msra.mxu0 0.0
        %6510 = vmatprep.subr.mxu0 0.0
        %6511 = vmatpush1.msra.mxu0 0.0
        %6512 = vmatprep.subr.mxu0 0.0
        %6513 = vmatpush1.msra.mxu0 0.0
        %6514 = vmatprep.subr.mxu0 0.0
        %6515 = vmatpush1.msra.mxu0 0.0
        %6516 = vmatprep.subr.mxu0 0.0
        %6517 = vmatpush1.msra.mxu0 0.0
        %6518 = vmatprep.subr.mxu0 0.0
        %6519 = vmatpush1.msra.mxu0 0.0
        %6520 = vmatprep.subr.mxu0 0.0
        %6521 = vmatpush1.msra.mxu0 0.0
        %6522 = vmatprep.subr.mxu0 0.0
        %6523 = vmatpush1.msra.mxu0 0.0
        %6524 = vmatprep.subr.mxu0 0.0
        %6525 = vmatpush1.msra.mxu0 0.0
        %6526 = vmatprep.subr.mxu0 0.0
        %6527 = vmatpush1.msra.mxu0 0.0
        %6528 = vmatprep.subr.mxu0 0.0
        %6529 = vmatpush1.msra.mxu0 0.0
        %6530 = vmatprep.subr.mxu0 0.0
        %6531 = vmatpush1.msra.mxu0 0.0
        %6532 = vmatprep.subr.mxu0 0.0
        %6533 = vmatpush1.msra.mxu0 0.0
        %6534 = vmatprep.subr.mxu0 0.0
        %6535 = vmatpush1.msra.mxu0 0.0
        %6536 = vmatprep.subr.mxu0 0.0
        %6537 = vmatpush1.msra.mxu0 0.0
        %6538 = vmatprep.subr.mxu0 0.0
        %6539 = vmatpush1.msra.mxu0 0.0
        %6540 = vmatprep.subr.mxu0 0.0
        %6541 = vmatpush1.msra.mxu0 0.0
        %6542 = vmatprep.subr.mxu0 0.0
        %6543 = vmatpush1.msra.mxu0 0.0
        %6544 = vmatprep.subr.mxu0 0.0
        %6545 = vmatpush1.msra.mxu0 0.0
        %6546 = vmatprep.subr.mxu0 0.0
        %6547 = vmatpush1.msra.mxu0 0.0
        %6548 = vmatprep.mubr.f32.mxu0 0.0
        %6549 = vmatmul.mubr.f32.gmra.mrb[0].mxu0 %v2861
        %v6550 = vpop.f32.mrb[0].mxu0
        %v6551 = vadd.f32 %v2631, %v6550
        %v6552 = vpop.f32.mrb[0].mxu0
        %v6553 = vadd.f32 %v2635, %v6552
        %6554 = vdwg.mxu0
        %6555 = vmatprep.subr.mxu0 %v1269
        %6556 = vmatpush1.msra.mxu0 %v1268
        %6557 = vmatprep.subr.mxu0 %v1397
        %6558 = vmatpush1.msra.mxu0 %v1396
        %6559 = vmatprep.subr.mxu0 %v1525
        %6560 = vmatpush1.msra.mxu0 %v1524
        %6561 = vmatprep.subr.mxu0 %v1653
        %6562 = vmatpush1.msra.mxu0 %v1652
        %6563 = vmatprep.subr.mxu0 %v1781
        %6564 = vmatpush1.msra.mxu0 %v1780
        %6565 = vmatprep.subr.mxu0 %v1909
        %6566 = vmatpush1.msra.mxu0 %v1908
        %6567 = vmatprep.subr.mxu0 %v2037
        %6568 = vmatpush1.msra.mxu0 %v2036
        %6569 = vmatprep.subr.mxu0 %v2165
        %6570 = vmatpush1.msra.mxu0 %v2164
        %6571 = vmatprep.subr.mxu0 0.0
        %6572 = vmatpush1.msra.mxu0 0.0
        %6573 = vmatprep.subr.mxu0 0.0
        %6574 = vmatpush1.msra.mxu0 0.0
        %6575 = vmatprep.subr.mxu0 0.0
        %6576 = vmatpush1.msra.mxu0 0.0
        %6577 = vmatprep.subr.mxu0 0.0
        %6578 = vmatpush1.msra.mxu0 0.0
        %6579 = vmatprep.subr.mxu0 0.0
        %6580 = vmatpush1.msra.mxu0 0.0
        %6581 = vmatprep.subr.mxu0 0.0
        %6582 = vmatpush1.msra.mxu0 0.0
        %6583 = vmatprep.subr.mxu0 0.0
        %6584 = vmatpush1.msra.mxu0 0.0
        %6585 = vmatprep.subr.mxu0 0.0
        %6586 = vmatpush1.msra.mxu0 0.0
        %6587 = vmatprep.subr.mxu0 0.0
        %6588 = vmatpush1.msra.mxu0 0.0
        %6589 = vmatprep.subr.mxu0 0.0
        %6590 = vmatpush1.msra.mxu0 0.0
        %6591 = vmatprep.subr.mxu0 0.0
        %6592 = vmatpush1.msra.mxu0 0.0
        %6593 = vmatprep.subr.mxu0 0.0
        %6594 = vmatpush1.msra.mxu0 0.0
        %6595 = vmatprep.subr.mxu0 0.0
        %6596 = vmatpush1.msra.mxu0 0.0
        %6597 = vmatprep.subr.mxu0 0.0
        %6598 = vmatpush1.msra.mxu0 0.0
        %6599 = vmatprep.subr.mxu0 0.0
        %6600 = vmatpush1.msra.mxu0 0.0
        %6601 = vmatprep.subr.mxu0 0.0
        %6602 = vmatpush1.msra.mxu0 0.0
        %6603 = vmatprep.subr.mxu0 0.0
        %6604 = vmatpush1.msra.mxu0 0.0
        %6605 = vmatprep.subr.mxu0 0.0
        %6606 = vmatpush1.msra.mxu0 0.0
        %6607 = vmatprep.subr.mxu0 0.0
        %6608 = vmatpush1.msra.mxu0 0.0
        %6609 = vmatprep.subr.mxu0 0.0
        %6610 = vmatpush1.msra.mxu0 0.0
        %6611 = vmatprep.subr.mxu0 0.0
        %6612 = vmatpush1.msra.mxu0 0.0
        %6613 = vmatprep.subr.mxu0 0.0
        %6614 = vmatpush1.msra.mxu0 0.0
        %6615 = vmatprep.subr.mxu0 0.0
        %6616 = vmatpush1.msra.mxu0 0.0
        %6617 = vmatprep.subr.mxu0 0.0
        %6618 = vmatpush1.msra.mxu0 0.0
        %6619 = vmatprep.mubr.f32.mxu0 0.0
        %6620 = vmatmul.mubr.f32.gmra.mrb[0].mxu0 %v2861
        %v6621 = vpop.f32.mrb[0].mxu0
        %v6622 = vadd.f32 %v2639, %v6621
        %v6623 = vpop.f32.mrb[0].mxu0
        %v6624 = vadd.f32 %v2643, %v6623
        %6625 = vdwg.mxu0
        %6626 = vmatprep.subr.mxu0 %v1271
        %6627 = vmatpush1.msra.mxu0 %v1270
        %6628 = vmatprep.subr.mxu0 %v1399
        %6629 = vmatpush1.msra.mxu0 %v1398
        %6630 = vmatprep.subr.mxu0 %v1527
        %6631 = vmatpush1.msra.mxu0 %v1526
        %6632 = vmatprep.subr.mxu0 %v1655
        %6633 = vmatpush1.msra.mxu0 %v1654
        %6634 = vmatprep.subr.mxu0 %v1783
        %6635 = vmatpush1.msra.mxu0 %v1782
        %6636 = vmatprep.subr.mxu0 %v1911
        %6637 = vmatpush1.msra.mxu0 %v1910
        %6638 = vmatprep.subr.mxu0 %v2039
        %6639 = vmatpush1.msra.mxu0 %v2038
        %6640 = vmatprep.subr.mxu0 %v2167
        %6641 = vmatpush1.msra.mxu0 %v2166
        %6642 = vmatprep.subr.mxu0 0.0
        %6643 = vmatpush1.msra.mxu0 0.0
        %6644 = vmatprep.subr.mxu0 0.0
        %6645 = vmatpush1.msra.mxu0 0.0
        %6646 = vmatprep.subr.mxu0 0.0
        %6647 = vmatpush1.msra.mxu0 0.0
        %6648 = vmatprep.subr.mxu0 0.0
        %6649 = vmatpush1.msra.mxu0 0.0
        %6650 = vmatprep.subr.mxu0 0.0
        %6651 = vmatpush1.msra.mxu0 0.0
        %6652 = vmatprep.subr.mxu0 0.0
        %6653 = vmatpush1.msra.mxu0 0.0
        %6654 = vmatprep.subr.mxu0 0.0
        %6655 = vmatpush1.msra.mxu0 0.0
        %6656 = vmatprep.subr.mxu0 0.0
        %6657 = vmatpush1.msra.mxu0 0.0
        %6658 = vmatprep.subr.mxu0 0.0
        %6659 = vmatpush1.msra.mxu0 0.0
        %6660 = vmatprep.subr.mxu0 0.0
        %6661 = vmatpush1.msra.mxu0 0.0
        %6662 = vmatprep.subr.mxu0 0.0
        %6663 = vmatpush1.msra.mxu0 0.0
        %6664 = vmatprep.subr.mxu0 0.0
        %6665 = vmatpush1.msra.mxu0 0.0
        %6666 = vmatprep.subr.mxu0 0.0
        %6667 = vmatpush1.msra.mxu0 0.0
        %6668 = vmatprep.subr.mxu0 0.0
        %6669 = vmatpush1.msra.mxu0 0.0
        %6670 = vmatprep.subr.mxu0 0.0
        %6671 = vmatpush1.msra.mxu0 0.0
        %6672 = vmatprep.subr.mxu0 0.0
        %6673 = vmatpush1.msra.mxu0 0.0
        %6674 = vmatprep.subr.mxu0 0.0
        %6675 = vmatpush1.msra.mxu0 0.0
        %6676 = vmatprep.subr.mxu0 0.0
        %6677 = vmatpush1.msra.mxu0 0.0
        %6678 = vmatprep.subr.mxu0 0.0
        %6679 = vmatpush1.msra.mxu0 0.0
        %6680 = vmatprep.subr.mxu0 0.0
        %6681 = vmatpush1.msra.mxu0 0.0
        %6682 = vmatprep.subr.mxu0 0.0
        %6683 = vmatpush1.msra.mxu0 0.0
        %6684 = vmatprep.subr.mxu0 0.0
        %6685 = vmatpush1.msra.mxu0 0.0
        %6686 = vmatprep.subr.mxu0 0.0
        %6687 = vmatpush1.msra.mxu0 0.0
        %6688 = vmatprep.subr.mxu0 0.0
        %6689 = vmatpush1.msra.mxu0 0.0
        %6690 = vmatprep.mubr.f32.mxu0 0.0
        %6691 = vmatmul.mubr.f32.gmra.mrb[0].mxu0 %v2861
        %v6692 = vpop.f32.mrb[0].mxu0
        %v6693 = vadd.f32 %v2647, %v6692
        %v6694 = vpop.f32.mrb[0].mxu0
        %v6695 = vadd.f32 %v2651, %v6694
        %6696 = vdwg.mxu0
        %6697 = vmatprep.subr.mxu0 %v1273
        %6698 = vmatpush1.msra.mxu0 %v1272
        %6699 = vmatprep.subr.mxu0 %v1401
        %6700 = vmatpush1.msra.mxu0 %v1400
        %6701 = vmatprep.subr.mxu0 %v1529
        %6702 = vmatpush1.msra.mxu0 %v1528
        %6703 = vmatprep.subr.mxu0 %v1657
        %6704 = vmatpush1.msra.mxu0 %v1656
        %6705 = vmatprep.subr.mxu0 %v1785
        %6706 = vmatpush1.msra.mxu0 %v1784
        %6707 = vmatprep.subr.mxu0 %v1913
        %6708 = vmatpush1.msra.mxu0 %v1912
        %6709 = vmatprep.subr.mxu0 %v2041
        %6710 = vmatpush1.msra.mxu0 %v2040
        %6711 = vmatprep.subr.mxu0 %v2169
        %6712 = vmatpush1.msra.mxu0 %v2168
        %6713 = vmatprep.subr.mxu0 0.0
        %6714 = vmatpush1.msra.mxu0 0.0
        %6715 = vmatprep.subr.mxu0 0.0
        %6716 = vmatpush1.msra.mxu0 0.0
        %6717 = vmatprep.subr.mxu0 0.0
        %6718 = vmatpush1.msra.mxu0 0.0
        %6719 = vmatprep.subr.mxu0 0.0
        %6720 = vmatpush1.msra.mxu0 0.0
        %6721 = vmatprep.subr.mxu0 0.0
        %6722 = vmatpush1.msra.mxu0 0.0
        %6723 = vmatprep.subr.mxu0 0.0
        %6724 = vmatpush1.msra.mxu0 0.0
        %6725 = vmatprep.subr.mxu0 0.0
        %6726 = vmatpush1.msra.mxu0 0.0
        %6727 = vmatprep.subr.mxu0 0.0
        %6728 = vmatpush1.msra.mxu0 0.0
        %6729 = vmatprep.subr.mxu0 0.0
        %6730 = vmatpush1.msra.mxu0 0.0
        %6731 = vmatprep.subr.mxu0 0.0
        %6732 = vmatpush1.msra.mxu0 0.0
        %6733 = vmatprep.subr.mxu0 0.0
        %6734 = vmatpush1.msra.mxu0 0.0
        %6735 = vmatprep.subr.mxu0 0.0
        %6736 = vmatpush1.msra.mxu0 0.0
        %6737 = vmatprep.subr.mxu0 0.0
        %6738 = vmatpush1.msra.mxu0 0.0
        %6739 = vmatprep.subr.mxu0 0.0
        %6740 = vmatpush1.msra.mxu0 0.0
        %6741 = vmatprep.subr.mxu0 0.0
        %6742 = vmatpush1.msra.mxu0 0.0
        %6743 = vmatprep.subr.mxu0 0.0
        %6744 = vmatpush1.msra.mxu0 0.0
        %6745 = vmatprep.subr.mxu0 0.0
        %6746 = vmatpush1.msra.mxu0 0.0
        %6747 = vmatprep.subr.mxu0 0.0
        %6748 = vmatpush1.msra.mxu0 0.0
        %6749 = vmatprep.subr.mxu0 0.0
        %6750 = vmatpush1.msra.mxu0 0.0
        %6751 = vmatprep.subr.mxu0 0.0
        %6752 = vmatpush1.msra.mxu0 0.0
        %6753 = vmatprep.subr.mxu0 0.0
        %6754 = vmatpush1.msra.mxu0 0.0
        %6755 = vmatprep.subr.mxu0 0.0
        %6756 = vmatpush1.msra.mxu0 0.0
        %6757 = vmatprep.subr.mxu0 0.0
        %6758 = vmatpush1.msra.mxu0 0.0
        %6759 = vmatprep.subr.mxu0 0.0
        %6760 = vmatpush1.msra.mxu0 0.0
        %6761 = vmatprep.mubr.f32.mxu0 0.0
        %6762 = vmatmul.mubr.f32.gmra.mrb[0].mxu0 %v2861
        %v6763 = vpop.f32.mrb[0].mxu0
        %v6764 = vadd.f32 %v2655, %v6763
        %v6765 = vpop.f32.mrb[0].mxu0
        %v6766 = vadd.f32 %v2659, %v6765
        %6767 = vdwg.mxu0
        %6768 = vmatprep.subr.mxu0 %v1275
        %6769 = vmatpush1.msra.mxu0 %v1274
        %6770 = vmatprep.subr.mxu0 %v1403
        %6771 = vmatpush1.msra.mxu0 %v1402
        %6772 = vmatprep.subr.mxu0 %v1531
        %6773 = vmatpush1.msra.mxu0 %v1530
        %6774 = vmatprep.subr.mxu0 %v1659
        %6775 = vmatpush1.msra.mxu0 %v1658
        %6776 = vmatprep.subr.mxu0 %v1787
        %6777 = vmatpush1.msra.mxu0 %v1786
        %6778 = vmatprep.subr.mxu0 %v1915
        %6779 = vmatpush1.msra.mxu0 %v1914
        %6780 = vmatprep.subr.mxu0 %v2043
        %6781 = vmatpush1.msra.mxu0 %v2042
        %6782 = vmatprep.subr.mxu0 %v2171
        %6783 = vmatpush1.msra.mxu0 %v2170
        %6784 = vmatprep.subr.mxu0 0.0
        %6785 = vmatpush1.msra.mxu0 0.0
        %6786 = vmatprep.subr.mxu0 0.0
        %6787 = vmatpush1.msra.mxu0 0.0
        %6788 = vmatprep.subr.mxu0 0.0
        %6789 = vmatpush1.msra.mxu0 0.0
        %6790 = vmatprep.subr.mxu0 0.0
        %6791 = vmatpush1.msra.mxu0 0.0
        %6792 = vmatprep.subr.mxu0 0.0
        %6793 = vmatpush1.msra.mxu0 0.0
        %6794 = vmatprep.subr.mxu0 0.0
        %6795 = vmatpush1.msra.mxu0 0.0
        %6796 = vmatprep.subr.mxu0 0.0
        %6797 = vmatpush1.msra.mxu0 0.0
        %6798 = vmatprep.subr.mxu0 0.0
        %6799 = vmatpush1.msra.mxu0 0.0
        %6800 = vmatprep.subr.mxu0 0.0
        %6801 = vmatpush1.msra.mxu0 0.0
        %6802 = vmatprep.subr.mxu0 0.0
        %6803 = vmatpush1.msra.mxu0 0.0
        %6804 = vmatprep.subr.mxu0 0.0
        %6805 = vmatpush1.msra.mxu0 0.0
        %6806 = vmatprep.subr.mxu0 0.0
        %6807 = vmatpush1.msra.mxu0 0.0
        %6808 = vmatprep.subr.mxu0 0.0
        %6809 = vmatpush1.msra.mxu0 0.0
        %6810 = vmatprep.subr.mxu0 0.0
        %6811 = vmatpush1.msra.mxu0 0.0
        %6812 = vmatprep.subr.mxu0 0.0
        %6813 = vmatpush1.msra.mxu0 0.0
        %6814 = vmatprep.subr.mxu0 0.0
        %6815 = vmatpush1.msra.mxu0 0.0
        %6816 = vmatprep.subr.mxu0 0.0
        %6817 = vmatpush1.msra.mxu0 0.0
        %6818 = vmatprep.subr.mxu0 0.0
        %6819 = vmatpush1.msra.mxu0 0.0
        %6820 = vmatprep.subr.mxu0 0.0
        %6821 = vmatpush1.msra.mxu0 0.0
        %6822 = vmatprep.subr.mxu0 0.0
        %6823 = vmatpush1.msra.mxu0 0.0
        %6824 = vmatprep.subr.mxu0 0.0
        %6825 = vmatpush1.msra.mxu0 0.0
        %6826 = vmatprep.subr.mxu0 0.0
        %6827 = vmatpush1.msra.mxu0 0.0
        %6828 = vmatprep.subr.mxu0 0.0
        %6829 = vmatpush1.msra.mxu0 0.0
        %6830 = vmatprep.subr.mxu0 0.0
        %6831 = vmatpush1.msra.mxu0 0.0
        %6832 = vmatprep.mubr.f32.mxu0 0.0
        %6833 = vmatmul.mubr.f32.gmra.mrb[0].mxu0 %v2861
        %v6834 = vpop.f32.mrb[0].mxu0
        %v6835 = vadd.f32 %v2663, %v6834
        %v6836 = vpop.f32.mrb[0].mxu0
        %v6837 = vadd.f32 %v2667, %v6836
        %6838 = vdwg.mxu0
        %6839 = vmatprep.subr.mxu0 %v1277
        %6840 = vmatpush1.msra.mxu0 %v1276
        %6841 = vmatprep.subr.mxu0 %v1405
        %6842 = vmatpush1.msra.mxu0 %v1404
        %6843 = vmatprep.subr.mxu0 %v1533
        %6844 = vmatpush1.msra.mxu0 %v1532
        %6845 = vmatprep.subr.mxu0 %v1661
        %6846 = vmatpush1.msra.mxu0 %v1660
        %6847 = vmatprep.subr.mxu0 %v1789
        %6848 = vmatpush1.msra.mxu0 %v1788
        %6849 = vmatprep.subr.mxu0 %v1917
        %6850 = vmatpush1.msra.mxu0 %v1916
        %6851 = vmatprep.subr.mxu0 %v2045
        %6852 = vmatpush1.msra.mxu0 %v2044
        %6853 = vmatprep.subr.mxu0 %v2173
        %6854 = vmatpush1.msra.mxu0 %v2172
        %6855 = vmatprep.subr.mxu0 0.0
        %6856 = vmatpush1.msra.mxu0 0.0
        %6857 = vmatprep.subr.mxu0 0.0
        %6858 = vmatpush1.msra.mxu0 0.0
        %6859 = vmatprep.subr.mxu0 0.0
        %6860 = vmatpush1.msra.mxu0 0.0
        %6861 = vmatprep.subr.mxu0 0.0
        %6862 = vmatpush1.msra.mxu0 0.0
        %6863 = vmatprep.subr.mxu0 0.0
        %6864 = vmatpush1.msra.mxu0 0.0
        %6865 = vmatprep.subr.mxu0 0.0
        %6866 = vmatpush1.msra.mxu0 0.0
        %6867 = vmatprep.subr.mxu0 0.0
        %6868 = vmatpush1.msra.mxu0 0.0
        %6869 = vmatprep.subr.mxu0 0.0
        %6870 = vmatpush1.msra.mxu0 0.0
        %6871 = vmatprep.subr.mxu0 0.0
        %6872 = vmatpush1.msra.mxu0 0.0
        %6873 = vmatprep.subr.mxu0 0.0
        %6874 = vmatpush1.msra.mxu0 0.0
        %6875 = vmatprep.subr.mxu0 0.0
        %6876 = vmatpush1.msra.mxu0 0.0
        %6877 = vmatprep.subr.mxu0 0.0
        %6878 = vmatpush1.msra.mxu0 0.0
        %6879 = vmatprep.subr.mxu0 0.0
        %6880 = vmatpush1.msra.mxu0 0.0
        %6881 = vmatprep.subr.mxu0 0.0
        %6882 = vmatpush1.msra.mxu0 0.0
        %6883 = vmatprep.subr.mxu0 0.0
        %6884 = vmatpush1.msra.mxu0 0.0
        %6885 = vmatprep.subr.mxu0 0.0
        %6886 = vmatpush1.msra.mxu0 0.0
        %6887 = vmatprep.subr.mxu0 0.0
        %6888 = vmatpush1.msra.mxu0 0.0
        %6889 = vmatprep.subr.mxu0 0.0
        %6890 = vmatpush1.msra.mxu0 0.0
        %6891 = vmatprep.subr.mxu0 0.0
        %6892 = vmatpush1.msra.mxu0 0.0
        %6893 = vmatprep.subr.mxu0 0.0
        %6894 = vmatpush1.msra.mxu0 0.0
        %6895 = vmatprep.subr.mxu0 0.0
        %6896 = vmatpush1.msra.mxu0 0.0
        %6897 = vmatprep.subr.mxu0 0.0
        %6898 = vmatpush1.msra.mxu0 0.0
        %6899 = vmatprep.subr.mxu0 0.0
        %6900 = vmatpush1.msra.mxu0 0.0
        %6901 = vmatprep.subr.mxu0 0.0
        %6902 = vmatpush1.msra.mxu0 0.0
        %6903 = vmatprep.mubr.f32.mxu0 0.0
        %6904 = vmatmul.mubr.f32.gmra.mrb[0].mxu0 %v2861
        %v6905 = vpop.f32.mrb[0].mxu0
        %v6906 = vadd.f32 %v2671, %v6905
        %v6907 = vpop.f32.mrb[0].mxu0
        %v6908 = vadd.f32 %v2675, %v6907
        %6909 = vdwg.mxu0
        %6910 = vmatprep.subr.mxu0 %v1279
        %6911 = vmatpush1.msra.mxu0 %v1278
        %6912 = vmatprep.subr.mxu0 %v1407
        %6913 = vmatpush1.msra.mxu0 %v1406
        %6914 = vmatprep.subr.mxu0 %v1535
        %6915 = vmatpush1.msra.mxu0 %v1534
        %6916 = vmatprep.subr.mxu0 %v1663
        %6917 = vmatpush1.msra.mxu0 %v1662
        %6918 = vmatprep.subr.mxu0 %v1791
        %6919 = vmatpush1.msra.mxu0 %v1790
        %6920 = vmatprep.subr.mxu0 %v1919
        %6921 = vmatpush1.msra.mxu0 %v1918
        %6922 = vmatprep.subr.mxu0 %v2047
        %6923 = vmatpush1.msra.mxu0 %v2046
        %6924 = vmatprep.subr.mxu0 %v2175
        %6925 = vmatpush1.msra.mxu0 %v2174
        %6926 = vmatprep.subr.mxu0 0.0
        %6927 = vmatpush1.msra.mxu0 0.0
        %6928 = vmatprep.subr.mxu0 0.0
        %6929 = vmatpush1.msra.mxu0 0.0
        %6930 = vmatprep.subr.mxu0 0.0
        %6931 = vmatpush1.msra.mxu0 0.0
        %6932 = vmatprep.subr.mxu0 0.0
        %6933 = vmatpush1.msra.mxu0 0.0
        %6934 = vmatprep.subr.mxu0 0.0
        %6935 = vmatpush1.msra.mxu0 0.0
        %6936 = vmatprep.subr.mxu0 0.0
        %6937 = vmatpush1.msra.mxu0 0.0
        %6938 = vmatprep.subr.mxu0 0.0
        %6939 = vmatpush1.msra.mxu0 0.0
        %6940 = vmatprep.subr.mxu0 0.0
        %6941 = vmatpush1.msra.mxu0 0.0
        %6942 = vmatprep.subr.mxu0 0.0
        %6943 = vmatpush1.msra.mxu0 0.0
        %6944 = vmatprep.subr.mxu0 0.0
        %6945 = vmatpush1.msra.mxu0 0.0
        %6946 = vmatprep.subr.mxu0 0.0
        %6947 = vmatpush1.msra.mxu0 0.0
        %6948 = vmatprep.subr.mxu0 0.0
        %6949 = vmatpush1.msra.mxu0 0.0
        %6950 = vmatprep.subr.mxu0 0.0
        %6951 = vmatpush1.msra.mxu0 0.0
        %6952 = vmatprep.subr.mxu0 0.0
        %6953 = vmatpush1.msra.mxu0 0.0
        %6954 = vmatprep.subr.mxu0 0.0
        %6955 = vmatpush1.msra.mxu0 0.0
        %6956 = vmatprep.subr.mxu0 0.0
        %6957 = vmatpush1.msra.mxu0 0.0
        %6958 = vmatprep.subr.mxu0 0.0
        %6959 = vmatpush1.msra.mxu0 0.0
        %6960 = vmatprep.subr.mxu0 0.0
        %6961 = vmatpush1.msra.mxu0 0.0
        %6962 = vmatprep.subr.mxu0 0.0
        %6963 = vmatpush1.msra.mxu0 0.0
        %6964 = vmatprep.subr.mxu0 0.0
        %6965 = vmatpush1.msra.mxu0 0.0
        %6966 = vmatprep.subr.mxu0 0.0
        %6967 = vmatpush1.msra.mxu0 0.0
        %6968 = vmatprep.subr.mxu0 0.0
        %6969 = vmatpush1.msra.mxu0 0.0
        %6970 = vmatprep.subr.mxu0 0.0
        %6971 = vmatpush1.msra.mxu0 0.0
        %6972 = vmatprep.subr.mxu0 0.0
        %6973 = vmatpush1.msra.mxu0 0.0
        %6974 = vmatprep.mubr.f32.mxu0 0.0
        %6975 = vmatmul.mubr.f32.gmra.mrb[0].mxu0 %v2861
        %v6976 = vpop.f32.mrb[0].mxu0
        %v6977 = vadd.f32 %v2679, %v6976
        %v6978 = vpop.f32.mrb[0].mxu0
        %v6979 = vadd.f32 %v2683, %v6978
        %6980 = vdwg.mxu0
        %6981 = vmatprep.subr.mxu0 %v1281
        %6982 = vmatpush1.msra.mxu0 %v1280
        %6983 = vmatprep.subr.mxu0 %v1409
        %6984 = vmatpush1.msra.mxu0 %v1408
        %6985 = vmatprep.subr.mxu0 %v1537
        %6986 = vmatpush1.msra.mxu0 %v1536
        %6987 = vmatprep.subr.mxu0 %v1665
        %6988 = vmatpush1.msra.mxu0 %v1664
        %6989 = vmatprep.subr.mxu0 %v1793
        %6990 = vmatpush1.msra.mxu0 %v1792
        %6991 = vmatprep.subr.mxu0 %v1921
        %6992 = vmatpush1.msra.mxu0 %v1920
        %6993 = vmatprep.subr.mxu0 %v2049
        %6994 = vmatpush1.msra.mxu0 %v2048
        %6995 = vmatprep.subr.mxu0 %v2177
        %6996 = vmatpush1.msra.mxu0 %v2176
        %6997 = vmatprep.subr.mxu0 0.0
        %6998 = vmatpush1.msra.mxu0 0.0
        %6999 = vmatprep.subr.mxu0 0.0
        %7000 = vmatpush1.msra.mxu0 0.0
        %7001 = vmatprep.subr.mxu0 0.0
        %7002 = vmatpush1.msra.mxu0 0.0
        %7003 = vmatprep.subr.mxu0 0.0
        %7004 = vmatpush1.msra.mxu0 0.0
        %7005 = vmatprep.subr.mxu0 0.0
        %7006 = vmatpush1.msra.mxu0 0.0
        %7007 = vmatprep.subr.mxu0 0.0
        %7008 = vmatpush1.msra.mxu0 0.0
        %7009 = vmatprep.subr.mxu0 0.0
        %7010 = vmatpush1.msra.mxu0 0.0
        %7011 = vmatprep.subr.mxu0 0.0
        %7012 = vmatpush1.msra.mxu0 0.0
        %7013 = vmatprep.subr.mxu0 0.0
        %7014 = vmatpush1.msra.mxu0 0.0
        %7015 = vmatprep.subr.mxu0 0.0
        %7016 = vmatpush1.msra.mxu0 0.0
        %7017 = vmatprep.subr.mxu0 0.0
        %7018 = vmatpush1.msra.mxu0 0.0
        %7019 = vmatprep.subr.mxu0 0.0
        %7020 = vmatpush1.msra.mxu0 0.0
        %7021 = vmatprep.subr.mxu0 0.0
        %7022 = vmatpush1.msra.mxu0 0.0
        %7023 = vmatprep.subr.mxu0 0.0
        %7024 = vmatpush1.msra.mxu0 0.0
        %7025 = vmatprep.subr.mxu0 0.0
        %7026 = vmatpush1.msra.mxu0 0.0
        %7027 = vmatprep.subr.mxu0 0.0
        %7028 = vmatpush1.msra.mxu0 0.0
        %7029 = vmatprep.subr.mxu0 0.0
        %7030 = vmatpush1.msra.mxu0 0.0
        %7031 = vmatprep.subr.mxu0 0.0
        %7032 = vmatpush1.msra.mxu0 0.0
        %7033 = vmatprep.subr.mxu0 0.0
        %7034 = vmatpush1.msra.mxu0 0.0
        %7035 = vmatprep.subr.mxu0 0.0
        %7036 = vmatpush1.msra.mxu0 0.0
        %7037 = vmatprep.subr.mxu0 0.0
        %7038 = vmatpush1.msra.mxu0 0.0
        %7039 = vmatprep.subr.mxu0 0.0
        %7040 = vmatpush1.msra.mxu0 0.0
        %7041 = vmatprep.subr.mxu0 0.0
        %7042 = vmatpush1.msra.mxu0 0.0
        %7043 = vmatprep.subr.mxu0 0.0
        %7044 = vmatpush1.msra.mxu0 0.0
        %7045 = vmatprep.mubr.f32.mxu0 0.0
        %7046 = vmatmul.mubr.f32.gmra.mrb[0].mxu0 %v2861
        %v7047 = vpop.f32.mrb[0].mxu0
        %v7048 = vadd.f32 %v2687, %v7047
        %v7049 = vpop.f32.mrb[0].mxu0
        %v7050 = vadd.f32 %v2691, %v7049
        %7051 = vdwg.mxu0
        %7052 = vmatprep.subr.mxu0 %v1283
        %7053 = vmatpush1.msra.mxu0 %v1282
        %7054 = vmatprep.subr.mxu0 %v1411
        %7055 = vmatpush1.msra.mxu0 %v1410
        %7056 = vmatprep.subr.mxu0 %v1539
        %7057 = vmatpush1.msra.mxu0 %v1538
        %7058 = vmatprep.subr.mxu0 %v1667
        %7059 = vmatpush1.msra.mxu0 %v1666
        %7060 = vmatprep.subr.mxu0 %v1795
        %7061 = vmatpush1.msra.mxu0 %v1794
        %7062 = vmatprep.subr.mxu0 %v1923
        %7063 = vmatpush1.msra.mxu0 %v1922
        %7064 = vmatprep.subr.mxu0 %v2051
        %7065 = vmatpush1.msra.mxu0 %v2050
        %7066 = vmatprep.subr.mxu0 %v2179
        %7067 = vmatpush1.msra.mxu0 %v2178
        %7068 = vmatprep.subr.mxu0 0.0
        %7069 = vmatpush1.msra.mxu0 0.0
        %7070 = vmatprep.subr.mxu0 0.0
        %7071 = vmatpush1.msra.mxu0 0.0
        %7072 = vmatprep.subr.mxu0 0.0
        %7073 = vmatpush1.msra.mxu0 0.0
        %7074 = vmatprep.subr.mxu0 0.0
        %7075 = vmatpush1.msra.mxu0 0.0
        %7076 = vmatprep.subr.mxu0 0.0
        %7077 = vmatpush1.msra.mxu0 0.0
        %7078 = vmatprep.subr.mxu0 0.0
        %7079 = vmatpush1.msra.mxu0 0.0
        %7080 = vmatprep.subr.mxu0 0.0
        %7081 = vmatpush1.msra.mxu0 0.0
        %7082 = vmatprep.subr.mxu0 0.0
        %7083 = vmatpush1.msra.mxu0 0.0
        %7084 = vmatprep.subr.mxu0 0.0
        %7085 = vmatpush1.msra.mxu0 0.0
        %7086 = vmatprep.subr.mxu0 0.0
        %7087 = vmatpush1.msra.mxu0 0.0
        %7088 = vmatprep.subr.mxu0 0.0
        %7089 = vmatpush1.msra.mxu0 0.0
        %7090 = vmatprep.subr.mxu0 0.0
        %7091 = vmatpush1.msra.mxu0 0.0
        %7092 = vmatprep.subr.mxu0 0.0
        %7093 = vmatpush1.msra.mxu0 0.0
        %7094 = vmatprep.subr.mxu0 0.0
        %7095 = vmatpush1.msra.mxu0 0.0
        %7096 = vmatprep.subr.mxu0 0.0
        %7097 = vmatpush1.msra.mxu0 0.0
        %7098 = vmatprep.subr.mxu0 0.0
        %7099 = vmatpush1.msra.mxu0 0.0
        %7100 = vmatprep.subr.mxu0 0.0
        %7101 = vmatpush1.msra.mxu0 0.0
        %7102 = vmatprep.subr.mxu0 0.0
        %7103 = vmatpush1.msra.mxu0 0.0
        %7104 = vmatprep.subr.mxu0 0.0
        %7105 = vmatpush1.msra.mxu0 0.0
        %7106 = vmatprep.subr.mxu0 0.0
        %7107 = vmatpush1.msra.mxu0 0.0
        %7108 = vmatprep.subr.mxu0 0.0
        %7109 = vmatpush1.msra.mxu0 0.0
        %7110 = vmatprep.subr.mxu0 0.0
        %7111 = vmatpush1.msra.mxu0 0.0
        %7112 = vmatprep.subr.mxu0 0.0
        %7113 = vmatpush1.msra.mxu0 0.0
        %7114 = vmatprep.subr.mxu0 0.0
        %7115 = vmatpush1.msra.mxu0 0.0
        %7116 = vmatprep.mubr.f32.mxu0 0.0
        %7117 = vmatmul.mubr.f32.gmra.mrb[0].mxu0 %v2861
        %v7118 = vpop.f32.mrb[0].mxu0
        %v7119 = vadd.f32 %v2695, %v7118
        %v7120 = vpop.f32.mrb[0].mxu0
        %v7121 = vadd.f32 %v2699, %v7120
        %7122 = vdwg.mxu0
        %7123 = vmatprep.subr.mxu0 %v1285
        %7124 = vmatpush1.msra.mxu0 %v1284
        %7125 = vmatprep.subr.mxu0 %v1413
        %7126 = vmatpush1.msra.mxu0 %v1412
        %7127 = vmatprep.subr.mxu0 %v1541
        %7128 = vmatpush1.msra.mxu0 %v1540
        %7129 = vmatprep.subr.mxu0 %v1669
        %7130 = vmatpush1.msra.mxu0 %v1668
        %7131 = vmatprep.subr.mxu0 %v1797
        %7132 = vmatpush1.msra.mxu0 %v1796
        %7133 = vmatprep.subr.mxu0 %v1925
        %7134 = vmatpush1.msra.mxu0 %v1924
        %7135 = vmatprep.subr.mxu0 %v2053
        %7136 = vmatpush1.msra.mxu0 %v2052
        %7137 = vmatprep.subr.mxu0 %v2181
        %7138 = vmatpush1.msra.mxu0 %v2180
        %7139 = vmatprep.subr.mxu0 0.0
        %7140 = vmatpush1.msra.mxu0 0.0
        %7141 = vmatprep.subr.mxu0 0.0
        %7142 = vmatpush1.msra.mxu0 0.0
        %7143 = vmatprep.subr.mxu0 0.0
        %7144 = vmatpush1.msra.mxu0 0.0
        %7145 = vmatprep.subr.mxu0 0.0
        %7146 = vmatpush1.msra.mxu0 0.0
        %7147 = vmatprep.subr.mxu0 0.0
        %7148 = vmatpush1.msra.mxu0 0.0
        %7149 = vmatprep.subr.mxu0 0.0
        %7150 = vmatpush1.msra.mxu0 0.0
        %7151 = vmatprep.subr.mxu0 0.0
        %7152 = vmatpush1.msra.mxu0 0.0
        %7153 = vmatprep.subr.mxu0 0.0
        %7154 = vmatpush1.msra.mxu0 0.0
        %7155 = vmatprep.subr.mxu0 0.0
        %7156 = vmatpush1.msra.mxu0 0.0
        %7157 = vmatprep.subr.mxu0 0.0
        %7158 = vmatpush1.msra.mxu0 0.0
        %7159 = vmatprep.subr.mxu0 0.0
        %7160 = vmatpush1.msra.mxu0 0.0
        %7161 = vmatprep.subr.mxu0 0.0
        %7162 = vmatpush1.msra.mxu0 0.0
        %7163 = vmatprep.subr.mxu0 0.0
        %7164 = vmatpush1.msra.mxu0 0.0
        %7165 = vmatprep.subr.mxu0 0.0
        %7166 = vmatpush1.msra.mxu0 0.0
        %7167 = vmatprep.subr.mxu0 0.0
        %7168 = vmatpush1.msra.mxu0 0.0
        %7169 = vmatprep.subr.mxu0 0.0
        %7170 = vmatpush1.msra.mxu0 0.0
        %7171 = vmatprep.subr.mxu0 0.0
        %7172 = vmatpush1.msra.mxu0 0.0
        %7173 = vmatprep.subr.mxu0 0.0
        %7174 = vmatpush1.msra.mxu0 0.0
        %7175 = vmatprep.subr.mxu0 0.0
        %7176 = vmatpush1.msra.mxu0 0.0
        %7177 = vmatprep.subr.mxu0 0.0
        %7178 = vmatpush1.msra.mxu0 0.0
        %7179 = vmatprep.subr.mxu0 0.0
        %7180 = vmatpush1.msra.mxu0 0.0
        %7181 = vmatprep.subr.mxu0 0.0
        %7182 = vmatpush1.msra.mxu0 0.0
        %7183 = vmatprep.subr.mxu0 0.0
        %7184 = vmatpush1.msra.mxu0 0.0
        %7185 = vmatprep.subr.mxu0 0.0
        %7186 = vmatpush1.msra.mxu0 0.0
        %7187 = vmatprep.mubr.f32.mxu0 0.0
        %7188 = vmatmul.mubr.f32.gmra.mrb[0].mxu0 %v2861
        %v7189 = vpop.f32.mrb[0].mxu0
        %v7190 = vadd.f32 %v2703, %v7189
        %v7191 = vpop.f32.mrb[0].mxu0
        %v7192 = vadd.f32 %v2707, %v7191
        %7193 = vdwg.mxu0
        %7194 = vmatprep.subr.mxu0 %v1287
        %7195 = vmatpush1.msra.mxu0 %v1286
        %7196 = vmatprep.subr.mxu0 %v1415
        %7197 = vmatpush1.msra.mxu0 %v1414
        %7198 = vmatprep.subr.mxu0 %v1543
        %7199 = vmatpush1.msra.mxu0 %v1542
        %7200 = vmatprep.subr.mxu0 %v1671
        %7201 = vmatpush1.msra.mxu0 %v1670
        %7202 = vmatprep.subr.mxu0 %v1799
        %7203 = vmatpush1.msra.mxu0 %v1798
        %7204 = vmatprep.subr.mxu0 %v1927
        %7205 = vmatpush1.msra.mxu0 %v1926
        %7206 = vmatprep.subr.mxu0 %v2055
        %7207 = vmatpush1.msra.mxu0 %v2054
        %7208 = vmatprep.subr.mxu0 %v2183
        %7209 = vmatpush1.msra.mxu0 %v2182
        %7210 = vmatprep.subr.mxu0 0.0
        %7211 = vmatpush1.msra.mxu0 0.0
        %7212 = vmatprep.subr.mxu0 0.0
        %7213 = vmatpush1.msra.mxu0 0.0
        %7214 = vmatprep.subr.mxu0 0.0
        %7215 = vmatpush1.msra.mxu0 0.0
        %7216 = vmatprep.subr.mxu0 0.0
        %7217 = vmatpush1.msra.mxu0 0.0
        %7218 = vmatprep.subr.mxu0 0.0
        %7219 = vmatpush1.msra.mxu0 0.0
        %7220 = vmatprep.subr.mxu0 0.0
        %7221 = vmatpush1.msra.mxu0 0.0
        %7222 = vmatprep.subr.mxu0 0.0
        %7223 = vmatpush1.msra.mxu0 0.0
        %7224 = vmatprep.subr.mxu0 0.0
        %7225 = vmatpush1.msra.mxu0 0.0
        %7226 = vmatprep.subr.mxu0 0.0
        %7227 = vmatpush1.msra.mxu0 0.0
        %7228 = vmatprep.subr.mxu0 0.0
        %7229 = vmatpush1.msra.mxu0 0.0
        %7230 = vmatprep.subr.mxu0 0.0
        %7231 = vmatpush1.msra.mxu0 0.0
        %7232 = vmatprep.subr.mxu0 0.0
        %7233 = vmatpush1.msra.mxu0 0.0
        %7234 = vmatprep.subr.mxu0 0.0
        %7235 = vmatpush1.msra.mxu0 0.0
        %7236 = vmatprep.subr.mxu0 0.0
        %7237 = vmatpush1.msra.mxu0 0.0
        %7238 = vmatprep.subr.mxu0 0.0
        %7239 = vmatpush1.msra.mxu0 0.0
        %7240 = vmatprep.subr.mxu0 0.0
        %7241 = vmatpush1.msra.mxu0 0.0
        %7242 = vmatprep.subr.mxu0 0.0
        %7243 = vmatpush1.msra.mxu0 0.0
        %7244 = vmatprep.subr.mxu0 0.0
        %7245 = vmatpush1.msra.mxu0 0.0
        %7246 = vmatprep.subr.mxu0 0.0
        %7247 = vmatpush1.msra.mxu0 0.0
        %7248 = vmatprep.subr.mxu0 0.0
        %7249 = vmatpush1.msra.mxu0 0.0
        %7250 = vmatprep.subr.mxu0 0.0
        %7251 = vmatpush1.msra.mxu0 0.0
        %7252 = vmatprep.subr.mxu0 0.0
        %7253 = vmatpush1.msra.mxu0 0.0
        %7254 = vmatprep.subr.mxu0 0.0
        %7255 = vmatpush1.msra.mxu0 0.0
        %7256 = vmatprep.subr.mxu0 0.0
        %7257 = vmatpush1.msra.mxu0 0.0
        %7258 = vmatprep.mubr.f32.mxu0 0.0
        %7259 = vmatmul.mubr.f32.gmra.mrb[0].mxu0 %v2861
        %v7260 = vpop.f32.mrb[0].mxu0
        %v7261 = vadd.f32 %v2711, %v7260
        %v7262 = vpop.f32.mrb[0].mxu0
        %v7263 = vadd.f32 %v2715, %v7262
        %7264 = vdwg.mxu0
        %7265 = vmatprep.subr.mxu0 %v1289
        %7266 = vmatpush1.msra.mxu0 %v1288
        %7267 = vmatprep.subr.mxu0 %v1417
        %7268 = vmatpush1.msra.mxu0 %v1416
        %7269 = vmatprep.subr.mxu0 %v1545
        %7270 = vmatpush1.msra.mxu0 %v1544
        %7271 = vmatprep.subr.mxu0 %v1673
        %7272 = vmatpush1.msra.mxu0 %v1672
        %7273 = vmatprep.subr.mxu0 %v1801
        %7274 = vmatpush1.msra.mxu0 %v1800
        %7275 = vmatprep.subr.mxu0 %v1929
        %7276 = vmatpush1.msra.mxu0 %v1928
        %7277 = vmatprep.subr.mxu0 %v2057
        %7278 = vmatpush1.msra.mxu0 %v2056
        %7279 = vmatprep.subr.mxu0 %v2185
        %7280 = vmatpush1.msra.mxu0 %v2184
        %7281 = vmatprep.subr.mxu0 0.0
        %7282 = vmatpush1.msra.mxu0 0.0
        %7283 = vmatprep.subr.mxu0 0.0
        %7284 = vmatpush1.msra.mxu0 0.0
        %7285 = vmatprep.subr.mxu0 0.0
        %7286 = vmatpush1.msra.mxu0 0.0
        %7287 = vmatprep.subr.mxu0 0.0
        %7288 = vmatpush1.msra.mxu0 0.0
        %7289 = vmatprep.subr.mxu0 0.0
        %7290 = vmatpush1.msra.mxu0 0.0
        %7291 = vmatprep.subr.mxu0 0.0
        %7292 = vmatpush1.msra.mxu0 0.0
        %7293 = vmatprep.subr.mxu0 0.0
        %7294 = vmatpush1.msra.mxu0 0.0
        %7295 = vmatprep.subr.mxu0 0.0
        %7296 = vmatpush1.msra.mxu0 0.0
        %7297 = vmatprep.subr.mxu0 0.0
        %7298 = vmatpush1.msra.mxu0 0.0
        %7299 = vmatprep.subr.mxu0 0.0
        %7300 = vmatpush1.msra.mxu0 0.0
        %7301 = vmatprep.subr.mxu0 0.0
        %7302 = vmatpush1.msra.mxu0 0.0
        %7303 = vmatprep.subr.mxu0 0.0
        %7304 = vmatpush1.msra.mxu0 0.0
        %7305 = vmatprep.subr.mxu0 0.0
        %7306 = vmatpush1.msra.mxu0 0.0
        %7307 = vmatprep.subr.mxu0 0.0
        %7308 = vmatpush1.msra.mxu0 0.0
        %7309 = vmatprep.subr.mxu0 0.0
        %7310 = vmatpush1.msra.mxu0 0.0
        %7311 = vmatprep.subr.mxu0 0.0
        %7312 = vmatpush1.msra.mxu0 0.0
        %7313 = vmatprep.subr.mxu0 0.0
        %7314 = vmatpush1.msra.mxu0 0.0
        %7315 = vmatprep.subr.mxu0 0.0
        %7316 = vmatpush1.msra.mxu0 0.0
        %7317 = vmatprep.subr.mxu0 0.0
        %7318 = vmatpush1.msra.mxu0 0.0
        %7319 = vmatprep.subr.mxu0 0.0
        %7320 = vmatpush1.msra.mxu0 0.0
        %7321 = vmatprep.subr.mxu0 0.0
        %7322 = vmatpush1.msra.mxu0 0.0
        %7323 = vmatprep.subr.mxu0 0.0
        %7324 = vmatpush1.msra.mxu0 0.0
        %7325 = vmatprep.subr.mxu0 0.0
        %7326 = vmatpush1.msra.mxu0 0.0
        %7327 = vmatprep.subr.mxu0 0.0
        %7328 = vmatpush1.msra.mxu0 0.0
        %7329 = vmatprep.mubr.f32.mxu0 0.0
        %7330 = vmatmul.mubr.f32.gmra.mrb[0].mxu0 %v2861
        %v7331 = vpop.f32.mrb[0].mxu0
        %v7332 = vadd.f32 %v2719, %v7331
        %v7333 = vpop.f32.mrb[0].mxu0
        %v7334 = vadd.f32 %v2723, %v7333
        %7335 = vdwg.mxu0
        %7336 = vmatprep.subr.mxu0 %v1291
        %7337 = vmatpush1.msra.mxu0 %v1290
        %7338 = vmatprep.subr.mxu0 %v1419
        %7339 = vmatpush1.msra.mxu0 %v1418
        %7340 = vmatprep.subr.mxu0 %v1547
        %7341 = vmatpush1.msra.mxu0 %v1546
        %7342 = vmatprep.subr.mxu0 %v1675
        %7343 = vmatpush1.msra.mxu0 %v1674
        %7344 = vmatprep.subr.mxu0 %v1803
        %7345 = vmatpush1.msra.mxu0 %v1802
        %7346 = vmatprep.subr.mxu0 %v1931
        %7347 = vmatpush1.msra.mxu0 %v1930
        %7348 = vmatprep.subr.mxu0 %v2059
        %7349 = vmatpush1.msra.mxu0 %v2058
        %7350 = vmatprep.subr.mxu0 %v2187
        %7351 = vmatpush1.msra.mxu0 %v2186
        %7352 = vmatprep.subr.mxu0 0.0
        %7353 = vmatpush1.msra.mxu0 0.0
        %7354 = vmatprep.subr.mxu0 0.0
        %7355 = vmatpush1.msra.mxu0 0.0
        %7356 = vmatprep.subr.mxu0 0.0
        %7357 = vmatpush1.msra.mxu0 0.0
        %7358 = vmatprep.subr.mxu0 0.0
        %7359 = vmatpush1.msra.mxu0 0.0
        %7360 = vmatprep.subr.mxu0 0.0
        %7361 = vmatpush1.msra.mxu0 0.0
        %7362 = vmatprep.subr.mxu0 0.0
        %7363 = vmatpush1.msra.mxu0 0.0
        %7364 = vmatprep.subr.mxu0 0.0
        %7365 = vmatpush1.msra.mxu0 0.0
        %7366 = vmatprep.subr.mxu0 0.0
        %7367 = vmatpush1.msra.mxu0 0.0
        %7368 = vmatprep.subr.mxu0 0.0
        %7369 = vmatpush1.msra.mxu0 0.0
        %7370 = vmatprep.subr.mxu0 0.0
        %7371 = vmatpush1.msra.mxu0 0.0
        %7372 = vmatprep.subr.mxu0 0.0
        %7373 = vmatpush1.msra.mxu0 0.0
        %7374 = vmatprep.subr.mxu0 0.0
        %7375 = vmatpush1.msra.mxu0 0.0
        %7376 = vmatprep.subr.mxu0 0.0
        %7377 = vmatpush1.msra.mxu0 0.0
        %7378 = vmatprep.subr.mxu0 0.0
        %7379 = vmatpush1.msra.mxu0 0.0
        %7380 = vmatprep.subr.mxu0 0.0
        %7381 = vmatpush1.msra.mxu0 0.0
        %7382 = vmatprep.subr.mxu0 0.0
        %7383 = vmatpush1.msra.mxu0 0.0
        %7384 = vmatprep.subr.mxu0 0.0
        %7385 = vmatpush1.msra.mxu0 0.0
        %7386 = vmatprep.subr.mxu0 0.0
        %7387 = vmatpush1.msra.mxu0 0.0
        %7388 = vmatprep.subr.mxu0 0.0
        %7389 = vmatpush1.msra.mxu0 0.0
        %7390 = vmatprep.subr.mxu0 0.0
        %7391 = vmatpush1.msra.mxu0 0.0
        %7392 = vmatprep.subr.mxu0 0.0
        %7393 = vmatpush1.msra.mxu0 0.0
        %7394 = vmatprep.subr.mxu0 0.0
        %7395 = vmatpush1.msra.mxu0 0.0
        %7396 = vmatprep.subr.mxu0 0.0
        %7397 = vmatpush1.msra.mxu0 0.0
        %7398 = vmatprep.subr.mxu0 0.0
        %7399 = vmatpush1.msra.mxu0 0.0
        %7400 = vmatprep.mubr.f32.mxu0 0.0
        %7401 = vmatmul.mubr.f32.gmra.mrb[0].mxu0 %v2861
        %v7402 = vpop.f32.mrb[0].mxu0
        %v7403 = vadd.f32 %v2727, %v7402
        %v7404 = vpop.f32.mrb[0].mxu0
        %v7405 = vadd.f32 %v2731, %v7404
        %7406 = vdwg.mxu0
        %v7535 = vcombine.low %v2930, %v2932
        %v7536 = vcombine.low %v3001, %v3003
        %v7537 = vcombine.low %v3072, %v3074
        %v7538 = vcombine.low %v3143, %v3145
        %v7540 = vunpack.c.l.s4 1966171168
        %v7541 = vunpack.c.0.s8 %v7540
        %v7542 = vlaneseq
        %v7543 = vshrl.u32 %v7542, 7
        %v7544 = vsub.s32 %v7541, %v7543
        %v7545 = vrot.slane %v7535, %v7544
        %v7547 = vunpack.c.l.s4 1966171168
        %v7548 = vunpack.c.0.s8 %v7547
        %v7549 = vlaneseq
        %v7550 = vshrl.u32 %v7549, 7
        %v7551 = vsub.s32 %v7548, %v7550
        %v7552 = vrot.slane %v7536, %v7551
        %v7554 = vunpack.c.l.s4 1966171168
        %v7555 = vunpack.c.0.s8 %v7554
        %v7556 = vlaneseq
        %v7557 = vshrl.u32 %v7556, 7
        %v7558 = vsub.s32 %v7555, %v7557
        %v7559 = vrot.slane %v7537, %v7558
        %v7561 = vunpack.c.l.s4 1966171168
        %v7562 = vunpack.c.0.s8 %v7561
        %v7563 = vlaneseq
        %v7564 = vshrl.u32 %v7563, 7
        %v7565 = vsub.s32 %v7562, %v7564
        %v7566 = vrot.slane %v7538, %v7565
        %v7567 = vcombine.low %v7545, %v7552
        %v7568 = vcombine.low %v7559, %v7566
        %v7570 = vunpack.c.l.s4 1966171168
        %v7571 = vunpack.c.0.s8 %v7570
        %v7572 = vlaneseq
        %v7573 = vshrl.u32 %v7572, 7
        %v7574 = vsub.s32 %v7571, %v7573
        %v7575 = vrot.slane %v7567, %v7574
        %v7577 = vunpack.c.l.s4 1966171168
        %v7578 = vunpack.c.0.s8 %v7577
        %v7579 = vlaneseq
        %v7580 = vshrl.u32 %v7579, 7
        %v7581 = vsub.s32 %v7578, %v7580
        %v7582 = vrot.slane %v7568, %v7581
        %v7583 = vcombine.low %v7575, %v7582
        %v7584 = vcombine.low %v3214, %v3216
        %v7585 = vcombine.low %v3285, %v3287
        %v7586 = vcombine.low %v3356, %v3358
        %v7587 = vcombine.low %v3427, %v3429
        %v7589 = vunpack.c.l.s4 1966171168
        %v7590 = vunpack.c.0.s8 %v7589
        %v7591 = vlaneseq
        %v7592 = vshrl.u32 %v7591, 7
        %v7593 = vsub.s32 %v7590, %v7592
        %v7594 = vrot.slane %v7584, %v7593
        %v7596 = vunpack.c.l.s4 1966171168
        %v7597 = vunpack.c.0.s8 %v7596
        %v7598 = vlaneseq
        %v7599 = vshrl.u32 %v7598, 7
        %v7600 = vsub.s32 %v7597, %v7599
        %v7601 = vrot.slane %v7585, %v7600
        %v7603 = vunpack.c.l.s4 1966171168
        %v7604 = vunpack.c.0.s8 %v7603
        %v7605 = vlaneseq
        %v7606 = vshrl.u32 %v7605, 7
        %v7607 = vsub.s32 %v7604, %v7606
        %v7608 = vrot.slane %v7586, %v7607
        %v7610 = vunpack.c.l.s4 1966171168
        %v7611 = vunpack.c.0.s8 %v7610
        %v7612 = vlaneseq
        %v7613 = vshrl.u32 %v7612, 7
        %v7614 = vsub.s32 %v7611, %v7613
        %v7615 = vrot.slane %v7587, %v7614
        %v7616 = vcombine.low %v7594, %v7601
        %v7617 = vcombine.low %v7608, %v7615
        %v7619 = vunpack.c.l.s4 1966171168
        %v7620 = vunpack.c.0.s8 %v7619
        %v7621 = vlaneseq
        %v7622 = vshrl.u32 %v7621, 7
        %v7623 = vsub.s32 %v7620, %v7622
        %v7624 = vrot.slane %v7616, %v7623
        %v7626 = vunpack.c.l.s4 1966171168
        %v7627 = vunpack.c.0.s8 %v7626
        %v7628 = vlaneseq
        %v7629 = vshrl.u32 %v7628, 7
        %v7630 = vsub.s32 %v7627, %v7629
        %v7631 = vrot.slane %v7617, %v7630
        %v7632 = vcombine.low %v7624, %v7631
        %v7633 = vcombine.low %v3498, %v3500
        %v7634 = vcombine.low %v3569, %v3571
        %v7635 = vcombine.low %v3640, %v3642
        %v7636 = vcombine.low %v3711, %v3713
        %v7638 = vunpack.c.l.s4 1966171168
        %v7639 = vunpack.c.0.s8 %v7638
        %v7640 = vlaneseq
        %v7641 = vshrl.u32 %v7640, 7
        %v7642 = vsub.s32 %v7639, %v7641
        %v7643 = vrot.slane %v7633, %v7642
        %v7645 = vunpack.c.l.s4 1966171168
        %v7646 = vunpack.c.0.s8 %v7645
        %v7647 = vlaneseq
        %v7648 = vshrl.u32 %v7647, 7
        %v7649 = vsub.s32 %v7646, %v7648
        %v7650 = vrot.slane %v7634, %v7649
        %v7652 = vunpack.c.l.s4 1966171168
        %v7653 = vunpack.c.0.s8 %v7652
        %v7654 = vlaneseq
        %v7655 = vshrl.u32 %v7654, 7
        %v7656 = vsub.s32 %v7653, %v7655
        %v7657 = vrot.slane %v7635, %v7656
        %v7659 = vunpack.c.l.s4 1966171168
        %v7660 = vunpack.c.0.s8 %v7659
        %v7661 = vlaneseq
        %v7662 = vshrl.u32 %v7661, 7
        %v7663 = vsub.s32 %v7660, %v7662
        %v7664 = vrot.slane %v7636, %v7663
        %v7665 = vcombine.low %v7643, %v7650
        %v7666 = vcombine.low %v7657, %v7664
        %v7668 = vunpack.c.l.s4 1966171168
        %v7669 = vunpack.c.0.s8 %v7668
        %v7670 = vlaneseq
        %v7671 = vshrl.u32 %v7670, 7
        %v7672 = vsub.s32 %v7669, %v7671
        %v7673 = vrot.slane %v7665, %v7672
        %v7675 = vunpack.c.l.s4 1966171168
        %v7676 = vunpack.c.0.s8 %v7675
        %v7677 = vlaneseq
        %v7678 = vshrl.u32 %v7677, 7
        %v7679 = vsub.s32 %v7676, %v7678
        %v7680 = vrot.slane %v7666, %v7679
        %v7681 = vcombine.low %v7673, %v7680
        %v7682 = vcombine.low %v3782, %v3784
        %v7683 = vcombine.low %v3853, %v3855
        %v7684 = vcombine.low %v3924, %v3926
        %v7685 = vcombine.low %v3995, %v3997
        %v7687 = vunpack.c.l.s4 1966171168
        %v7688 = vunpack.c.0.s8 %v7687
        %v7689 = vlaneseq
        %v7690 = vshrl.u32 %v7689, 7
        %v7691 = vsub.s32 %v7688, %v7690
        %v7692 = vrot.slane %v7682, %v7691
        %v7694 = vunpack.c.l.s4 1966171168
        %v7695 = vunpack.c.0.s8 %v7694
        %v7696 = vlaneseq
        %v7697 = vshrl.u32 %v7696, 7
        %v7698 = vsub.s32 %v7695, %v7697
        %v7699 = vrot.slane %v7683, %v7698
        %v7701 = vunpack.c.l.s4 1966171168
        %v7702 = vunpack.c.0.s8 %v7701
        %v7703 = vlaneseq
        %v7704 = vshrl.u32 %v7703, 7
        %v7705 = vsub.s32 %v7702, %v7704
        %v7706 = vrot.slane %v7684, %v7705
        %v7708 = vunpack.c.l.s4 1966171168
        %v7709 = vunpack.c.0.s8 %v7708
        %v7710 = vlaneseq
        %v7711 = vshrl.u32 %v7710, 7
        %v7712 = vsub.s32 %v7709, %v7711
        %v7713 = vrot.slane %v7685, %v7712
        %v7714 = vcombine.low %v7692, %v7699
        %v7715 = vcombine.low %v7706, %v7713
        %v7717 = vunpack.c.l.s4 1966171168
        %v7718 = vunpack.c.0.s8 %v7717
        %v7719 = vlaneseq
        %v7720 = vshrl.u32 %v7719, 7
        %v7721 = vsub.s32 %v7718, %v7720
        %v7722 = vrot.slane %v7714, %v7721
        %v7724 = vunpack.c.l.s4 1966171168
        %v7725 = vunpack.c.0.s8 %v7724
        %v7726 = vlaneseq
        %v7727 = vshrl.u32 %v7726, 7
        %v7728 = vsub.s32 %v7725, %v7727
        %v7729 = vrot.slane %v7715, %v7728
        %v7730 = vcombine.low %v7722, %v7729
        %v7731 = vcombine.low %v4066, %v4068
        %v7732 = vcombine.low %v4137, %v4139
        %v7733 = vcombine.low %v4208, %v4210
        %v7734 = vcombine.low %v4279, %v4281
        %v7736 = vunpack.c.l.s4 1966171168
        %v7737 = vunpack.c.0.s8 %v7736
        %v7738 = vlaneseq
        %v7739 = vshrl.u32 %v7738, 7
        %v7740 = vsub.s32 %v7737, %v7739
        %v7741 = vrot.slane %v7731, %v7740
        %v7743 = vunpack.c.l.s4 1966171168
        %v7744 = vunpack.c.0.s8 %v7743
        %v7745 = vlaneseq
        %v7746 = vshrl.u32 %v7745, 7
        %v7747 = vsub.s32 %v7744, %v7746
        %v7748 = vrot.slane %v7732, %v7747
        %v7750 = vunpack.c.l.s4 1966171168
        %v7751 = vunpack.c.0.s8 %v7750
        %v7752 = vlaneseq
        %v7753 = vshrl.u32 %v7752, 7
        %v7754 = vsub.s32 %v7751, %v7753
        %v7755 = vrot.slane %v7733, %v7754
        %v7757 = vunpack.c.l.s4 1966171168
        %v7758 = vunpack.c.0.s8 %v7757
        %v7759 = vlaneseq
        %v7760 = vshrl.u32 %v7759, 7
        %v7761 = vsub.s32 %v7758, %v7760
        %v7762 = vrot.slane %v7734, %v7761
        %v7763 = vcombine.low %v7741, %v7748
        %v7764 = vcombine.low %v7755, %v7762
        %v7766 = vunpack.c.l.s4 1966171168
        %v7767 = vunpack.c.0.s8 %v7766
        %v7768 = vlaneseq
        %v7769 = vshrl.u32 %v7768, 7
        %v7770 = vsub.s32 %v7767, %v7769
        %v7771 = vrot.slane %v7763, %v7770
        %v7773 = vunpack.c.l.s4 1966171168
        %v7774 = vunpack.c.0.s8 %v7773
        %v7775 = vlaneseq
        %v7776 = vshrl.u32 %v7775, 7
        %v7777 = vsub.s32 %v7774, %v7776
        %v7778 = vrot.slane %v7764, %v7777
        %v7779 = vcombine.low %v7771, %v7778
        %v7780 = vcombine.low %v4350, %v4352
        %v7781 = vcombine.low %v4421, %v4423
        %v7782 = vcombine.low %v4492, %v4494
        %v7783 = vcombine.low %v4563, %v4565
        %v7785 = vunpack.c.l.s4 1966171168
        %v7786 = vunpack.c.0.s8 %v7785
        %v7787 = vlaneseq
        %v7788 = vshrl.u32 %v7787, 7
        %v7789 = vsub.s32 %v7786, %v7788
        %v7790 = vrot.slane %v7780, %v7789
        %v7792 = vunpack.c.l.s4 1966171168
        %v7793 = vunpack.c.0.s8 %v7792
        %v7794 = vlaneseq
        %v7795 = vshrl.u32 %v7794, 7
        %v7796 = vsub.s32 %v7793, %v7795
        %v7797 = vrot.slane %v7781, %v7796
        %v7799 = vunpack.c.l.s4 1966171168
        %v7800 = vunpack.c.0.s8 %v7799
        %v7801 = vlaneseq
        %v7802 = vshrl.u32 %v7801, 7
        %v7803 = vsub.s32 %v7800, %v7802
        %v7804 = vrot.slane %v7782, %v7803
        %v7806 = vunpack.c.l.s4 1966171168
        %v7807 = vunpack.c.0.s8 %v7806
        %v7808 = vlaneseq
        %v7809 = vshrl.u32 %v7808, 7
        %v7810 = vsub.s32 %v7807, %v7809
        %v7811 = vrot.slane %v7783, %v7810
        %v7812 = vcombine.low %v7790, %v7797
        %v7813 = vcombine.low %v7804, %v7811
        %v7815 = vunpack.c.l.s4 1966171168
        %v7816 = vunpack.c.0.s8 %v7815
        %v7817 = vlaneseq
        %v7818 = vshrl.u32 %v7817, 7
        %v7819 = vsub.s32 %v7816, %v7818
        %v7820 = vrot.slane %v7812, %v7819
        %v7822 = vunpack.c.l.s4 1966171168
        %v7823 = vunpack.c.0.s8 %v7822
        %v7824 = vlaneseq
        %v7825 = vshrl.u32 %v7824, 7
        %v7826 = vsub.s32 %v7823, %v7825
        %v7827 = vrot.slane %v7813, %v7826
        %v7828 = vcombine.low %v7820, %v7827
        %v7829 = vcombine.low %v4634, %v4636
        %v7830 = vcombine.low %v4705, %v4707
        %v7831 = vcombine.low %v4776, %v4778
        %v7832 = vcombine.low %v4847, %v4849
        %v7834 = vunpack.c.l.s4 1966171168
        %v7835 = vunpack.c.0.s8 %v7834
        %v7836 = vlaneseq
        %v7837 = vshrl.u32 %v7836, 7
        %v7838 = vsub.s32 %v7835, %v7837
        %v7839 = vrot.slane %v7829, %v7838
        %v7841 = vunpack.c.l.s4 1966171168
        %v7842 = vunpack.c.0.s8 %v7841
        %v7843 = vlaneseq
        %v7844 = vshrl.u32 %v7843, 7
        %v7845 = vsub.s32 %v7842, %v7844
        %v7846 = vrot.slane %v7830, %v7845
        %v7848 = vunpack.c.l.s4 1966171168
        %v7849 = vunpack.c.0.s8 %v7848
        %v7850 = vlaneseq
        %v7851 = vshrl.u32 %v7850, 7
        %v7852 = vsub.s32 %v7849, %v7851
        %v7853 = vrot.slane %v7831, %v7852
        %v7855 = vunpack.c.l.s4 1966171168
        %v7856 = vunpack.c.0.s8 %v7855
        %v7857 = vlaneseq
        %v7858 = vshrl.u32 %v7857, 7
        %v7859 = vsub.s32 %v7856, %v7858
        %v7860 = vrot.slane %v7832, %v7859
        %v7861 = vcombine.low %v7839, %v7846
        %v7862 = vcombine.low %v7853, %v7860
        %v7864 = vunpack.c.l.s4 1966171168
        %v7865 = vunpack.c.0.s8 %v7864
        %v7866 = vlaneseq
        %v7867 = vshrl.u32 %v7866, 7
        %v7868 = vsub.s32 %v7865, %v7867
        %v7869 = vrot.slane %v7861, %v7868
        %v7871 = vunpack.c.l.s4 1966171168
        %v7872 = vunpack.c.0.s8 %v7871
        %v7873 = vlaneseq
        %v7874 = vshrl.u32 %v7873, 7
        %v7875 = vsub.s32 %v7872, %v7874
        %v7876 = vrot.slane %v7862, %v7875
        %v7877 = vcombine.low %v7869, %v7876
        %v7878 = vcombine.low %v4918, %v4920
        %v7879 = vcombine.low %v4989, %v4991
        %v7880 = vcombine.low %v5060, %v5062
        %v7881 = vcombine.low %v5131, %v5133
        %v7883 = vunpack.c.l.s4 1966171168
        %v7884 = vunpack.c.0.s8 %v7883
        %v7885 = vlaneseq
        %v7886 = vshrl.u32 %v7885, 7
        %v7887 = vsub.s32 %v7884, %v7886
        %v7888 = vrot.slane %v7878, %v7887
        %v7890 = vunpack.c.l.s4 1966171168
        %v7891 = vunpack.c.0.s8 %v7890
        %v7892 = vlaneseq
        %v7893 = vshrl.u32 %v7892, 7
        %v7894 = vsub.s32 %v7891, %v7893
        %v7895 = vrot.slane %v7879, %v7894
        %v7897 = vunpack.c.l.s4 1966171168
        %v7898 = vunpack.c.0.s8 %v7897
        %v7899 = vlaneseq
        %v7900 = vshrl.u32 %v7899, 7
        %v7901 = vsub.s32 %v7898, %v7900
        %v7902 = vrot.slane %v7880, %v7901
        %v7904 = vunpack.c.l.s4 1966171168
        %v7905 = vunpack.c.0.s8 %v7904
        %v7906 = vlaneseq
        %v7907 = vshrl.u32 %v7906, 7
        %v7908 = vsub.s32 %v7905, %v7907
        %v7909 = vrot.slane %v7881, %v7908
        %v7910 = vcombine.low %v7888, %v7895
        %v7911 = vcombine.low %v7902, %v7909
        %v7913 = vunpack.c.l.s4 1966171168
        %v7914 = vunpack.c.0.s8 %v7913
        %v7915 = vlaneseq
        %v7916 = vshrl.u32 %v7915, 7
        %v7917 = vsub.s32 %v7914, %v7916
        %v7918 = vrot.slane %v7910, %v7917
        %v7920 = vunpack.c.l.s4 1966171168
        %v7921 = vunpack.c.0.s8 %v7920
        %v7922 = vlaneseq
        %v7923 = vshrl.u32 %v7922, 7
        %v7924 = vsub.s32 %v7921, %v7923
        %v7925 = vrot.slane %v7911, %v7924
        %v7926 = vcombine.low %v7918, %v7925
        %v7927 = vcombine.low %v5202, %v5204
        %v7928 = vcombine.low %v5273, %v5275
        %v7929 = vcombine.low %v5344, %v5346
        %v7930 = vcombine.low %v5415, %v5417
        %v7932 = vunpack.c.l.s4 1966171168
        %v7933 = vunpack.c.0.s8 %v7932
        %v7934 = vlaneseq
        %v7935 = vshrl.u32 %v7934, 7
        %v7936 = vsub.s32 %v7933, %v7935
        %v7937 = vrot.slane %v7927, %v7936
        %v7939 = vunpack.c.l.s4 1966171168
        %v7940 = vunpack.c.0.s8 %v7939
        %v7941 = vlaneseq
        %v7942 = vshrl.u32 %v7941, 7
        %v7943 = vsub.s32 %v7940, %v7942
        %v7944 = vrot.slane %v7928, %v7943
        %v7946 = vunpack.c.l.s4 1966171168
        %v7947 = vunpack.c.0.s8 %v7946
        %v7948 = vlaneseq
        %v7949 = vshrl.u32 %v7948, 7
        %v7950 = vsub.s32 %v7947, %v7949
        %v7951 = vrot.slane %v7929, %v7950
        %v7953 = vunpack.c.l.s4 1966171168
        %v7954 = vunpack.c.0.s8 %v7953
        %v7955 = vlaneseq
        %v7956 = vshrl.u32 %v7955, 7
        %v7957 = vsub.s32 %v7954, %v7956
        %v7958 = vrot.slane %v7930, %v7957
        %v7959 = vcombine.low %v7937, %v7944
        %v7960 = vcombine.low %v7951, %v7958
        %v7962 = vunpack.c.l.s4 1966171168
        %v7963 = vunpack.c.0.s8 %v7962
        %v7964 = vlaneseq
        %v7965 = vshrl.u32 %v7964, 7
        %v7966 = vsub.s32 %v7963, %v7965
        %v7967 = vrot.slane %v7959, %v7966
        %v7969 = vunpack.c.l.s4 1966171168
        %v7970 = vunpack.c.0.s8 %v7969
        %v7971 = vlaneseq
        %v7972 = vshrl.u32 %v7971, 7
        %v7973 = vsub.s32 %v7970, %v7972
        %v7974 = vrot.slane %v7960, %v7973
        %v7975 = vcombine.low %v7967, %v7974
        %v7976 = vcombine.low %v5486, %v5488
        %v7977 = vcombine.low %v5557, %v5559
        %v7978 = vcombine.low %v5628, %v5630
        %v7979 = vcombine.low %v5699, %v5701
        %v7981 = vunpack.c.l.s4 1966171168
        %v7982 = vunpack.c.0.s8 %v7981
        %v7983 = vlaneseq
        %v7984 = vshrl.u32 %v7983, 7
        %v7985 = vsub.s32 %v7982, %v7984
        %v7986 = vrot.slane %v7976, %v7985
        %v7988 = vunpack.c.l.s4 1966171168
        %v7989 = vunpack.c.0.s8 %v7988
        %v7990 = vlaneseq
        %v7991 = vshrl.u32 %v7990, 7
        %v7992 = vsub.s32 %v7989, %v7991
        %v7993 = vrot.slane %v7977, %v7992
        %v7995 = vunpack.c.l.s4 1966171168
        %v7996 = vunpack.c.0.s8 %v7995
        %v7997 = vlaneseq
        %v7998 = vshrl.u32 %v7997, 7
        %v7999 = vsub.s32 %v7996, %v7998
        %v8000 = vrot.slane %v7978, %v7999
        %v8002 = vunpack.c.l.s4 1966171168
        %v8003 = vunpack.c.0.s8 %v8002
        %v8004 = vlaneseq
        %v8005 = vshrl.u32 %v8004, 7
        %v8006 = vsub.s32 %v8003, %v8005
        %v8007 = vrot.slane %v7979, %v8006
        %v8008 = vcombine.low %v7986, %v7993
        %v8009 = vcombine.low %v8000, %v8007
        %v8011 = vunpack.c.l.s4 1966171168
        %v8012 = vunpack.c.0.s8 %v8011
        %v8013 = vlaneseq
        %v8014 = vshrl.u32 %v8013, 7
        %v8015 = vsub.s32 %v8012, %v8014
        %v8016 = vrot.slane %v8008, %v8015
        %v8018 = vunpack.c.l.s4 1966171168
        %v8019 = vunpack.c.0.s8 %v8018
        %v8020 = vlaneseq
        %v8021 = vshrl.u32 %v8020, 7
        %v8022 = vsub.s32 %v8019, %v8021
        %v8023 = vrot.slane %v8009, %v8022
        %v8024 = vcombine.low %v8016, %v8023
        %v8025 = vcombine.low %v5770, %v5772
        %v8026 = vcombine.low %v5841, %v5843
        %v8027 = vcombine.low %v5912, %v5914
        %v8028 = vcombine.low %v5983, %v5985
        %v8030 = vunpack.c.l.s4 1966171168
        %v8031 = vunpack.c.0.s8 %v8030
        %v8032 = vlaneseq
        %v8033 = vshrl.u32 %v8032, 7
        %v8034 = vsub.s32 %v8031, %v8033
        %v8035 = vrot.slane %v8025, %v8034
        %v8037 = vunpack.c.l.s4 1966171168
        %v8038 = vunpack.c.0.s8 %v8037
        %v8039 = vlaneseq
        %v8040 = vshrl.u32 %v8039, 7
        %v8041 = vsub.s32 %v8038, %v8040
        %v8042 = vrot.slane %v8026, %v8041
        %v8044 = vunpack.c.l.s4 1966171168
        %v8045 = vunpack.c.0.s8 %v8044
        %v8046 = vlaneseq
        %v8047 = vshrl.u32 %v8046, 7
        %v8048 = vsub.s32 %v8045, %v8047
        %v8049 = vrot.slane %v8027, %v8048
        %v8051 = vunpack.c.l.s4 1966171168
        %v8052 = vunpack.c.0.s8 %v8051
        %v8053 = vlaneseq
        %v8054 = vshrl.u32 %v8053, 7
        %v8055 = vsub.s32 %v8052, %v8054
        %v8056 = vrot.slane %v8028, %v8055
        %v8057 = vcombine.low %v8035, %v8042
        %v8058 = vcombine.low %v8049, %v8056
        %v8060 = vunpack.c.l.s4 1966171168
        %v8061 = vunpack.c.0.s8 %v8060
        %v8062 = vlaneseq
        %v8063 = vshrl.u32 %v8062, 7
        %v8064 = vsub.s32 %v8061, %v8063
        %v8065 = vrot.slane %v8057, %v8064
        %v8067 = vunpack.c.l.s4 1966171168
        %v8068 = vunpack.c.0.s8 %v8067
        %v8069 = vlaneseq
        %v8070 = vshrl.u32 %v8069, 7
        %v8071 = vsub.s32 %v8068, %v8070
        %v8072 = vrot.slane %v8058, %v8071
        %v8073 = vcombine.low %v8065, %v8072
        %v8074 = vcombine.low %v6054, %v6056
        %v8075 = vcombine.low %v6125, %v6127
        %v8076 = vcombine.low %v6196, %v6198
        %v8077 = vcombine.low %v6267, %v6269
        %v8079 = vunpack.c.l.s4 1966171168
        %v8080 = vunpack.c.0.s8 %v8079
        %v8081 = vlaneseq
        %v8082 = vshrl.u32 %v8081, 7
        %v8083 = vsub.s32 %v8080, %v8082
        %v8084 = vrot.slane %v8074, %v8083
        %v8086 = vunpack.c.l.s4 1966171168
        %v8087 = vunpack.c.0.s8 %v8086
        %v8088 = vlaneseq
        %v8089 = vshrl.u32 %v8088, 7
        %v8090 = vsub.s32 %v8087, %v8089
        %v8091 = vrot.slane %v8075, %v8090
        %v8093 = vunpack.c.l.s4 1966171168
        %v8094 = vunpack.c.0.s8 %v8093
        %v8095 = vlaneseq
        %v8096 = vshrl.u32 %v8095, 7
        %v8097 = vsub.s32 %v8094, %v8096
        %v8098 = vrot.slane %v8076, %v8097
        %v8100 = vunpack.c.l.s4 1966171168
        %v8101 = vunpack.c.0.s8 %v8100
        %v8102 = vlaneseq
        %v8103 = vshrl.u32 %v8102, 7
        %v8104 = vsub.s32 %v8101, %v8103
        %v8105 = vrot.slane %v8077, %v8104
        %v8106 = vcombine.low %v8084, %v8091
        %v8107 = vcombine.low %v8098, %v8105
        %v8109 = vunpack.c.l.s4 1966171168
        %v8110 = vunpack.c.0.s8 %v8109
        %v8111 = vlaneseq
        %v8112 = vshrl.u32 %v8111, 7
        %v8113 = vsub.s32 %v8110, %v8112
        %v8114 = vrot.slane %v8106, %v8113
        %v8116 = vunpack.c.l.s4 1966171168
        %v8117 = vunpack.c.0.s8 %v8116
        %v8118 = vlaneseq
        %v8119 = vshrl.u32 %v8118, 7
        %v8120 = vsub.s32 %v8117, %v8119
        %v8121 = vrot.slane %v8107, %v8120
        %v8122 = vcombine.low %v8114, %v8121
        %v8123 = vcombine.low %v6338, %v6340
        %v8124 = vcombine.low %v6409, %v6411
        %v8125 = vcombine.low %v6480, %v6482
        %v8126 = vcombine.low %v6551, %v6553
        %v8128 = vunpack.c.l.s4 1966171168
        %v8129 = vunpack.c.0.s8 %v8128
        %v8130 = vlaneseq
        %v8131 = vshrl.u32 %v8130, 7
        %v8132 = vsub.s32 %v8129, %v8131
        %v8133 = vrot.slane %v8123, %v8132
        %v8135 = vunpack.c.l.s4 1966171168
        %v8136 = vunpack.c.0.s8 %v8135
        %v8137 = vlaneseq
        %v8138 = vshrl.u32 %v8137, 7
        %v8139 = vsub.s32 %v8136, %v8138
        %v8140 = vrot.slane %v8124, %v8139
        %v8142 = vunpack.c.l.s4 1966171168
        %v8143 = vunpack.c.0.s8 %v8142
        %v8144 = vlaneseq
        %v8145 = vshrl.u32 %v8144, 7
        %v8146 = vsub.s32 %v8143, %v8145
        %v8147 = vrot.slane %v8125, %v8146
        %v8149 = vunpack.c.l.s4 1966171168
        %v8150 = vunpack.c.0.s8 %v8149
        %v8151 = vlaneseq
        %v8152 = vshrl.u32 %v8151, 7
        %v8153 = vsub.s32 %v8150, %v8152
        %v8154 = vrot.slane %v8126, %v8153
        %v8155 = vcombine.low %v8133, %v8140
        %v8156 = vcombine.low %v8147, %v8154
        %v8158 = vunpack.c.l.s4 1966171168
        %v8159 = vunpack.c.0.s8 %v8158
        %v8160 = vlaneseq
        %v8161 = vshrl.u32 %v8160, 7
        %v8162 = vsub.s32 %v8159, %v8161
        %v8163 = vrot.slane %v8155, %v8162
        %v8165 = vunpack.c.l.s4 1966171168
        %v8166 = vunpack.c.0.s8 %v8165
        %v8167 = vlaneseq
        %v8168 = vshrl.u32 %v8167, 7
        %v8169 = vsub.s32 %v8166, %v8168
        %v8170 = vrot.slane %v8156, %v8169
        %v8171 = vcombine.low %v8163, %v8170
        %v8172 = vcombine.low %v6622, %v6624
        %v8173 = vcombine.low %v6693, %v6695
        %v8174 = vcombine.low %v6764, %v6766
        %v8175 = vcombine.low %v6835, %v6837
        %v8177 = vunpack.c.l.s4 1966171168
        %v8178 = vunpack.c.0.s8 %v8177
        %v8179 = vlaneseq
        %v8180 = vshrl.u32 %v8179, 7
        %v8181 = vsub.s32 %v8178, %v8180
        %v8182 = vrot.slane %v8172, %v8181
        %v8184 = vunpack.c.l.s4 1966171168
        %v8185 = vunpack.c.0.s8 %v8184
        %v8186 = vlaneseq
        %v8187 = vshrl.u32 %v8186, 7
        %v8188 = vsub.s32 %v8185, %v8187
        %v8189 = vrot.slane %v8173, %v8188
        %v8191 = vunpack.c.l.s4 1966171168
        %v8192 = vunpack.c.0.s8 %v8191
        %v8193 = vlaneseq
        %v8194 = vshrl.u32 %v8193, 7
        %v8195 = vsub.s32 %v8192, %v8194
        %v8196 = vrot.slane %v8174, %v8195
        %v8198 = vunpack.c.l.s4 1966171168
        %v8199 = vunpack.c.0.s8 %v8198
        %v8200 = vlaneseq
        %v8201 = vshrl.u32 %v8200, 7
        %v8202 = vsub.s32 %v8199, %v8201
        %v8203 = vrot.slane %v8175, %v8202
        %v8204 = vcombine.low %v8182, %v8189
        %v8205 = vcombine.low %v8196, %v8203
        %v8207 = vunpack.c.l.s4 1966171168
        %v8208 = vunpack.c.0.s8 %v8207
        %v8209 = vlaneseq
        %v8210 = vshrl.u32 %v8209, 7
        %v8211 = vsub.s32 %v8208, %v8210
        %v8212 = vrot.slane %v8204, %v8211
        %v8214 = vunpack.c.l.s4 1966171168
        %v8215 = vunpack.c.0.s8 %v8214
        %v8216 = vlaneseq
        %v8217 = vshrl.u32 %v8216, 7
        %v8218 = vsub.s32 %v8215, %v8217
        %v8219 = vrot.slane %v8205, %v8218
        %v8220 = vcombine.low %v8212, %v8219
        %v8221 = vcombine.low %v6906, %v6908
        %v8222 = vcombine.low %v6977, %v6979
        %v8223 = vcombine.low %v7048, %v7050
        %v8224 = vcombine.low %v7119, %v7121
        %v8226 = vunpack.c.l.s4 1966171168
        %v8227 = vunpack.c.0.s8 %v8226
        %v8228 = vlaneseq
        %v8229 = vshrl.u32 %v8228, 7
        %v8230 = vsub.s32 %v8227, %v8229
        %v8231 = vrot.slane %v8221, %v8230
        %v8233 = vunpack.c.l.s4 1966171168
        %v8234 = vunpack.c.0.s8 %v8233
        %v8235 = vlaneseq
        %v8236 = vshrl.u32 %v8235, 7
        %v8237 = vsub.s32 %v8234, %v8236
        %v8238 = vrot.slane %v8222, %v8237
        %v8240 = vunpack.c.l.s4 1966171168
        %v8241 = vunpack.c.0.s8 %v8240
        %v8242 = vlaneseq
        %v8243 = vshrl.u32 %v8242, 7
        %v8244 = vsub.s32 %v8241, %v8243
        %v8245 = vrot.slane %v8223, %v8244
        %v8247 = vunpack.c.l.s4 1966171168
        %v8248 = vunpack.c.0.s8 %v8247
        %v8249 = vlaneseq
        %v8250 = vshrl.u32 %v8249, 7
        %v8251 = vsub.s32 %v8248, %v8250
        %v8252 = vrot.slane %v8224, %v8251
        %v8253 = vcombine.low %v8231, %v8238
        %v8254 = vcombine.low %v8245, %v8252
        %v8256 = vunpack.c.l.s4 1966171168
        %v8257 = vunpack.c.0.s8 %v8256
        %v8258 = vlaneseq
        %v8259 = vshrl.u32 %v8258, 7
        %v8260 = vsub.s32 %v8257, %v8259
        %v8261 = vrot.slane %v8253, %v8260
        %v8263 = vunpack.c.l.s4 1966171168
        %v8264 = vunpack.c.0.s8 %v8263
        %v8265 = vlaneseq
        %v8266 = vshrl.u32 %v8265, 7
        %v8267 = vsub.s32 %v8264, %v8266
        %v8268 = vrot.slane %v8254, %v8267
        %v8269 = vcombine.low %v8261, %v8268
        %v8270 = vcombine.low %v7190, %v7192
        %v8271 = vcombine.low %v7261, %v7263
        %v8272 = vcombine.low %v7332, %v7334
        %v8273 = vcombine.low %v7403, %v7405
        %v8275 = vunpack.c.l.s4 1966171168
        %v8276 = vunpack.c.0.s8 %v8275
        %v8277 = vlaneseq
        %v8278 = vshrl.u32 %v8277, 7
        %v8279 = vsub.s32 %v8276, %v8278
        %v8280 = vrot.slane %v8270, %v8279
        %v8282 = vunpack.c.l.s4 1966171168
        %v8283 = vunpack.c.0.s8 %v8282
        %v8284 = vlaneseq
        %v8285 = vshrl.u32 %v8284, 7
        %v8286 = vsub.s32 %v8283, %v8285
        %v8287 = vrot.slane %v8271, %v8286
        %v8289 = vunpack.c.l.s4 1966171168
        %v8290 = vunpack.c.0.s8 %v8289
        %v8291 = vlaneseq
        %v8292 = vshrl.u32 %v8291, 7
        %v8293 = vsub.s32 %v8290, %v8292
        %v8294 = vrot.slane %v8272, %v8293
        %v8296 = vunpack.c.l.s4 1966171168
        %v8297 = vunpack.c.0.s8 %v8296
        %v8298 = vlaneseq
        %v8299 = vshrl.u32 %v8298, 7
        %v8300 = vsub.s32 %v8297, %v8299
        %v8301 = vrot.slane %v8273, %v8300
        %v8302 = vcombine.low %v8280, %v8287
        %v8303 = vcombine.low %v8294, %v8301
        %v8305 = vunpack.c.l.s4 1966171168
        %v8306 = vunpack.c.0.s8 %v8305
        %v8307 = vlaneseq
        %v8308 = vshrl.u32 %v8307, 7
        %v8309 = vsub.s32 %v8306, %v8308
        %v8310 = vrot.slane %v8302, %v8309
        %v8312 = vunpack.c.l.s4 1966171168
        %v8313 = vunpack.c.0.s8 %v8312
        %v8314 = vlaneseq
        %v8315 = vshrl.u32 %v8314, 7
        %v8316 = vsub.s32 %v8313, %v8315
        %v8317 = vrot.slane %v8303, %v8316
        %v8318 = vcombine.low %v8310, %v8317
        %8335 = vst [vmem:[%s398] sm:$0xff] %v7583
        %8336 = vst [vmem:[%s398 + $0x8] sm:$0xff] %v7632
        %8337 = vst [vmem:[%s398 + $0x10] sm:$0xff] %v7681
        %8338 = vst [vmem:[%s398 + $0x18] sm:$0xff] %v7730
        %8339 = vst [vmem:[%s398 + $0x20] sm:$0xff] %v7779
        %8340 = vst [vmem:[%s398 + $0x28] sm:$0xff] %v7828
        %8341 = vst [vmem:[%s398 + $0x30] sm:$0xff] %v7877
        %8342 = vst [vmem:[%s398 + $0x38] sm:$0xff] %v7926
        %8343 = vst [vmem:[%s398 + $0x40] sm:$0xff] %v7975
        %8344 = vst [vmem:[%s398 + $0x48] sm:$0xff] %v8024
        %8345 = vst [vmem:[%s398 + $0x50] sm:$0xff] %v8073
        %8346 = vst [vmem:[%s398 + $0x58] sm:$0xff] %v8122
        %8347 = vst [vmem:[%s398 + $0x60] sm:$0xff] %v8171
        %8348 = vst [vmem:[%s398 + $0x68] sm:$0xff] %v8220
        %8349 = vst [vmem:[%s398 + $0x70] sm:$0xff] %v8269
        %8350 = vst [vmem:[%s398 + $0x78] sm:$0xff] %v8318
        %s8351 = sand.u32 %s192, 1
        %s8352 = scalar_lea.sflag [#allocation4], %s8351
        %s8353 = sand.u32 %s192, 1
        %s8354 = smul.addr %s8353, 128
        %s8355 = scalar_lea.vmem [#allocation14], %s8354
        // Predicated region
        $region77: #{tpu_custom_call.1} parent=47 // pred_check
          %p8356 = pneg %p202
        $region78: #{tpu_custom_call.1} parent=47 // pred_check_branch
          %8358 = sbr.rel (%p8356) target = $region80
        $region79: #{tpu_custom_call.1} parent=47 // pred_region
          %s8359 = smul.u32 128, %s27
          %s8361 = ssub.s32 2048, 2048
          %8362 = vsyncadd %s8352, %s8361
          %s8363 = smul.addr %s8359, 16
          %s8364 = scalar_lea.hbm %s7, %s8363
          %s8366 = sshll.u32 %s8355, 4
          %s8367 = int_to_ptr.vmem [resolvable:$true] %s8366
          %8369 = dma.vmem_to_hbm [thread:$0]  %s8367, 2048, %s8364, %s8352
        $region80: #{tpu_custom_call.1} parent=47 // pred_fallthru
          _
      $region48: #{tpu_custom_call.1} parent=5 // pred_fallthru
        _
      %p8370 = scmp.le.s32.totalorder 2, %s22
      // Predicated region
      $region81: #{tpu_custom_call.1} parent=5 // pred_check
        %p8371 = pneg %p8370
      $region82: #{tpu_custom_call.1} parent=5 // pred_check_branch
        %8373 = sbr.rel (%p8371) target = $region84
      $region83: #{tpu_custom_call.1} parent=5 // pred_region
        %s8374 = ssub.s32 %s22, 2
        // Predicated region
        $region85: #{tpu_custom_call.1} parent=83 // pred_check
          %p8375 = pneg %p208
        $region86: #{tpu_custom_call.1} parent=83 // pred_check_branch
          %8377 = sbr.rel (%p8375) target = $region88
        $region87: #{tpu_custom_call.1} parent=83 // pred_region
          %s8378 = sand.u32 %s193, 1
          %s8379 = scalar_lea.sflag [#allocation4], %s8378
          %s8380 = sand.u32 %s193, 1
          %s8381 = smul.addr %s8380, 128
          %s8382 = scalar_lea.vmem [#allocation14], %s8381
          %8383 = dma.done %s8379, 2048
        $region88: #{tpu_custom_call.1} parent=83 // pred_fallthru
          _
      $region84: #{tpu_custom_call.1} parent=5 // pred_fallthru
        _
    $region6: #{tpu_custom_call.1} parent=1 // loop_footer
      %s26 = sadd.s32 1, %s22
    $region7: #{tpu_custom_call.1} parent=1 // loop_footer_branch
      %21 = sbr.rel target = $region3
    $region8: #{tpu_custom_call.1} parent=1 // loop_exit
      _
    %8384 = vsyncpa [#allocation3], 1
    %s8385 = scalar_lea.sflag [#allocation3], 1
    %8386 = vsyncpa %s8385, 1
    %8387 = vsyncpa [#allocation6], 1
    %8388 = vsyncpa [#allocation9], 1
    %8389 = vsyncpa [#allocation12], 1
    %s8390 = scalar_lea.sflag [#allocation12], 1
    %8391 = vsyncpa %s8390, 1
    %8392 = vsyncpa [#allocation4], 1
    %s8393 = scalar_lea.sflag [#allocation4], 1
    %8394 = vsyncpa %s8393, 1

</llo_original>
